<compile_context>
chip_gen: v6e
topology: v6e:2x2x1
jax: 0.10.0
libtpu: 0.0.40
codegen_flags: <defaults>
</compile_context>

<pallas_src>
import math
import numpy as np
import jax
import jax.numpy as jnp
from jax.experimental import pallas as pl
from jax.experimental.pallas import tpu as pltpu

# ----------------------- small synthetic configuration -----------------------
IMG_SIZE = 16
PATCH = 4
IN_CHANS = 3
EMBED_DIM = 32
DEPTH = 2
NUM_HEADS = 4
DEC_EMBED_DIM = 16
DEC_DEPTH = 1
DEC_NUM_HEADS = 4
MLP_RATIO = 4.0
CODEBOOK_SIZE = 128      # original module uses 8192; kept small for the test
GAMMA_INIT = 0.1         # gammas_init_values (LayerScale)
LN_EPS = 1e-5            # nn.LayerNorm default eps

GRID_HW = IMG_SIZE // PATCH
NUM_PATCHES = GRID_HW * GRID_HW
PATCH_DIM = IN_CHANS * PATCH * PATCH
BATCH = 2
VIS = 9                  # number of visible patches selected by `one_hot`
S_ENC = 1 + VIS          # encoder sequence length (cls + visible)
S_DEC = 1 + NUM_PATCHES  # decoder sequence length (cls + all patches)


# ------------------------- sincos positional embedding -----------------------
def get_1d_sincos_pos_embed_from_grid(embed_dim, pos):
    assert embed_dim % 2 == 0
    omega = np.arange(embed_dim // 2, dtype=np.float32)
    omega /= embed_dim / 2.0
    omega = 1.0 / 10000 ** omega
    pos = pos.reshape(-1)
    out = np.einsum('m,d->md', pos, omega)
    return np.concatenate([np.sin(out), np.cos(out)], axis=1)


def get_2d_sincos_pos_embed_from_grid(embed_dim, grid):
    assert embed_dim % 2 == 0
    emb_h = get_1d_sincos_pos_embed_from_grid(embed_dim // 2, grid[0])
    emb_w = get_1d_sincos_pos_embed_from_grid(embed_dim // 2, grid[1])
    return np.concatenate([emb_h, emb_w], axis=1)


def get_2d_sincos_pos_embed(embed_dim, grid_size, cls_token=False):
    grid_h = np.arange(grid_size, dtype=np.float32)
    grid_w = np.arange(grid_size, dtype=np.float32)
    grid = np.meshgrid(grid_w, grid_h)
    grid = np.stack(grid, axis=0).reshape([2, 1, grid_size, grid_size])
    pos_embed = get_2d_sincos_pos_embed_from_grid(embed_dim, grid)
    if cls_token:
        pos_embed = np.concatenate([np.zeros([1, embed_dim]), pos_embed], axis=0)
    return pos_embed


# ------------------------------ in-kernel helpers -----------------------------
def _layernorm(x, w, b):
    mu = jnp.mean(x, axis=-1, keepdims=True)
    var = jnp.mean(jnp.square(x - mu), axis=-1, keepdims=True)
    return (x - mu) * jax.lax.rsqrt(var + LN_EPS) * w + b


def _gelu(x):
    # tanh-form GELU -> runs on the EUP slot (perf review). Differs from
    # torch's exact-erf GELU by <~1e-3 relative; acceptable for this forward.
    c = math.sqrt(2.0 / math.pi)
    return 0.5 * x * (1.0 + jnp.tanh(c * (x + 0.044715 * x * x * x)))


def _softmax_last(x):
    m = jnp.max(x, axis=-1, keepdims=True)
    e = jnp.exp(x - m)
    return e * pl.reciprocal(jnp.sum(e, axis=-1, keepdims=True), approx=True)


def _block_stack(x, depth, num_heads, vecs, qkvw, qkvb, projw, fc1w, fc1b, fc2w):
    """Run `depth` ViT blocks on the (S, D) f32 activation x.

    Per-depth packed weights (refs):
      vecs  (depth*8, 1, D)  rows: ln1_w, ln1_b, gamma1, proj_b,
                                   ln2_w, ln2_b, gamma2, fc2_b   (f32)
      qkvw  (depth, D, 3D) bf16    qkvb (depth, 1, 3D) f32
      projw (depth, D, D)  bf16
      fc1w  (depth, D, HID) bf16   fc1b (depth, 1, HID) f32
      fc2w  (depth, HID, D) bf16

    NOTE: at real MAE depth (12/24) the depth loop should become an
    "arbitrary" grid axis with per-block weight BlockSpecs (per perf review);
    at DEPTH<=2 a static unrolled loop is fine.
    """
    D = x.shape[-1]
    hd = D // num_heads
    scale = 1.0 / math.sqrt(hd)
    bf16 = jnp.bfloat16
    f32 = jnp.float32

    for d in range(depth):
        base = d * 8
        ln1_w, ln1_b = vecs[base + 0], vecs[base + 1]
        gamma1, proj_b = vecs[base + 2], vecs[base + 3]
        ln2_w, ln2_b = vecs[base + 4], vecs[base + 5]
        gamma2, fc2_b = vecs[base + 6], vecs[base + 7]

        # --- attention branch: ONE fused qkv matmul, ONE output projection ---
        h = _layernorm(x, ln1_w, ln1_b)
        qkv = jnp.dot(h.astype(bf16), qkvw[d],
                      preferred_element_type=f32) + qkvb[d]          # (S, 3D)
        heads = []
        for hh in range(num_heads):
            q = qkv[:, hh * hd:(hh + 1) * hd]
            k = qkv[:, D + hh * hd:D + (hh + 1) * hd]
            v = qkv[:, 2 * D + hh * hd:2 * D + (hh + 1) * hd]
            att = jax.lax.dot_general(q * scale, k, (((1,), (1,)), ((), ())),
                                      preferred_element_type=f32)    # (S, S)
            att = _softmax_last(att)
            heads.append(jnp.dot(att, v, preferred_element_type=f32))
        o = jnp.concatenate(heads, axis=-1)                           # (S, D)
        o = jnp.dot(o.astype(bf16), projw[d],
                    preferred_element_type=f32) + proj_b
        x = x + gamma1 * o                       # LayerScale residual (gamma1)

        # --- MLP branch ---
        h2 = _layernorm(x, ln2_w, ln2_b)
        m = _gelu(jnp.dot(h2.astype(bf16), fc1w[d],
                          preferred_element_type=f32) + fc1b[d])
        m = jnp.dot(m.astype(bf16), fc2w[d],
                    preferred_element_type=f32) + fc2_b
        x = x + gamma2 * m                       # LayerScale residual (gamma2)
    return x


# --------------------------- fully fused MAE kernel ---------------------------
def mae_kernel(patch_ref, restore_ref,
               pw_ref, pb_ref, cls_ref,
               evecs_ref, eqkvw_ref, eqkvb_ref, eprojw_ref,
               efc1w_ref, efc1b_ref, efc2w_ref, enw_ref, enb_ref,
               dew_ref, deb_ref, mask_ref, dpos_ref,
               dvecs_ref, dqkvw_ref, dqkvb_ref, dprojw_ref,
               dfc1w_ref, dfc1b_ref, dfc2w_ref, dnw_ref, dnb_ref,
               predw_ref, predb_ref,
               out_ref):
    f32 = jnp.float32
    bf16 = jnp.bfloat16

    # ------------------------------ encoder ----------------------------------
    # Visible rows were gathered host-side; only VIS rows are DMA'd per sample.
    pe = jnp.dot(patch_ref[0].astype(bf16), pw_ref[...],
                 preferred_element_type=f32) + pb_ref[...]            # (VIS, D)
    x = jnp.concatenate([cls_ref[...], pe], axis=0)                   # (S_ENC, D)
    x = _block_stack(x, DEPTH, NUM_HEADS, evecs_ref, eqkvw_ref, eqkvb_ref,
                     eprojw_ref, efc1w_ref, efc1b_ref, efc2w_ref)
    lat = _layernorm(x, enw_ref[...], enb_ref[...])                   # (S_ENC, D)

    # ------------------------------ decoder ----------------------------------
    enc = jnp.dot(lat.astype(bf16), dew_ref[...],
                  preferred_element_type=f32) + deb_ref[...]          # (S_ENC, Ddec)
    shuffled = jnp.concatenate(
        [enc[1:, :],
         jnp.broadcast_to(mask_ref[...], (NUM_PATCHES - VIS, DEC_EMBED_DIM))],
        axis=0)                                                        # (L, Ddec)
    # Un-shuffle: row i <- shuffled[restore[i]].  Build the permutation one-hot
    # in-register from the int32 indices (no L*L f32 DMA, per perf review).
    col = jax.lax.broadcasted_iota(jnp.int32, (NUM_PATCHES, NUM_PATCHES), 1)
    perm = (col == restore_ref[0]).astype(f32)                         # (L, L)
    gathered = jnp.dot(perm, shuffled, preferred_element_type=f32)     # (L, Ddec)

    xd = jnp.concatenate([enc[0:1, :], dpos_ref[...] + gathered], axis=0)  # (S_DEC, Ddec)
    xd = _block_stack(xd, DEC_DEPTH, DEC_NUM_HEADS, dvecs_ref, dqkvw_ref,
                      dqkvb_ref, dprojw_ref, dfc1w_ref, dfc1b_ref, dfc2w_ref)
    # drop cls before norm+pred (per-row ops -> identical result for kept rows)
    xd = _layernorm(xd[1:, :], dnw_ref[...], dnb_ref[...])
    out_ref[0] = jnp.dot(xd.astype(bf16), predw_ref[...],
                         preferred_element_type=f32) + predb_ref[...]  # (L, CODEBOOK)


# ------------------------------ pallas wrapper --------------------------------
def _w_spec(a):
    nd = a.ndim
    return pl.BlockSpec(a.shape, lambda n, _nd=nd: (0,) * _nd)


def mae_fused_call(patches_vis, restore_idx, p):
    N = patches_vis.shape[0]
    weights = [p['patch_w'], p['patch_b'], p['cls_token'],
               p['enc_vecs'], p['enc_qkvw'], p['enc_qkvb'], p['enc_projw'],
               p['enc_fc1w'], p['enc_fc1b'], p['enc_fc2w'],
               p['enc_norm_w'], p['enc_norm_b'],
               p['dec_embed_w'], p['dec_embed_b'], p['mask_token'], p['dec_pos_embed'],
               p['dec_vecs'], p['dec_qkvw'], p['dec_qkvb'], p['dec_projw'],
               p['dec_fc1w'], p['dec_fc1b'], p['dec_fc2w'],
               p['dec_norm_w'], p['dec_norm_b'],
               p['dec_pred_w'], p['dec_pred_b']]
    in_specs = [pl.BlockSpec((1, VIS, PATCH_DIM), lambda n: (n, 0, 0)),
                pl.BlockSpec((1, NUM_PATCHES, 1), lambda n: (n, 0, 0))]
    in_specs += [_w_spec(w) for w in weights]
    return pl.pallas_call(
        mae_kernel,
        out_shape=jax.ShapeDtypeStruct((N, NUM_PATCHES, CODEBOOK_SIZE), jnp.float32),
        grid=(N,),
        in_specs=in_specs,
        out_specs=pl.BlockSpec((1, NUM_PATCHES, CODEBOOK_SIZE), lambda n: (n, 0, 0)),
        compiler_params=pltpu.CompilerParams(dimension_semantics=("parallel",)),
    )(patches_vis, restore_idx, *weights)


# ------------------------------- parameters -----------------------------------
def init_params(key):
    keys = iter(jax.random.split(key, 64))
    bf16 = jnp.bfloat16

    def xavier(shape):
        fan_in, fan_out = shape
        lim = math.sqrt(6.0 / (fan_in + fan_out))
        return jax.random.uniform(next(keys), shape, jnp.float32, -lim, lim)

    def block_params(dim):
        hid = int(dim * MLP_RATIO)
        return dict(
            ln1_w=jnp.ones((1, dim), jnp.float32),
            ln1_b=jnp.zeros((1, dim), jnp.float32),
            qkv_w=xavier((dim, 3 * dim)),
            qkv_b=jnp.zeros((1, 3 * dim), jnp.float32),
            proj_w=xavier((dim, dim)),
            proj_b=jnp.zeros((1, dim), jnp.float32),
            gamma1=jnp.full((1, dim), GAMMA_INIT, jnp.float32),
            ln2_w=jnp.ones((1, dim), jnp.float32),
            ln2_b=jnp.zeros((1, dim), jnp.float32),
            fc1_w=xavier((dim, hid)),
            fc1_b=jnp.zeros((1, hid), jnp.float32),
            fc2_w=xavier((hid, dim)),
            fc2_b=jnp.zeros((1, dim), jnp.float32),
            gamma2=jnp.full((1, dim), GAMMA_INIT, jnp.float32),
        )

    def pack_blocks(blocks, prefix):
        vecs, qkvw, qkvb, projw, fc1w, fc1b, fc2w = ([] for _ in range(7))
        for b in blocks:
            vecs += [b['ln1_w'], b['ln1_b'], b['gamma1'], b['proj_b'],
                     b['ln2_w'], b['ln2_b'], b['gamma2'], b['fc2_b']]
            qkvw.append(b['qkv_w']); qkvb.append(b['qkv_b'])
            projw.append(b['proj_w'])
            fc1w.append(b['fc1_w']); fc1b.append(b['fc1_b']); fc2w.append(b['fc2_w'])
        return {
            prefix + '_vecs': jnp.stack(vecs),                     # (depth*8, 1, dim) f32
            prefix + '_qkvw': jnp.stack(qkvw).astype(bf16),        # (depth, dim, 3*dim)
            prefix + '_qkvb': jnp.stack(qkvb),                     # (depth, 1, 3*dim) f32
            prefix + '_projw': jnp.stack(projw).astype(bf16),      # (depth, dim, dim)
            prefix + '_fc1w': jnp.stack(fc1w).astype(bf16),        # (depth, dim, hid)
            prefix + '_fc1b': jnp.stack(fc1b),                     # (depth, 1, hid) f32
            prefix + '_fc2w': jnp.stack(fc2w).astype(bf16),        # (depth, hid, dim)
        }

    enc_blocks = [block_params(EMBED_DIM) for _ in range(DEPTH)]
    dec_blocks = [block_params(DEC_EMBED_DIM) for _ in range(DEC_DEPTH)]

    params = dict(
        patch_w=xavier((PATCH_DIM, EMBED_DIM)).astype(bf16),
        patch_b=jnp.zeros((1, EMBED_DIM), jnp.float32),
        cls_token=0.02 * jax.random.normal(next(keys), (1, EMBED_DIM), jnp.float32),
        mask_token=0.02 * jax.random.normal(next(keys), (1, DEC_EMBED_DIM), jnp.float32),
        enc_norm_w=jnp.ones((1, EMBED_DIM), jnp.float32),
        enc_norm_b=jnp.zeros((1, EMBED_DIM), jnp.float32),
        dec_embed_w=xavier((EMBED_DIM, DEC_EMBED_DIM)).astype(bf16),
        dec_embed_b=jnp.zeros((1, DEC_EMBED_DIM), jnp.float32),
        dec_norm_w=jnp.ones((1, DEC_EMBED_DIM), jnp.float32),
        dec_norm_b=jnp.zeros((1, DEC_EMBED_DIM), jnp.float32),
        dec_pred_w=xavier((DEC_EMBED_DIM, CODEBOOK_SIZE)).astype(bf16),
        dec_pred_b=jnp.zeros((1, CODEBOOK_SIZE), jnp.float32),
        dec_pos_embed=jnp.asarray(
            get_2d_sincos_pos_embed(DEC_EMBED_DIM, GRID_HW, cls_token=False),
            jnp.float32),
    )
    params.update(pack_blocks(enc_blocks, 'enc'))
    params.update(pack_blocks(dec_blocks, 'dec'))
    return params


# --------------------------------- forward ------------------------------------
def mae_forward(params, img, one_hot, all_idx):
    N = img.shape[0]
    p, g = PATCH, GRID_HW

    # patchify (glue): NCHW -> (N, L, C*p*p), flattened as (c, ph, pw) to match
    # the Conv2d(kernel=stride=patch) weight flattening.
    patches = img.reshape(N, IN_CHANS, g, p, g, p)
    patches = patches.transpose(0, 2, 4, 1, 3, 5).reshape(N, NUM_PATCHES, PATCH_DIM)

    # visibility one-hot -> row indices; gather the VIS visible rows so only
    # those are DMA'd into the fused kernel (perf review: drop the one-hot
    # matmul and the full-L patch DMA).
    vis_idx = jnp.argmax(one_hot, axis=-1).astype(jnp.int32)            # (N, VIS)
    patches_vis = jnp.take_along_axis(patches, vis_idx[..., None], axis=1)

    # decoder un-shuffle indices (argsort is host glue on tiny ints); the
    # gather itself happens inside the fused kernel from these L int32/sample.
    restore = jnp.argsort(all_idx, axis=-1).astype(jnp.int32)[..., None]  # (N, L, 1)

    return mae_fused_call(patches_vis, restore, params)                 # (N, L, CODEBOOK)


# ----------------------------------- main --------------------------------------
if __name__ == "__main__":
    key = jax.random.PRNGKey(0)
    kp, ki, km = jax.random.split(key, 3)
    params = init_params(kp)

    img = jax.random.normal(ki, (BATCH, IN_CHANS, IMG_SIZE, IMG_SIZE), jnp.float32)
    # per-sample patch permutation: first VIS entries are the visible patches
    perms = jnp.stack([jax.random.permutation(k, NUM_PATCHES)
                       for k in jax.random.split(km, BATCH)]).astype(jnp.int32)
    all_idx = perms                                                   # (B, L)
    one_hot = jax.nn.one_hot(perms[:, :VIS], NUM_PATCHES, dtype=jnp.float32)

    pred = jax.jit(mae_forward)(params, img, one_hot, all_idx)
    jax.block_until_ready(pred)
    assert pred.shape == (BATCH, NUM_PATCHES, CODEBOOK_SIZE), pred.shape
    assert bool(jnp.all(jnp.isfinite(pred)))
    print("KERNEL_OK")
</pallas_src>

<mosaic_0001>
module attributes {stable_mosaic.version = 11 : i64} {
  func.func @mae_kernel(%arg0: i32, %arg1: memref<1x9x48xf32, #tpu.memory_space<vmem>>, %arg2: memref<1x16x1xi32, #tpu.memory_space<vmem>>, %arg3: memref<48x32xbf16, #tpu.memory_space<vmem>>, %arg4: memref<1x32xf32, #tpu.memory_space<vmem>>, %arg5: memref<1x32xf32, #tpu.memory_space<vmem>>, %arg6: memref<16x1x32xf32, #tpu.memory_space<vmem>>, %arg7: memref<2x32x96xbf16, #tpu.memory_space<vmem>>, %arg8: memref<2x1x96xf32, #tpu.memory_space<vmem>>, %arg9: memref<2x32x32xbf16, #tpu.memory_space<vmem>>, %arg10: memref<2x32x128xbf16, #tpu.memory_space<vmem>>, %arg11: memref<2x1x128xf32, #tpu.memory_space<vmem>>, %arg12: memref<2x128x32xbf16, #tpu.memory_space<vmem>>, %arg13: memref<1x32xf32, #tpu.memory_space<vmem>>, %arg14: memref<1x32xf32, #tpu.memory_space<vmem>>, %arg15: memref<32x16xbf16, #tpu.memory_space<vmem>>, %arg16: memref<1x16xf32, #tpu.memory_space<vmem>>, %arg17: memref<1x16xf32, #tpu.memory_space<vmem>>, %arg18: memref<16x16xf32, #tpu.memory_space<vmem>>, %arg19: memref<8x1x16xf32, #tpu.memory_space<vmem>>, %arg20: memref<1x16x48xbf16, #tpu.memory_space<vmem>>, %arg21: memref<1x1x48xf32, #tpu.memory_space<vmem>>, %arg22: memref<1x16x16xbf16, #tpu.memory_space<vmem>>, %arg23: memref<1x16x64xbf16, #tpu.memory_space<vmem>>, %arg24: memref<1x1x64xf32, #tpu.memory_space<vmem>>, %arg25: memref<1x64x16xbf16, #tpu.memory_space<vmem>>, %arg26: memref<1x16xf32, #tpu.memory_space<vmem>>, %arg27: memref<1x16xf32, #tpu.memory_space<vmem>>, %arg28: memref<16x128xbf16, #tpu.memory_space<vmem>>, %arg29: memref<1x128xf32, #tpu.memory_space<vmem>>, %arg30: memref<1x16x128xf32, #tpu.memory_space<vmem>>) attributes {dimension_semantics = [#tpu.dimension_semantics<parallel>], iteration_bounds = array<i64: 2>, scalar_prefetch = 0 : i64, scratch_operands = 0 : i64, tpu.core_type = #tpu.core_type<tc>, window_params = [{transform_indices = @transform_0, window_bounds = array<i64: 1, 9, 48>}, {transform_indices = @transform_1, window_bounds = array<i64: 1, 16, 1>}, {pipeline_mode = #tpu.pipeline_mode<synchronous>, transform_indices = @transform_2, window_bounds = array<i64: 48, 32>}, {pipeline_mode = #tpu.pipeline_mode<synchronous>, transform_indices = @transform_3, window_bounds = array<i64: 1, 32>}, {pipeline_mode = #tpu.pipeline_mode<synchronous>, transform_indices = @transform_4, window_bounds = array<i64: 1, 32>}, {pipeline_mode = #tpu.pipeline_mode<synchronous>, transform_indices = @transform_5, window_bounds = array<i64: 16, 1, 32>}, {pipeline_mode = #tpu.pipeline_mode<synchronous>, transform_indices = @transform_6, window_bounds = array<i64: 2, 32, 96>}, {pipeline_mode = #tpu.pipeline_mode<synchronous>, transform_indices = @transform_7, window_bounds = array<i64: 2, 1, 96>}, {pipeline_mode = #tpu.pipeline_mode<synchronous>, transform_indices = @transform_8, window_bounds = array<i64: 2, 32, 32>}, {pipeline_mode = #tpu.pipeline_mode<synchronous>, transform_indices = @transform_9, window_bounds = array<i64: 2, 32, 128>}, {pipeline_mode = #tpu.pipeline_mode<synchronous>, transform_indices = @transform_10, window_bounds = array<i64: 2, 1, 128>}, {pipeline_mode = #tpu.pipeline_mode<synchronous>, transform_indices = @transform_11, window_bounds = array<i64: 2, 128, 32>}, {pipeline_mode = #tpu.pipeline_mode<synchronous>, transform_indices = @transform_12, window_bounds = array<i64: 1, 32>}, {pipeline_mode = #tpu.pipeline_mode<synchronous>, transform_indices = @transform_13, window_bounds = array<i64: 1, 32>}, {pipeline_mode = #tpu.pipeline_mode<synchronous>, transform_indices = @transform_14, window_bounds = array<i64: 32, 16>}, {pipeline_mode = #tpu.pipeline_mode<synchronous>, transform_indices = @transform_15, window_bounds = array<i64: 1, 16>}, {pipeline_mode = #tpu.pipeline_mode<synchronous>, transform_indices = @transform_16, window_bounds = array<i64: 1, 16>}, {pipeline_mode = #tpu.pipeline_mode<synchronous>, transform_indices = @transform_17, window_bounds = array<i64: 16, 16>}, {pipeline_mode = #tpu.pipeline_mode<synchronous>, transform_indices = @transform_18, window_bounds = array<i64: 8, 1, 16>}, {pipeline_mode = #tpu.pipeline_mode<synchronous>, transform_indices = @transform_19, window_bounds = array<i64: 1, 16, 48>}, {pipeline_mode = #tpu.pipeline_mode<synchronous>, transform_indices = @transform_20, window_bounds = array<i64: 1, 1, 48>}, {pipeline_mode = #tpu.pipeline_mode<synchronous>, transform_indices = @transform_21, window_bounds = array<i64: 1, 16, 16>}, {pipeline_mode = #tpu.pipeline_mode<synchronous>, transform_indices = @transform_22, window_bounds = array<i64: 1, 16, 64>}, {pipeline_mode = #tpu.pipeline_mode<synchronous>, transform_indices = @transform_23, window_bounds = array<i64: 1, 1, 64>}, {pipeline_mode = #tpu.pipeline_mode<synchronous>, transform_indices = @transform_24, window_bounds = array<i64: 1, 64, 16>}, {pipeline_mode = #tpu.pipeline_mode<synchronous>, transform_indices = @transform_25, window_bounds = array<i64: 1, 16>}, {pipeline_mode = #tpu.pipeline_mode<synchronous>, transform_indices = @transform_26, window_bounds = array<i64: 1, 16>}, {pipeline_mode = #tpu.pipeline_mode<synchronous>, transform_indices = @transform_27, window_bounds = array<i64: 16, 128>}, {pipeline_mode = #tpu.pipeline_mode<synchronous>, transform_indices = @transform_28, window_bounds = array<i64: 1, 128>}, {transform_indices = @transform_29, window_bounds = array<i64: 1, 16, 128>}]} {
    %c0 = arith.constant 0 : index
    %c0_0 = arith.constant 0 : index
    %c0_1 = arith.constant 0 : index
    %0 = vector.load %arg1[%c0, %c0_0, %c0_1] : memref<1x9x48xf32, #tpu.memory_space<vmem>>, vector<1x9x48xf32>
    %1 = vector.shape_cast %0 : vector<1x9x48xf32> to vector<9x48xf32>
    %2 = arith.truncf %1 : vector<9x48xf32> to vector<9x48xbf16>
    %c0_2 = arith.constant 0 : index
    %c0_3 = arith.constant 0 : index
    %3 = vector.load %arg3[%c0_2, %c0_3] : memref<48x32xbf16, #tpu.memory_space<vmem>>, vector<48x32xbf16>
    %cst = arith.constant dense<0.000000e+00> : vector<9x32xf32>
    %4 = tpu.matmul %2, %3, %cst {dimension_numbers = #tpu.dot_dimension_numbers<[1], [0], [0], [1], [0, 0, 1, 1], [], []>} : vector<9x48xbf16>, vector<48x32xbf16>, vector<9x32xf32> -> vector<9x32xf32>
    %c0_4 = arith.constant 0 : index
    %c0_5 = arith.constant 0 : index
    %5 = vector.load %arg4[%c0_4, %c0_5] : memref<1x32xf32, #tpu.memory_space<vmem>>, vector<1x32xf32>
    %6 = vector.broadcast %5 : vector<1x32xf32> to vector<9x32xf32>
    %7 = arith.addf %4, %6 : vector<9x32xf32>
    %c0_6 = arith.constant 0 : index
    %c0_7 = arith.constant 0 : index
    %8 = vector.load %arg5[%c0_6, %c0_7] : memref<1x32xf32, #tpu.memory_space<vmem>>, vector<1x32xf32>
    %9 = tpu.concatenate %8, %7 in 0 : vector<1x32xf32>, vector<9x32xf32> -> vector<10x32xf32>
    %c0_8 = arith.constant 0 : index
    %c0_9 = arith.constant 0 : index
    %c0_10 = arith.constant 0 : index
    %10 = vector.load %arg6[%c0_8, %c0_9, %c0_10] : memref<16x1x32xf32, #tpu.memory_space<vmem>>, vector<1x1x32xf32>
    %11 = vector.shape_cast %10 : vector<1x1x32xf32> to vector<1x32xf32>
    %c1 = arith.constant 1 : index
    %c0_11 = arith.constant 0 : index
    %c0_12 = arith.constant 0 : index
    %12 = vector.load %arg6[%c1, %c0_11, %c0_12] : memref<16x1x32xf32, #tpu.memory_space<vmem>>, vector<1x1x32xf32>
    %13 = vector.shape_cast %12 : vector<1x1x32xf32> to vector<1x32xf32>
    %c2 = arith.constant 2 : index
    %c0_13 = arith.constant 0 : index
    %c0_14 = arith.constant 0 : index
    %14 = vector.load %arg6[%c2, %c0_13, %c0_14] : memref<16x1x32xf32, #tpu.memory_space<vmem>>, vector<1x1x32xf32>
    %15 = vector.shape_cast %14 : vector<1x1x32xf32> to vector<1x32xf32>
    %c3 = arith.constant 3 : index
    %c0_15 = arith.constant 0 : index
    %c0_16 = arith.constant 0 : index
    %16 = vector.load %arg6[%c3, %c0_15, %c0_16] : memref<16x1x32xf32, #tpu.memory_space<vmem>>, vector<1x1x32xf32>
    %17 = vector.shape_cast %16 : vector<1x1x32xf32> to vector<1x32xf32>
    %c4 = arith.constant 4 : index
    %c0_17 = arith.constant 0 : index
    %c0_18 = arith.constant 0 : index
    %18 = vector.load %arg6[%c4, %c0_17, %c0_18] : memref<16x1x32xf32, #tpu.memory_space<vmem>>, vector<1x1x32xf32>
    %19 = vector.shape_cast %18 : vector<1x1x32xf32> to vector<1x32xf32>
    %c5 = arith.constant 5 : index
    %c0_19 = arith.constant 0 : index
    %c0_20 = arith.constant 0 : index
    %20 = vector.load %arg6[%c5, %c0_19, %c0_20] : memref<16x1x32xf32, #tpu.memory_space<vmem>>, vector<1x1x32xf32>
    %21 = vector.shape_cast %20 : vector<1x1x32xf32> to vector<1x32xf32>
    %c6 = arith.constant 6 : index
    %c0_21 = arith.constant 0 : index
    %c0_22 = arith.constant 0 : index
    %22 = vector.load %arg6[%c6, %c0_21, %c0_22] : memref<16x1x32xf32, #tpu.memory_space<vmem>>, vector<1x1x32xf32>
    %23 = vector.shape_cast %22 : vector<1x1x32xf32> to vector<1x32xf32>
    %c7 = arith.constant 7 : index
    %c0_23 = arith.constant 0 : index
    %c0_24 = arith.constant 0 : index
    %24 = vector.load %arg6[%c7, %c0_23, %c0_24] : memref<16x1x32xf32, #tpu.memory_space<vmem>>, vector<1x1x32xf32>
    %25 = vector.shape_cast %24 : vector<1x1x32xf32> to vector<1x32xf32>
    %cst_25 = arith.constant dense<0.000000e+00> : vector<10xf32>
    %26 = vector.multi_reduction <add>, %9, %cst_25 [1] : vector<10x32xf32> to vector<10xf32>
    %27 = vector.shape_cast %26 : vector<10xf32> to vector<10x1xf32>
    %cst_26 = arith.constant 3.200000e+01 : f32
    %28 = vector.broadcast %cst_26 : f32 to vector<10x1xf32>
    %29 = arith.divf %27, %28 : vector<10x1xf32>
    %30 = vector.broadcast %29 : vector<10x1xf32> to vector<10x32xf32>
    %31 = arith.subf %9, %30 : vector<10x32xf32>
    %32 = arith.mulf %31, %31 : vector<10x32xf32>
    %cst_27 = arith.constant dense<0.000000e+00> : vector<10xf32>
    %33 = vector.multi_reduction <add>, %32, %cst_27 [1] : vector<10x32xf32> to vector<10xf32>
    %34 = vector.shape_cast %33 : vector<10xf32> to vector<10x1xf32>
    %cst_28 = arith.constant 3.200000e+01 : f32
    %35 = vector.broadcast %cst_28 : f32 to vector<10x1xf32>
    %36 = arith.divf %34, %35 : vector<10x1xf32>
    %37 = vector.broadcast %29 : vector<10x1xf32> to vector<10x32xf32>
    %38 = arith.subf %9, %37 : vector<10x32xf32>
    %cst_29 = arith.constant 9.99999974E-6 : f32
    %39 = vector.broadcast %cst_29 : f32 to vector<10x1xf32>
    %40 = arith.addf %36, %39 : vector<10x1xf32>
    %41 = math.rsqrt %40 : vector<10x1xf32>
    %42 = vector.broadcast %41 : vector<10x1xf32> to vector<10x32xf32>
    %43 = arith.mulf %38, %42 : vector<10x32xf32>
    %44 = vector.broadcast %11 : vector<1x32xf32> to vector<10x32xf32>
    %45 = arith.mulf %43, %44 : vector<10x32xf32>
    %46 = vector.broadcast %13 : vector<1x32xf32> to vector<10x32xf32>
    %47 = arith.addf %45, %46 : vector<10x32xf32>
    %48 = arith.truncf %47 : vector<10x32xf32> to vector<10x32xbf16>
    %c0_30 = arith.constant 0 : index
    %c0_31 = arith.constant 0 : index
    %c0_32 = arith.constant 0 : index
    %49 = vector.load %arg7[%c0_30, %c0_31, %c0_32] : memref<2x32x96xbf16, #tpu.memory_space<vmem>>, vector<1x32x96xbf16>
    %50 = vector.shape_cast %49 : vector<1x32x96xbf16> to vector<32x96xbf16>
    %cst_33 = arith.constant dense<0.000000e+00> : vector<10x96xf32>
    %51 = tpu.matmul %48, %50, %cst_33 {dimension_numbers = #tpu.dot_dimension_numbers<[1], [0], [0], [1], [0, 0, 1, 1], [], []>} : vector<10x32xbf16>, vector<32x96xbf16>, vector<10x96xf32> -> vector<10x96xf32>
    %c0_34 = arith.constant 0 : index
    %c0_35 = arith.constant 0 : index
    %c0_36 = arith.constant 0 : index
    %52 = vector.load %arg8[%c0_34, %c0_35, %c0_36] : memref<2x1x96xf32, #tpu.memory_space<vmem>>, vector<1x1x96xf32>
    %53 = vector.shape_cast %52 : vector<1x1x96xf32> to vector<1x96xf32>
    %54 = vector.broadcast %53 : vector<1x96xf32> to vector<10x96xf32>
    %55 = arith.addf %51, %54 : vector<10x96xf32>
    %56 = vector.extract_strided_slice %55 {offsets = [0, 0], sizes = [10, 8], strides = [1, 1]} : vector<10x96xf32> to vector<10x8xf32>
    %57 = vector.extract_strided_slice %55 {offsets = [0, 32], sizes = [10, 8], strides = [1, 1]} : vector<10x96xf32> to vector<10x8xf32>
    %58 = vector.extract_strided_slice %55 {offsets = [0, 64], sizes = [10, 8], strides = [1, 1]} : vector<10x96xf32> to vector<10x8xf32>
    %cst_37 = arith.constant 0.353553385 : f32
    %59 = vector.broadcast %cst_37 : f32 to vector<10x8xf32>
    %60 = arith.mulf %56, %59 : vector<10x8xf32>
    %cst_38 = arith.constant dense<0.000000e+00> : vector<10x10xf32>
    %61 = tpu.matmul %60, %57, %cst_38 {dimension_numbers = #tpu.dot_dimension_numbers<[1], [1], [0], [0], [0, 0, 1, 0], [], []>} : vector<10x8xf32>, vector<10x8xf32>, vector<10x10xf32> -> vector<10x10xf32>
    %cst_39 = arith.constant dense<0xFF800000> : vector<10xf32>
    %62 = vector.multi_reduction <maximumf>, %61, %cst_39 [1] : vector<10x10xf32> to vector<10xf32>
    %63 = vector.shape_cast %62 : vector<10xf32> to vector<10x1xf32>
    %64 = vector.broadcast %63 : vector<10x1xf32> to vector<10x10xf32>
    %65 = arith.subf %61, %64 : vector<10x10xf32>
    %66 = math.exp %65 : vector<10x10xf32>
    %cst_40 = arith.constant dense<0.000000e+00> : vector<10xf32>
    %67 = vector.multi_reduction <add>, %66, %cst_40 [1] : vector<10x10xf32> to vector<10xf32>
    %68 = vector.shape_cast %67 : vector<10xf32> to vector<10x1xf32>
    %69 = tpu.reciprocal %68 {approx = true} : vector<10x1xf32> -> vector<10x1xf32>
    %70 = vector.broadcast %69 : vector<10x1xf32> to vector<10x10xf32>
    %71 = arith.mulf %66, %70 : vector<10x10xf32>
    %cst_41 = arith.constant dense<0.000000e+00> : vector<10x8xf32>
    %72 = tpu.matmul %71, %58, %cst_41 {dimension_numbers = #tpu.dot_dimension_numbers<[1], [0], [0], [1], [0, 0, 1, 1], [], []>} : vector<10x10xf32>, vector<10x8xf32>, vector<10x8xf32> -> vector<10x8xf32>
    %73 = vector.extract_strided_slice %55 {offsets = [0, 8], sizes = [10, 8], strides = [1, 1]} : vector<10x96xf32> to vector<10x8xf32>
    %74 = vector.extract_strided_slice %55 {offsets = [0, 40], sizes = [10, 8], strides = [1, 1]} : vector<10x96xf32> to vector<10x8xf32>
    %75 = vector.extract_strided_slice %55 {offsets = [0, 72], sizes = [10, 8], strides = [1, 1]} : vector<10x96xf32> to vector<10x8xf32>
    %cst_42 = arith.constant 0.353553385 : f32
    %76 = vector.broadcast %cst_42 : f32 to vector<10x8xf32>
    %77 = arith.mulf %73, %76 : vector<10x8xf32>
    %cst_43 = arith.constant dense<0.000000e+00> : vector<10x10xf32>
    %78 = tpu.matmul %77, %74, %cst_43 {dimension_numbers = #tpu.dot_dimension_numbers<[1], [1], [0], [0], [0, 0, 1, 0], [], []>} : vector<10x8xf32>, vector<10x8xf32>, vector<10x10xf32> -> vector<10x10xf32>
    %cst_44 = arith.constant dense<0xFF800000> : vector<10xf32>
    %79 = vector.multi_reduction <maximumf>, %78, %cst_44 [1] : vector<10x10xf32> to vector<10xf32>
    %80 = vector.shape_cast %79 : vector<10xf32> to vector<10x1xf32>
    %81 = vector.broadcast %80 : vector<10x1xf32> to vector<10x10xf32>
    %82 = arith.subf %78, %81 : vector<10x10xf32>
    %83 = math.exp %82 : vector<10x10xf32>
    %cst_45 = arith.constant dense<0.000000e+00> : vector<10xf32>
    %84 = vector.multi_reduction <add>, %83, %cst_45 [1] : vector<10x10xf32> to vector<10xf32>
    %85 = vector.shape_cast %84 : vector<10xf32> to vector<10x1xf32>
    %86 = tpu.reciprocal %85 {approx = true} : vector<10x1xf32> -> vector<10x1xf32>
    %87 = vector.broadcast %86 : vector<10x1xf32> to vector<10x10xf32>
    %88 = arith.mulf %83, %87 : vector<10x10xf32>
    %cst_46 = arith.constant dense<0.000000e+00> : vector<10x8xf32>
    %89 = tpu.matmul %88, %75, %cst_46 {dimension_numbers = #tpu.dot_dimension_numbers<[1], [0], [0], [1], [0, 0, 1, 1], [], []>} : vector<10x10xf32>, vector<10x8xf32>, vector<10x8xf32> -> vector<10x8xf32>
    %90 = vector.extract_strided_slice %55 {offsets = [0, 16], sizes = [10, 8], strides = [1, 1]} : vector<10x96xf32> to vector<10x8xf32>
    %91 = vector.extract_strided_slice %55 {offsets = [0, 48], sizes = [10, 8], strides = [1, 1]} : vector<10x96xf32> to vector<10x8xf32>
    %92 = vector.extract_strided_slice %55 {offsets = [0, 80], sizes = [10, 8], strides = [1, 1]} : vector<10x96xf32> to vector<10x8xf32>
    %cst_47 = arith.constant 0.353553385 : f32
    %93 = vector.broadcast %cst_47 : f32 to vector<10x8xf32>
    %94 = arith.mulf %90, %93 : vector<10x8xf32>
    %cst_48 = arith.constant dense<0.000000e+00> : vector<10x10xf32>
    %95 = tpu.matmul %94, %91, %cst_48 {dimension_numbers = #tpu.dot_dimension_numbers<[1], [1], [0], [0], [0, 0, 1, 0], [], []>} : vector<10x8xf32>, vector<10x8xf32>, vector<10x10xf32> -> vector<10x10xf32>
    %cst_49 = arith.constant dense<0xFF800000> : vector<10xf32>
    %96 = vector.multi_reduction <maximumf>, %95, %cst_49 [1] : vector<10x10xf32> to vector<10xf32>
    %97 = vector.shape_cast %96 : vector<10xf32> to vector<10x1xf32>
    %98 = vector.broadcast %97 : vector<10x1xf32> to vector<10x10xf32>
    %99 = arith.subf %95, %98 : vector<10x10xf32>
    %100 = math.exp %99 : vector<10x10xf32>
    %cst_50 = arith.constant dense<0.000000e+00> : vector<10xf32>
    %101 = vector.multi_reduction <add>, %100, %cst_50 [1] : vector<10x10xf32> to vector<10xf32>
    %102 = vector.shape_cast %101 : vector<10xf32> to vector<10x1xf32>
    %103 = tpu.reciprocal %102 {approx = true} : vector<10x1xf32> -> vector<10x1xf32>
    %104 = vector.broadcast %103 : vector<10x1xf32> to vector<10x10xf32>
    %105 = arith.mulf %100, %104 : vector<10x10xf32>
    %cst_51 = arith.constant dense<0.000000e+00> : vector<10x8xf32>
    %106 = tpu.matmul %105, %92, %cst_51 {dimension_numbers = #tpu.dot_dimension_numbers<[1], [0], [0], [1], [0, 0, 1, 1], [], []>} : vector<10x10xf32>, vector<10x8xf32>, vector<10x8xf32> -> vector<10x8xf32>
    %107 = vector.extract_strided_slice %55 {offsets = [0, 24], sizes = [10, 8], strides = [1, 1]} : vector<10x96xf32> to vector<10x8xf32>
    %108 = vector.extract_strided_slice %55 {offsets = [0, 56], sizes = [10, 8], strides = [1, 1]} : vector<10x96xf32> to vector<10x8xf32>
    %109 = vector.extract_strided_slice %55 {offsets = [0, 88], sizes = [10, 8], strides = [1, 1]} : vector<10x96xf32> to vector<10x8xf32>
    %cst_52 = arith.constant 0.353553385 : f32
    %110 = vector.broadcast %cst_52 : f32 to vector<10x8xf32>
    %111 = arith.mulf %107, %110 : vector<10x8xf32>
    %cst_53 = arith.constant dense<0.000000e+00> : vector<10x10xf32>
    %112 = tpu.matmul %111, %108, %cst_53 {dimension_numbers = #tpu.dot_dimension_numbers<[1], [1], [0], [0], [0, 0, 1, 0], [], []>} : vector<10x8xf32>, vector<10x8xf32>, vector<10x10xf32> -> vector<10x10xf32>
    %cst_54 = arith.constant dense<0xFF800000> : vector<10xf32>
    %113 = vector.multi_reduction <maximumf>, %112, %cst_54 [1] : vector<10x10xf32> to vector<10xf32>
    %114 = vector.shape_cast %113 : vector<10xf32> to vector<10x1xf32>
    %115 = vector.broadcast %114 : vector<10x1xf32> to vector<10x10xf32>
    %116 = arith.subf %112, %115 : vector<10x10xf32>
    %117 = math.exp %116 : vector<10x10xf32>
    %cst_55 = arith.constant dense<0.000000e+00> : vector<10xf32>
    %118 = vector.multi_reduction <add>, %117, %cst_55 [1] : vector<10x10xf32> to vector<10xf32>
    %119 = vector.shape_cast %118 : vector<10xf32> to vector<10x1xf32>
    %120 = tpu.reciprocal %119 {approx = true} : vector<10x1xf32> -> vector<10x1xf32>
    %121 = vector.broadcast %120 : vector<10x1xf32> to vector<10x10xf32>
    %122 = arith.mulf %117, %121 : vector<10x10xf32>
    %cst_56 = arith.constant dense<0.000000e+00> : vector<10x8xf32>
    %123 = tpu.matmul %122, %109, %cst_56 {dimension_numbers = #tpu.dot_dimension_numbers<[1], [0], [0], [1], [0, 0, 1, 1], [], []>} : vector<10x10xf32>, vector<10x8xf32>, vector<10x8xf32> -> vector<10x8xf32>
    %124 = tpu.concatenate %72, %89, %106, %123 in 1 : vector<10x8xf32>, vector<10x8xf32>, vector<10x8xf32>, vector<10x8xf32> -> vector<10x32xf32>
    %125 = arith.truncf %124 : vector<10x32xf32> to vector<10x32xbf16>
    %c0_57 = arith.constant 0 : index
    %c0_58 = arith.constant 0 : index
    %c0_59 = arith.constant 0 : index
    %126 = vector.load %arg9[%c0_57, %c0_58, %c0_59] : memref<2x32x32xbf16, #tpu.memory_space<vmem>>, vector<1x32x32xbf16>
    %127 = vector.shape_cast %126 : vector<1x32x32xbf16> to vector<32x32xbf16>
    %cst_60 = arith.constant dense<0.000000e+00> : vector<10x32xf32>
    %128 = tpu.matmul %125, %127, %cst_60 {dimension_numbers = #tpu.dot_dimension_numbers<[1], [0], [0], [1], [0, 0, 1, 1], [], []>} : vector<10x32xbf16>, vector<32x32xbf16>, vector<10x32xf32> -> vector<10x32xf32>
    %129 = vector.broadcast %17 : vector<1x32xf32> to vector<10x32xf32>
    %130 = arith.addf %128, %129 : vector<10x32xf32>
    %131 = vector.broadcast %15 : vector<1x32xf32> to vector<10x32xf32>
    %132 = arith.mulf %131, %130 : vector<10x32xf32>
    %133 = arith.addf %9, %132 : vector<10x32xf32>
    %cst_61 = arith.constant dense<0.000000e+00> : vector<10xf32>
    %134 = vector.multi_reduction <add>, %133, %cst_61 [1] : vector<10x32xf32> to vector<10xf32>
    %135 = vector.shape_cast %134 : vector<10xf32> to vector<10x1xf32>
    %cst_62 = arith.constant 3.200000e+01 : f32
    %136 = vector.broadcast %cst_62 : f32 to vector<10x1xf32>
    %137 = arith.divf %135, %136 : vector<10x1xf32>
    %138 = vector.broadcast %137 : vector<10x1xf32> to vector<10x32xf32>
    %139 = arith.subf %133, %138 : vector<10x32xf32>
    %140 = arith.mulf %139, %139 : vector<10x32xf32>
    %cst_63 = arith.constant dense<0.000000e+00> : vector<10xf32>
    %141 = vector.multi_reduction <add>, %140, %cst_63 [1] : vector<10x32xf32> to vector<10xf32>
    %142 = vector.shape_cast %141 : vector<10xf32> to vector<10x1xf32>
    %cst_64 = arith.constant 3.200000e+01 : f32
    %143 = vector.broadcast %cst_64 : f32 to vector<10x1xf32>
    %144 = arith.divf %142, %143 : vector<10x1xf32>
    %145 = vector.broadcast %137 : vector<10x1xf32> to vector<10x32xf32>
    %146 = arith.subf %133, %145 : vector<10x32xf32>
    %cst_65 = arith.constant 9.99999974E-6 : f32
    %147 = vector.broadcast %cst_65 : f32 to vector<10x1xf32>
    %148 = arith.addf %144, %147 : vector<10x1xf32>
    %149 = math.rsqrt %148 : vector<10x1xf32>
    %150 = vector.broadcast %149 : vector<10x1xf32> to vector<10x32xf32>
    %151 = arith.mulf %146, %150 : vector<10x32xf32>
    %152 = vector.broadcast %19 : vector<1x32xf32> to vector<10x32xf32>
    %153 = arith.mulf %151, %152 : vector<10x32xf32>
    %154 = vector.broadcast %21 : vector<1x32xf32> to vector<10x32xf32>
    %155 = arith.addf %153, %154 : vector<10x32xf32>
    %156 = arith.truncf %155 : vector<10x32xf32> to vector<10x32xbf16>
    %c0_66 = arith.constant 0 : index
    %c0_67 = arith.constant 0 : index
    %c0_68 = arith.constant 0 : index
    %157 = vector.load %arg10[%c0_66, %c0_67, %c0_68] : memref<2x32x128xbf16, #tpu.memory_space<vmem>>, vector<1x32x128xbf16>
    %158 = vector.shape_cast %157 : vector<1x32x128xbf16> to vector<32x128xbf16>
    %cst_69 = arith.constant dense<0.000000e+00> : vector<10x128xf32>
    %159 = tpu.matmul %156, %158, %cst_69 {dimension_numbers = #tpu.dot_dimension_numbers<[1], [0], [0], [1], [0, 0, 1, 1], [], []>} : vector<10x32xbf16>, vector<32x128xbf16>, vector<10x128xf32> -> vector<10x128xf32>
    %c0_70 = arith.constant 0 : index
    %c0_71 = arith.constant 0 : index
    %c0_72 = arith.constant 0 : index
    %160 = vector.load %arg11[%c0_70, %c0_71, %c0_72] : memref<2x1x128xf32, #tpu.memory_space<vmem>>, vector<1x1x128xf32>
    %161 = vector.shape_cast %160 : vector<1x1x128xf32> to vector<1x128xf32>
    %162 = vector.broadcast %161 : vector<1x128xf32> to vector<10x128xf32>
    %163 = arith.addf %159, %162 : vector<10x128xf32>
    %cst_73 = arith.constant 5.000000e-01 : f32
    %164 = vector.broadcast %cst_73 : f32 to vector<10x128xf32>
    %165 = arith.mulf %164, %163 : vector<10x128xf32>
    %cst_74 = arith.constant 4.471500e-02 : f32
    %166 = vector.broadcast %cst_74 : f32 to vector<10x128xf32>
    %167 = arith.mulf %166, %163 : vector<10x128xf32>
    %168 = arith.mulf %167, %163 : vector<10x128xf32>
    %169 = arith.mulf %168, %163 : vector<10x128xf32>
    %170 = arith.addf %163, %169 : vector<10x128xf32>
    %cst_75 = arith.constant 0.797884583 : f32
    %171 = vector.broadcast %cst_75 : f32 to vector<10x128xf32>
    %172 = arith.mulf %171, %170 : vector<10x128xf32>
    %173 = math.tanh %172 : vector<10x128xf32>
    %cst_76 = arith.constant 1.000000e+00 : f32
    %174 = vector.broadcast %cst_76 : f32 to vector<10x128xf32>
    %175 = arith.addf %174, %173 : vector<10x128xf32>
    %176 = arith.mulf %165, %175 : vector<10x128xf32>
    %177 = arith.truncf %176 : vector<10x128xf32> to vector<10x128xbf16>
    %c0_77 = arith.constant 0 : index
    %c0_78 = arith.constant 0 : index
    %c0_79 = arith.constant 0 : index
    %178 = vector.load %arg12[%c0_77, %c0_78, %c0_79] : memref<2x128x32xbf16, #tpu.memory_space<vmem>>, vector<1x128x32xbf16>
    %179 = vector.shape_cast %178 : vector<1x128x32xbf16> to vector<128x32xbf16>
    %cst_80 = arith.constant dense<0.000000e+00> : vector<10x32xf32>
    %180 = tpu.matmul %177, %179, %cst_80 {dimension_numbers = #tpu.dot_dimension_numbers<[1], [0], [0], [1], [0, 0, 1, 1], [], []>} : vector<10x128xbf16>, vector<128x32xbf16>, vector<10x32xf32> -> vector<10x32xf32>
    %181 = vector.broadcast %25 : vector<1x32xf32> to vector<10x32xf32>
    %182 = arith.addf %180, %181 : vector<10x32xf32>
    %183 = vector.broadcast %23 : vector<1x32xf32> to vector<10x32xf32>
    %184 = arith.mulf %183, %182 : vector<10x32xf32>
    %185 = arith.addf %133, %184 : vector<10x32xf32>
    %c8 = arith.constant 8 : index
    %c0_81 = arith.constant 0 : index
    %c0_82 = arith.constant 0 : index
    %186 = vector.load %arg6[%c8, %c0_81, %c0_82] : memref<16x1x32xf32, #tpu.memory_space<vmem>>, vector<1x1x32xf32>
    %187 = vector.shape_cast %186 : vector<1x1x32xf32> to vector<1x32xf32>
    %c9 = arith.constant 9 : index
    %c0_83 = arith.constant 0 : index
    %c0_84 = arith.constant 0 : index
    %188 = vector.load %arg6[%c9, %c0_83, %c0_84] : memref<16x1x32xf32, #tpu.memory_space<vmem>>, vector<1x1x32xf32>
    %189 = vector.shape_cast %188 : vector<1x1x32xf32> to vector<1x32xf32>
    %c10 = arith.constant 10 : index
    %c0_85 = arith.constant 0 : index
    %c0_86 = arith.constant 0 : index
    %190 = vector.load %arg6[%c10, %c0_85, %c0_86] : memref<16x1x32xf32, #tpu.memory_space<vmem>>, vector<1x1x32xf32>
    %191 = vector.shape_cast %190 : vector<1x1x32xf32> to vector<1x32xf32>
    %c11 = arith.constant 11 : index
    %c0_87 = arith.constant 0 : index
    %c0_88 = arith.constant 0 : index
    %192 = vector.load %arg6[%c11, %c0_87, %c0_88] : memref<16x1x32xf32, #tpu.memory_space<vmem>>, vector<1x1x32xf32>
    %193 = vector.shape_cast %192 : vector<1x1x32xf32> to vector<1x32xf32>
    %c12 = arith.constant 12 : index
    %c0_89 = arith.constant 0 : index
    %c0_90 = arith.constant 0 : index
    %194 = vector.load %arg6[%c12, %c0_89, %c0_90] : memref<16x1x32xf32, #tpu.memory_space<vmem>>, vector<1x1x32xf32>
    %195 = vector.shape_cast %194 : vector<1x1x32xf32> to vector<1x32xf32>
    %c13 = arith.constant 13 : index
    %c0_91 = arith.constant 0 : index
    %c0_92 = arith.constant 0 : index
    %196 = vector.load %arg6[%c13, %c0_91, %c0_92] : memref<16x1x32xf32, #tpu.memory_space<vmem>>, vector<1x1x32xf32>
    %197 = vector.shape_cast %196 : vector<1x1x32xf32> to vector<1x32xf32>
    %c14 = arith.constant 14 : index
    %c0_93 = arith.constant 0 : index
    %c0_94 = arith.constant 0 : index
    %198 = vector.load %arg6[%c14, %c0_93, %c0_94] : memref<16x1x32xf32, #tpu.memory_space<vmem>>, vector<1x1x32xf32>
    %199 = vector.shape_cast %198 : vector<1x1x32xf32> to vector<1x32xf32>
    %c15 = arith.constant 15 : index
    %c0_95 = arith.constant 0 : index
    %c0_96 = arith.constant 0 : index
    %200 = vector.load %arg6[%c15, %c0_95, %c0_96] : memref<16x1x32xf32, #tpu.memory_space<vmem>>, vector<1x1x32xf32>
    %201 = vector.shape_cast %200 : vector<1x1x32xf32> to vector<1x32xf32>
    %cst_97 = arith.constant dense<0.000000e+00> : vector<10xf32>
    %202 = vector.multi_reduction <add>, %185, %cst_97 [1] : vector<10x32xf32> to vector<10xf32>
    %203 = vector.shape_cast %202 : vector<10xf32> to vector<10x1xf32>
    %cst_98 = arith.constant 3.200000e+01 : f32
    %204 = vector.broadcast %cst_98 : f32 to vector<10x1xf32>
    %205 = arith.divf %203, %204 : vector<10x1xf32>
    %206 = vector.broadcast %205 : vector<10x1xf32> to vector<10x32xf32>
    %207 = arith.subf %185, %206 : vector<10x32xf32>
    %208 = arith.mulf %207, %207 : vector<10x32xf32>
    %cst_99 = arith.constant dense<0.000000e+00> : vector<10xf32>
    %209 = vector.multi_reduction <add>, %208, %cst_99 [1] : vector<10x32xf32> to vector<10xf32>
    %210 = vector.shape_cast %209 : vector<10xf32> to vector<10x1xf32>
    %cst_100 = arith.constant 3.200000e+01 : f32
    %211 = vector.broadcast %cst_100 : f32 to vector<10x1xf32>
    %212 = arith.divf %210, %211 : vector<10x1xf32>
    %213 = vector.broadcast %205 : vector<10x1xf32> to vector<10x32xf32>
    %214 = arith.subf %185, %213 : vector<10x32xf32>
    %cst_101 = arith.constant 9.99999974E-6 : f32
    %215 = vector.broadcast %cst_101 : f32 to vector<10x1xf32>
    %216 = arith.addf %212, %215 : vector<10x1xf32>
    %217 = math.rsqrt %216 : vector<10x1xf32>
    %218 = vector.broadcast %217 : vector<10x1xf32> to vector<10x32xf32>
    %219 = arith.mulf %214, %218 : vector<10x32xf32>
    %220 = vector.broadcast %187 : vector<1x32xf32> to vector<10x32xf32>
    %221 = arith.mulf %219, %220 : vector<10x32xf32>
    %222 = vector.broadcast %189 : vector<1x32xf32> to vector<10x32xf32>
    %223 = arith.addf %221, %222 : vector<10x32xf32>
    %224 = arith.truncf %223 : vector<10x32xf32> to vector<10x32xbf16>
    %c1_102 = arith.constant 1 : index
    %c0_103 = arith.constant 0 : index
    %c0_104 = arith.constant 0 : index
    %225 = vector.load %arg7[%c1_102, %c0_103, %c0_104] : memref<2x32x96xbf16, #tpu.memory_space<vmem>>, vector<1x32x96xbf16>
    %226 = vector.shape_cast %225 : vector<1x32x96xbf16> to vector<32x96xbf16>
    %cst_105 = arith.constant dense<0.000000e+00> : vector<10x96xf32>
    %227 = tpu.matmul %224, %226, %cst_105 {dimension_numbers = #tpu.dot_dimension_numbers<[1], [0], [0], [1], [0, 0, 1, 1], [], []>} : vector<10x32xbf16>, vector<32x96xbf16>, vector<10x96xf32> -> vector<10x96xf32>
    %c1_106 = arith.constant 1 : index
    %c0_107 = arith.constant 0 : index
    %c0_108 = arith.constant 0 : index
    %228 = vector.load %arg8[%c1_106, %c0_107, %c0_108] : memref<2x1x96xf32, #tpu.memory_space<vmem>>, vector<1x1x96xf32>
    %229 = vector.shape_cast %228 : vector<1x1x96xf32> to vector<1x96xf32>
    %230 = vector.broadcast %229 : vector<1x96xf32> to vector<10x96xf32>
    %231 = arith.addf %227, %230 : vector<10x96xf32>
    %232 = vector.extract_strided_slice %231 {offsets = [0, 0], sizes = [10, 8], strides = [1, 1]} : vector<10x96xf32> to vector<10x8xf32>
    %233 = vector.extract_strided_slice %231 {offsets = [0, 32], sizes = [10, 8], strides = [1, 1]} : vector<10x96xf32> to vector<10x8xf32>
    %234 = vector.extract_strided_slice %231 {offsets = [0, 64], sizes = [10, 8], strides = [1, 1]} : vector<10x96xf32> to vector<10x8xf32>
    %cst_109 = arith.constant 0.353553385 : f32
    %235 = vector.broadcast %cst_109 : f32 to vector<10x8xf32>
    %236 = arith.mulf %232, %235 : vector<10x8xf32>
    %cst_110 = arith.constant dense<0.000000e+00> : vector<10x10xf32>
    %237 = tpu.matmul %236, %233, %cst_110 {dimension_numbers = #tpu.dot_dimension_numbers<[1], [1], [0], [0], [0, 0, 1, 0], [], []>} : vector<10x8xf32>, vector<10x8xf32>, vector<10x10xf32> -> vector<10x10xf32>
    %cst_111 = arith.constant dense<0xFF800000> : vector<10xf32>
    %238 = vector.multi_reduction <maximumf>, %237, %cst_111 [1] : vector<10x10xf32> to vector<10xf32>
    %239 = vector.shape_cast %238 : vector<10xf32> to vector<10x1xf32>
    %240 = vector.broadcast %239 : vector<10x1xf32> to vector<10x10xf32>
    %241 = arith.subf %237, %240 : vector<10x10xf32>
    %242 = math.exp %241 : vector<10x10xf32>
    %cst_112 = arith.constant dense<0.000000e+00> : vector<10xf32>
    %243 = vector.multi_reduction <add>, %242, %cst_112 [1] : vector<10x10xf32> to vector<10xf32>
    %244 = vector.shape_cast %243 : vector<10xf32> to vector<10x1xf32>
    %245 = tpu.reciprocal %244 {approx = true} : vector<10x1xf32> -> vector<10x1xf32>
    %246 = vector.broadcast %245 : vector<10x1xf32> to vector<10x10xf32>
    %247 = arith.mulf %242, %246 : vector<10x10xf32>
    %cst_113 = arith.constant dense<0.000000e+00> : vector<10x8xf32>
    %248 = tpu.matmul %247, %234, %cst_113 {dimension_numbers = #tpu.dot_dimension_numbers<[1], [0], [0], [1], [0, 0, 1, 1], [], []>} : vector<10x10xf32>, vector<10x8xf32>, vector<10x8xf32> -> vector<10x8xf32>
    %249 = vector.extract_strided_slice %231 {offsets = [0, 8], sizes = [10, 8], strides = [1, 1]} : vector<10x96xf32> to vector<10x8xf32>
    %250 = vector.extract_strided_slice %231 {offsets = [0, 40], sizes = [10, 8], strides = [1, 1]} : vector<10x96xf32> to vector<10x8xf32>
    %251 = vector.extract_strided_slice %231 {offsets = [0, 72], sizes = [10, 8], strides = [1, 1]} : vector<10x96xf32> to vector<10x8xf32>
    %cst_114 = arith.constant 0.353553385 : f32
    %252 = vector.broadcast %cst_114 : f32 to vector<10x8xf32>
    %253 = arith.mulf %249, %252 : vector<10x8xf32>
    %cst_115 = arith.constant dense<0.000000e+00> : vector<10x10xf32>
    %254 = tpu.matmul %253, %250, %cst_115 {dimension_numbers = #tpu.dot_dimension_numbers<[1], [1], [0], [0], [0, 0, 1, 0], [], []>} : vector<10x8xf32>, vector<10x8xf32>, vector<10x10xf32> -> vector<10x10xf32>
    %cst_116 = arith.constant dense<0xFF800000> : vector<10xf32>
    %255 = vector.multi_reduction <maximumf>, %254, %cst_116 [1] : vector<10x10xf32> to vector<10xf32>
    %256 = vector.shape_cast %255 : vector<10xf32> to vector<10x1xf32>
    %257 = vector.broadcast %256 : vector<10x1xf32> to vector<10x10xf32>
    %258 = arith.subf %254, %257 : vector<10x10xf32>
    %259 = math.exp %258 : vector<10x10xf32>
    %cst_117 = arith.constant dense<0.000000e+00> : vector<10xf32>
    %260 = vector.multi_reduction <add>, %259, %cst_117 [1] : vector<10x10xf32> to vector<10xf32>
    %261 = vector.shape_cast %260 : vector<10xf32> to vector<10x1xf32>
    %262 = tpu.reciprocal %261 {approx = true} : vector<10x1xf32> -> vector<10x1xf32>
    %263 = vector.broadcast %262 : vector<10x1xf32> to vector<10x10xf32>
    %264 = arith.mulf %259, %263 : vector<10x10xf32>
    %cst_118 = arith.constant dense<0.000000e+00> : vector<10x8xf32>
    %265 = tpu.matmul %264, %251, %cst_118 {dimension_numbers = #tpu.dot_dimension_numbers<[1], [0], [0], [1], [0, 0, 1, 1], [], []>} : vector<10x10xf32>, vector<10x8xf32>, vector<10x8xf32> -> vector<10x8xf32>
    %266 = vector.extract_strided_slice %231 {offsets = [0, 16], sizes = [10, 8], strides = [1, 1]} : vector<10x96xf32> to vector<10x8xf32>
    %267 = vector.extract_strided_slice %231 {offsets = [0, 48], sizes = [10, 8], strides = [1, 1]} : vector<10x96xf32> to vector<10x8xf32>
    %268 = vector.extract_strided_slice %231 {offsets = [0, 80], sizes = [10, 8], strides = [1, 1]} : vector<10x96xf32> to vector<10x8xf32>
    %cst_119 = arith.constant 0.353553385 : f32
    %269 = vector.broadcast %cst_119 : f32 to vector<10x8xf32>
    %270 = arith.mulf %266, %269 : vector<10x8xf32>
    %cst_120 = arith.constant dense<0.000000e+00> : vector<10x10xf32>
    %271 = tpu.matmul %270, %267, %cst_120 {dimension_numbers = #tpu.dot_dimension_numbers<[1], [1], [0], [0], [0, 0, 1, 0], [], []>} : vector<10x8xf32>, vector<10x8xf32>, vector<10x10xf32> -> vector<10x10xf32>
    %cst_121 = arith.constant dense<0xFF800000> : vector<10xf32>
    %272 = vector.multi_reduction <maximumf>, %271, %cst_121 [1] : vector<10x10xf32> to vector<10xf32>
    %273 = vector.shape_cast %272 : vector<10xf32> to vector<10x1xf32>
    %274 = vector.broadcast %273 : vector<10x1xf32> to vector<10x10xf32>
    %275 = arith.subf %271, %274 : vector<10x10xf32>
    %276 = math.exp %275 : vector<10x10xf32>
    %cst_122 = arith.constant dense<0.000000e+00> : vector<10xf32>
    %277 = vector.multi_reduction <add>, %276, %cst_122 [1] : vector<10x10xf32> to vector<10xf32>
    %278 = vector.shape_cast %277 : vector<10xf32> to vector<10x1xf32>
    %279 = tpu.reciprocal %278 {approx = true} : vector<10x1xf32> -> vector<10x1xf32>
    %280 = vector.broadcast %279 : vector<10x1xf32> to vector<10x10xf32>
    %281 = arith.mulf %276, %280 : vector<10x10xf32>
    %cst_123 = arith.constant dense<0.000000e+00> : vector<10x8xf32>
    %282 = tpu.matmul %281, %268, %cst_123 {dimension_numbers = #tpu.dot_dimension_numbers<[1], [0], [0], [1], [0, 0, 1, 1], [], []>} : vector<10x10xf32>, vector<10x8xf32>, vector<10x8xf32> -> vector<10x8xf32>
    %283 = vector.extract_strided_slice %231 {offsets = [0, 24], sizes = [10, 8], strides = [1, 1]} : vector<10x96xf32> to vector<10x8xf32>
    %284 = vector.extract_strided_slice %231 {offsets = [0, 56], sizes = [10, 8], strides = [1, 1]} : vector<10x96xf32> to vector<10x8xf32>
    %285 = vector.extract_strided_slice %231 {offsets = [0, 88], sizes = [10, 8], strides = [1, 1]} : vector<10x96xf32> to vector<10x8xf32>
    %cst_124 = arith.constant 0.353553385 : f32
    %286 = vector.broadcast %cst_124 : f32 to vector<10x8xf32>
    %287 = arith.mulf %283, %286 : vector<10x8xf32>
    %cst_125 = arith.constant dense<0.000000e+00> : vector<10x10xf32>
    %288 = tpu.matmul %287, %284, %cst_125 {dimension_numbers = #tpu.dot_dimension_numbers<[1], [1], [0], [0], [0, 0, 1, 0], [], []>} : vector<10x8xf32>, vector<10x8xf32>, vector<10x10xf32> -> vector<10x10xf32>
    %cst_126 = arith.constant dense<0xFF800000> : vector<10xf32>
    %289 = vector.multi_reduction <maximumf>, %288, %cst_126 [1] : vector<10x10xf32> to vector<10xf32>
    %290 = vector.shape_cast %289 : vector<10xf32> to vector<10x1xf32>
    %291 = vector.broadcast %290 : vector<10x1xf32> to vector<10x10xf32>
    %292 = arith.subf %288, %291 : vector<10x10xf32>
    %293 = math.exp %292 : vector<10x10xf32>
    %cst_127 = arith.constant dense<0.000000e+00> : vector<10xf32>
    %294 = vector.multi_reduction <add>, %293, %cst_127 [1] : vector<10x10xf32> to vector<10xf32>
    %295 = vector.shape_cast %294 : vector<10xf32> to vector<10x1xf32>
    %296 = tpu.reciprocal %295 {approx = true} : vector<10x1xf32> -> vector<10x1xf32>
    %297 = vector.broadcast %296 : vector<10x1xf32> to vector<10x10xf32>
    %298 = arith.mulf %293, %297 : vector<10x10xf32>
    %cst_128 = arith.constant dense<0.000000e+00> : vector<10x8xf32>
    %299 = tpu.matmul %298, %285, %cst_128 {dimension_numbers = #tpu.dot_dimension_numbers<[1], [0], [0], [1], [0, 0, 1, 1], [], []>} : vector<10x10xf32>, vector<10x8xf32>, vector<10x8xf32> -> vector<10x8xf32>
    %300 = tpu.concatenate %248, %265, %282, %299 in 1 : vector<10x8xf32>, vector<10x8xf32>, vector<10x8xf32>, vector<10x8xf32> -> vector<10x32xf32>
    %301 = arith.truncf %300 : vector<10x32xf32> to vector<10x32xbf16>
    %c1_129 = arith.constant 1 : index
    %c0_130 = arith.constant 0 : index
    %c0_131 = arith.constant 0 : index
    %302 = vector.load %arg9[%c1_129, %c0_130, %c0_131] : memref<2x32x32xbf16, #tpu.memory_space<vmem>>, vector<1x32x32xbf16>
    %303 = vector.shape_cast %302 : vector<1x32x32xbf16> to vector<32x32xbf16>
    %cst_132 = arith.constant dense<0.000000e+00> : vector<10x32xf32>
    %304 = tpu.matmul %301, %303, %cst_132 {dimension_numbers = #tpu.dot_dimension_numbers<[1], [0], [0], [1], [0, 0, 1, 1], [], []>} : vector<10x32xbf16>, vector<32x32xbf16>, vector<10x32xf32> -> vector<10x32xf32>
    %305 = vector.broadcast %193 : vector<1x32xf32> to vector<10x32xf32>
    %306 = arith.addf %304, %305 : vector<10x32xf32>
    %307 = vector.broadcast %191 : vector<1x32xf32> to vector<10x32xf32>
    %308 = arith.mulf %307, %306 : vector<10x32xf32>
    %309 = arith.addf %185, %308 : vector<10x32xf32>
    %cst_133 = arith.constant dense<0.000000e+00> : vector<10xf32>
    %310 = vector.multi_reduction <add>, %309, %cst_133 [1] : vector<10x32xf32> to vector<10xf32>
    %311 = vector.shape_cast %310 : vector<10xf32> to vector<10x1xf32>
    %cst_134 = arith.constant 3.200000e+01 : f32
    %312 = vector.broadcast %cst_134 : f32 to vector<10x1xf32>
    %313 = arith.divf %311, %312 : vector<10x1xf32>
    %314 = vector.broadcast %313 : vector<10x1xf32> to vector<10x32xf32>
    %315 = arith.subf %309, %314 : vector<10x32xf32>
    %316 = arith.mulf %315, %315 : vector<10x32xf32>
    %cst_135 = arith.constant dense<0.000000e+00> : vector<10xf32>
    %317 = vector.multi_reduction <add>, %316, %cst_135 [1] : vector<10x32xf32> to vector<10xf32>
    %318 = vector.shape_cast %317 : vector<10xf32> to vector<10x1xf32>
    %cst_136 = arith.constant 3.200000e+01 : f32
    %319 = vector.broadcast %cst_136 : f32 to vector<10x1xf32>
    %320 = arith.divf %318, %319 : vector<10x1xf32>
    %321 = vector.broadcast %313 : vector<10x1xf32> to vector<10x32xf32>
    %322 = arith.subf %309, %321 : vector<10x32xf32>
    %cst_137 = arith.constant 9.99999974E-6 : f32
    %323 = vector.broadcast %cst_137 : f32 to vector<10x1xf32>
    %324 = arith.addf %320, %323 : vector<10x1xf32>
    %325 = math.rsqrt %324 : vector<10x1xf32>
    %326 = vector.broadcast %325 : vector<10x1xf32> to vector<10x32xf32>
    %327 = arith.mulf %322, %326 : vector<10x32xf32>
    %328 = vector.broadcast %195 : vector<1x32xf32> to vector<10x32xf32>
    %329 = arith.mulf %327, %328 : vector<10x32xf32>
    %330 = vector.broadcast %197 : vector<1x32xf32> to vector<10x32xf32>
    %331 = arith.addf %329, %330 : vector<10x32xf32>
    %332 = arith.truncf %331 : vector<10x32xf32> to vector<10x32xbf16>
    %c1_138 = arith.constant 1 : index
    %c0_139 = arith.constant 0 : index
    %c0_140 = arith.constant 0 : index
    %333 = vector.load %arg10[%c1_138, %c0_139, %c0_140] : memref<2x32x128xbf16, #tpu.memory_space<vmem>>, vector<1x32x128xbf16>
    %334 = vector.shape_cast %333 : vector<1x32x128xbf16> to vector<32x128xbf16>
    %cst_141 = arith.constant dense<0.000000e+00> : vector<10x128xf32>
    %335 = tpu.matmul %332, %334, %cst_141 {dimension_numbers = #tpu.dot_dimension_numbers<[1], [0], [0], [1], [0, 0, 1, 1], [], []>} : vector<10x32xbf16>, vector<32x128xbf16>, vector<10x128xf32> -> vector<10x128xf32>
    %c1_142 = arith.constant 1 : index
    %c0_143 = arith.constant 0 : index
    %c0_144 = arith.constant 0 : index
    %336 = vector.load %arg11[%c1_142, %c0_143, %c0_144] : memref<2x1x128xf32, #tpu.memory_space<vmem>>, vector<1x1x128xf32>
    %337 = vector.shape_cast %336 : vector<1x1x128xf32> to vector<1x128xf32>
    %338 = vector.broadcast %337 : vector<1x128xf32> to vector<10x128xf32>
    %339 = arith.addf %335, %338 : vector<10x128xf32>
    %cst_145 = arith.constant 5.000000e-01 : f32
    %340 = vector.broadcast %cst_145 : f32 to vector<10x128xf32>
    %341 = arith.mulf %340, %339 : vector<10x128xf32>
    %cst_146 = arith.constant 4.471500e-02 : f32
    %342 = vector.broadcast %cst_146 : f32 to vector<10x128xf32>
    %343 = arith.mulf %342, %339 : vector<10x128xf32>
    %344 = arith.mulf %343, %339 : vector<10x128xf32>
    %345 = arith.mulf %344, %339 : vector<10x128xf32>
    %346 = arith.addf %339, %345 : vector<10x128xf32>
    %cst_147 = arith.constant 0.797884583 : f32
    %347 = vector.broadcast %cst_147 : f32 to vector<10x128xf32>
    %348 = arith.mulf %347, %346 : vector<10x128xf32>
    %349 = math.tanh %348 : vector<10x128xf32>
    %cst_148 = arith.constant 1.000000e+00 : f32
    %350 = vector.broadcast %cst_148 : f32 to vector<10x128xf32>
    %351 = arith.addf %350, %349 : vector<10x128xf32>
    %352 = arith.mulf %341, %351 : vector<10x128xf32>
    %353 = arith.truncf %352 : vector<10x128xf32> to vector<10x128xbf16>
    %c1_149 = arith.constant 1 : index
    %c0_150 = arith.constant 0 : index
    %c0_151 = arith.constant 0 : index
    %354 = vector.load %arg12[%c1_149, %c0_150, %c0_151] : memref<2x128x32xbf16, #tpu.memory_space<vmem>>, vector<1x128x32xbf16>
    %355 = vector.shape_cast %354 : vector<1x128x32xbf16> to vector<128x32xbf16>
    %cst_152 = arith.constant dense<0.000000e+00> : vector<10x32xf32>
    %356 = tpu.matmul %353, %355, %cst_152 {dimension_numbers = #tpu.dot_dimension_numbers<[1], [0], [0], [1], [0, 0, 1, 1], [], []>} : vector<10x128xbf16>, vector<128x32xbf16>, vector<10x32xf32> -> vector<10x32xf32>
    %357 = vector.broadcast %201 : vector<1x32xf32> to vector<10x32xf32>
    %358 = arith.addf %356, %357 : vector<10x32xf32>
    %359 = vector.broadcast %199 : vector<1x32xf32> to vector<10x32xf32>
    %360 = arith.mulf %359, %358 : vector<10x32xf32>
    %361 = arith.addf %309, %360 : vector<10x32xf32>
    %c0_153 = arith.constant 0 : index
    %c0_154 = arith.constant 0 : index
    %362 = vector.load %arg13[%c0_153, %c0_154] : memref<1x32xf32, #tpu.memory_space<vmem>>, vector<1x32xf32>
    %c0_155 = arith.constant 0 : index
    %c0_156 = arith.constant 0 : index
    %363 = vector.load %arg14[%c0_155, %c0_156] : memref<1x32xf32, #tpu.memory_space<vmem>>, vector<1x32xf32>
    %cst_157 = arith.constant dense<0.000000e+00> : vector<10xf32>
    %364 = vector.multi_reduction <add>, %361, %cst_157 [1] : vector<10x32xf32> to vector<10xf32>
    %365 = vector.shape_cast %364 : vector<10xf32> to vector<10x1xf32>
    %cst_158 = arith.constant 3.200000e+01 : f32
    %366 = vector.broadcast %cst_158 : f32 to vector<10x1xf32>
    %367 = arith.divf %365, %366 : vector<10x1xf32>
    %368 = vector.broadcast %367 : vector<10x1xf32> to vector<10x32xf32>
    %369 = arith.subf %361, %368 : vector<10x32xf32>
    %370 = arith.mulf %369, %369 : vector<10x32xf32>
    %cst_159 = arith.constant dense<0.000000e+00> : vector<10xf32>
    %371 = vector.multi_reduction <add>, %370, %cst_159 [1] : vector<10x32xf32> to vector<10xf32>
    %372 = vector.shape_cast %371 : vector<10xf32> to vector<10x1xf32>
    %cst_160 = arith.constant 3.200000e+01 : f32
    %373 = vector.broadcast %cst_160 : f32 to vector<10x1xf32>
    %374 = arith.divf %372, %373 : vector<10x1xf32>
    %375 = vector.broadcast %367 : vector<10x1xf32> to vector<10x32xf32>
    %376 = arith.subf %361, %375 : vector<10x32xf32>
    %cst_161 = arith.constant 9.99999974E-6 : f32
    %377 = vector.broadcast %cst_161 : f32 to vector<10x1xf32>
    %378 = arith.addf %374, %377 : vector<10x1xf32>
    %379 = math.rsqrt %378 : vector<10x1xf32>
    %380 = vector.broadcast %379 : vector<10x1xf32> to vector<10x32xf32>
    %381 = arith.mulf %376, %380 : vector<10x32xf32>
    %382 = vector.broadcast %362 : vector<1x32xf32> to vector<10x32xf32>
    %383 = arith.mulf %381, %382 : vector<10x32xf32>
    %384 = vector.broadcast %363 : vector<1x32xf32> to vector<10x32xf32>
    %385 = arith.addf %383, %384 : vector<10x32xf32>
    %386 = arith.truncf %385 : vector<10x32xf32> to vector<10x32xbf16>
    %c0_162 = arith.constant 0 : index
    %c0_163 = arith.constant 0 : index
    %387 = vector.load %arg15[%c0_162, %c0_163] : memref<32x16xbf16, #tpu.memory_space<vmem>>, vector<32x16xbf16>
    %cst_164 = arith.constant dense<0.000000e+00> : vector<10x16xf32>
    %388 = tpu.matmul %386, %387, %cst_164 {dimension_numbers = #tpu.dot_dimension_numbers<[1], [0], [0], [1], [0, 0, 1, 1], [], []>} : vector<10x32xbf16>, vector<32x16xbf16>, vector<10x16xf32> -> vector<10x16xf32>
    %c0_165 = arith.constant 0 : index
    %c0_166 = arith.constant 0 : index
    %389 = vector.load %arg16[%c0_165, %c0_166] : memref<1x16xf32, #tpu.memory_space<vmem>>, vector<1x16xf32>
    %390 = vector.broadcast %389 : vector<1x16xf32> to vector<10x16xf32>
    %391 = arith.addf %388, %390 : vector<10x16xf32>
    %392 = vector.extract_strided_slice %391 {offsets = [1, 0], sizes = [9, 16], strides = [1, 1]} : vector<10x16xf32> to vector<9x16xf32>
    %c0_167 = arith.constant 0 : index
    %c0_168 = arith.constant 0 : index
    %393 = vector.load %arg17[%c0_167, %c0_168] : memref<1x16xf32, #tpu.memory_space<vmem>>, vector<1x16xf32>
    %394 = vector.shape_cast %393 : vector<1x16xf32> to vector<1x16xf32>
    %395 = vector.broadcast %394 : vector<1x16xf32> to vector<7x16xf32>
    %396 = tpu.concatenate %392, %395 in 0 : vector<9x16xf32>, vector<7x16xf32> -> vector<16x16xf32>
    %397 = tpu.iota {dimensions = array<i32: 1>} : vector<16x16xi32>
    %c0_169 = arith.constant 0 : index
    %c0_170 = arith.constant 0 : index
    %c0_171 = arith.constant 0 : index
    %398 = vector.load %arg2[%c0_169, %c0_170, %c0_171] : memref<1x16x1xi32, #tpu.memory_space<vmem>>, vector<1x16x1xi32>
    %399 = vector.shape_cast %398 : vector<1x16x1xi32> to vector<16x1xi32>
    %400 = vector.broadcast %399 : vector<16x1xi32> to vector<16x16xi32>
    %401 = arith.cmpi eq, %397, %400 : vector<16x16xi32>
    %402 = arith.extui %401 : vector<16x16xi1> to vector<16x16xi32>
    %403 = arith.sitofp %402 : vector<16x16xi32> to vector<16x16xf32>
    %cst_172 = arith.constant dense<0.000000e+00> : vector<16x16xf32>
    %404 = tpu.matmul %403, %396, %cst_172 {dimension_numbers = #tpu.dot_dimension_numbers<[1], [0], [0], [1], [0, 0, 1, 1], [], []>} : vector<16x16xf32>, vector<16x16xf32>, vector<16x16xf32> -> vector<16x16xf32>
    %405 = vector.extract_strided_slice %391 {offsets = [0, 0], sizes = [1, 16], strides = [1, 1]} : vector<10x16xf32> to vector<1x16xf32>
    %c0_173 = arith.constant 0 : index
    %c0_174 = arith.constant 0 : index
    %406 = vector.load %arg18[%c0_173, %c0_174] : memref<16x16xf32, #tpu.memory_space<vmem>>, vector<16x16xf32>
    %407 = arith.addf %406, %404 : vector<16x16xf32>
    %408 = tpu.concatenate %405, %407 in 0 : vector<1x16xf32>, vector<16x16xf32> -> vector<17x16xf32>
    %c0_175 = arith.constant 0 : index
    %c0_176 = arith.constant 0 : index
    %c0_177 = arith.constant 0 : index
    %409 = vector.load %arg19[%c0_175, %c0_176, %c0_177] : memref<8x1x16xf32, #tpu.memory_space<vmem>>, vector<1x1x16xf32>
    %410 = vector.shape_cast %409 : vector<1x1x16xf32> to vector<1x16xf32>
    %c1_178 = arith.constant 1 : index
    %c0_179 = arith.constant 0 : index
    %c0_180 = arith.constant 0 : index
    %411 = vector.load %arg19[%c1_178, %c0_179, %c0_180] : memref<8x1x16xf32, #tpu.memory_space<vmem>>, vector<1x1x16xf32>
    %412 = vector.shape_cast %411 : vector<1x1x16xf32> to vector<1x16xf32>
    %c2_181 = arith.constant 2 : index
    %c0_182 = arith.constant 0 : index
    %c0_183 = arith.constant 0 : index
    %413 = vector.load %arg19[%c2_181, %c0_182, %c0_183] : memref<8x1x16xf32, #tpu.memory_space<vmem>>, vector<1x1x16xf32>
    %414 = vector.shape_cast %413 : vector<1x1x16xf32> to vector<1x16xf32>
    %c3_184 = arith.constant 3 : index
    %c0_185 = arith.constant 0 : index
    %c0_186 = arith.constant 0 : index
    %415 = vector.load %arg19[%c3_184, %c0_185, %c0_186] : memref<8x1x16xf32, #tpu.memory_space<vmem>>, vector<1x1x16xf32>
    %416 = vector.shape_cast %415 : vector<1x1x16xf32> to vector<1x16xf32>
    %c4_187 = arith.constant 4 : index
    %c0_188 = arith.constant 0 : index
    %c0_189 = arith.constant 0 : index
    %417 = vector.load %arg19[%c4_187, %c0_188, %c0_189] : memref<8x1x16xf32, #tpu.memory_space<vmem>>, vector<1x1x16xf32>
    %418 = vector.shape_cast %417 : vector<1x1x16xf32> to vector<1x16xf32>
    %c5_190 = arith.constant 5 : index
    %c0_191 = arith.constant 0 : index
    %c0_192 = arith.constant 0 : index
    %419 = vector.load %arg19[%c5_190, %c0_191, %c0_192] : memref<8x1x16xf32, #tpu.memory_space<vmem>>, vector<1x1x16xf32>
    %420 = vector.shape_cast %419 : vector<1x1x16xf32> to vector<1x16xf32>
    %c6_193 = arith.constant 6 : index
    %c0_194 = arith.constant 0 : index
    %c0_195 = arith.constant 0 : index
    %421 = vector.load %arg19[%c6_193, %c0_194, %c0_195] : memref<8x1x16xf32, #tpu.memory_space<vmem>>, vector<1x1x16xf32>
    %422 = vector.shape_cast %421 : vector<1x1x16xf32> to vector<1x16xf32>
    %c7_196 = arith.constant 7 : index
    %c0_197 = arith.constant 0 : index
    %c0_198 = arith.constant 0 : index
    %423 = vector.load %arg19[%c7_196, %c0_197, %c0_198] : memref<8x1x16xf32, #tpu.memory_space<vmem>>, vector<1x1x16xf32>
    %424 = vector.shape_cast %423 : vector<1x1x16xf32> to vector<1x16xf32>
    %cst_199 = arith.constant dense<0.000000e+00> : vector<17xf32>
    %425 = vector.multi_reduction <add>, %408, %cst_199 [1] : vector<17x16xf32> to vector<17xf32>
    %426 = vector.shape_cast %425 : vector<17xf32> to vector<17x1xf32>
    %cst_200 = arith.constant 1.600000e+01 : f32
    %427 = vector.broadcast %cst_200 : f32 to vector<17x1xf32>
    %428 = arith.divf %426, %427 : vector<17x1xf32>
    %429 = vector.broadcast %428 : vector<17x1xf32> to vector<17x16xf32>
    %430 = arith.subf %408, %429 : vector<17x16xf32>
    %431 = arith.mulf %430, %430 : vector<17x16xf32>
    %cst_201 = arith.constant dense<0.000000e+00> : vector<17xf32>
    %432 = vector.multi_reduction <add>, %431, %cst_201 [1] : vector<17x16xf32> to vector<17xf32>
    %433 = vector.shape_cast %432 : vector<17xf32> to vector<17x1xf32>
    %cst_202 = arith.constant 1.600000e+01 : f32
    %434 = vector.broadcast %cst_202 : f32 to vector<17x1xf32>
    %435 = arith.divf %433, %434 : vector<17x1xf32>
    %436 = vector.broadcast %428 : vector<17x1xf32> to vector<17x16xf32>
    %437 = arith.subf %408, %436 : vector<17x16xf32>
    %cst_203 = arith.constant 9.99999974E-6 : f32
    %438 = vector.broadcast %cst_203 : f32 to vector<17x1xf32>
    %439 = arith.addf %435, %438 : vector<17x1xf32>
    %440 = math.rsqrt %439 : vector<17x1xf32>
    %441 = vector.broadcast %440 : vector<17x1xf32> to vector<17x16xf32>
    %442 = arith.mulf %437, %441 : vector<17x16xf32>
    %443 = vector.broadcast %410 : vector<1x16xf32> to vector<17x16xf32>
    %444 = arith.mulf %442, %443 : vector<17x16xf32>
    %445 = vector.broadcast %412 : vector<1x16xf32> to vector<17x16xf32>
    %446 = arith.addf %444, %445 : vector<17x16xf32>
    %447 = arith.truncf %446 : vector<17x16xf32> to vector<17x16xbf16>
    %c0_204 = arith.constant 0 : index
    %c0_205 = arith.constant 0 : index
    %c0_206 = arith.constant 0 : index
    %448 = vector.load %arg20[%c0_204, %c0_205, %c0_206] : memref<1x16x48xbf16, #tpu.memory_space<vmem>>, vector<1x16x48xbf16>
    %449 = vector.shape_cast %448 : vector<1x16x48xbf16> to vector<16x48xbf16>
    %cst_207 = arith.constant dense<0.000000e+00> : vector<17x48xf32>
    %450 = tpu.matmul %447, %449, %cst_207 {dimension_numbers = #tpu.dot_dimension_numbers<[1], [0], [0], [1], [0, 0, 1, 1], [], []>} : vector<17x16xbf16>, vector<16x48xbf16>, vector<17x48xf32> -> vector<17x48xf32>
    %c0_208 = arith.constant 0 : index
    %c0_209 = arith.constant 0 : index
    %c0_210 = arith.constant 0 : index
    %451 = vector.load %arg21[%c0_208, %c0_209, %c0_210] : memref<1x1x48xf32, #tpu.memory_space<vmem>>, vector<1x1x48xf32>
    %452 = vector.shape_cast %451 : vector<1x1x48xf32> to vector<1x48xf32>
    %453 = vector.broadcast %452 : vector<1x48xf32> to vector<17x48xf32>
    %454 = arith.addf %450, %453 : vector<17x48xf32>
    %455 = vector.extract_strided_slice %454 {offsets = [0, 0], sizes = [17, 4], strides = [1, 1]} : vector<17x48xf32> to vector<17x4xf32>
    %456 = vector.extract_strided_slice %454 {offsets = [0, 16], sizes = [17, 4], strides = [1, 1]} : vector<17x48xf32> to vector<17x4xf32>
    %457 = vector.extract_strided_slice %454 {offsets = [0, 32], sizes = [17, 4], strides = [1, 1]} : vector<17x48xf32> to vector<17x4xf32>
    %cst_211 = arith.constant 5.000000e-01 : f32
    %458 = vector.broadcast %cst_211 : f32 to vector<17x4xf32>
    %459 = arith.mulf %455, %458 : vector<17x4xf32>
    %cst_212 = arith.constant dense<0.000000e+00> : vector<17x17xf32>
    %460 = tpu.matmul %459, %456, %cst_212 {dimension_numbers = #tpu.dot_dimension_numbers<[1], [1], [0], [0], [0, 0, 1, 0], [], []>} : vector<17x4xf32>, vector<17x4xf32>, vector<17x17xf32> -> vector<17x17xf32>
    %cst_213 = arith.constant dense<0xFF800000> : vector<17xf32>
    %461 = vector.multi_reduction <maximumf>, %460, %cst_213 [1] : vector<17x17xf32> to vector<17xf32>
    %462 = vector.shape_cast %461 : vector<17xf32> to vector<17x1xf32>
    %463 = vector.broadcast %462 : vector<17x1xf32> to vector<17x17xf32>
    %464 = arith.subf %460, %463 : vector<17x17xf32>
    %465 = math.exp %464 : vector<17x17xf32>
    %cst_214 = arith.constant dense<0.000000e+00> : vector<17xf32>
    %466 = vector.multi_reduction <add>, %465, %cst_214 [1] : vector<17x17xf32> to vector<17xf32>
    %467 = vector.shape_cast %466 : vector<17xf32> to vector<17x1xf32>
    %468 = tpu.reciprocal %467 {approx = true} : vector<17x1xf32> -> vector<17x1xf32>
    %469 = vector.broadcast %468 : vector<17x1xf32> to vector<17x17xf32>
    %470 = arith.mulf %465, %469 : vector<17x17xf32>
    %cst_215 = arith.constant dense<0.000000e+00> : vector<17x4xf32>
    %471 = tpu.matmul %470, %457, %cst_215 {dimension_numbers = #tpu.dot_dimension_numbers<[1], [0], [0], [1], [0, 0, 1, 1], [], []>} : vector<17x17xf32>, vector<17x4xf32>, vector<17x4xf32> -> vector<17x4xf32>
    %472 = vector.extract_strided_slice %454 {offsets = [0, 4], sizes = [17, 4], strides = [1, 1]} : vector<17x48xf32> to vector<17x4xf32>
    %473 = vector.extract_strided_slice %454 {offsets = [0, 20], sizes = [17, 4], strides = [1, 1]} : vector<17x48xf32> to vector<17x4xf32>
    %474 = vector.extract_strided_slice %454 {offsets = [0, 36], sizes = [17, 4], strides = [1, 1]} : vector<17x48xf32> to vector<17x4xf32>
    %cst_216 = arith.constant 5.000000e-01 : f32
    %475 = vector.broadcast %cst_216 : f32 to vector<17x4xf32>
    %476 = arith.mulf %472, %475 : vector<17x4xf32>
    %cst_217 = arith.constant dense<0.000000e+00> : vector<17x17xf32>
    %477 = tpu.matmul %476, %473, %cst_217 {dimension_numbers = #tpu.dot_dimension_numbers<[1], [1], [0], [0], [0, 0, 1, 0], [], []>} : vector<17x4xf32>, vector<17x4xf32>, vector<17x17xf32> -> vector<17x17xf32>
    %cst_218 = arith.constant dense<0xFF800000> : vector<17xf32>
    %478 = vector.multi_reduction <maximumf>, %477, %cst_218 [1] : vector<17x17xf32> to vector<17xf32>
    %479 = vector.shape_cast %478 : vector<17xf32> to vector<17x1xf32>
    %480 = vector.broadcast %479 : vector<17x1xf32> to vector<17x17xf32>
    %481 = arith.subf %477, %480 : vector<17x17xf32>
    %482 = math.exp %481 : vector<17x17xf32>
    %cst_219 = arith.constant dense<0.000000e+00> : vector<17xf32>
    %483 = vector.multi_reduction <add>, %482, %cst_219 [1] : vector<17x17xf32> to vector<17xf32>
    %484 = vector.shape_cast %483 : vector<17xf32> to vector<17x1xf32>
    %485 = tpu.reciprocal %484 {approx = true} : vector<17x1xf32> -> vector<17x1xf32>
    %486 = vector.broadcast %485 : vector<17x1xf32> to vector<17x17xf32>
    %487 = arith.mulf %482, %486 : vector<17x17xf32>
    %cst_220 = arith.constant dense<0.000000e+00> : vector<17x4xf32>
    %488 = tpu.matmul %487, %474, %cst_220 {dimension_numbers = #tpu.dot_dimension_numbers<[1], [0], [0], [1], [0, 0, 1, 1], [], []>} : vector<17x17xf32>, vector<17x4xf32>, vector<17x4xf32> -> vector<17x4xf32>
    %489 = vector.extract_strided_slice %454 {offsets = [0, 8], sizes = [17, 4], strides = [1, 1]} : vector<17x48xf32> to vector<17x4xf32>
    %490 = vector.extract_strided_slice %454 {offsets = [0, 24], sizes = [17, 4], strides = [1, 1]} : vector<17x48xf32> to vector<17x4xf32>
    %491 = vector.extract_strided_slice %454 {offsets = [0, 40], sizes = [17, 4], strides = [1, 1]} : vector<17x48xf32> to vector<17x4xf32>
    %cst_221 = arith.constant 5.000000e-01 : f32
    %492 = vector.broadcast %cst_221 : f32 to vector<17x4xf32>
    %493 = arith.mulf %489, %492 : vector<17x4xf32>
    %cst_222 = arith.constant dense<0.000000e+00> : vector<17x17xf32>
    %494 = tpu.matmul %493, %490, %cst_222 {dimension_numbers = #tpu.dot_dimension_numbers<[1], [1], [0], [0], [0, 0, 1, 0], [], []>} : vector<17x4xf32>, vector<17x4xf32>, vector<17x17xf32> -> vector<17x17xf32>
    %cst_223 = arith.constant dense<0xFF800000> : vector<17xf32>
    %495 = vector.multi_reduction <maximumf>, %494, %cst_223 [1] : vector<17x17xf32> to vector<17xf32>
    %496 = vector.shape_cast %495 : vector<17xf32> to vector<17x1xf32>
    %497 = vector.broadcast %496 : vector<17x1xf32> to vector<17x17xf32>
    %498 = arith.subf %494, %497 : vector<17x17xf32>
    %499 = math.exp %498 : vector<17x17xf32>
    %cst_224 = arith.constant dense<0.000000e+00> : vector<17xf32>
    %500 = vector.multi_reduction <add>, %499, %cst_224 [1] : vector<17x17xf32> to vector<17xf32>
    %501 = vector.shape_cast %500 : vector<17xf32> to vector<17x1xf32>
    %502 = tpu.reciprocal %501 {approx = true} : vector<17x1xf32> -> vector<17x1xf32>
    %503 = vector.broadcast %502 : vector<17x1xf32> to vector<17x17xf32>
    %504 = arith.mulf %499, %503 : vector<17x17xf32>
    %cst_225 = arith.constant dense<0.000000e+00> : vector<17x4xf32>
    %505 = tpu.matmul %504, %491, %cst_225 {dimension_numbers = #tpu.dot_dimension_numbers<[1], [0], [0], [1], [0, 0, 1, 1], [], []>} : vector<17x17xf32>, vector<17x4xf32>, vector<17x4xf32> -> vector<17x4xf32>
    %506 = vector.extract_strided_slice %454 {offsets = [0, 12], sizes = [17, 4], strides = [1, 1]} : vector<17x48xf32> to vector<17x4xf32>
    %507 = vector.extract_strided_slice %454 {offsets = [0, 28], sizes = [17, 4], strides = [1, 1]} : vector<17x48xf32> to vector<17x4xf32>
    %508 = vector.extract_strided_slice %454 {offsets = [0, 44], sizes = [17, 4], strides = [1, 1]} : vector<17x48xf32> to vector<17x4xf32>
    %cst_226 = arith.constant 5.000000e-01 : f32
    %509 = vector.broadcast %cst_226 : f32 to vector<17x4xf32>
    %510 = arith.mulf %506, %509 : vector<17x4xf32>
    %cst_227 = arith.constant dense<0.000000e+00> : vector<17x17xf32>
    %511 = tpu.matmul %510, %507, %cst_227 {dimension_numbers = #tpu.dot_dimension_numbers<[1], [1], [0], [0], [0, 0, 1, 0], [], []>} : vector<17x4xf32>, vector<17x4xf32>, vector<17x17xf32> -> vector<17x17xf32>
    %cst_228 = arith.constant dense<0xFF800000> : vector<17xf32>
    %512 = vector.multi_reduction <maximumf>, %511, %cst_228 [1] : vector<17x17xf32> to vector<17xf32>
    %513 = vector.shape_cast %512 : vector<17xf32> to vector<17x1xf32>
    %514 = vector.broadcast %513 : vector<17x1xf32> to vector<17x17xf32>
    %515 = arith.subf %511, %514 : vector<17x17xf32>
    %516 = math.exp %515 : vector<17x17xf32>
    %cst_229 = arith.constant dense<0.000000e+00> : vector<17xf32>
    %517 = vector.multi_reduction <add>, %516, %cst_229 [1] : vector<17x17xf32> to vector<17xf32>
    %518 = vector.shape_cast %517 : vector<17xf32> to vector<17x1xf32>
    %519 = tpu.reciprocal %518 {approx = true} : vector<17x1xf32> -> vector<17x1xf32>
    %520 = vector.broadcast %519 : vector<17x1xf32> to vector<17x17xf32>
    %521 = arith.mulf %516, %520 : vector<17x17xf32>
    %cst_230 = arith.constant dense<0.000000e+00> : vector<17x4xf32>
    %522 = tpu.matmul %521, %508, %cst_230 {dimension_numbers = #tpu.dot_dimension_numbers<[1], [0], [0], [1], [0, 0, 1, 1], [], []>} : vector<17x17xf32>, vector<17x4xf32>, vector<17x4xf32> -> vector<17x4xf32>
    %523 = tpu.concatenate %471, %488, %505, %522 in 1 : vector<17x4xf32>, vector<17x4xf32>, vector<17x4xf32>, vector<17x4xf32> -> vector<17x16xf32>
    %524 = arith.truncf %523 : vector<17x16xf32> to vector<17x16xbf16>
    %c0_231 = arith.constant 0 : index
    %c0_232 = arith.constant 0 : index
    %c0_233 = arith.constant 0 : index
    %525 = vector.load %arg22[%c0_231, %c0_232, %c0_233] : memref<1x16x16xbf16, #tpu.memory_space<vmem>>, vector<1x16x16xbf16>
    %526 = vector.shape_cast %525 : vector<1x16x16xbf16> to vector<16x16xbf16>
    %cst_234 = arith.constant dense<0.000000e+00> : vector<17x16xf32>
    %527 = tpu.matmul %524, %526, %cst_234 {dimension_numbers = #tpu.dot_dimension_numbers<[1], [0], [0], [1], [0, 0, 1, 1], [], []>} : vector<17x16xbf16>, vector<16x16xbf16>, vector<17x16xf32> -> vector<17x16xf32>
    %528 = vector.broadcast %416 : vector<1x16xf32> to vector<17x16xf32>
    %529 = arith.addf %527, %528 : vector<17x16xf32>
    %530 = vector.broadcast %414 : vector<1x16xf32> to vector<17x16xf32>
    %531 = arith.mulf %530, %529 : vector<17x16xf32>
    %532 = arith.addf %408, %531 : vector<17x16xf32>
    %cst_235 = arith.constant dense<0.000000e+00> : vector<17xf32>
    %533 = vector.multi_reduction <add>, %532, %cst_235 [1] : vector<17x16xf32> to vector<17xf32>
    %534 = vector.shape_cast %533 : vector<17xf32> to vector<17x1xf32>
    %cst_236 = arith.constant 1.600000e+01 : f32
    %535 = vector.broadcast %cst_236 : f32 to vector<17x1xf32>
    %536 = arith.divf %534, %535 : vector<17x1xf32>
    %537 = vector.broadcast %536 : vector<17x1xf32> to vector<17x16xf32>
    %538 = arith.subf %532, %537 : vector<17x16xf32>
    %539 = arith.mulf %538, %538 : vector<17x16xf32>
    %cst_237 = arith.constant dense<0.000000e+00> : vector<17xf32>
    %540 = vector.multi_reduction <add>, %539, %cst_237 [1] : vector<17x16xf32> to vector<17xf32>
    %541 = vector.shape_cast %540 : vector<17xf32> to vector<17x1xf32>
    %cst_238 = arith.constant 1.600000e+01 : f32
    %542 = vector.broadcast %cst_238 : f32 to vector<17x1xf32>
    %543 = arith.divf %541, %542 : vector<17x1xf32>
    %544 = vector.broadcast %536 : vector<17x1xf32> to vector<17x16xf32>
    %545 = arith.subf %532, %544 : vector<17x16xf32>
    %cst_239 = arith.constant 9.99999974E-6 : f32
    %546 = vector.broadcast %cst_239 : f32 to vector<17x1xf32>
    %547 = arith.addf %543, %546 : vector<17x1xf32>
    %548 = math.rsqrt %547 : vector<17x1xf32>
    %549 = vector.broadcast %548 : vector<17x1xf32> to vector<17x16xf32>
    %550 = arith.mulf %545, %549 : vector<17x16xf32>
    %551 = vector.broadcast %418 : vector<1x16xf32> to vector<17x16xf32>
    %552 = arith.mulf %550, %551 : vector<17x16xf32>
    %553 = vector.broadcast %420 : vector<1x16xf32> to vector<17x16xf32>
    %554 = arith.addf %552, %553 : vector<17x16xf32>
    %555 = arith.truncf %554 : vector<17x16xf32> to vector<17x16xbf16>
    %c0_240 = arith.constant 0 : index
    %c0_241 = arith.constant 0 : index
    %c0_242 = arith.constant 0 : index
    %556 = vector.load %arg23[%c0_240, %c0_241, %c0_242] : memref<1x16x64xbf16, #tpu.memory_space<vmem>>, vector<1x16x64xbf16>
    %557 = vector.shape_cast %556 : vector<1x16x64xbf16> to vector<16x64xbf16>
    %cst_243 = arith.constant dense<0.000000e+00> : vector<17x64xf32>
    %558 = tpu.matmul %555, %557, %cst_243 {dimension_numbers = #tpu.dot_dimension_numbers<[1], [0], [0], [1], [0, 0, 1, 1], [], []>} : vector<17x16xbf16>, vector<16x64xbf16>, vector<17x64xf32> -> vector<17x64xf32>
    %c0_244 = arith.constant 0 : index
    %c0_245 = arith.constant 0 : index
    %c0_246 = arith.constant 0 : index
    %559 = vector.load %arg24[%c0_244, %c0_245, %c0_246] : memref<1x1x64xf32, #tpu.memory_space<vmem>>, vector<1x1x64xf32>
    %560 = vector.shape_cast %559 : vector<1x1x64xf32> to vector<1x64xf32>
    %561 = vector.broadcast %560 : vector<1x64xf32> to vector<17x64xf32>
    %562 = arith.addf %558, %561 : vector<17x64xf32>
    %cst_247 = arith.constant 5.000000e-01 : f32
    %563 = vector.broadcast %cst_247 : f32 to vector<17x64xf32>
    %564 = arith.mulf %563, %562 : vector<17x64xf32>
    %cst_248 = arith.constant 4.471500e-02 : f32
    %565 = vector.broadcast %cst_248 : f32 to vector<17x64xf32>
    %566 = arith.mulf %565, %562 : vector<17x64xf32>
    %567 = arith.mulf %566, %562 : vector<17x64xf32>
    %568 = arith.mulf %567, %562 : vector<17x64xf32>
    %569 = arith.addf %562, %568 : vector<17x64xf32>
    %cst_249 = arith.constant 0.797884583 : f32
    %570 = vector.broadcast %cst_249 : f32 to vector<17x64xf32>
    %571 = arith.mulf %570, %569 : vector<17x64xf32>
    %572 = math.tanh %571 : vector<17x64xf32>
    %cst_250 = arith.constant 1.000000e+00 : f32
    %573 = vector.broadcast %cst_250 : f32 to vector<17x64xf32>
    %574 = arith.addf %573, %572 : vector<17x64xf32>
    %575 = arith.mulf %564, %574 : vector<17x64xf32>
    %576 = arith.truncf %575 : vector<17x64xf32> to vector<17x64xbf16>
    %c0_251 = arith.constant 0 : index
    %c0_252 = arith.constant 0 : index
    %c0_253 = arith.constant 0 : index
    %577 = vector.load %arg25[%c0_251, %c0_252, %c0_253] : memref<1x64x16xbf16, #tpu.memory_space<vmem>>, vector<1x64x16xbf16>
    %578 = vector.shape_cast %577 : vector<1x64x16xbf16> to vector<64x16xbf16>
    %cst_254 = arith.constant dense<0.000000e+00> : vector<17x16xf32>
    %579 = tpu.matmul %576, %578, %cst_254 {dimension_numbers = #tpu.dot_dimension_numbers<[1], [0], [0], [1], [0, 0, 1, 1], [], []>} : vector<17x64xbf16>, vector<64x16xbf16>, vector<17x16xf32> -> vector<17x16xf32>
    %580 = vector.broadcast %424 : vector<1x16xf32> to vector<17x16xf32>
    %581 = arith.addf %579, %580 : vector<17x16xf32>
    %582 = vector.broadcast %422 : vector<1x16xf32> to vector<17x16xf32>
    %583 = arith.mulf %582, %581 : vector<17x16xf32>
    %584 = arith.addf %532, %583 : vector<17x16xf32>
    %585 = vector.extract_strided_slice %584 {offsets = [1, 0], sizes = [16, 16], strides = [1, 1]} : vector<17x16xf32> to vector<16x16xf32>
    %c0_255 = arith.constant 0 : index
    %c0_256 = arith.constant 0 : index
    %586 = vector.load %arg26[%c0_255, %c0_256] : memref<1x16xf32, #tpu.memory_space<vmem>>, vector<1x16xf32>
    %c0_257 = arith.constant 0 : index
    %c0_258 = arith.constant 0 : index
    %587 = vector.load %arg27[%c0_257, %c0_258] : memref<1x16xf32, #tpu.memory_space<vmem>>, vector<1x16xf32>
    %cst_259 = arith.constant dense<0.000000e+00> : vector<16xf32>
    %588 = vector.multi_reduction <add>, %585, %cst_259 [1] : vector<16x16xf32> to vector<16xf32>
    %589 = vector.shape_cast %588 : vector<16xf32> to vector<16x1xf32>
    %cst_260 = arith.constant 1.600000e+01 : f32
    %590 = vector.broadcast %cst_260 : f32 to vector<16x1xf32>
    %591 = arith.divf %589, %590 : vector<16x1xf32>
    %592 = vector.broadcast %591 : vector<16x1xf32> to vector<16x16xf32>
    %593 = arith.subf %585, %592 : vector<16x16xf32>
    %594 = arith.mulf %593, %593 : vector<16x16xf32>
    %cst_261 = arith.constant dense<0.000000e+00> : vector<16xf32>
    %595 = vector.multi_reduction <add>, %594, %cst_261 [1] : vector<16x16xf32> to vector<16xf32>
    %596 = vector.shape_cast %595 : vector<16xf32> to vector<16x1xf32>
    %cst_262 = arith.constant 1.600000e+01 : f32
    %597 = vector.broadcast %cst_262 : f32 to vector<16x1xf32>
    %598 = arith.divf %596, %597 : vector<16x1xf32>
    %599 = vector.broadcast %591 : vector<16x1xf32> to vector<16x16xf32>
    %600 = arith.subf %585, %599 : vector<16x16xf32>
    %cst_263 = arith.constant 9.99999974E-6 : f32
    %601 = vector.broadcast %cst_263 : f32 to vector<16x1xf32>
    %602 = arith.addf %598, %601 : vector<16x1xf32>
    %603 = math.rsqrt %602 : vector<16x1xf32>
    %604 = vector.broadcast %603 : vector<16x1xf32> to vector<16x16xf32>
    %605 = arith.mulf %600, %604 : vector<16x16xf32>
    %606 = vector.broadcast %586 : vector<1x16xf32> to vector<16x16xf32>
    %607 = arith.mulf %605, %606 : vector<16x16xf32>
    %608 = vector.broadcast %587 : vector<1x16xf32> to vector<16x16xf32>
    %609 = arith.addf %607, %608 : vector<16x16xf32>
    %610 = arith.truncf %609 : vector<16x16xf32> to vector<16x16xbf16>
    %c0_264 = arith.constant 0 : index
    %c0_265 = arith.constant 0 : index
    %611 = vector.load %arg28[%c0_264, %c0_265] : memref<16x128xbf16, #tpu.memory_space<vmem>>, vector<16x128xbf16>
    %cst_266 = arith.constant dense<0.000000e+00> : vector<16x128xf32>
    %612 = tpu.matmul %610, %611, %cst_266 {dimension_numbers = #tpu.dot_dimension_numbers<[1], [0], [0], [1], [0, 0, 1, 1], [], []>} : vector<16x16xbf16>, vector<16x128xbf16>, vector<16x128xf32> -> vector<16x128xf32>
    %c0_267 = arith.constant 0 : index
    %c0_268 = arith.constant 0 : index
    %613 = vector.load %arg29[%c0_267, %c0_268] : memref<1x128xf32, #tpu.memory_space<vmem>>, vector<1x128xf32>
    %614 = vector.broadcast %613 : vector<1x128xf32> to vector<16x128xf32>
    %615 = arith.addf %612, %614 : vector<16x128xf32>
    %c0_269 = arith.constant 0 : index
    %c0_270 = arith.constant 0 : index
    %c0_271 = arith.constant 0 : index
    %616 = vector.load %arg30[%c0_269, %c0_270, %c0_271] : memref<1x16x128xf32, #tpu.memory_space<vmem>>, vector<1x16x128xf32>
    %617 = vector.shape_cast %616 : vector<1x16x128xf32> to vector<16x128xf32>
    %618 = vector.shape_cast %615 : vector<16x128xf32> to vector<1x16x128xf32>
    tpu.vector_store %arg30[%c0_269, %c0_270, %c0_271], %618 {strides = array<i32>} : memref<1x16x128xf32, #tpu.memory_space<vmem>>, vector<1x16x128xf32>,
    return
  }
  func.func @transform_0(%arg0: i32) -> (i32, i32, i32) {
    %c0_i32 = arith.constant 0 : i32
    %c0_i32_0 = arith.constant 0 : i32
    %c0_i32_1 = arith.constant 0 : i32
    return %arg0, %c0_i32, %c0_i32_0 : i32, i32, i32
  }
  func.func @transform_1(%arg0: i32) -> (i32, i32, i32) {
    %c0_i32 = arith.constant 0 : i32
    %c0_i32_0 = arith.constant 0 : i32
    %c0_i32_1 = arith.constant 0 : i32
    return %arg0, %c0_i32, %c0_i32_0 : i32, i32, i32
  }
  func.func @transform_2(%arg0: i32) -> (i32, i32) {
    %c0_i32 = arith.constant 0 : i32
    %c0_i32_0 = arith.constant 0 : i32
    %c0_i32_1 = arith.constant 0 : i32
    return %c0_i32, %c0_i32_0 : i32, i32
  }
  func.func @transform_3(%arg0: i32) -> (i32, i32) {
    %c0_i32 = arith.constant 0 : i32
    %c0_i32_0 = arith.constant 0 : i32
    %c0_i32_1 = arith.constant 0 : i32
    return %c0_i32, %c0_i32_0 : i32, i32
  }
  func.func @transform_4(%arg0: i32) -> (i32, i32) {
    %c0_i32 = arith.constant 0 : i32
    %c0_i32_0 = arith.constant 0 : i32
    %c0_i32_1 = arith.constant 0 : i32
    return %c0_i32, %c0_i32_0 : i32, i32
  }
  func.func @transform_5(%arg0: i32) -> (i32, i32, i32) {
    %c0_i32 = arith.constant 0 : i32
    %c0_i32_0 = arith.constant 0 : i32
    %c0_i32_1 = arith.constant 0 : i32
    %c0_i32_2 = arith.constant 0 : i32
    return %c0_i32, %c0_i32_0, %c0_i32_1 : i32, i32, i32
  }
  func.func @transform_6(%arg0: i32) -> (i32, i32, i32) {
    %c0_i32 = arith.constant 0 : i32
    %c0_i32_0 = arith.constant 0 : i32
    %c0_i32_1 = arith.constant 0 : i32
    %c0_i32_2 = arith.constant 0 : i32
    return %c0_i32, %c0_i32_0, %c0_i32_1 : i32, i32, i32
  }
  func.func @transform_7(%arg0: i32) -> (i32, i32, i32) {
    %c0_i32 = arith.constant 0 : i32
    %c0_i32_0 = arith.constant 0 : i32
    %c0_i32_1 = arith.constant 0 : i32
    %c0_i32_2 = arith.constant 0 : i32
    return %c0_i32, %c0_i32_0, %c0_i32_1 : i32, i32, i32
  }
  func.func @transform_8(%arg0: i32) -> (i32, i32, i32) {
    %c0_i32 = arith.constant 0 : i32
    %c0_i32_0 = arith.constant 0 : i32
    %c0_i32_1 = arith.constant 0 : i32
    %c0_i32_2 = arith.constant 0 : i32
    return %c0_i32, %c0_i32_0, %c0_i32_1 : i32, i32, i32
  }
  func.func @transform_9(%arg0: i32) -> (i32, i32, i32) {
    %c0_i32 = arith.constant 0 : i32
    %c0_i32_0 = arith.constant 0 : i32
    %c0_i32_1 = arith.constant 0 : i32
    %c0_i32_2 = arith.constant 0 : i32
    return %c0_i32, %c0_i32_0, %c0_i32_1 : i32, i32, i32
  }
  func.func @transform_10(%arg0: i32) -> (i32, i32, i32) {
    %c0_i32 = arith.constant 0 : i32
    %c0_i32_0 = arith.constant 0 : i32
    %c0_i32_1 = arith.constant 0 : i32
    %c0_i32_2 = arith.constant 0 : i32
    return %c0_i32, %c0_i32_0, %c0_i32_1 : i32, i32, i32
  }
  func.func @transform_11(%arg0: i32) -> (i32, i32, i32) {
    %c0_i32 = arith.constant 0 : i32
    %c0_i32_0 = arith.constant 0 : i32
    %c0_i32_1 = arith.constant 0 : i32
    %c0_i32_2 = arith.constant 0 : i32
    return %c0_i32, %c0_i32_0, %c0_i32_1 : i32, i32, i32
  }
  func.func @transform_12(%arg0: i32) -> (i32, i32) {
    %c0_i32 = arith.constant 0 : i32
    %c0_i32_0 = arith.constant 0 : i32
    %c0_i32_1 = arith.constant 0 : i32
    return %c0_i32, %c0_i32_0 : i32, i32
  }
  func.func @transform_13(%arg0: i32) -> (i32, i32) {
    %c0_i32 = arith.constant 0 : i32
    %c0_i32_0 = arith.constant 0 : i32
    %c0_i32_1 = arith.constant 0 : i32
    return %c0_i32, %c0_i32_0 : i32, i32
  }
  func.func @transform_14(%arg0: i32) -> (i32, i32) {
    %c0_i32 = arith.constant 0 : i32
    %c0_i32_0 = arith.constant 0 : i32
    %c0_i32_1 = arith.constant 0 : i32
    return %c0_i32, %c0_i32_0 : i32, i32
  }
  func.func @transform_15(%arg0: i32) -> (i32, i32) {
    %c0_i32 = arith.constant 0 : i32
    %c0_i32_0 = arith.constant 0 : i32
    %c0_i32_1 = arith.constant 0 : i32
    return %c0_i32, %c0_i32_0 : i32, i32
  }
  func.func @transform_16(%arg0: i32) -> (i32, i32) {
    %c0_i32 = arith.constant 0 : i32
    %c0_i32_0 = arith.constant 0 : i32
    %c0_i32_1 = arith.constant 0 : i32
    return %c0_i32, %c0_i32_0 : i32, i32
  }
  func.func @transform_17(%arg0: i32) -> (i32, i32) {
    %c0_i32 = arith.constant 0 : i32
    %c0_i32_0 = arith.constant 0 : i32
    %c0_i32_1 = arith.constant 0 : i32
    return %c0_i32, %c0_i32_0 : i32, i32
  }
  func.func @transform_18(%arg0: i32) -> (i32, i32, i32) {
    %c0_i32 = arith.constant 0 : i32
    %c0_i32_0 = arith.constant 0 : i32
    %c0_i32_1 = arith.constant 0 : i32
    %c0_i32_2 = arith.constant 0 : i32
    return %c0_i32, %c0_i32_0, %c0_i32_1 : i32, i32, i32
  }
  func.func @transform_19(%arg0: i32) -> (i32, i32, i32) {
    %c0_i32 = arith.constant 0 : i32
    %c0_i32_0 = arith.constant 0 : i32
    %c0_i32_1 = arith.constant 0 : i32
    %c0_i32_2 = arith.constant 0 : i32
    return %c0_i32, %c0_i32_0, %c0_i32_1 : i32, i32, i32
  }
  func.func @transform_20(%arg0: i32) -> (i32, i32, i32) {
    %c0_i32 = arith.constant 0 : i32
    %c0_i32_0 = arith.constant 0 : i32
    %c0_i32_1 = arith.constant 0 : i32
    %c0_i32_2 = arith.constant 0 : i32
    return %c0_i32, %c0_i32_0, %c0_i32_1 : i32, i32, i32
  }
  func.func @transform_21(%arg0: i32) -> (i32, i32, i32) {
    %c0_i32 = arith.constant 0 : i32
    %c0_i32_0 = arith.constant 0 : i32
    %c0_i32_1 = arith.constant 0 : i32
    %c0_i32_2 = arith.constant 0 : i32
    return %c0_i32, %c0_i32_0, %c0_i32_1 : i32, i32, i32
  }
  func.func @transform_22(%arg0: i32) -> (i32, i32, i32) {
    %c0_i32 = arith.constant 0 : i32
    %c0_i32_0 = arith.constant 0 : i32
    %c0_i32_1 = arith.constant 0 : i32
    %c0_i32_2 = arith.constant 0 : i32
    return %c0_i32, %c0_i32_0, %c0_i32_1 : i32, i32, i32
  }
  func.func @transform_23(%arg0: i32) -> (i32, i32, i32) {
    %c0_i32 = arith.constant 0 : i32
    %c0_i32_0 = arith.constant 0 : i32
    %c0_i32_1 = arith.constant 0 : i32
    %c0_i32_2 = arith.constant 0 : i32
    return %c0_i32, %c0_i32_0, %c0_i32_1 : i32, i32, i32
  }
  func.func @transform_24(%arg0: i32) -> (i32, i32, i32) {
    %c0_i32 = arith.constant 0 : i32
    %c0_i32_0 = arith.constant 0 : i32
    %c0_i32_1 = arith.constant 0 : i32
    %c0_i32_2 = arith.constant 0 : i32
    return %c0_i32, %c0_i32_0, %c0_i32_1 : i32, i32, i32
  }
  func.func @transform_25(%arg0: i32) -> (i32, i32) {
    %c0_i32 = arith.constant 0 : i32
    %c0_i32_0 = arith.constant 0 : i32
    %c0_i32_1 = arith.constant 0 : i32
    return %c0_i32, %c0_i32_0 : i32, i32
  }
  func.func @transform_26(%arg0: i32) -> (i32, i32) {
    %c0_i32 = arith.constant 0 : i32
    %c0_i32_0 = arith.constant 0 : i32
    %c0_i32_1 = arith.constant 0 : i32
    return %c0_i32, %c0_i32_0 : i32, i32
  }
  func.func @transform_27(%arg0: i32) -> (i32, i32) {
    %c0_i32 = arith.constant 0 : i32
    %c0_i32_0 = arith.constant 0 : i32
    %c0_i32_1 = arith.constant 0 : i32
    return %c0_i32, %c0_i32_0 : i32, i32
  }
  func.func @transform_28(%arg0: i32) -> (i32, i32) {
    %c0_i32 = arith.constant 0 : i32
    %c0_i32_0 = arith.constant 0 : i32
    %c0_i32_1 = arith.constant 0 : i32
    return %c0_i32, %c0_i32_0 : i32, i32
  }
  func.func @transform_29(%arg0: i32) -> (i32, i32, i32) {
    %c0_i32 = arith.constant 0 : i32
    %c0_i32_0 = arith.constant 0 : i32
    %c0_i32_1 = arith.constant 0 : i32
    return %arg0, %c0_i32, %c0_i32_0 : i32, i32, i32
  }
}

</mosaic_0001>

<llo_original>
// kernel: mae_forward.1
$region0: #{mae_forward.1}
  #allocation0 [shape = 'u32[]', space=smem, size = 0x4, offset = 0x4, fixed_abs, tag = 'smem constant byte address 0x4 - core index']
  #allocation1 [shape = 'u32[144,128]{1,0:T(1,128)}', space=vmem, size = 0x12000, scoped, tag = 'internal scratch']
  %s0 = inlined_call_operand.smem [shape: u32[30], index: -1, kind: input, shape index: {}]
  %s1 = sld [smem:[%s0]]
  %s2 = scalar_lea.smem %s0, 1
  %s3 = sld [smem:[%s2]]
  %s4 = scalar_lea.smem %s0, 2
  %s5 = sld [smem:[%s4]]
  %s6 = scalar_lea.smem %s0, 3
  %s7 = sld [smem:[%s6]]
  %s8 = scalar_lea.smem %s0, 4
  %s9 = sld [smem:[%s8]]
  %s10 = scalar_lea.smem %s0, 5
  %s11 = sld [smem:[%s10]]
  %s12 = scalar_lea.smem %s0, 6
  %s13 = sld [smem:[%s12]]
  %s14 = scalar_lea.smem %s0, 7
  %s15 = sld [smem:[%s14]]
  %s16 = scalar_lea.smem %s0, 8
  %s17 = sld [smem:[%s16]]
  %s18 = scalar_lea.smem %s0, 9
  %s19 = sld [smem:[%s18]]
  %s20 = scalar_lea.smem %s0, 10
  %s21 = sld [smem:[%s20]]
  %s22 = scalar_lea.smem %s0, 11
  %s23 = sld [smem:[%s22]]
  %s24 = scalar_lea.smem %s0, 12
  %s25 = sld [smem:[%s24]]
  %s26 = scalar_lea.smem %s0, 13
  %s27 = sld [smem:[%s26]]
  %s28 = scalar_lea.smem %s0, 14
  %s29 = sld [smem:[%s28]]
  %s30 = scalar_lea.smem %s0, 15
  %s31 = sld [smem:[%s30]]
  %s32 = scalar_lea.smem %s0, 16
  %s33 = sld [smem:[%s32]]
  %s34 = scalar_lea.smem %s0, 17
  %s35 = sld [smem:[%s34]]
  %s36 = scalar_lea.smem %s0, 18
  %s37 = sld [smem:[%s36]]
  %s38 = scalar_lea.smem %s0, 19
  %s39 = sld [smem:[%s38]]
  %s40 = scalar_lea.smem %s0, 20
  %s41 = sld [smem:[%s40]]
  %s42 = scalar_lea.smem %s0, 21
  %s43 = sld [smem:[%s42]]
  %s44 = scalar_lea.smem %s0, 22
  %s45 = sld [smem:[%s44]]
  %s46 = scalar_lea.smem %s0, 23
  %s47 = sld [smem:[%s46]]
  %s48 = scalar_lea.smem %s0, 24
  %s49 = sld [smem:[%s48]]
  %s50 = scalar_lea.smem %s0, 25
  %s51 = sld [smem:[%s50]]
  %s52 = scalar_lea.smem %s0, 26
  %s53 = sld [smem:[%s52]]
  %s54 = scalar_lea.smem %s0, 27
  %s55 = sld [smem:[%s54]]
  %s56 = scalar_lea.smem %s0, 28
  %s57 = sld [smem:[%s56]]
  %s58 = scalar_lea.smem %s0, 29
  %s59 = sld [smem:[%s58]]
  %s60 = sld [smem:[#allocation0]]
  $region149: #{mae_forward.1} parent=0
    _
  %s62 = ssub.s32 1, %s60
  %s63 = scalar_select 0, %s62, %s60
  $region1: #{mae_forward.1} parent=0
    #allocation2 [shape = 'u8[16384]{0}', space=vmem, size = 0x4000, scoped, tag = 'output window, operand 0']
    #allocation3 [shape = 's32[2]{0}', space=sflag, size = 0x8, scoped, tag = 'scoped memory for mae_forward.1']
    %64 = vsyncpa [#allocation3], 0
    %s65 = scalar_lea.sflag [#allocation3], 1
    %66 = vsyncpa %s65, 0
    loop: start=0, step=1, limit=4
    $region2: #{mae_forward.1} parent=1 // loop_pre_header
      _
    $region3: #{mae_forward.1} parent=1 // loop_header
      %s68 = sphi 0, %s72
      %p69 = scmp.ge.s32.totalorder %s68, 4
      %s78 = sphi 0, %s80
      %s81 = sphi 0, %s78
      %s82 = sphi 0, %s81
      %s98 = sphi 0, %s82
      %s104 = sphi 0, %s106
      %s107 = sphi 0, %s104
      %s108 = sphi 0, %s107
      %s124 = sphi 0, %s108
      %s128 = sphi 0, %s128
      %s130 = sphi 0, %s128
      %s131 = sphi 0, %s130
      %s145 = sphi 0, %s131
      %s149 = sphi 0, %s149
      %s151 = sphi 0, %s149
      %s152 = sphi 0, %s151
      %s166 = sphi 0, %s152
      %s170 = sphi 0, %s170
      %s172 = sphi 0, %s170
      %s173 = sphi 0, %s172
      %s187 = sphi 0, %s173
      %s191 = sphi 0, %s191
      %s193 = sphi 0, %s191
      %s194 = sphi 0, %s193
      %s208 = sphi 0, %s194
      %s212 = sphi 0, %s212
      %s214 = sphi 0, %s212
      %s215 = sphi 0, %s214
      %s229 = sphi 0, %s215
      %s233 = sphi 0, %s233
      %s235 = sphi 0, %s233
      %s236 = sphi 0, %s235
      %s250 = sphi 0, %s236
      %s254 = sphi 0, %s254
      %s256 = sphi 0, %s254
      %s257 = sphi 0, %s256
      %s271 = sphi 0, %s257
      %s275 = sphi 0, %s275
      %s277 = sphi 0, %s275
      %s278 = sphi 0, %s277
      %s292 = sphi 0, %s278
      %s296 = sphi 0, %s296
      %s298 = sphi 0, %s296
      %s299 = sphi 0, %s298
      %s313 = sphi 0, %s299
      %s317 = sphi 0, %s317
      %s319 = sphi 0, %s317
      %s320 = sphi 0, %s319
      %s334 = sphi 0, %s320
      %s338 = sphi 0, %s338
      %s340 = sphi 0, %s338
      %s341 = sphi 0, %s340
      %s355 = sphi 0, %s341
      %s359 = sphi 0, %s359
      %s361 = sphi 0, %s359
      %s362 = sphi 0, %s361
      %s376 = sphi 0, %s362
      %s380 = sphi 0, %s380
      %s382 = sphi 0, %s380
      %s383 = sphi 0, %s382
      %s397 = sphi 0, %s383
      %s401 = sphi 0, %s401
      %s403 = sphi 0, %s401
      %s404 = sphi 0, %s403
      %s418 = sphi 0, %s404
      %s422 = sphi 0, %s422
      %s424 = sphi 0, %s422
      %s425 = sphi 0, %s424
      %s439 = sphi 0, %s425
      %s443 = sphi 0, %s443
      %s445 = sphi 0, %s443
      %s446 = sphi 0, %s445
      %s460 = sphi 0, %s446
      %s464 = sphi 0, %s464
      %s466 = sphi 0, %s464
      %s467 = sphi 0, %s466
      %s481 = sphi 0, %s467
      %s485 = sphi 0, %s485
      %s487 = sphi 0, %s485
      %s488 = sphi 0, %s487
      %s502 = sphi 0, %s488
      %s506 = sphi 0, %s506
      %s508 = sphi 0, %s506
      %s509 = sphi 0, %s508
      %s523 = sphi 0, %s509
      %s527 = sphi 0, %s527
      %s529 = sphi 0, %s527
      %s530 = sphi 0, %s529
      %s544 = sphi 0, %s530
      %s548 = sphi 0, %s548
      %s550 = sphi 0, %s548
      %s551 = sphi 0, %s550
      %s565 = sphi 0, %s551
      %s569 = sphi 0, %s569
      %s571 = sphi 0, %s569
      %s572 = sphi 0, %s571
      %s586 = sphi 0, %s572
      %s590 = sphi 0, %s590
      %s592 = sphi 0, %s590
      %s593 = sphi 0, %s592
      %s607 = sphi 0, %s593
      %s611 = sphi 0, %s611
      %s613 = sphi 0, %s611
      %s614 = sphi 0, %s613
      %s628 = sphi 0, %s614
      %s632 = sphi 0, %s632
      %s634 = sphi 0, %s632
      %s635 = sphi 0, %s634
      %s649 = sphi 0, %s635
      %s653 = sphi 0, %s653
      %s655 = sphi 0, %s653
      %s656 = sphi 0, %s655
      %s670 = sphi 0, %s656
      %s674 = sphi 0, %s674
      %s676 = sphi 0, %s674
      %s677 = sphi 0, %s676
      %s691 = sphi 0, %s677
      %s697 = sphi 0, %s699
      %s700 = sphi 0, %s697
      %s701 = sphi 0, %s700
      %s717 = sphi 0, %s701
    $region4: #{mae_forward.1} parent=1 // loop_header_branch
      %71 = sbr.rel (%p69) target = $region8
    $region5: #{mae_forward.1} parent=1 // loop_body
      %s73 = ssub.s32 %s68, 1
      %s74 = ssub.s32 %s68, 2
      %s75 = sadd.s32 %s68, 1
      %s76 = ssub.s32 %s68, %s75
      %p77 = scmp.eq.s32.totalorder %s76, 0
      %s79 = sadd.s32 %s78, 1
      %s80 = scalar_select %p77, %s78, %s79
      %p83 = pneg %p77
      %p84 = scmp.eq.s32.totalorder %s68, 1
      %p85 = por %p83, %p84
      %p86 = scmp.ne.s32.totalorder %s78, %s81
      %p87 = scmp.eq.s32.totalorder %s68, 0
      %p88 = por %p86, %p87
      %p89 = scmp.ne.s32.totalorder %s78, %s81
      %p90 = scmp.eq.s32.totalorder %s73, 1
      %p91 = por %p89, %p90
      %p92 = scmp.ne.s32.totalorder %s81, %s82
      %p93 = scmp.eq.s32.totalorder %s73, 0
      %p94 = por %p92, %p93
      %p95 = scmp.ne.s32.totalorder %s81, %s82
      %p96 = scmp.eq.s32.totalorder %s74, 1
      %p97 = por %p95, %p96
      %p99 = scmp.ne.s32.totalorder %s82, %s98
      %p100 = scmp.eq.s32.totalorder %s74, 0
      %p101 = por %p99, %p100
      %s102 = ssub.s32 %s68, %s75
      %p103 = scmp.eq.s32.totalorder %s102, 0
      %s105 = sadd.s32 %s104, 1
      %s106 = scalar_select %p103, %s104, %s105
      %p109 = pneg %p103
      %p110 = scmp.eq.s32.totalorder %s68, 1
      %p111 = por %p109, %p110
      %p112 = scmp.ne.s32.totalorder %s104, %s107
      %p113 = scmp.eq.s32.totalorder %s68, 0
      %p114 = por %p112, %p113
      %p115 = scmp.ne.s32.totalorder %s104, %s107
      %p116 = scmp.eq.s32.totalorder %s73, 1
      %p117 = por %p115, %p116
      %p118 = scmp.ne.s32.totalorder %s107, %s108
      %p119 = scmp.eq.s32.totalorder %s73, 0
      %p120 = por %p118, %p119
      %p121 = scmp.ne.s32.totalorder %s107, %s108
      %p122 = scmp.eq.s32.totalorder %s74, 1
      %p123 = por %p121, %p122
      %p125 = scmp.ne.s32.totalorder %s108, %s124
      %p126 = scmp.eq.s32.totalorder %s74, 0
      %p127 = por %p125, %p126
      %s129 = sadd.s32 %s128, 1
      %p132 = scmp.eq.s32.totalorder %s68, 1
      %p133 = scmp.ne.s32.totalorder %s128, %s130
      %p134 = scmp.eq.s32.totalorder %s68, 0
      %p135 = por %p133, %p134
      %p136 = scmp.ne.s32.totalorder %s128, %s130
      %p137 = scmp.eq.s32.totalorder %s73, 1
      %p138 = por %p136, %p137
      %p139 = scmp.ne.s32.totalorder %s130, %s131
      %p140 = scmp.eq.s32.totalorder %s73, 0
      %p141 = por %p139, %p140
      %p142 = scmp.ne.s32.totalorder %s130, %s131
      %p143 = scmp.eq.s32.totalorder %s74, 1
      %p144 = por %p142, %p143
      %p146 = scmp.ne.s32.totalorder %s131, %s145
      %p147 = scmp.eq.s32.totalorder %s74, 0
      %p148 = por %p146, %p147
      %s150 = sadd.s32 %s149, 1
      %p153 = scmp.eq.s32.totalorder %s68, 1
      %p154 = scmp.ne.s32.totalorder %s149, %s151
      %p155 = scmp.eq.s32.totalorder %s68, 0
      %p156 = por %p154, %p155
      %p157 = scmp.ne.s32.totalorder %s149, %s151
      %p158 = scmp.eq.s32.totalorder %s73, 1
      %p159 = por %p157, %p158
      %p160 = scmp.ne.s32.totalorder %s151, %s152
      %p161 = scmp.eq.s32.totalorder %s73, 0
      %p162 = por %p160, %p161
      %p163 = scmp.ne.s32.totalorder %s151, %s152
      %p164 = scmp.eq.s32.totalorder %s74, 1
      %p165 = por %p163, %p164
      %p167 = scmp.ne.s32.totalorder %s152, %s166
      %p168 = scmp.eq.s32.totalorder %s74, 0
      %p169 = por %p167, %p168
      %s171 = sadd.s32 %s170, 1
      %p174 = scmp.eq.s32.totalorder %s68, 1
      %p175 = scmp.ne.s32.totalorder %s170, %s172
      %p176 = scmp.eq.s32.totalorder %s68, 0
      %p177 = por %p175, %p176
      %p178 = scmp.ne.s32.totalorder %s170, %s172
      %p179 = scmp.eq.s32.totalorder %s73, 1
      %p180 = por %p178, %p179
      %p181 = scmp.ne.s32.totalorder %s172, %s173
      %p182 = scmp.eq.s32.totalorder %s73, 0
      %p183 = por %p181, %p182
      %p184 = scmp.ne.s32.totalorder %s172, %s173
      %p185 = scmp.eq.s32.totalorder %s74, 1
      %p186 = por %p184, %p185
      %p188 = scmp.ne.s32.totalorder %s173, %s187
      %p189 = scmp.eq.s32.totalorder %s74, 0
      %p190 = por %p188, %p189
      %s192 = sadd.s32 %s191, 1
      %p195 = scmp.eq.s32.totalorder %s68, 1
      %p196 = scmp.ne.s32.totalorder %s191, %s193
      %p197 = scmp.eq.s32.totalorder %s68, 0
      %p198 = por %p196, %p197
      %p199 = scmp.ne.s32.totalorder %s191, %s193
      %p200 = scmp.eq.s32.totalorder %s73, 1
      %p201 = por %p199, %p200
      %p202 = scmp.ne.s32.totalorder %s193, %s194
      %p203 = scmp.eq.s32.totalorder %s73, 0
      %p204 = por %p202, %p203
      %p205 = scmp.ne.s32.totalorder %s193, %s194
      %p206 = scmp.eq.s32.totalorder %s74, 1
      %p207 = por %p205, %p206
      %p209 = scmp.ne.s32.totalorder %s194, %s208
      %p210 = scmp.eq.s32.totalorder %s74, 0
      %p211 = por %p209, %p210
      %s213 = sadd.s32 %s212, 1
      %p216 = scmp.eq.s32.totalorder %s68, 1
      %p217 = scmp.ne.s32.totalorder %s212, %s214
      %p218 = scmp.eq.s32.totalorder %s68, 0
      %p219 = por %p217, %p218
      %p220 = scmp.ne.s32.totalorder %s212, %s214
      %p221 = scmp.eq.s32.totalorder %s73, 1
      %p222 = por %p220, %p221
      %p223 = scmp.ne.s32.totalorder %s214, %s215
      %p224 = scmp.eq.s32.totalorder %s73, 0
      %p225 = por %p223, %p224
      %p226 = scmp.ne.s32.totalorder %s214, %s215
      %p227 = scmp.eq.s32.totalorder %s74, 1
      %p228 = por %p226, %p227
      %p230 = scmp.ne.s32.totalorder %s215, %s229
      %p231 = scmp.eq.s32.totalorder %s74, 0
      %p232 = por %p230, %p231
      %s234 = sadd.s32 %s233, 1
      %p237 = scmp.eq.s32.totalorder %s68, 1
      %p238 = scmp.ne.s32.totalorder %s233, %s235
      %p239 = scmp.eq.s32.totalorder %s68, 0
      %p240 = por %p238, %p239
      %p241 = scmp.ne.s32.totalorder %s233, %s235
      %p242 = scmp.eq.s32.totalorder %s73, 1
      %p243 = por %p241, %p242
      %p244 = scmp.ne.s32.totalorder %s235, %s236
      %p245 = scmp.eq.s32.totalorder %s73, 0
      %p246 = por %p244, %p245
      %p247 = scmp.ne.s32.totalorder %s235, %s236
      %p248 = scmp.eq.s32.totalorder %s74, 1
      %p249 = por %p247, %p248
      %p251 = scmp.ne.s32.totalorder %s236, %s250
      %p252 = scmp.eq.s32.totalorder %s74, 0
      %p253 = por %p251, %p252
      %s255 = sadd.s32 %s254, 1
      %p258 = scmp.eq.s32.totalorder %s68, 1
      %p259 = scmp.ne.s32.totalorder %s254, %s256
      %p260 = scmp.eq.s32.totalorder %s68, 0
      %p261 = por %p259, %p260
      %p262 = scmp.ne.s32.totalorder %s254, %s256
      %p263 = scmp.eq.s32.totalorder %s73, 1
      %p264 = por %p262, %p263
      %p265 = scmp.ne.s32.totalorder %s256, %s257
      %p266 = scmp.eq.s32.totalorder %s73, 0
      %p267 = por %p265, %p266
      %p268 = scmp.ne.s32.totalorder %s256, %s257
      %p269 = scmp.eq.s32.totalorder %s74, 1
      %p270 = por %p268, %p269
      %p272 = scmp.ne.s32.totalorder %s257, %s271
      %p273 = scmp.eq.s32.totalorder %s74, 0
      %p274 = por %p272, %p273
      %s276 = sadd.s32 %s275, 1
      %p279 = scmp.eq.s32.totalorder %s68, 1
      %p280 = scmp.ne.s32.totalorder %s275, %s277
      %p281 = scmp.eq.s32.totalorder %s68, 0
      %p282 = por %p280, %p281
      %p283 = scmp.ne.s32.totalorder %s275, %s277
      %p284 = scmp.eq.s32.totalorder %s73, 1
      %p285 = por %p283, %p284
      %p286 = scmp.ne.s32.totalorder %s277, %s278
      %p287 = scmp.eq.s32.totalorder %s73, 0
      %p288 = por %p286, %p287
      %p289 = scmp.ne.s32.totalorder %s277, %s278
      %p290 = scmp.eq.s32.totalorder %s74, 1
      %p291 = por %p289, %p290
      %p293 = scmp.ne.s32.totalorder %s278, %s292
      %p294 = scmp.eq.s32.totalorder %s74, 0
      %p295 = por %p293, %p294
      %s297 = sadd.s32 %s296, 1
      %p300 = scmp.eq.s32.totalorder %s68, 1
      %p301 = scmp.ne.s32.totalorder %s296, %s298
      %p302 = scmp.eq.s32.totalorder %s68, 0
      %p303 = por %p301, %p302
      %p304 = scmp.ne.s32.totalorder %s296, %s298
      %p305 = scmp.eq.s32.totalorder %s73, 1
      %p306 = por %p304, %p305
      %p307 = scmp.ne.s32.totalorder %s298, %s299
      %p308 = scmp.eq.s32.totalorder %s73, 0
      %p309 = por %p307, %p308
      %p310 = scmp.ne.s32.totalorder %s298, %s299
      %p311 = scmp.eq.s32.totalorder %s74, 1
      %p312 = por %p310, %p311
      %p314 = scmp.ne.s32.totalorder %s299, %s313
      %p315 = scmp.eq.s32.totalorder %s74, 0
      %p316 = por %p314, %p315
      %s318 = sadd.s32 %s317, 1
      %p321 = scmp.eq.s32.totalorder %s68, 1
      %p322 = scmp.ne.s32.totalorder %s317, %s319
      %p323 = scmp.eq.s32.totalorder %s68, 0
      %p324 = por %p322, %p323
      %p325 = scmp.ne.s32.totalorder %s317, %s319
      %p326 = scmp.eq.s32.totalorder %s73, 1
      %p327 = por %p325, %p326
      %p328 = scmp.ne.s32.totalorder %s319, %s320
      %p329 = scmp.eq.s32.totalorder %s73, 0
      %p330 = por %p328, %p329
      %p331 = scmp.ne.s32.totalorder %s319, %s320
      %p332 = scmp.eq.s32.totalorder %s74, 1
      %p333 = por %p331, %p332
      %p335 = scmp.ne.s32.totalorder %s320, %s334
      %p336 = scmp.eq.s32.totalorder %s74, 0
      %p337 = por %p335, %p336
      %s339 = sadd.s32 %s338, 1
      %p342 = scmp.eq.s32.totalorder %s68, 1
      %p343 = scmp.ne.s32.totalorder %s338, %s340
      %p344 = scmp.eq.s32.totalorder %s68, 0
      %p345 = por %p343, %p344
      %p346 = scmp.ne.s32.totalorder %s338, %s340
      %p347 = scmp.eq.s32.totalorder %s73, 1
      %p348 = por %p346, %p347
      %p349 = scmp.ne.s32.totalorder %s340, %s341
      %p350 = scmp.eq.s32.totalorder %s73, 0
      %p351 = por %p349, %p350
      %p352 = scmp.ne.s32.totalorder %s340, %s341
      %p353 = scmp.eq.s32.totalorder %s74, 1
      %p354 = por %p352, %p353
      %p356 = scmp.ne.s32.totalorder %s341, %s355
      %p357 = scmp.eq.s32.totalorder %s74, 0
      %p358 = por %p356, %p357
      %s360 = sadd.s32 %s359, 1
      %p363 = scmp.eq.s32.totalorder %s68, 1
      %p364 = scmp.ne.s32.totalorder %s359, %s361
      %p365 = scmp.eq.s32.totalorder %s68, 0
      %p366 = por %p364, %p365
      %p367 = scmp.ne.s32.totalorder %s359, %s361
      %p368 = scmp.eq.s32.totalorder %s73, 1
      %p369 = por %p367, %p368
      %p370 = scmp.ne.s32.totalorder %s361, %s362
      %p371 = scmp.eq.s32.totalorder %s73, 0
      %p372 = por %p370, %p371
      %p373 = scmp.ne.s32.totalorder %s361, %s362
      %p374 = scmp.eq.s32.totalorder %s74, 1
      %p375 = por %p373, %p374
      %p377 = scmp.ne.s32.totalorder %s362, %s376
      %p378 = scmp.eq.s32.totalorder %s74, 0
      %p379 = por %p377, %p378
      %s381 = sadd.s32 %s380, 1
      %p384 = scmp.eq.s32.totalorder %s68, 1
      %p385 = scmp.ne.s32.totalorder %s380, %s382
      %p386 = scmp.eq.s32.totalorder %s68, 0
      %p387 = por %p385, %p386
      %p388 = scmp.ne.s32.totalorder %s380, %s382
      %p389 = scmp.eq.s32.totalorder %s73, 1
      %p390 = por %p388, %p389
      %p391 = scmp.ne.s32.totalorder %s382, %s383
      %p392 = scmp.eq.s32.totalorder %s73, 0
      %p393 = por %p391, %p392
      %p394 = scmp.ne.s32.totalorder %s382, %s383
      %p395 = scmp.eq.s32.totalorder %s74, 1
      %p396 = por %p394, %p395
      %p398 = scmp.ne.s32.totalorder %s383, %s397
      %p399 = scmp.eq.s32.totalorder %s74, 0
      %p400 = por %p398, %p399
      %s402 = sadd.s32 %s401, 1
      %p405 = scmp.eq.s32.totalorder %s68, 1
      %p406 = scmp.ne.s32.totalorder %s401, %s403
      %p407 = scmp.eq.s32.totalorder %s68, 0
      %p408 = por %p406, %p407
      %p409 = scmp.ne.s32.totalorder %s401, %s403
      %p410 = scmp.eq.s32.totalorder %s73, 1
      %p411 = por %p409, %p410
      %p412 = scmp.ne.s32.totalorder %s403, %s404
      %p413 = scmp.eq.s32.totalorder %s73, 0
      %p414 = por %p412, %p413
      %p415 = scmp.ne.s32.totalorder %s403, %s404
      %p416 = scmp.eq.s32.totalorder %s74, 1
      %p417 = por %p415, %p416
      %p419 = scmp.ne.s32.totalorder %s404, %s418
      %p420 = scmp.eq.s32.totalorder %s74, 0
      %p421 = por %p419, %p420
      %s423 = sadd.s32 %s422, 1
      %p426 = scmp.eq.s32.totalorder %s68, 1
      %p427 = scmp.ne.s32.totalorder %s422, %s424
      %p428 = scmp.eq.s32.totalorder %s68, 0
      %p429 = por %p427, %p428
      %p430 = scmp.ne.s32.totalorder %s422, %s424
      %p431 = scmp.eq.s32.totalorder %s73, 1
      %p432 = por %p430, %p431
      %p433 = scmp.ne.s32.totalorder %s424, %s425
      %p434 = scmp.eq.s32.totalorder %s73, 0
      %p435 = por %p433, %p434
      %p436 = scmp.ne.s32.totalorder %s424, %s425
      %p437 = scmp.eq.s32.totalorder %s74, 1
      %p438 = por %p436, %p437
      %p440 = scmp.ne.s32.totalorder %s425, %s439
      %p441 = scmp.eq.s32.totalorder %s74, 0
      %p442 = por %p440, %p441
      %s444 = sadd.s32 %s443, 1
      %p447 = scmp.eq.s32.totalorder %s68, 1
      %p448 = scmp.ne.s32.totalorder %s443, %s445
      %p449 = scmp.eq.s32.totalorder %s68, 0
      %p450 = por %p448, %p449
      %p451 = scmp.ne.s32.totalorder %s443, %s445
      %p452 = scmp.eq.s32.totalorder %s73, 1
      %p453 = por %p451, %p452
      %p454 = scmp.ne.s32.totalorder %s445, %s446
      %p455 = scmp.eq.s32.totalorder %s73, 0
      %p456 = por %p454, %p455
      %p457 = scmp.ne.s32.totalorder %s445, %s446
      %p458 = scmp.eq.s32.totalorder %s74, 1
      %p459 = por %p457, %p458
      %p461 = scmp.ne.s32.totalorder %s446, %s460
      %p462 = scmp.eq.s32.totalorder %s74, 0
      %p463 = por %p461, %p462
      %s465 = sadd.s32 %s464, 1
      %p468 = scmp.eq.s32.totalorder %s68, 1
      %p469 = scmp.ne.s32.totalorder %s464, %s466
      %p470 = scmp.eq.s32.totalorder %s68, 0
      %p471 = por %p469, %p470
      %p472 = scmp.ne.s32.totalorder %s464, %s466
      %p473 = scmp.eq.s32.totalorder %s73, 1
      %p474 = por %p472, %p473
      %p475 = scmp.ne.s32.totalorder %s466, %s467
      %p476 = scmp.eq.s32.totalorder %s73, 0
      %p477 = por %p475, %p476
      %p478 = scmp.ne.s32.totalorder %s466, %s467
      %p479 = scmp.eq.s32.totalorder %s74, 1
      %p480 = por %p478, %p479
      %p482 = scmp.ne.s32.totalorder %s467, %s481
      %p483 = scmp.eq.s32.totalorder %s74, 0
      %p484 = por %p482, %p483
      %s486 = sadd.s32 %s485, 1
      %p489 = scmp.eq.s32.totalorder %s68, 1
      %p490 = scmp.ne.s32.totalorder %s485, %s487
      %p491 = scmp.eq.s32.totalorder %s68, 0
      %p492 = por %p490, %p491
      %p493 = scmp.ne.s32.totalorder %s485, %s487
      %p494 = scmp.eq.s32.totalorder %s73, 1
      %p495 = por %p493, %p494
      %p496 = scmp.ne.s32.totalorder %s487, %s488
      %p497 = scmp.eq.s32.totalorder %s73, 0
      %p498 = por %p496, %p497
      %p499 = scmp.ne.s32.totalorder %s487, %s488
      %p500 = scmp.eq.s32.totalorder %s74, 1
      %p501 = por %p499, %p500
      %p503 = scmp.ne.s32.totalorder %s488, %s502
      %p504 = scmp.eq.s32.totalorder %s74, 0
      %p505 = por %p503, %p504
      %s507 = sadd.s32 %s506, 1
      %p510 = scmp.eq.s32.totalorder %s68, 1
      %p511 = scmp.ne.s32.totalorder %s506, %s508
      %p512 = scmp.eq.s32.totalorder %s68, 0
      %p513 = por %p511, %p512
      %p514 = scmp.ne.s32.totalorder %s506, %s508
      %p515 = scmp.eq.s32.totalorder %s73, 1
      %p516 = por %p514, %p515
      %p517 = scmp.ne.s32.totalorder %s508, %s509
      %p518 = scmp.eq.s32.totalorder %s73, 0
      %p519 = por %p517, %p518
      %p520 = scmp.ne.s32.totalorder %s508, %s509
      %p521 = scmp.eq.s32.totalorder %s74, 1
      %p522 = por %p520, %p521
      %p524 = scmp.ne.s32.totalorder %s509, %s523
      %p525 = scmp.eq.s32.totalorder %s74, 0
      %p526 = por %p524, %p525
      %s528 = sadd.s32 %s527, 1
      %p531 = scmp.eq.s32.totalorder %s68, 1
      %p532 = scmp.ne.s32.totalorder %s527, %s529
      %p533 = scmp.eq.s32.totalorder %s68, 0
      %p534 = por %p532, %p533
      %p535 = scmp.ne.s32.totalorder %s527, %s529
      %p536 = scmp.eq.s32.totalorder %s73, 1
      %p537 = por %p535, %p536
      %p538 = scmp.ne.s32.totalorder %s529, %s530
      %p539 = scmp.eq.s32.totalorder %s73, 0
      %p540 = por %p538, %p539
      %p541 = scmp.ne.s32.totalorder %s529, %s530
      %p542 = scmp.eq.s32.totalorder %s74, 1
      %p543 = por %p541, %p542
      %p545 = scmp.ne.s32.totalorder %s530, %s544
      %p546 = scmp.eq.s32.totalorder %s74, 0
      %p547 = por %p545, %p546
      %s549 = sadd.s32 %s548, 1
      %p552 = scmp.eq.s32.totalorder %s68, 1
      %p553 = scmp.ne.s32.totalorder %s548, %s550
      %p554 = scmp.eq.s32.totalorder %s68, 0
      %p555 = por %p553, %p554
      %p556 = scmp.ne.s32.totalorder %s548, %s550
      %p557 = scmp.eq.s32.totalorder %s73, 1
      %p558 = por %p556, %p557
      %p559 = scmp.ne.s32.totalorder %s550, %s551
      %p560 = scmp.eq.s32.totalorder %s73, 0
      %p561 = por %p559, %p560
      %p562 = scmp.ne.s32.totalorder %s550, %s551
      %p563 = scmp.eq.s32.totalorder %s74, 1
      %p564 = por %p562, %p563
      %p566 = scmp.ne.s32.totalorder %s551, %s565
      %p567 = scmp.eq.s32.totalorder %s74, 0
      %p568 = por %p566, %p567
      %s570 = sadd.s32 %s569, 1
      %p573 = scmp.eq.s32.totalorder %s68, 1
      %p574 = scmp.ne.s32.totalorder %s569, %s571
      %p575 = scmp.eq.s32.totalorder %s68, 0
      %p576 = por %p574, %p575
      %p577 = scmp.ne.s32.totalorder %s569, %s571
      %p578 = scmp.eq.s32.totalorder %s73, 1
      %p579 = por %p577, %p578
      %p580 = scmp.ne.s32.totalorder %s571, %s572
      %p581 = scmp.eq.s32.totalorder %s73, 0
      %p582 = por %p580, %p581
      %p583 = scmp.ne.s32.totalorder %s571, %s572
      %p584 = scmp.eq.s32.totalorder %s74, 1
      %p585 = por %p583, %p584
      %p587 = scmp.ne.s32.totalorder %s572, %s586
      %p588 = scmp.eq.s32.totalorder %s74, 0
      %p589 = por %p587, %p588
      %s591 = sadd.s32 %s590, 1
      %p594 = scmp.eq.s32.totalorder %s68, 1
      %p595 = scmp.ne.s32.totalorder %s590, %s592
      %p596 = scmp.eq.s32.totalorder %s68, 0
      %p597 = por %p595, %p596
      %p598 = scmp.ne.s32.totalorder %s590, %s592
      %p599 = scmp.eq.s32.totalorder %s73, 1
      %p600 = por %p598, %p599
      %p601 = scmp.ne.s32.totalorder %s592, %s593
      %p602 = scmp.eq.s32.totalorder %s73, 0
      %p603 = por %p601, %p602
      %p604 = scmp.ne.s32.totalorder %s592, %s593
      %p605 = scmp.eq.s32.totalorder %s74, 1
      %p606 = por %p604, %p605
      %p608 = scmp.ne.s32.totalorder %s593, %s607
      %p609 = scmp.eq.s32.totalorder %s74, 0
      %p610 = por %p608, %p609
      %s612 = sadd.s32 %s611, 1
      %p615 = scmp.eq.s32.totalorder %s68, 1
      %p616 = scmp.ne.s32.totalorder %s611, %s613
      %p617 = scmp.eq.s32.totalorder %s68, 0
      %p618 = por %p616, %p617
      %p619 = scmp.ne.s32.totalorder %s611, %s613
      %p620 = scmp.eq.s32.totalorder %s73, 1
      %p621 = por %p619, %p620
      %p622 = scmp.ne.s32.totalorder %s613, %s614
      %p623 = scmp.eq.s32.totalorder %s73, 0
      %p624 = por %p622, %p623
      %p625 = scmp.ne.s32.totalorder %s613, %s614
      %p626 = scmp.eq.s32.totalorder %s74, 1
      %p627 = por %p625, %p626
      %p629 = scmp.ne.s32.totalorder %s614, %s628
      %p630 = scmp.eq.s32.totalorder %s74, 0
      %p631 = por %p629, %p630
      %s633 = sadd.s32 %s632, 1
      %p636 = scmp.eq.s32.totalorder %s68, 1
      %p637 = scmp.ne.s32.totalorder %s632, %s634
      %p638 = scmp.eq.s32.totalorder %s68, 0
      %p639 = por %p637, %p638
      %p640 = scmp.ne.s32.totalorder %s632, %s634
      %p641 = scmp.eq.s32.totalorder %s73, 1
      %p642 = por %p640, %p641
      %p643 = scmp.ne.s32.totalorder %s634, %s635
      %p644 = scmp.eq.s32.totalorder %s73, 0
      %p645 = por %p643, %p644
      %p646 = scmp.ne.s32.totalorder %s634, %s635
      %p647 = scmp.eq.s32.totalorder %s74, 1
      %p648 = por %p646, %p647
      %p650 = scmp.ne.s32.totalorder %s635, %s649
      %p651 = scmp.eq.s32.totalorder %s74, 0
      %p652 = por %p650, %p651
      %s654 = sadd.s32 %s653, 1
      %p657 = scmp.eq.s32.totalorder %s68, 1
      %p658 = scmp.ne.s32.totalorder %s653, %s655
      %p659 = scmp.eq.s32.totalorder %s68, 0
      %p660 = por %p658, %p659
      %p661 = scmp.ne.s32.totalorder %s653, %s655
      %p662 = scmp.eq.s32.totalorder %s73, 1
      %p663 = por %p661, %p662
      %p664 = scmp.ne.s32.totalorder %s655, %s656
      %p665 = scmp.eq.s32.totalorder %s73, 0
      %p666 = por %p664, %p665
      %p667 = scmp.ne.s32.totalorder %s655, %s656
      %p668 = scmp.eq.s32.totalorder %s74, 1
      %p669 = por %p667, %p668
      %p671 = scmp.ne.s32.totalorder %s656, %s670
      %p672 = scmp.eq.s32.totalorder %s74, 0
      %p673 = por %p671, %p672
      %s675 = sadd.s32 %s674, 1
      %p678 = scmp.eq.s32.totalorder %s68, 1
      %p679 = scmp.ne.s32.totalorder %s674, %s676
      %p680 = scmp.eq.s32.totalorder %s68, 0
      %p681 = por %p679, %p680
      %p682 = scmp.ne.s32.totalorder %s674, %s676
      %p683 = scmp.eq.s32.totalorder %s73, 1
      %p684 = por %p682, %p683
      %p685 = scmp.ne.s32.totalorder %s676, %s677
      %p686 = scmp.eq.s32.totalorder %s73, 0
      %p687 = por %p685, %p686
      %p688 = scmp.ne.s32.totalorder %s676, %s677
      %p689 = scmp.eq.s32.totalorder %s74, 1
      %p690 = por %p688, %p689
      %p692 = scmp.ne.s32.totalorder %s677, %s691
      %p693 = scmp.eq.s32.totalorder %s74, 0
      %p694 = por %p692, %p693
      %s695 = ssub.s32 %s68, %s75
      %p696 = scmp.eq.s32.totalorder %s695, 0
      %s698 = sadd.s32 %s697, 1
      %s699 = scalar_select %p696, %s697, %s698
      %p702 = pneg %p696
      %p703 = scmp.eq.s32.totalorder %s68, 1
      %p704 = por %p702, %p703
      %p705 = scmp.ne.s32.totalorder %s697, %s700
      %p706 = scmp.eq.s32.totalorder %s68, 0
      %p707 = por %p705, %p706
      %p708 = scmp.ne.s32.totalorder %s697, %s700
      %p709 = scmp.eq.s32.totalorder %s73, 1
      %p710 = por %p708, %p709
      %p711 = scmp.ne.s32.totalorder %s700, %s701
      %p712 = scmp.eq.s32.totalorder %s73, 0
      %p713 = por %p711, %p712
      %p714 = scmp.ne.s32.totalorder %s700, %s701
      %p715 = scmp.eq.s32.totalorder %s74, 1
      %p716 = por %p714, %p715
      %p718 = scmp.ne.s32.totalorder %s701, %s717
      %p719 = scmp.eq.s32.totalorder %s74, 0
      %p720 = por %p718, %p719
      %p721 = scmp.le.s32.totalorder 1, %s68
      %p722 = scmp.lt.s32.totalorder %s68, 3
      %p723 = pnand %p721, %p722
      %p724 = pneg %p723
      // Predicated region
      $region9: #{mae_forward.1} parent=5 // pred_check
        _
      $region10: #{mae_forward.1} parent=5 // pred_check_branch
        %726 = sbr.rel (%p723) target = $region12
      $region11: #{mae_forward.1} parent=5 // pred_region
        %s727 = ssub.s32 %s68, 1
        // Predicated region
        $region13: #{mae_forward.1} parent=11 // pred_check
          %p728 = pneg %p141
        $region14: #{mae_forward.1} parent=11 // pred_check_branch
          %730 = sbr.rel (%p728) target = $region16
        $region15: #{mae_forward.1} parent=11 // pred_region
          _
        $region16: #{mae_forward.1} parent=11 // pred_fallthru
          _
        // Predicated region
        $region17: #{mae_forward.1} parent=11 // pred_check
          %p731 = pneg %p162
        $region18: #{mae_forward.1} parent=11 // pred_check_branch
          %733 = sbr.rel (%p731) target = $region20
        $region19: #{mae_forward.1} parent=11 // pred_region
          _
        $region20: #{mae_forward.1} parent=11 // pred_fallthru
          _
        // Predicated region
        $region21: #{mae_forward.1} parent=11 // pred_check
          %p734 = pneg %p183
        $region22: #{mae_forward.1} parent=11 // pred_check_branch
          %736 = sbr.rel (%p734) target = $region24
        $region23: #{mae_forward.1} parent=11 // pred_region
          _
        $region24: #{mae_forward.1} parent=11 // pred_fallthru
          _
        // Predicated region
        $region25: #{mae_forward.1} parent=11 // pred_check
          %p737 = pneg %p204
        $region26: #{mae_forward.1} parent=11 // pred_check_branch
          %739 = sbr.rel (%p737) target = $region28
        $region27: #{mae_forward.1} parent=11 // pred_region
          _
        $region28: #{mae_forward.1} parent=11 // pred_fallthru
          _
        // Predicated region
        $region29: #{mae_forward.1} parent=11 // pred_check
          %p740 = pneg %p225
        $region30: #{mae_forward.1} parent=11 // pred_check_branch
          %742 = sbr.rel (%p740) target = $region32
        $region31: #{mae_forward.1} parent=11 // pred_region
          _
        $region32: #{mae_forward.1} parent=11 // pred_fallthru
          _
        // Predicated region
        $region33: #{mae_forward.1} parent=11 // pred_check
          %p743 = pneg %p246
        $region34: #{mae_forward.1} parent=11 // pred_check_branch
          %745 = sbr.rel (%p743) target = $region36
        $region35: #{mae_forward.1} parent=11 // pred_region
          _
        $region36: #{mae_forward.1} parent=11 // pred_fallthru
          _
        // Predicated region
        $region37: #{mae_forward.1} parent=11 // pred_check
          %p746 = pneg %p267
        $region38: #{mae_forward.1} parent=11 // pred_check_branch
          %748 = sbr.rel (%p746) target = $region40
        $region39: #{mae_forward.1} parent=11 // pred_region
          _
        $region40: #{mae_forward.1} parent=11 // pred_fallthru
          _
        // Predicated region
        $region41: #{mae_forward.1} parent=11 // pred_check
          %p749 = pneg %p288
        $region42: #{mae_forward.1} parent=11 // pred_check_branch
          %751 = sbr.rel (%p749) target = $region44
        $region43: #{mae_forward.1} parent=11 // pred_region
          _
        $region44: #{mae_forward.1} parent=11 // pred_fallthru
          _
        // Predicated region
        $region45: #{mae_forward.1} parent=11 // pred_check
          %p752 = pneg %p309
        $region46: #{mae_forward.1} parent=11 // pred_check_branch
          %754 = sbr.rel (%p752) target = $region48
        $region47: #{mae_forward.1} parent=11 // pred_region
          _
        $region48: #{mae_forward.1} parent=11 // pred_fallthru
          _
        // Predicated region
        $region49: #{mae_forward.1} parent=11 // pred_check
          %p755 = pneg %p330
        $region50: #{mae_forward.1} parent=11 // pred_check_branch
          %757 = sbr.rel (%p755) target = $region52
        $region51: #{mae_forward.1} parent=11 // pred_region
          _
        $region52: #{mae_forward.1} parent=11 // pred_fallthru
          _
        // Predicated region
        $region53: #{mae_forward.1} parent=11 // pred_check
          %p758 = pneg %p351
        $region54: #{mae_forward.1} parent=11 // pred_check_branch
          %760 = sbr.rel (%p758) target = $region56
        $region55: #{mae_forward.1} parent=11 // pred_region
          _
        $region56: #{mae_forward.1} parent=11 // pred_fallthru
          _
        // Predicated region
        $region57: #{mae_forward.1} parent=11 // pred_check
          %p761 = pneg %p372
        $region58: #{mae_forward.1} parent=11 // pred_check_branch
          %763 = sbr.rel (%p761) target = $region60
        $region59: #{mae_forward.1} parent=11 // pred_region
          _
        $region60: #{mae_forward.1} parent=11 // pred_fallthru
          _
        // Predicated region
        $region61: #{mae_forward.1} parent=11 // pred_check
          %p764 = pneg %p393
        $region62: #{mae_forward.1} parent=11 // pred_check_branch
          %766 = sbr.rel (%p764) target = $region64
        $region63: #{mae_forward.1} parent=11 // pred_region
          _
        $region64: #{mae_forward.1} parent=11 // pred_fallthru
          _
        // Predicated region
        $region65: #{mae_forward.1} parent=11 // pred_check
          %p767 = pneg %p414
        $region66: #{mae_forward.1} parent=11 // pred_check_branch
          %769 = sbr.rel (%p767) target = $region68
        $region67: #{mae_forward.1} parent=11 // pred_region
          _
        $region68: #{mae_forward.1} parent=11 // pred_fallthru
          _
        // Predicated region
        $region69: #{mae_forward.1} parent=11 // pred_check
          %p770 = pneg %p435
        $region70: #{mae_forward.1} parent=11 // pred_check_branch
          %772 = sbr.rel (%p770) target = $region72
        $region71: #{mae_forward.1} parent=11 // pred_region
          _
        $region72: #{mae_forward.1} parent=11 // pred_fallthru
          _
        // Predicated region
        $region73: #{mae_forward.1} parent=11 // pred_check
          %p773 = pneg %p456
        $region74: #{mae_forward.1} parent=11 // pred_check_branch
          %775 = sbr.rel (%p773) target = $region76
        $region75: #{mae_forward.1} parent=11 // pred_region
          _
        $region76: #{mae_forward.1} parent=11 // pred_fallthru
          _
        // Predicated region
        $region77: #{mae_forward.1} parent=11 // pred_check
          %p776 = pneg %p477
        $region78: #{mae_forward.1} parent=11 // pred_check_branch
          %778 = sbr.rel (%p776) target = $region80
        $region79: #{mae_forward.1} parent=11 // pred_region
          _
        $region80: #{mae_forward.1} parent=11 // pred_fallthru
          _
        // Predicated region
        $region81: #{mae_forward.1} parent=11 // pred_check
          %p779 = pneg %p498
        $region82: #{mae_forward.1} parent=11 // pred_check_branch
          %781 = sbr.rel (%p779) target = $region84
        $region83: #{mae_forward.1} parent=11 // pred_region
          _
        $region84: #{mae_forward.1} parent=11 // pred_fallthru
          _
        // Predicated region
        $region85: #{mae_forward.1} parent=11 // pred_check
          %p782 = pneg %p519
        $region86: #{mae_forward.1} parent=11 // pred_check_branch
          %784 = sbr.rel (%p782) target = $region88
        $region87: #{mae_forward.1} parent=11 // pred_region
          _
        $region88: #{mae_forward.1} parent=11 // pred_fallthru
          _
        // Predicated region
        $region89: #{mae_forward.1} parent=11 // pred_check
          %p785 = pneg %p540
        $region90: #{mae_forward.1} parent=11 // pred_check_branch
          %787 = sbr.rel (%p785) target = $region92
        $region91: #{mae_forward.1} parent=11 // pred_region
          _
        $region92: #{mae_forward.1} parent=11 // pred_fallthru
          _
        // Predicated region
        $region93: #{mae_forward.1} parent=11 // pred_check
          %p788 = pneg %p561
        $region94: #{mae_forward.1} parent=11 // pred_check_branch
          %790 = sbr.rel (%p788) target = $region96
        $region95: #{mae_forward.1} parent=11 // pred_region
          _
        $region96: #{mae_forward.1} parent=11 // pred_fallthru
          _
        // Predicated region
        $region97: #{mae_forward.1} parent=11 // pred_check
          %p791 = pneg %p582
        $region98: #{mae_forward.1} parent=11 // pred_check_branch
          %793 = sbr.rel (%p791) target = $region100
        $region99: #{mae_forward.1} parent=11 // pred_region
          _
        $region100: #{mae_forward.1} parent=11 // pred_fallthru
          _
        // Predicated region
        $region101: #{mae_forward.1} parent=11 // pred_check
          %p794 = pneg %p603
        $region102: #{mae_forward.1} parent=11 // pred_check_branch
          %796 = sbr.rel (%p794) target = $region104
        $region103: #{mae_forward.1} parent=11 // pred_region
          _
        $region104: #{mae_forward.1} parent=11 // pred_fallthru
          _
        // Predicated region
        $region105: #{mae_forward.1} parent=11 // pred_check
          %p797 = pneg %p624
        $region106: #{mae_forward.1} parent=11 // pred_check_branch
          %799 = sbr.rel (%p797) target = $region108
        $region107: #{mae_forward.1} parent=11 // pred_region
          _
        $region108: #{mae_forward.1} parent=11 // pred_fallthru
          _
        // Predicated region
        $region109: #{mae_forward.1} parent=11 // pred_check
          %p800 = pneg %p645
        $region110: #{mae_forward.1} parent=11 // pred_check_branch
          %802 = sbr.rel (%p800) target = $region112
        $region111: #{mae_forward.1} parent=11 // pred_region
          _
        $region112: #{mae_forward.1} parent=11 // pred_fallthru
          _
        // Predicated region
        $region113: #{mae_forward.1} parent=11 // pred_check
          %p803 = pneg %p666
        $region114: #{mae_forward.1} parent=11 // pred_check_branch
          %805 = sbr.rel (%p803) target = $region116
        $region115: #{mae_forward.1} parent=11 // pred_region
          _
        $region116: #{mae_forward.1} parent=11 // pred_fallthru
          _
        // Predicated region
        $region117: #{mae_forward.1} parent=11 // pred_check
          %p806 = pneg %p687
        $region118: #{mae_forward.1} parent=11 // pred_check_branch
          %808 = sbr.rel (%p806) target = $region120
        $region119: #{mae_forward.1} parent=11 // pred_region
          _
        $region120: #{mae_forward.1} parent=11 // pred_fallthru
          _
      $region12: #{mae_forward.1} parent=5 // pred_fallthru
        _
      %p809 = scmp.lt.s32.totalorder %s68, 2
      // Predicated region
      $region121: #{mae_forward.1} parent=5 // pred_check
        %p810 = pneg %p809
      $region122: #{mae_forward.1} parent=5 // pred_check_branch
        %812 = sbr.rel (%p810) target = $region124
      $region123: #{mae_forward.1} parent=5 // pred_region
        // Predicated region
        $region125: #{mae_forward.1} parent=123 // pred_check
          %p813 = pneg %p88
        $region126: #{mae_forward.1} parent=123 // pred_check_branch
          %815 = sbr.rel (%p813) target = $region128
        $region127: #{mae_forward.1} parent=123 // pred_region
          %p816 = scmp.lt.s32.totalorder %s68, 1
          %s817 = scalar_select %p816, %s68, 1
          %s818 = smul.addr %s817, 2
          %s819 = smul.addr %s818, 8
          %s820 = scalar_lea.vmem %s1, %s819
        $region128: #{mae_forward.1} parent=123 // pred_fallthru
          _
        // Predicated region
        $region129: #{mae_forward.1} parent=123 // pred_check
          %p821 = pneg %p114
        $region130: #{mae_forward.1} parent=123 // pred_check_branch
          %823 = sbr.rel (%p821) target = $region132
        $region131: #{mae_forward.1} parent=123 // pred_region
          %p824 = scmp.lt.s32.totalorder %s68, 1
          %s825 = scalar_select %p824, %s68, 1
          %s826 = smul.addr %s825, 2
          %s827 = smul.addr %s826, 8
          %s828 = scalar_lea.vmem %s3, %s827
        $region132: #{mae_forward.1} parent=123 // pred_fallthru
          _
      $region124: #{mae_forward.1} parent=5 // pred_fallthru
        _
      %p829 = scmp.le.s32.totalorder 1, %s68
      %p830 = scmp.lt.s32.totalorder %s68, 3
      %p831 = pnand %p829, %p830
      %p832 = pneg %p831
      // Predicated region
      $region133: #{mae_forward.1} parent=5 // pred_check
        _
      $region134: #{mae_forward.1} parent=5 // pred_check_branch
        %834 = sbr.rel (%p831) target = $region136
      $region135: #{mae_forward.1} parent=5 // pred_region
        %s835 = ssub.s32 %s68, 1
        %p836 = scmp.lt.s32.totalorder %s73, 1
        %s837 = scalar_select %p836, %s73, 1
        %s838 = smul.addr %s837, 2
        %s839 = smul.addr %s838, 8
        %s840 = scalar_lea.vmem %s1, %s839
        %p841 = pneg %p94
        %p842 = pneg %p91
        %p843 = scmp.lt.s32.totalorder %s73, 1
        %s844 = scalar_select %p843, %s73, 1
        %s845 = smul.addr %s844, 2
        %s846 = smul.addr %s845, 8
        %s847 = scalar_lea.vmem %s3, %s846
        %p848 = pneg %p120
        %p849 = pneg %p117
        %p850 = pneg %p141
        %p851 = pneg %p138
        %p852 = pneg %p162
        %p853 = pneg %p159
        %p854 = pneg %p183
        %p855 = pneg %p180
        %p856 = pneg %p204
        %p857 = pneg %p201
        %p858 = pneg %p225
        %p859 = pneg %p222
        %p860 = pneg %p246
        %p861 = pneg %p243
        %p862 = pneg %p267
        %p863 = pneg %p264
        %p864 = pneg %p288
        %p865 = pneg %p285
        %p866 = pneg %p309
        %p867 = pneg %p306
        %p868 = pneg %p330
        %p869 = pneg %p327
        %p870 = pneg %p351
        %p871 = pneg %p348
        %p872 = pneg %p372
        %p873 = pneg %p369
        %p874 = pneg %p393
        %p875 = pneg %p390
        %p876 = pneg %p414
        %p877 = pneg %p411
        %p878 = pneg %p435
        %p879 = pneg %p432
        %p880 = pneg %p456
        %p881 = pneg %p453
        %p882 = pneg %p477
        %p883 = pneg %p474
        %p884 = pneg %p498
        %p885 = pneg %p495
        %p886 = pneg %p519
        %p887 = pneg %p516
        %p888 = pneg %p540
        %p889 = pneg %p537
        %p890 = pneg %p561
        %p891 = pneg %p558
        %p892 = pneg %p582
        %p893 = pneg %p579
        %p894 = pneg %p603
        %p895 = pneg %p600
        %p896 = pneg %p624
        %p897 = pneg %p621
        %p898 = pneg %p645
        %p899 = pneg %p642
        %p900 = pneg %p666
        %p901 = pneg %p663
        %p902 = pneg %p687
        %p903 = pneg %p684
        %p904 = pneg %p713
        %p905 = pneg %p710
        %s906 = sand.u32 %s700, 1
        %s907 = scalar_lea.sflag [#allocation3], %s906
        %s908 = sand.u32 %s700, 1
        %s909 = smul.addr %s908, 16
        %s910 = scalar_lea.vmem [#allocation2], %s909
        %p911 = scmp.lt.s32.totalorder %s73, 1
        %s912 = scalar_select %p911, %s73, 1
        %s913 = smul.addr %s912, 2
        %s914 = smul.addr %s913, 8
        %s915 = scalar_lea.vmem %s1, %s914
        %p916 = scmp.lt.s32.totalorder %s73, 1
        %s917 = scalar_select %p916, %s73, 1
        %s918 = smul.addr %s917, 2
        %s919 = smul.addr %s918, 8
        %s920 = scalar_lea.vmem %s3, %s919
        %v922 = vld [vmem:[%s915] sm:$0xff]
        %v923 = vld [vmem:[%s915 + $0x8] sm:$0x1]
        %v924 = vpack.c.bf16 %v923, %v922
        %v925 = vld [vmem:[%s5] sm:$0xf]
        %v926 = vld [vmem:[%s5 + $0x4] sm:$0xf]
        %v927 = vld [vmem:[%s5 + $0x8] sm:$0xf]
        %v928 = vld [vmem:[%s5 + $0xc] sm:$0xf]
        %v929 = vld [vmem:[%s5 + $0x10] sm:$0xf]
        %v930 = vld [vmem:[%s5 + $0x14] sm:$0xf]
        %v931 = vld [vmem:[%s7] sm:$0x1]
        %v933 = vlaneseq
        %v934 = vshrl.u32 %v933, 7
        %v935 = vsub.s32 0, %v934
        %v936 = vrot.slane %v931, %v935
        %v944 = vunpack.c.l.b16 %v925
        %v945 = vunpack.c.l.b16 %v926
        %v946 = vunpack.c.l.b16 %v927
        %v947 = vunpack.c.l.b16 %v928
        %v948 = vunpack.c.l.b16 %v929
        %v949 = vunpack.c.l.b16 %v930
        %v950 = vpack.c.b16 %v945, %v944
        %v951 = vpack.c.b16 %v947, %v946
        %v952 = vpack.c.b16 %v949, %v948
        %vm956 = vcmask 392192
        %v958 = vsel %vm956, %v924, 0
        %960 = vmatprep.subr.bf16.mxu0 0
        %961 = vmatpush1.bf16.msra.mxu0 0
        %962 = vmatprep.subr.bf16.mxu0 0
        %963 = vmatpush1.bf16.msra.mxu0 0
        %964 = vmatprep.subr.bf16.mxu0 0
        %965 = vmatpush1.bf16.msra.mxu0 0
        %966 = vmatprep.subr.bf16.mxu0 0
        %967 = vmatpush1.bf16.msra.mxu0 0
        %968 = vmatprep.subr.bf16.mxu0 0
        %969 = vmatpush1.bf16.msra.mxu0 0
        %970 = vmatprep.subr.bf16.mxu0 0
        %971 = vmatpush1.bf16.msra.mxu0 %v952
        %972 = vmatprep.subr.bf16.mxu0 0
        %973 = vmatpush1.bf16.msra.mxu0 %v951
        %974 = vmatprep.subr.bf16.mxu0 0
        %975 = vmatpush1.bf16.msra.mxu0 %v950
        %976 = vmatprep.subr.bf16.mxu0 0
        %977 = vmatpush2.bf16.msra.mxu0 0
        %978 = vmatprep.subr.bf16.mxu0 0
        %979 = vmatpush2.bf16.msra.mxu0 0
        %980 = vmatprep.subr.bf16.mxu0 0
        %981 = vmatpush2.bf16.msra.mxu0 0
        %982 = vmatprep.subr.bf16.mxu0 0
        %983 = vmatpush2.bf16.msra.mxu0 0
        %984 = vmatprep.subr.bf16.mxu0 0
        %985 = vmatpush2.bf16.msra.mxu0 0
        %986 = vmatprep.subr.bf16.mxu0 0
        %987 = vmatpush2.bf16.msra.mxu0 0
        %988 = vmatprep.subr.bf16.mxu0 0
        %989 = vmatpush2.bf16.msra.mxu0 0
        %990 = vmatprep.subr.bf16.mxu0 0
        %991 = vmatpush2.bf16.msra.mxu0 0
        %992 = vmatprep.mubr.bf16.mxu0 0
        %993 = vmatmul.mubr.bf16.gmra.mxu0 %v958
        %v994 = vpop.f32.mrf.mxu0
        %v995 = vadd.f32 %v936, %v994
        %v996 = vpop.f32.mrf.mxu0
        %v997 = vpop.f32.mrf.mxu0
        %v998 = vadd.f32 %v936, %v997
        %v999 = vpop.f32.mrf.mxu0
        %1000 = vdwg.mxu0
        %v1001 = vld [vmem:[%s9] sm:$0x1]
        %vm1004 = vcmask 1040384
        %v1005 = vrot.slane %v995, 7
        %v1006 = vrot.slane %v998, 7
        %v1007 = vsel %vm1004, %v1005, %v1006
        %v1010 = vsel %vm1004, %v1001, %v1005
        %v1011 = vld [vmem:[%s11] sm:$0x1]
        %s1012 = scalar_lea.vmem %s11, 1
        %v1013 = vld [vmem:[%s1012] sm:$0x1]
        %s1014 = scalar_lea.vmem %s11, 2
        %v1015 = vld [vmem:[%s1014] sm:$0x1]
        %s1016 = scalar_lea.vmem %s11, 3
        %v1017 = vld [vmem:[%s1016] sm:$0x1]
        %s1018 = scalar_lea.vmem %s11, 4
        %v1019 = vld [vmem:[%s1018] sm:$0x1]
        %s1020 = scalar_lea.vmem %s11, 5
        %v1021 = vld [vmem:[%s1020] sm:$0x1]
        %s1022 = scalar_lea.vmem %s11, 6
        %v1023 = vld [vmem:[%s1022] sm:$0x1]
        %s1024 = scalar_lea.vmem %s11, 7
        %v1025 = vld [vmem:[%s1024] sm:$0x1]
        %vm1026 = vcmask 261120
        %v1027 = vsel %vm1026, %v1010, 0.0
        %1028 = vadd.xlane.f32.xlu0 %v1027
        %v1029 = vpop.xlane.xlu0 %1028
        %vm1030 = vcmask 254976
        %v1031 = vsel %vm1030, %v1007, 0.0
        %1032 = vadd.xlane.f32.xlu0 %v1031
        %v1033 = vpop.xlane.xlu0 %1032
        %v1034 = vrcp.pop 32.0
        %v1035 = vmul.f32 %v1029, %v1034
        %v1036 = vmul.f32 %v1033, %v1034
        %v1037 = vsub.f32 %v1010, %v1035
        %v1038 = vsub.f32 %v1007, %v1036
        %v1039 = vmul.f32 %v1037, %v1037
        %v1040 = vmul.f32 %v1038, %v1038
        %v1041 = vsel %vm1026, %v1039, 0.0
        %1042 = vadd.xlane.f32.xlu0 %v1041
        %v1043 = vpop.xlane.xlu0 %1042
        %v1044 = vsel %vm1030, %v1040, 0.0
        %1045 = vadd.xlane.f32.xlu0 %v1044
        %v1046 = vpop.xlane.xlu0 %1045
        %v1047 = vmul.f32 %v1043, %v1034
        %v1048 = vmul.f32 %v1046, %v1034
        %v1049 = vadd.f32 %v1047, 1e-05
        %v1050 = vadd.f32 %v1048, 1e-05
        %v1051 = vrsqrt.pop %v1049
        %v1052 = vrsqrt.pop %v1050
        %v1053 = vmul.f32 %v1037, %v1051
        %v1054 = vmul.f32 %v1038, %v1052
        %v1056 = vlaneseq
        %v1057 = vshrl.u32 %v1056, 7
        %v1058 = vsub.s32 0, %v1057
        %v1059 = vrot.slane %v1011, %v1058
        %v1061 = vmul.f32 %v1053, %v1059
        %v1062 = vmul.f32 %v1054, %v1059
        %v1064 = vlaneseq
        %v1065 = vshrl.u32 %v1064, 7
        %v1066 = vsub.s32 0, %v1065
        %v1067 = vrot.slane %v1013, %v1066
        %v1069 = vadd.f32 %v1061, %v1067
        %v1070 = vadd.f32 %v1062, %v1067
        %v1071 = vpack.c.bf16 %v1070, %v1069
        %v1072 = vld [vmem:[%s13] sm:$0xf]
        %v1073 = vld [vmem:[%s13 + $0x4] sm:$0xf]
        %v1074 = vld [vmem:[%s13 + $0x8] sm:$0xf]
        %v1075 = vld [vmem:[%s13 + $0xc] sm:$0xf]
        %v1076 = vld [vmem:[%s15] sm:$0x1]
        %v1078 = vlaneseq
        %v1079 = vshrl.u32 %v1078, 7
        %v1080 = vsub.s32 0, %v1079
        %v1081 = vrot.slane %v1076, %v1080
        %v1087 = vunpack.c.l.b16 %v1072
        %v1088 = vunpack.c.l.b16 %v1073
        %v1089 = vunpack.c.l.b16 %v1074
        %v1090 = vunpack.c.l.b16 %v1075
        %v1091 = vpack.c.b16 %v1088, %v1087
        %v1092 = vpack.c.b16 %v1090, %v1089
        %v1096 = vsel %vm1026, %v1071, 0
        %1098 = vmatprep.subr.bf16.mxu0 0
        %1099 = vmatpush1.bf16.msra.mxu0 0
        %1100 = vmatprep.subr.bf16.mxu0 0
        %1101 = vmatpush1.bf16.msra.mxu0 0
        %1102 = vmatprep.subr.bf16.mxu0 0
        %1103 = vmatpush1.bf16.msra.mxu0 0
        %1104 = vmatprep.subr.bf16.mxu0 0
        %1105 = vmatpush1.bf16.msra.mxu0 0
        %1106 = vmatprep.subr.bf16.mxu0 0
        %1107 = vmatpush1.bf16.msra.mxu0 0
        %1108 = vmatprep.subr.bf16.mxu0 0
        %1109 = vmatpush1.bf16.msra.mxu0 0
        %1110 = vmatprep.subr.bf16.mxu0 0
        %1111 = vmatpush1.bf16.msra.mxu0 %v1092
        %1112 = vmatprep.subr.bf16.mxu0 0
        %1113 = vmatpush1.bf16.msra.mxu0 %v1091
        %1114 = vmatprep.subr.bf16.mxu0 0
        %1115 = vmatpush2.bf16.msra.mxu0 0
        %1116 = vmatprep.subr.bf16.mxu0 0
        %1117 = vmatpush2.bf16.msra.mxu0 0
        %1118 = vmatprep.subr.bf16.mxu0 0
        %1119 = vmatpush2.bf16.msra.mxu0 0
        %1120 = vmatprep.subr.bf16.mxu0 0
        %1121 = vmatpush2.bf16.msra.mxu0 0
        %1122 = vmatprep.subr.bf16.mxu0 0
        %1123 = vmatpush2.bf16.msra.mxu0 0
        %1124 = vmatprep.subr.bf16.mxu0 0
        %1125 = vmatpush2.bf16.msra.mxu0 0
        %1126 = vmatprep.subr.bf16.mxu0 0
        %1127 = vmatpush2.bf16.msra.mxu0 0
        %1128 = vmatprep.subr.bf16.mxu0 0
        %1129 = vmatpush2.bf16.msra.mxu0 0
        %1130 = vmatprep.mubr.bf16.mxu0 0
        %1131 = vmatmul.mubr.bf16.gmra.mxu0 %v1096
        %v1132 = vpop.f32.mrf.mxu0
        %v1133 = vadd.f32 %v1081, %v1132
        %v1134 = vpop.f32.mrf.mxu0
        %v1135 = vpop.f32.mrf.mxu0
        %v1136 = vadd.f32 %v1081, %v1135
        %v1137 = vpop.f32.mrf.mxu0
        %1138 = vdwg.mxu0
        %v1139 = vmul.f32 %v1133, 0.35355338
        %v1140 = vmul.f32 %v1136, 0.35355338
        %1143 = vrot.lane.b32.xlu0 %v1133, 96
        %v1144 = vpop.permute.xlu0 %1143
        %1145 = vrot.lane.b32.xlu0 %v1136, 96
        %v1146 = vpop.permute.xlu0 %1145
        %vm1147 = vcmask 64512
        %v1149 = vsel %vm1147, %v1139, 0
        %v1152 = vsel %vm1147, %v1140, 0
        %v1154 = vsel %vm1147, %v1144, 0
        %v1156 = vsel %vm1147, %v1146, 0
        %1158 = vmatprep.subr.mxu0 0.0
        %1159 = vmatpush1.xpose.msra.mxu0 0.0
        %1160 = vmatprep.subr.mxu0 0.0
        %1161 = vmatpush1.xpose.msra.mxu0 0.0
        %1162 = vmatprep.subr.mxu0 0.0
        %1163 = vmatpush1.xpose.msra.mxu0 0.0
        %1164 = vmatprep.subr.mxu0 0.0
        %1165 = vmatpush1.xpose.msra.mxu0 0.0
        %1166 = vmatprep.subr.mxu0 0.0
        %1167 = vmatpush1.xpose.msra.mxu0 0.0
        %1168 = vmatprep.subr.mxu0 0.0
        %1169 = vmatpush1.xpose.msra.mxu0 0.0
        %1170 = vmatprep.subr.mxu0 0.0
        %1171 = vmatpush1.xpose.msra.mxu0 0.0
        %1172 = vmatprep.subr.mxu0 0.0
        %1173 = vmatpush1.xpose.msra.mxu0 0.0
        %1174 = vmatprep.subr.mxu0 0.0
        %1175 = vmatpush1.xpose.msra.mxu0 0.0
        %1176 = vmatprep.subr.mxu0 0.0
        %1177 = vmatpush1.xpose.msra.mxu0 0.0
        %1178 = vmatprep.subr.mxu0 0.0
        %1179 = vmatpush1.xpose.msra.mxu0 0.0
        %1180 = vmatprep.subr.mxu0 0.0
        %1181 = vmatpush1.xpose.msra.mxu0 0.0
        %1182 = vmatprep.subr.mxu0 0.0
        %1183 = vmatpush1.xpose.msra.mxu0 0.0
        %1184 = vmatprep.subr.mxu0 0.0
        %1185 = vmatpush1.xpose.msra.mxu0 0.0
        %1186 = vmatprep.subr.mxu0 0.0
        %1187 = vmatpush1.xpose.msra.mxu0 %v1156
        %1188 = vmatprep.subr.mxu0 0.0
        %1189 = vmatpush1.xpose.msra.mxu0 %v1154
        %1190 = vmatprep.subr.mxu0 0.0
        %1191 = vmatpush2.xpose.msra.mxu0 0.0
        %1192 = vmatprep.subr.mxu0 0.0
        %1193 = vmatpush2.xpose.msra.mxu0 0.0
        %1194 = vmatprep.subr.mxu0 0.0
        %1195 = vmatpush2.xpose.msra.mxu0 0.0
        %1196 = vmatprep.subr.mxu0 0.0
        %1197 = vmatpush2.xpose.msra.mxu0 0.0
        %1198 = vmatprep.subr.mxu0 0.0
        %1199 = vmatpush2.xpose.msra.mxu0 0.0
        %1200 = vmatprep.subr.mxu0 0.0
        %1201 = vmatpush2.xpose.msra.mxu0 0.0
        %1202 = vmatprep.subr.mxu0 0.0
        %1203 = vmatpush2.xpose.msra.mxu0 0.0
        %1204 = vmatprep.subr.mxu0 0.0
        %1205 = vmatpush2.xpose.msra.mxu0 0.0
        %1206 = vmatprep.subr.mxu0 0.0
        %1207 = vmatpush2.xpose.msra.mxu0 0.0
        %1208 = vmatprep.subr.mxu0 0.0
        %1209 = vmatpush2.xpose.msra.mxu0 0.0
        %1210 = vmatprep.subr.mxu0 0.0
        %1211 = vmatpush2.xpose.msra.mxu0 0.0
        %1212 = vmatprep.subr.mxu0 0.0
        %1213 = vmatpush2.xpose.msra.mxu0 0.0
        %1214 = vmatprep.subr.mxu0 0.0
        %1215 = vmatpush2.xpose.msra.mxu0 0.0
        %1216 = vmatprep.subr.mxu0 0.0
        %1217 = vmatpush2.xpose.msra.mxu0 0.0
        %1218 = vmatprep.subr.mxu0 0.0
        %1219 = vmatpush2.xpose.msra.mxu0 0.0
        %1220 = vmatprep.subr.mxu0 0.0
        %1221 = vmatpush2.xpose.msra.mxu0 0.0
        %1222 = vmatprep.mubr.f32.mxu0 0.0
        %1223 = vmatmul.mubr.f32.gmra.mxu0 %v1149
        %v1224 = vpop.f32.mrf.mxu0
        %v1225 = vadd.f32 0.0, %v1224
        %v1226 = vpop.f32.mrf.mxu0
        %1227 = vmatprep.mubr.f32.mxu0 0.0
        %1228 = vmatmul.mubr.f32.gmra.mxu0 %v1152
        %v1229 = vpop.f32.mrf.mxu0
        %v1230 = vadd.f32 0.0, %v1229
        %v1231 = vpop.f32.mrf.mxu0
        %1232 = vdwg.mxu0
        %vm1233 = vcmask 80896
        %v1234 = vsel %vm1233, %v1225, -inf
        %1235 = vmax.xlane.f32.xlu0 %v1234
        %v1236 = vpop.xlane.xlu0 %1235
        %vm1237 = vcmask 74752
        %v1238 = vsel %vm1237, %v1230, -inf
        %1239 = vmax.xlane.f32.xlu0 %v1238
        %v1240 = vpop.xlane.xlu0 %1239
        %v1241 = vsub.f32 %v1225, %v1236
        %v1242 = vsub.f32 %v1230, %v1240
        %v1243 = vmul.f32 %v1241, 1.442695
        %v1244 = vpow.pop %v1243
        %v1245 = vmul.f32 %v1242, 1.442695
        %v1246 = vpow.pop %v1245
        %v1247 = vsel %vm1233, %v1244, 0.0
        %1248 = vadd.xlane.f32.xlu0 %v1247
        %v1249 = vpop.xlane.xlu0 %1248
        %v1250 = vsel %vm1237, %v1246, 0.0
        %1251 = vadd.xlane.f32.xlu0 %v1250
        %v1252 = vpop.xlane.xlu0 %1251
        %v1253 = vrcp.pop %v1249
        %v1254 = vrcp.pop %v1252
        %v1255 = vmul.f32 %v1244, %v1253
        %v1256 = vmul.f32 %v1246, %v1254
        %1257 = vrot.lane.b32.xlu0 %v1133, 64
        %v1258 = vpop.permute.xlu0 %1257
        %1259 = vrot.lane.b32.xlu0 %v1136, 64
        %v1260 = vpop.permute.xlu0 %1259
        %v1263 = vsel %vm1233, %v1255, 0
        %v1266 = vsel %vm1233, %v1256, 0
        %vm1268 = vcmask 1041408
        %v1269 = vsel %vm1268, %v1260, 0
        %1271 = vmatprep.subr.mxu0 0.0
        %1272 = vmatpush1.msra.mxu0 0.0
        %1273 = vmatprep.subr.mxu0 0.0
        %1274 = vmatpush1.msra.mxu0 0.0
        %1275 = vmatprep.subr.mxu0 0.0
        %1276 = vmatpush1.msra.mxu0 0.0
        %1277 = vmatprep.subr.mxu0 0.0
        %1278 = vmatpush1.msra.mxu0 0.0
        %1279 = vmatprep.subr.mxu0 0.0
        %1280 = vmatpush1.msra.mxu0 0.0
        %1281 = vmatprep.subr.mxu0 0.0
        %1282 = vmatpush1.msra.mxu0 0.0
        %1283 = vmatprep.subr.mxu0 0.0
        %1284 = vmatpush1.msra.mxu0 0.0
        %1285 = vmatprep.subr.mxu0 0.0
        %1286 = vmatpush1.msra.mxu0 0.0
        %1287 = vmatprep.subr.mxu0 0.0
        %1288 = vmatpush1.msra.mxu0 0.0
        %1289 = vmatprep.subr.mxu0 0.0
        %1290 = vmatpush1.msra.mxu0 0.0
        %1291 = vmatprep.subr.mxu0 0.0
        %1292 = vmatpush1.msra.mxu0 0.0
        %1293 = vmatprep.subr.mxu0 0.0
        %1294 = vmatpush1.msra.mxu0 0.0
        %1295 = vmatprep.subr.mxu0 0.0
        %1296 = vmatpush1.msra.mxu0 0.0
        %1297 = vmatprep.subr.mxu0 0.0
        %1298 = vmatpush1.msra.mxu0 0.0
        %1299 = vmatprep.subr.mxu0 0.0
        %1300 = vmatpush1.msra.mxu0 %v1269
        %1301 = vmatprep.subr.mxu0 0.0
        %1302 = vmatpush1.msra.mxu0 %v1258
        %1303 = vmatprep.subr.mxu0 0.0
        %1304 = vmatpush2.msra.mxu0 0.0
        %1305 = vmatprep.subr.mxu0 0.0
        %1306 = vmatpush2.msra.mxu0 0.0
        %1307 = vmatprep.subr.mxu0 0.0
        %1308 = vmatpush2.msra.mxu0 0.0
        %1309 = vmatprep.subr.mxu0 0.0
        %1310 = vmatpush2.msra.mxu0 0.0
        %1311 = vmatprep.subr.mxu0 0.0
        %1312 = vmatpush2.msra.mxu0 0.0
        %1313 = vmatprep.subr.mxu0 0.0
        %1314 = vmatpush2.msra.mxu0 0.0
        %1315 = vmatprep.subr.mxu0 0.0
        %1316 = vmatpush2.msra.mxu0 0.0
        %1317 = vmatprep.subr.mxu0 0.0
        %1318 = vmatpush2.msra.mxu0 0.0
        %1319 = vmatprep.subr.mxu0 0.0
        %1320 = vmatpush2.msra.mxu0 0.0
        %1321 = vmatprep.subr.mxu0 0.0
        %1322 = vmatpush2.msra.mxu0 0.0
        %1323 = vmatprep.subr.mxu0 0.0
        %1324 = vmatpush2.msra.mxu0 0.0
        %1325 = vmatprep.subr.mxu0 0.0
        %1326 = vmatpush2.msra.mxu0 0.0
        %1327 = vmatprep.subr.mxu0 0.0
        %1328 = vmatpush2.msra.mxu0 0.0
        %1329 = vmatprep.subr.mxu0 0.0
        %1330 = vmatpush2.msra.mxu0 0.0
        %1331 = vmatprep.subr.mxu0 0.0
        %1332 = vmatpush2.msra.mxu0 0.0
        %1333 = vmatprep.subr.mxu0 0.0
        %1334 = vmatpush2.msra.mxu0 0.0
        %1335 = vmatprep.mubr.f32.mxu0 0.0
        %1336 = vmatmul.mubr.f32.gmra.mxu0 %v1263
        %v1337 = vpop.f32.mrf.mxu0
        %v1338 = vadd.f32 0.0, %v1337
        %v1339 = vpop.f32.mrf.mxu0
        %1340 = vmatprep.mubr.f32.mxu0 0.0
        %1341 = vmatmul.mubr.f32.gmra.mxu0 %v1266
        %v1342 = vpop.f32.mrf.mxu0
        %v1343 = vadd.f32 0.0, %v1342
        %v1344 = vpop.f32.mrf.mxu0
        %1345 = vdwg.mxu0
        %1346 = vrot.lane.b32.xlu0 %v1139, 120
        %v1347 = vpop.permute.xlu0 %1346
        %1348 = vrot.lane.b32.xlu0 %v1140, 120
        %v1349 = vpop.permute.xlu0 %1348
        %1350 = vrot.lane.b32.xlu0 %v1133, 88
        %v1351 = vpop.permute.xlu0 %1350
        %1352 = vrot.lane.b32.xlu0 %v1136, 88
        %v1353 = vpop.permute.xlu0 %1352
        %v1354 = vsel %vm1147, %v1347, 0
        %v1356 = vsel %vm1147, %v1349, 0
        %v1358 = vsel %vm1147, %v1351, 0
        %v1360 = vsel %vm1147, %v1353, 0
        %1362 = vmatprep.subr.mxu0 0.0
        %1363 = vmatpush1.xpose.msra.mxu0 0.0
        %1364 = vmatprep.subr.mxu0 0.0
        %1365 = vmatpush1.xpose.msra.mxu0 0.0
        %1366 = vmatprep.subr.mxu0 0.0
        %1367 = vmatpush1.xpose.msra.mxu0 0.0
        %1368 = vmatprep.subr.mxu0 0.0
        %1369 = vmatpush1.xpose.msra.mxu0 0.0
        %1370 = vmatprep.subr.mxu0 0.0
        %1371 = vmatpush1.xpose.msra.mxu0 0.0
        %1372 = vmatprep.subr.mxu0 0.0
        %1373 = vmatpush1.xpose.msra.mxu0 0.0
        %1374 = vmatprep.subr.mxu0 0.0
        %1375 = vmatpush1.xpose.msra.mxu0 0.0
        %1376 = vmatprep.subr.mxu0 0.0
        %1377 = vmatpush1.xpose.msra.mxu0 0.0
        %1378 = vmatprep.subr.mxu0 0.0
        %1379 = vmatpush1.xpose.msra.mxu0 0.0
        %1380 = vmatprep.subr.mxu0 0.0
        %1381 = vmatpush1.xpose.msra.mxu0 0.0
        %1382 = vmatprep.subr.mxu0 0.0
        %1383 = vmatpush1.xpose.msra.mxu0 0.0
        %1384 = vmatprep.subr.mxu0 0.0
        %1385 = vmatpush1.xpose.msra.mxu0 0.0
        %1386 = vmatprep.subr.mxu0 0.0
        %1387 = vmatpush1.xpose.msra.mxu0 0.0
        %1388 = vmatprep.subr.mxu0 0.0
        %1389 = vmatpush1.xpose.msra.mxu0 0.0
        %1390 = vmatprep.subr.mxu0 0.0
        %1391 = vmatpush1.xpose.msra.mxu0 %v1360
        %1392 = vmatprep.subr.mxu0 0.0
        %1393 = vmatpush1.xpose.msra.mxu0 %v1358
        %1394 = vmatprep.subr.mxu0 0.0
        %1395 = vmatpush2.xpose.msra.mxu0 0.0
        %1396 = vmatprep.subr.mxu0 0.0
        %1397 = vmatpush2.xpose.msra.mxu0 0.0
        %1398 = vmatprep.subr.mxu0 0.0
        %1399 = vmatpush2.xpose.msra.mxu0 0.0
        %1400 = vmatprep.subr.mxu0 0.0
        %1401 = vmatpush2.xpose.msra.mxu0 0.0
        %1402 = vmatprep.subr.mxu0 0.0
        %1403 = vmatpush2.xpose.msra.mxu0 0.0
        %1404 = vmatprep.subr.mxu0 0.0
        %1405 = vmatpush2.xpose.msra.mxu0 0.0
        %1406 = vmatprep.subr.mxu0 0.0
        %1407 = vmatpush2.xpose.msra.mxu0 0.0
        %1408 = vmatprep.subr.mxu0 0.0
        %1409 = vmatpush2.xpose.msra.mxu0 0.0
        %1410 = vmatprep.subr.mxu0 0.0
        %1411 = vmatpush2.xpose.msra.mxu0 0.0
        %1412 = vmatprep.subr.mxu0 0.0
        %1413 = vmatpush2.xpose.msra.mxu0 0.0
        %1414 = vmatprep.subr.mxu0 0.0
        %1415 = vmatpush2.xpose.msra.mxu0 0.0
        %1416 = vmatprep.subr.mxu0 0.0
        %1417 = vmatpush2.xpose.msra.mxu0 0.0
        %1418 = vmatprep.subr.mxu0 0.0
        %1419 = vmatpush2.xpose.msra.mxu0 0.0
        %1420 = vmatprep.subr.mxu0 0.0
        %1421 = vmatpush2.xpose.msra.mxu0 0.0
        %1422 = vmatprep.subr.mxu0 0.0
        %1423 = vmatpush2.xpose.msra.mxu0 0.0
        %1424 = vmatprep.subr.mxu0 0.0
        %1425 = vmatpush2.xpose.msra.mxu0 0.0
        %1426 = vmatprep.mubr.f32.mxu0 0.0
        %1427 = vmatmul.mubr.f32.gmra.mxu0 %v1354
        %v1428 = vpop.f32.mrf.mxu0
        %v1429 = vadd.f32 0.0, %v1428
        %v1430 = vpop.f32.mrf.mxu0
        %1431 = vmatprep.mubr.f32.mxu0 0.0
        %1432 = vmatmul.mubr.f32.gmra.mxu0 %v1356
        %v1433 = vpop.f32.mrf.mxu0
        %v1434 = vadd.f32 0.0, %v1433
        %v1435 = vpop.f32.mrf.mxu0
        %1436 = vdwg.mxu0
        %v1437 = vsel %vm1233, %v1429, -inf
        %1438 = vmax.xlane.f32.xlu0 %v1437
        %v1439 = vpop.xlane.xlu0 %1438
        %v1440 = vsel %vm1237, %v1434, -inf
        %1441 = vmax.xlane.f32.xlu0 %v1440
        %v1442 = vpop.xlane.xlu0 %1441
        %v1443 = vsub.f32 %v1429, %v1439
        %v1444 = vsub.f32 %v1434, %v1442
        %v1445 = vmul.f32 %v1443, 1.442695
        %v1446 = vpow.pop %v1445
        %v1447 = vmul.f32 %v1444, 1.442695
        %v1448 = vpow.pop %v1447
        %v1449 = vsel %vm1233, %v1446, 0.0
        %1450 = vadd.xlane.f32.xlu0 %v1449
        %v1451 = vpop.xlane.xlu0 %1450
        %v1452 = vsel %vm1237, %v1448, 0.0
        %1453 = vadd.xlane.f32.xlu0 %v1452
        %v1454 = vpop.xlane.xlu0 %1453
        %v1455 = vrcp.pop %v1451
        %v1456 = vrcp.pop %v1454
        %v1457 = vmul.f32 %v1446, %v1455
        %v1458 = vmul.f32 %v1448, %v1456
        %1459 = vrot.lane.b32.xlu0 %v1133, 56
        %v1460 = vpop.permute.xlu0 %1459
        %1461 = vrot.lane.b32.xlu0 %v1136, 56
        %v1462 = vpop.permute.xlu0 %1461
        %v1465 = vsel %vm1233, %v1457, 0
        %v1468 = vsel %vm1233, %v1458, 0
        %v1470 = vsel %vm1268, %v1462, 0
        %1472 = vmatprep.subr.mxu0 0.0
        %1473 = vmatpush1.msra.mxu0 0.0
        %1474 = vmatprep.subr.mxu0 0.0
        %1475 = vmatpush1.msra.mxu0 0.0
        %1476 = vmatprep.subr.mxu0 0.0
        %1477 = vmatpush1.msra.mxu0 0.0
        %1478 = vmatprep.subr.mxu0 0.0
        %1479 = vmatpush1.msra.mxu0 0.0
        %1480 = vmatprep.subr.mxu0 0.0
        %1481 = vmatpush1.msra.mxu0 0.0
        %1482 = vmatprep.subr.mxu0 0.0
        %1483 = vmatpush1.msra.mxu0 0.0
        %1484 = vmatprep.subr.mxu0 0.0
        %1485 = vmatpush1.msra.mxu0 0.0
        %1486 = vmatprep.subr.mxu0 0.0
        %1487 = vmatpush1.msra.mxu0 0.0
        %1488 = vmatprep.subr.mxu0 0.0
        %1489 = vmatpush1.msra.mxu0 0.0
        %1490 = vmatprep.subr.mxu0 0.0
        %1491 = vmatpush1.msra.mxu0 0.0
        %1492 = vmatprep.subr.mxu0 0.0
        %1493 = vmatpush1.msra.mxu0 0.0
        %1494 = vmatprep.subr.mxu0 0.0
        %1495 = vmatpush1.msra.mxu0 0.0
        %1496 = vmatprep.subr.mxu0 0.0
        %1497 = vmatpush1.msra.mxu0 0.0
        %1498 = vmatprep.subr.mxu0 0.0
        %1499 = vmatpush1.msra.mxu0 0.0
        %1500 = vmatprep.subr.mxu0 0.0
        %1501 = vmatpush1.msra.mxu0 %v1470
        %1502 = vmatprep.subr.mxu0 0.0
        %1503 = vmatpush1.msra.mxu0 %v1460
        %1504 = vmatprep.subr.mxu0 0.0
        %1505 = vmatpush2.msra.mxu0 0.0
        %1506 = vmatprep.subr.mxu0 0.0
        %1507 = vmatpush2.msra.mxu0 0.0
        %1508 = vmatprep.subr.mxu0 0.0
        %1509 = vmatpush2.msra.mxu0 0.0
        %1510 = vmatprep.subr.mxu0 0.0
        %1511 = vmatpush2.msra.mxu0 0.0
        %1512 = vmatprep.subr.mxu0 0.0
        %1513 = vmatpush2.msra.mxu0 0.0
        %1514 = vmatprep.subr.mxu0 0.0
        %1515 = vmatpush2.msra.mxu0 0.0
        %1516 = vmatprep.subr.mxu0 0.0
        %1517 = vmatpush2.msra.mxu0 0.0
        %1518 = vmatprep.subr.mxu0 0.0
        %1519 = vmatpush2.msra.mxu0 0.0
        %1520 = vmatprep.subr.mxu0 0.0
        %1521 = vmatpush2.msra.mxu0 0.0
        %1522 = vmatprep.subr.mxu0 0.0
        %1523 = vmatpush2.msra.mxu0 0.0
        %1524 = vmatprep.subr.mxu0 0.0
        %1525 = vmatpush2.msra.mxu0 0.0
        %1526 = vmatprep.subr.mxu0 0.0
        %1527 = vmatpush2.msra.mxu0 0.0
        %1528 = vmatprep.subr.mxu0 0.0
        %1529 = vmatpush2.msra.mxu0 0.0
        %1530 = vmatprep.subr.mxu0 0.0
        %1531 = vmatpush2.msra.mxu0 0.0
        %1532 = vmatprep.subr.mxu0 0.0
        %1533 = vmatpush2.msra.mxu0 0.0
        %1534 = vmatprep.subr.mxu0 0.0
        %1535 = vmatpush2.msra.mxu0 0.0
        %1536 = vmatprep.mubr.f32.mxu0 0.0
        %1537 = vmatmul.mubr.f32.gmra.mxu0 %v1465
        %v1538 = vpop.f32.mrf.mxu0
        %v1539 = vadd.f32 0.0, %v1538
        %v1540 = vpop.f32.mrf.mxu0
        %1541 = vmatprep.mubr.f32.mxu0 0.0
        %1542 = vmatmul.mubr.f32.gmra.mxu0 %v1468
        %v1543 = vpop.f32.mrf.mxu0
        %v1544 = vadd.f32 0.0, %v1543
        %v1545 = vpop.f32.mrf.mxu0
        %1546 = vdwg.mxu0
        %1547 = vrot.lane.b32.xlu0 %v1139, 112
        %v1548 = vpop.permute.xlu0 %1547
        %1549 = vrot.lane.b32.xlu0 %v1140, 112
        %v1550 = vpop.permute.xlu0 %1549
        %1551 = vrot.lane.b32.xlu0 %v1133, 80
        %v1552 = vpop.permute.xlu0 %1551
        %1553 = vrot.lane.b32.xlu0 %v1136, 80
        %v1554 = vpop.permute.xlu0 %1553
        %v1555 = vsel %vm1147, %v1548, 0
        %v1557 = vsel %vm1147, %v1550, 0
        %v1559 = vsel %vm1147, %v1552, 0
        %v1561 = vsel %vm1147, %v1554, 0
        %1563 = vmatprep.subr.mxu0 0.0
        %1564 = vmatpush1.xpose.msra.mxu0 0.0
        %1565 = vmatprep.subr.mxu0 0.0
        %1566 = vmatpush1.xpose.msra.mxu0 0.0
        %1567 = vmatprep.subr.mxu0 0.0
        %1568 = vmatpush1.xpose.msra.mxu0 0.0
        %1569 = vmatprep.subr.mxu0 0.0
        %1570 = vmatpush1.xpose.msra.mxu0 0.0
        %1571 = vmatprep.subr.mxu0 0.0
        %1572 = vmatpush1.xpose.msra.mxu0 0.0
        %1573 = vmatprep.subr.mxu0 0.0
        %1574 = vmatpush1.xpose.msra.mxu0 0.0
        %1575 = vmatprep.subr.mxu0 0.0
        %1576 = vmatpush1.xpose.msra.mxu0 0.0
        %1577 = vmatprep.subr.mxu0 0.0
        %1578 = vmatpush1.xpose.msra.mxu0 0.0
        %1579 = vmatprep.subr.mxu0 0.0
        %1580 = vmatpush1.xpose.msra.mxu0 0.0
        %1581 = vmatprep.subr.mxu0 0.0
        %1582 = vmatpush1.xpose.msra.mxu0 0.0
        %1583 = vmatprep.subr.mxu0 0.0
        %1584 = vmatpush1.xpose.msra.mxu0 0.0
        %1585 = vmatprep.subr.mxu0 0.0
        %1586 = vmatpush1.xpose.msra.mxu0 0.0
        %1587 = vmatprep.subr.mxu0 0.0
        %1588 = vmatpush1.xpose.msra.mxu0 0.0
        %1589 = vmatprep.subr.mxu0 0.0
        %1590 = vmatpush1.xpose.msra.mxu0 0.0
        %1591 = vmatprep.subr.mxu0 0.0
        %1592 = vmatpush1.xpose.msra.mxu0 %v1561
        %1593 = vmatprep.subr.mxu0 0.0
        %1594 = vmatpush1.xpose.msra.mxu0 %v1559
        %1595 = vmatprep.subr.mxu0 0.0
        %1596 = vmatpush2.xpose.msra.mxu0 0.0
        %1597 = vmatprep.subr.mxu0 0.0
        %1598 = vmatpush2.xpose.msra.mxu0 0.0
        %1599 = vmatprep.subr.mxu0 0.0
        %1600 = vmatpush2.xpose.msra.mxu0 0.0
        %1601 = vmatprep.subr.mxu0 0.0
        %1602 = vmatpush2.xpose.msra.mxu0 0.0
        %1603 = vmatprep.subr.mxu0 0.0
        %1604 = vmatpush2.xpose.msra.mxu0 0.0
        %1605 = vmatprep.subr.mxu0 0.0
        %1606 = vmatpush2.xpose.msra.mxu0 0.0
        %1607 = vmatprep.subr.mxu0 0.0
        %1608 = vmatpush2.xpose.msra.mxu0 0.0
        %1609 = vmatprep.subr.mxu0 0.0
        %1610 = vmatpush2.xpose.msra.mxu0 0.0
        %1611 = vmatprep.subr.mxu0 0.0
        %1612 = vmatpush2.xpose.msra.mxu0 0.0
        %1613 = vmatprep.subr.mxu0 0.0
        %1614 = vmatpush2.xpose.msra.mxu0 0.0
        %1615 = vmatprep.subr.mxu0 0.0
        %1616 = vmatpush2.xpose.msra.mxu0 0.0
        %1617 = vmatprep.subr.mxu0 0.0
        %1618 = vmatpush2.xpose.msra.mxu0 0.0
        %1619 = vmatprep.subr.mxu0 0.0
        %1620 = vmatpush2.xpose.msra.mxu0 0.0
        %1621 = vmatprep.subr.mxu0 0.0
        %1622 = vmatpush2.xpose.msra.mxu0 0.0
        %1623 = vmatprep.subr.mxu0 0.0
        %1624 = vmatpush2.xpose.msra.mxu0 0.0
        %1625 = vmatprep.subr.mxu0 0.0
        %1626 = vmatpush2.xpose.msra.mxu0 0.0
        %1627 = vmatprep.mubr.f32.mxu0 0.0
        %1628 = vmatmul.mubr.f32.gmra.mxu0 %v1555
        %v1629 = vpop.f32.mrf.mxu0
        %v1630 = vadd.f32 0.0, %v1629
        %v1631 = vpop.f32.mrf.mxu0
        %1632 = vmatprep.mubr.f32.mxu0 0.0
        %1633 = vmatmul.mubr.f32.gmra.mxu0 %v1557
        %v1634 = vpop.f32.mrf.mxu0
        %v1635 = vadd.f32 0.0, %v1634
        %v1636 = vpop.f32.mrf.mxu0
        %1637 = vdwg.mxu0
        %v1638 = vsel %vm1233, %v1630, -inf
        %1639 = vmax.xlane.f32.xlu0 %v1638
        %v1640 = vpop.xlane.xlu0 %1639
        %v1641 = vsel %vm1237, %v1635, -inf
        %1642 = vmax.xlane.f32.xlu0 %v1641
        %v1643 = vpop.xlane.xlu0 %1642
        %v1644 = vsub.f32 %v1630, %v1640
        %v1645 = vsub.f32 %v1635, %v1643
        %v1646 = vmul.f32 %v1644, 1.442695
        %v1647 = vpow.pop %v1646
        %v1648 = vmul.f32 %v1645, 1.442695
        %v1649 = vpow.pop %v1648
        %v1650 = vsel %vm1233, %v1647, 0.0
        %1651 = vadd.xlane.f32.xlu0 %v1650
        %v1652 = vpop.xlane.xlu0 %1651
        %v1653 = vsel %vm1237, %v1649, 0.0
        %1654 = vadd.xlane.f32.xlu0 %v1653
        %v1655 = vpop.xlane.xlu0 %1654
        %v1656 = vrcp.pop %v1652
        %v1657 = vrcp.pop %v1655
        %v1658 = vmul.f32 %v1647, %v1656
        %v1659 = vmul.f32 %v1649, %v1657
        %1660 = vrot.lane.b32.xlu0 %v1133, 48
        %v1661 = vpop.permute.xlu0 %1660
        %1662 = vrot.lane.b32.xlu0 %v1136, 48
        %v1663 = vpop.permute.xlu0 %1662
        %v1666 = vsel %vm1233, %v1658, 0
        %v1669 = vsel %vm1233, %v1659, 0
        %v1671 = vsel %vm1268, %v1663, 0
        %1673 = vmatprep.subr.mxu0 0.0
        %1674 = vmatpush1.msra.mxu0 0.0
        %1675 = vmatprep.subr.mxu0 0.0
        %1676 = vmatpush1.msra.mxu0 0.0
        %1677 = vmatprep.subr.mxu0 0.0
        %1678 = vmatpush1.msra.mxu0 0.0
        %1679 = vmatprep.subr.mxu0 0.0
        %1680 = vmatpush1.msra.mxu0 0.0
        %1681 = vmatprep.subr.mxu0 0.0
        %1682 = vmatpush1.msra.mxu0 0.0
        %1683 = vmatprep.subr.mxu0 0.0
        %1684 = vmatpush1.msra.mxu0 0.0
        %1685 = vmatprep.subr.mxu0 0.0
        %1686 = vmatpush1.msra.mxu0 0.0
        %1687 = vmatprep.subr.mxu0 0.0
        %1688 = vmatpush1.msra.mxu0 0.0
        %1689 = vmatprep.subr.mxu0 0.0
        %1690 = vmatpush1.msra.mxu0 0.0
        %1691 = vmatprep.subr.mxu0 0.0
        %1692 = vmatpush1.msra.mxu0 0.0
        %1693 = vmatprep.subr.mxu0 0.0
        %1694 = vmatpush1.msra.mxu0 0.0
        %1695 = vmatprep.subr.mxu0 0.0
        %1696 = vmatpush1.msra.mxu0 0.0
        %1697 = vmatprep.subr.mxu0 0.0
        %1698 = vmatpush1.msra.mxu0 0.0
        %1699 = vmatprep.subr.mxu0 0.0
        %1700 = vmatpush1.msra.mxu0 0.0
        %1701 = vmatprep.subr.mxu0 0.0
        %1702 = vmatpush1.msra.mxu0 %v1671
        %1703 = vmatprep.subr.mxu0 0.0
        %1704 = vmatpush1.msra.mxu0 %v1661
        %1705 = vmatprep.subr.mxu0 0.0
        %1706 = vmatpush2.msra.mxu0 0.0
        %1707 = vmatprep.subr.mxu0 0.0
        %1708 = vmatpush2.msra.mxu0 0.0
        %1709 = vmatprep.subr.mxu0 0.0
        %1710 = vmatpush2.msra.mxu0 0.0
        %1711 = vmatprep.subr.mxu0 0.0
        %1712 = vmatpush2.msra.mxu0 0.0
        %1713 = vmatprep.subr.mxu0 0.0
        %1714 = vmatpush2.msra.mxu0 0.0
        %1715 = vmatprep.subr.mxu0 0.0
        %1716 = vmatpush2.msra.mxu0 0.0
        %1717 = vmatprep.subr.mxu0 0.0
        %1718 = vmatpush2.msra.mxu0 0.0
        %1719 = vmatprep.subr.mxu0 0.0
        %1720 = vmatpush2.msra.mxu0 0.0
        %1721 = vmatprep.subr.mxu0 0.0
        %1722 = vmatpush2.msra.mxu0 0.0
        %1723 = vmatprep.subr.mxu0 0.0
        %1724 = vmatpush2.msra.mxu0 0.0
        %1725 = vmatprep.subr.mxu0 0.0
        %1726 = vmatpush2.msra.mxu0 0.0
        %1727 = vmatprep.subr.mxu0 0.0
        %1728 = vmatpush2.msra.mxu0 0.0
        %1729 = vmatprep.subr.mxu0 0.0
        %1730 = vmatpush2.msra.mxu0 0.0
        %1731 = vmatprep.subr.mxu0 0.0
        %1732 = vmatpush2.msra.mxu0 0.0
        %1733 = vmatprep.subr.mxu0 0.0
        %1734 = vmatpush2.msra.mxu0 0.0
        %1735 = vmatprep.subr.mxu0 0.0
        %1736 = vmatpush2.msra.mxu0 0.0
        %1737 = vmatprep.mubr.f32.mxu0 0.0
        %1738 = vmatmul.mubr.f32.gmra.mxu0 %v1666
        %v1739 = vpop.f32.mrf.mxu0
        %v1740 = vadd.f32 0.0, %v1739
        %v1741 = vpop.f32.mrf.mxu0
        %1742 = vmatprep.mubr.f32.mxu0 0.0
        %1743 = vmatmul.mubr.f32.gmra.mxu0 %v1669
        %v1744 = vpop.f32.mrf.mxu0
        %v1745 = vadd.f32 0.0, %v1744
        %v1746 = vpop.f32.mrf.mxu0
        %1747 = vdwg.mxu0
        %1748 = vrot.lane.b32.xlu0 %v1139, 104
        %v1749 = vpop.permute.xlu0 %1748
        %1750 = vrot.lane.b32.xlu0 %v1140, 104
        %v1751 = vpop.permute.xlu0 %1750
        %1752 = vrot.lane.b32.xlu0 %v1133, 72
        %v1753 = vpop.permute.xlu0 %1752
        %1754 = vrot.lane.b32.xlu0 %v1136, 72
        %v1755 = vpop.permute.xlu0 %1754
        %v1756 = vsel %vm1147, %v1749, 0
        %v1758 = vsel %vm1147, %v1751, 0
        %v1760 = vsel %vm1147, %v1753, 0
        %v1762 = vsel %vm1147, %v1755, 0
        %1764 = vmatprep.subr.mxu0 0.0
        %1765 = vmatpush1.xpose.msra.mxu0 0.0
        %1766 = vmatprep.subr.mxu0 0.0
        %1767 = vmatpush1.xpose.msra.mxu0 0.0
        %1768 = vmatprep.subr.mxu0 0.0
        %1769 = vmatpush1.xpose.msra.mxu0 0.0
        %1770 = vmatprep.subr.mxu0 0.0
        %1771 = vmatpush1.xpose.msra.mxu0 0.0
        %1772 = vmatprep.subr.mxu0 0.0
        %1773 = vmatpush1.xpose.msra.mxu0 0.0
        %1774 = vmatprep.subr.mxu0 0.0
        %1775 = vmatpush1.xpose.msra.mxu0 0.0
        %1776 = vmatprep.subr.mxu0 0.0
        %1777 = vmatpush1.xpose.msra.mxu0 0.0
        %1778 = vmatprep.subr.mxu0 0.0
        %1779 = vmatpush1.xpose.msra.mxu0 0.0
        %1780 = vmatprep.subr.mxu0 0.0
        %1781 = vmatpush1.xpose.msra.mxu0 0.0
        %1782 = vmatprep.subr.mxu0 0.0
        %1783 = vmatpush1.xpose.msra.mxu0 0.0
        %1784 = vmatprep.subr.mxu0 0.0
        %1785 = vmatpush1.xpose.msra.mxu0 0.0
        %1786 = vmatprep.subr.mxu0 0.0
        %1787 = vmatpush1.xpose.msra.mxu0 0.0
        %1788 = vmatprep.subr.mxu0 0.0
        %1789 = vmatpush1.xpose.msra.mxu0 0.0
        %1790 = vmatprep.subr.mxu0 0.0
        %1791 = vmatpush1.xpose.msra.mxu0 0.0
        %1792 = vmatprep.subr.mxu0 0.0
        %1793 = vmatpush1.xpose.msra.mxu0 %v1762
        %1794 = vmatprep.subr.mxu0 0.0
        %1795 = vmatpush1.xpose.msra.mxu0 %v1760
        %1796 = vmatprep.subr.mxu0 0.0
        %1797 = vmatpush2.xpose.msra.mxu0 0.0
        %1798 = vmatprep.subr.mxu0 0.0
        %1799 = vmatpush2.xpose.msra.mxu0 0.0
        %1800 = vmatprep.subr.mxu0 0.0
        %1801 = vmatpush2.xpose.msra.mxu0 0.0
        %1802 = vmatprep.subr.mxu0 0.0
        %1803 = vmatpush2.xpose.msra.mxu0 0.0
        %1804 = vmatprep.subr.mxu0 0.0
        %1805 = vmatpush2.xpose.msra.mxu0 0.0
        %1806 = vmatprep.subr.mxu0 0.0
        %1807 = vmatpush2.xpose.msra.mxu0 0.0
        %1808 = vmatprep.subr.mxu0 0.0
        %1809 = vmatpush2.xpose.msra.mxu0 0.0
        %1810 = vmatprep.subr.mxu0 0.0
        %1811 = vmatpush2.xpose.msra.mxu0 0.0
        %1812 = vmatprep.subr.mxu0 0.0
        %1813 = vmatpush2.xpose.msra.mxu0 0.0
        %1814 = vmatprep.subr.mxu0 0.0
        %1815 = vmatpush2.xpose.msra.mxu0 0.0
        %1816 = vmatprep.subr.mxu0 0.0
        %1817 = vmatpush2.xpose.msra.mxu0 0.0
        %1818 = vmatprep.subr.mxu0 0.0
        %1819 = vmatpush2.xpose.msra.mxu0 0.0
        %1820 = vmatprep.subr.mxu0 0.0
        %1821 = vmatpush2.xpose.msra.mxu0 0.0
        %1822 = vmatprep.subr.mxu0 0.0
        %1823 = vmatpush2.xpose.msra.mxu0 0.0
        %1824 = vmatprep.subr.mxu0 0.0
        %1825 = vmatpush2.xpose.msra.mxu0 0.0
        %1826 = vmatprep.subr.mxu0 0.0
        %1827 = vmatpush2.xpose.msra.mxu0 0.0
        %1828 = vmatprep.mubr.f32.mxu0 0.0
        %1829 = vmatmul.mubr.f32.gmra.mxu0 %v1756
        %v1830 = vpop.f32.mrf.mxu0
        %v1831 = vadd.f32 0.0, %v1830
        %v1832 = vpop.f32.mrf.mxu0
        %1833 = vmatprep.mubr.f32.mxu0 0.0
        %1834 = vmatmul.mubr.f32.gmra.mxu0 %v1758
        %v1835 = vpop.f32.mrf.mxu0
        %v1836 = vadd.f32 0.0, %v1835
        %v1837 = vpop.f32.mrf.mxu0
        %1838 = vdwg.mxu0
        %v1839 = vsel %vm1233, %v1831, -inf
        %1840 = vmax.xlane.f32.xlu0 %v1839
        %v1841 = vpop.xlane.xlu0 %1840
        %v1842 = vsel %vm1237, %v1836, -inf
        %1843 = vmax.xlane.f32.xlu0 %v1842
        %v1844 = vpop.xlane.xlu0 %1843
        %v1845 = vsub.f32 %v1831, %v1841
        %v1846 = vsub.f32 %v1836, %v1844
        %v1847 = vmul.f32 %v1845, 1.442695
        %v1848 = vpow.pop %v1847
        %v1849 = vmul.f32 %v1846, 1.442695
        %v1850 = vpow.pop %v1849
        %v1851 = vsel %vm1233, %v1848, 0.0
        %1852 = vadd.xlane.f32.xlu0 %v1851
        %v1853 = vpop.xlane.xlu0 %1852
        %v1854 = vsel %vm1237, %v1850, 0.0
        %1855 = vadd.xlane.f32.xlu0 %v1854
        %v1856 = vpop.xlane.xlu0 %1855
        %v1857 = vrcp.pop %v1853
        %v1858 = vrcp.pop %v1856
        %v1859 = vmul.f32 %v1848, %v1857
        %v1860 = vmul.f32 %v1850, %v1858
        %1861 = vrot.lane.b32.xlu0 %v1133, 40
        %v1862 = vpop.permute.xlu0 %1861
        %1863 = vrot.lane.b32.xlu0 %v1136, 40
        %v1864 = vpop.permute.xlu0 %1863
        %v1867 = vsel %vm1233, %v1859, 0
        %v1870 = vsel %vm1233, %v1860, 0
        %v1872 = vsel %vm1268, %v1864, 0
        %1874 = vmatprep.subr.mxu0 0.0
        %1875 = vmatpush1.msra.mxu0 0.0
        %1876 = vmatprep.subr.mxu0 0.0
        %1877 = vmatpush1.msra.mxu0 0.0
        %1878 = vmatprep.subr.mxu0 0.0
        %1879 = vmatpush1.msra.mxu0 0.0
        %1880 = vmatprep.subr.mxu0 0.0
        %1881 = vmatpush1.msra.mxu0 0.0
        %1882 = vmatprep.subr.mxu0 0.0
        %1883 = vmatpush1.msra.mxu0 0.0
        %1884 = vmatprep.subr.mxu0 0.0
        %1885 = vmatpush1.msra.mxu0 0.0
        %1886 = vmatprep.subr.mxu0 0.0
        %1887 = vmatpush1.msra.mxu0 0.0
        %1888 = vmatprep.subr.mxu0 0.0
        %1889 = vmatpush1.msra.mxu0 0.0
        %1890 = vmatprep.subr.mxu0 0.0
        %1891 = vmatpush1.msra.mxu0 0.0
        %1892 = vmatprep.subr.mxu0 0.0
        %1893 = vmatpush1.msra.mxu0 0.0
        %1894 = vmatprep.subr.mxu0 0.0
        %1895 = vmatpush1.msra.mxu0 0.0
        %1896 = vmatprep.subr.mxu0 0.0
        %1897 = vmatpush1.msra.mxu0 0.0
        %1898 = vmatprep.subr.mxu0 0.0
        %1899 = vmatpush1.msra.mxu0 0.0
        %1900 = vmatprep.subr.mxu0 0.0
        %1901 = vmatpush1.msra.mxu0 0.0
        %1902 = vmatprep.subr.mxu0 0.0
        %1903 = vmatpush1.msra.mxu0 %v1872
        %1904 = vmatprep.subr.mxu0 0.0
        %1905 = vmatpush1.msra.mxu0 %v1862
        %1906 = vmatprep.subr.mxu0 0.0
        %1907 = vmatpush2.msra.mxu0 0.0
        %1908 = vmatprep.subr.mxu0 0.0
        %1909 = vmatpush2.msra.mxu0 0.0
        %1910 = vmatprep.subr.mxu0 0.0
        %1911 = vmatpush2.msra.mxu0 0.0
        %1912 = vmatprep.subr.mxu0 0.0
        %1913 = vmatpush2.msra.mxu0 0.0
        %1914 = vmatprep.subr.mxu0 0.0
        %1915 = vmatpush2.msra.mxu0 0.0
        %1916 = vmatprep.subr.mxu0 0.0
        %1917 = vmatpush2.msra.mxu0 0.0
        %1918 = vmatprep.subr.mxu0 0.0
        %1919 = vmatpush2.msra.mxu0 0.0
        %1920 = vmatprep.subr.mxu0 0.0
        %1921 = vmatpush2.msra.mxu0 0.0
        %1922 = vmatprep.subr.mxu0 0.0
        %1923 = vmatpush2.msra.mxu0 0.0
        %1924 = vmatprep.subr.mxu0 0.0
        %1925 = vmatpush2.msra.mxu0 0.0
        %1926 = vmatprep.subr.mxu0 0.0
        %1927 = vmatpush2.msra.mxu0 0.0
        %1928 = vmatprep.subr.mxu0 0.0
        %1929 = vmatpush2.msra.mxu0 0.0
        %1930 = vmatprep.subr.mxu0 0.0
        %1931 = vmatpush2.msra.mxu0 0.0
        %1932 = vmatprep.subr.mxu0 0.0
        %1933 = vmatpush2.msra.mxu0 0.0
        %1934 = vmatprep.subr.mxu0 0.0
        %1935 = vmatpush2.msra.mxu0 0.0
        %1936 = vmatprep.subr.mxu0 0.0
        %1937 = vmatpush2.msra.mxu0 0.0
        %1938 = vmatprep.mubr.f32.mxu0 0.0
        %1939 = vmatmul.mubr.f32.gmra.mxu0 %v1867
        %v1940 = vpop.f32.mrf.mxu0
        %v1941 = vadd.f32 0.0, %v1940
        %v1942 = vpop.f32.mrf.mxu0
        %1943 = vmatprep.mubr.f32.mxu0 0.0
        %1944 = vmatmul.mubr.f32.gmra.mxu0 %v1870
        %v1945 = vpop.f32.mrf.mxu0
        %v1946 = vadd.f32 0.0, %v1945
        %v1947 = vpop.f32.mrf.mxu0
        %1948 = vdwg.mxu0
        %1951 = vrot.lane.b32.xlu0 %v1539, 8
        %v1952 = vpop.permute.xlu0 %1951
        %1953 = vrot.lane.b32.xlu0 %v1544, 8
        %v1954 = vpop.permute.xlu0 %1953
        %1959 = vrot.lane.b32.xlu0 %v1740, 16
        %v1960 = vpop.permute.xlu0 %1959
        %1961 = vrot.lane.b32.xlu0 %v1745, 16
        %v1962 = vpop.permute.xlu0 %1961
        %1967 = vrot.lane.b32.xlu0 %v1941, 24
        %v1968 = vpop.permute.xlu0 %1967
        %1969 = vrot.lane.b32.xlu0 %v1946, 24
        %v1970 = vpop.permute.xlu0 %1969
        %v1973 = vsel %vm1147, %v1338, %v1952
        %v1974 = vsel %vm1147, %v1343, %v1954
        %vm1975 = vcmask 130048
        %v1976 = vsel %vm1975, %v1973, %v1960
        %v1977 = vsel %vm1975, %v1974, %v1962
        %vm1978 = vcmask 195584
        %v1979 = vsel %vm1978, %v1976, %v1968
        %v1980 = vsel %vm1978, %v1977, %v1970
        %v1981 = vpack.c.bf16 %v1980, %v1979
        %v1982 = vld [vmem:[%s17] sm:$0xf]
        %v1983 = vld [vmem:[%s17 + $0x4] sm:$0xf]
        %v1984 = vld [vmem:[%s17 + $0x8] sm:$0xf]
        %v1985 = vld [vmem:[%s17 + $0xc] sm:$0xf]
        %v1987 = vlaneseq
        %v1988 = vshrl.u32 %v1987, 7
        %v1989 = vsub.s32 0, %v1988
        %v1990 = vrot.slane %v1017, %v1989
        %v1996 = vunpack.c.l.b16 %v1982
        %v1997 = vunpack.c.l.b16 %v1983
        %v1998 = vunpack.c.l.b16 %v1984
        %v1999 = vunpack.c.l.b16 %v1985
        %v2000 = vpack.c.b16 %v1997, %v1996
        %v2001 = vpack.c.b16 %v1999, %v1998
        %v2005 = vsel %vm1026, %v1981, 0
        %2007 = vmatprep.subr.bf16.mxu0 0
        %2008 = vmatpush1.bf16.msra.mxu0 0
        %2009 = vmatprep.subr.bf16.mxu0 0
        %2010 = vmatpush1.bf16.msra.mxu0 0
        %2011 = vmatprep.subr.bf16.mxu0 0
        %2012 = vmatpush1.bf16.msra.mxu0 0
        %2013 = vmatprep.subr.bf16.mxu0 0
        %2014 = vmatpush1.bf16.msra.mxu0 0
        %2015 = vmatprep.subr.bf16.mxu0 0
        %2016 = vmatpush1.bf16.msra.mxu0 0
        %2017 = vmatprep.subr.bf16.mxu0 0
        %2018 = vmatpush1.bf16.msra.mxu0 0
        %2019 = vmatprep.subr.bf16.mxu0 0
        %2020 = vmatpush1.bf16.msra.mxu0 %v2001
        %2021 = vmatprep.subr.bf16.mxu0 0
        %2022 = vmatpush1.bf16.msra.mxu0 %v2000
        %2023 = vmatprep.subr.bf16.mxu0 0
        %2024 = vmatpush2.bf16.msra.mxu0 0
        %2025 = vmatprep.subr.bf16.mxu0 0
        %2026 = vmatpush2.bf16.msra.mxu0 0
        %2027 = vmatprep.subr.bf16.mxu0 0
        %2028 = vmatpush2.bf16.msra.mxu0 0
        %2029 = vmatprep.subr.bf16.mxu0 0
        %2030 = vmatpush2.bf16.msra.mxu0 0
        %2031 = vmatprep.subr.bf16.mxu0 0
        %2032 = vmatpush2.bf16.msra.mxu0 0
        %2033 = vmatprep.subr.bf16.mxu0 0
        %2034 = vmatpush2.bf16.msra.mxu0 0
        %2035 = vmatprep.subr.bf16.mxu0 0
        %2036 = vmatpush2.bf16.msra.mxu0 0
        %2037 = vmatprep.subr.bf16.mxu0 0
        %2038 = vmatpush2.bf16.msra.mxu0 0
        %2039 = vmatprep.mubr.bf16.mxu0 0
        %2040 = vmatmul.mubr.bf16.gmra.mxu0 %v2005
        %v2041 = vpop.f32.mrf.mxu0
        %v2042 = vadd.f32 %v1990, %v2041
        %v2043 = vpop.f32.mrf.mxu0
        %v2044 = vpop.f32.mrf.mxu0
        %v2045 = vadd.f32 %v1990, %v2044
        %v2046 = vpop.f32.mrf.mxu0
        %2047 = vdwg.mxu0
        %v2049 = vlaneseq
        %v2050 = vshrl.u32 %v2049, 7
        %v2051 = vsub.s32 0, %v2050
        %v2052 = vrot.slane %v1015, %v2051
        %v2054 = vmul.f32 %v2052, %v2042
        %v2055 = vmul.f32 %v2052, %v2045
        %v2056 = vadd.f32 %v1010, %v2054
        %v2057 = vadd.f32 %v1007, %v2055
        %v2058 = vsel %vm1026, %v2056, 0.0
        %2059 = vadd.xlane.f32.xlu0 %v2058
        %v2060 = vpop.xlane.xlu0 %2059
        %v2061 = vsel %vm1030, %v2057, 0.0
        %2062 = vadd.xlane.f32.xlu0 %v2061
        %v2063 = vpop.xlane.xlu0 %2062
        %v2064 = vmul.f32 %v2060, %v1034
        %v2065 = vmul.f32 %v2063, %v1034
        %v2066 = vsub.f32 %v2056, %v2064
        %v2067 = vsub.f32 %v2057, %v2065
        %v2068 = vmul.f32 %v2066, %v2066
        %v2069 = vmul.f32 %v2067, %v2067
        %v2070 = vsel %vm1026, %v2068, 0.0
        %2071 = vadd.xlane.f32.xlu0 %v2070
        %v2072 = vpop.xlane.xlu0 %2071
        %v2073 = vsel %vm1030, %v2069, 0.0
        %2074 = vadd.xlane.f32.xlu0 %v2073
        %v2075 = vpop.xlane.xlu0 %2074
        %v2076 = vmul.f32 %v2072, %v1034
        %v2077 = vmul.f32 %v2075, %v1034
        %v2078 = vadd.f32 %v2076, 1e-05
        %v2079 = vadd.f32 %v2077, 1e-05
        %v2080 = vrsqrt.pop %v2078
        %v2081 = vrsqrt.pop %v2079
        %v2082 = vmul.f32 %v2066, %v2080
        %v2083 = vmul.f32 %v2067, %v2081
        %v2085 = vlaneseq
        %v2086 = vshrl.u32 %v2085, 7
        %v2087 = vsub.s32 0, %v2086
        %v2088 = vrot.slane %v1019, %v2087
        %v2090 = vmul.f32 %v2082, %v2088
        %v2091 = vmul.f32 %v2083, %v2088
        %v2093 = vlaneseq
        %v2094 = vshrl.u32 %v2093, 7
        %v2095 = vsub.s32 0, %v2094
        %v2096 = vrot.slane %v1021, %v2095
        %v2098 = vadd.f32 %v2090, %v2096
        %v2099 = vadd.f32 %v2091, %v2096
        %v2100 = vpack.c.bf16 %v2099, %v2098
        %v2101 = vld [vmem:[%s19] sm:$0xf]
        %v2102 = vld [vmem:[%s19 + $0x4] sm:$0xf]
        %v2103 = vld [vmem:[%s19 + $0x8] sm:$0xf]
        %v2104 = vld [vmem:[%s19 + $0xc] sm:$0xf]
        %v2105 = vld [vmem:[%s21] sm:$0x1]
        %v2107 = vlaneseq
        %v2108 = vshrl.u32 %v2107, 7
        %v2109 = vsub.s32 0, %v2108
        %v2110 = vrot.slane %v2105, %v2109
        %v2116 = vunpack.c.l.b16 %v2101
        %v2117 = vunpack.c.l.b16 %v2102
        %v2118 = vunpack.c.l.b16 %v2103
        %v2119 = vunpack.c.l.b16 %v2104
        %v2120 = vpack.c.b16 %v2117, %v2116
        %v2121 = vpack.c.b16 %v2119, %v2118
        %v2125 = vsel %vm1026, %v2100, 0
        %2127 = vmatprep.subr.bf16.mxu0 0
        %2128 = vmatpush1.bf16.msra.mxu0 0
        %2129 = vmatprep.subr.bf16.mxu0 0
        %2130 = vmatpush1.bf16.msra.mxu0 0
        %2131 = vmatprep.subr.bf16.mxu0 0
        %2132 = vmatpush1.bf16.msra.mxu0 0
        %2133 = vmatprep.subr.bf16.mxu0 0
        %2134 = vmatpush1.bf16.msra.mxu0 0
        %2135 = vmatprep.subr.bf16.mxu0 0
        %2136 = vmatpush1.bf16.msra.mxu0 0
        %2137 = vmatprep.subr.bf16.mxu0 0
        %2138 = vmatpush1.bf16.msra.mxu0 0
        %2139 = vmatprep.subr.bf16.mxu0 0
        %2140 = vmatpush1.bf16.msra.mxu0 %v2121
        %2141 = vmatprep.subr.bf16.mxu0 0
        %2142 = vmatpush1.bf16.msra.mxu0 %v2120
        %2143 = vmatprep.subr.bf16.mxu0 0
        %2144 = vmatpush2.bf16.msra.mxu0 0
        %2145 = vmatprep.subr.bf16.mxu0 0
        %2146 = vmatpush2.bf16.msra.mxu0 0
        %2147 = vmatprep.subr.bf16.mxu0 0
        %2148 = vmatpush2.bf16.msra.mxu0 0
        %2149 = vmatprep.subr.bf16.mxu0 0
        %2150 = vmatpush2.bf16.msra.mxu0 0
        %2151 = vmatprep.subr.bf16.mxu0 0
        %2152 = vmatpush2.bf16.msra.mxu0 0
        %2153 = vmatprep.subr.bf16.mxu0 0
        %2154 = vmatpush2.bf16.msra.mxu0 0
        %2155 = vmatprep.subr.bf16.mxu0 0
        %2156 = vmatpush2.bf16.msra.mxu0 0
        %2157 = vmatprep.subr.bf16.mxu0 0
        %2158 = vmatpush2.bf16.msra.mxu0 0
        %2159 = vmatprep.mubr.bf16.mxu0 0
        %2160 = vmatmul.mubr.bf16.gmra.mxu0 %v2125
        %v2161 = vpop.f32.mrf.mxu0
        %v2162 = vadd.f32 %v2110, %v2161
        %v2163 = vpop.f32.mrf.mxu0
        %v2164 = vpop.f32.mrf.mxu0
        %v2165 = vadd.f32 %v2110, %v2164
        %v2166 = vpop.f32.mrf.mxu0
        %2167 = vdwg.mxu0
        %v2168 = vmul.f32 %v2162, 0.5
        %v2169 = vmul.f32 %v2165, 0.5
        %v2170 = vmul.f32 %v2162, 0.044715
        %v2171 = vmul.f32 %v2165, 0.044715
        %v2172 = vmul.f32 %v2170, %v2162
        %v2173 = vmul.f32 %v2171, %v2165
        %v2174 = vmul.f32 %v2172, %v2162
        %v2175 = vmul.f32 %v2173, %v2165
        %v2176 = vadd.f32 %v2162, %v2174
        %v2177 = vadd.f32 %v2165, %v2175
        %v2178 = vmul.f32 %v2176, 0.7978846
        %v2179 = vmul.f32 %v2177, 0.7978846
        %v2180 = vtanh.pop %v2178
        %v2181 = vtanh.pop %v2179
        %v2182 = vadd.f32 %v2180, 1.0
        %v2183 = vadd.f32 %v2181, 1.0
        %v2184 = vmul.f32 %v2168, %v2182
        %v2185 = vmul.f32 %v2169, %v2183
        %v2186 = vpack.c.bf16 %v2185, %v2184
        %v2187 = vld [vmem:[%s23] sm:$0xf]
        %v2188 = vld [vmem:[%s23 + $0x4] sm:$0xf]
        %v2189 = vld [vmem:[%s23 + $0x8] sm:$0xf]
        %v2190 = vld [vmem:[%s23 + $0xc] sm:$0xf]
        %v2191 = vld [vmem:[%s23 + $0x10] sm:$0xf]
        %v2192 = vld [vmem:[%s23 + $0x14] sm:$0xf]
        %v2193 = vld [vmem:[%s23 + $0x18] sm:$0xf]
        %v2194 = vld [vmem:[%s23 + $0x1c] sm:$0xf]
        %v2195 = vld [vmem:[%s23 + $0x20] sm:$0xf]
        %v2196 = vld [vmem:[%s23 + $0x24] sm:$0xf]
        %v2197 = vld [vmem:[%s23 + $0x28] sm:$0xf]
        %v2198 = vld [vmem:[%s23 + $0x2c] sm:$0xf]
        %v2199 = vld [vmem:[%s23 + $0x30] sm:$0xf]
        %v2200 = vld [vmem:[%s23 + $0x34] sm:$0xf]
        %v2201 = vld [vmem:[%s23 + $0x38] sm:$0xf]
        %v2202 = vld [vmem:[%s23 + $0x3c] sm:$0xf]
        %v2204 = vlaneseq
        %v2205 = vshrl.u32 %v2204, 7
        %v2206 = vsub.s32 0, %v2205
        %v2207 = vrot.slane %v1025, %v2206
        %v2225 = vunpack.c.l.b16 %v2187
        %v2226 = vunpack.c.l.b16 %v2188
        %v2227 = vunpack.c.l.b16 %v2189
        %v2228 = vunpack.c.l.b16 %v2190
        %v2229 = vunpack.c.l.b16 %v2191
        %v2230 = vunpack.c.l.b16 %v2192
        %v2231 = vunpack.c.l.b16 %v2193
        %v2232 = vunpack.c.l.b16 %v2194
        %v2233 = vunpack.c.l.b16 %v2195
        %v2234 = vunpack.c.l.b16 %v2196
        %v2235 = vunpack.c.l.b16 %v2197
        %v2236 = vunpack.c.l.b16 %v2198
        %v2237 = vunpack.c.l.b16 %v2199
        %v2238 = vunpack.c.l.b16 %v2200
        %v2239 = vunpack.c.l.b16 %v2201
        %v2240 = vunpack.c.l.b16 %v2202
        %v2241 = vpack.c.b16 %v2226, %v2225
        %v2242 = vpack.c.b16 %v2228, %v2227
        %v2243 = vpack.c.b16 %v2230, %v2229
        %v2244 = vpack.c.b16 %v2232, %v2231
        %v2245 = vpack.c.b16 %v2234, %v2233
        %v2246 = vpack.c.b16 %v2236, %v2235
        %v2247 = vpack.c.b16 %v2238, %v2237
        %v2248 = vpack.c.b16 %v2240, %v2239
        %2257 = vmatprep.subr.bf16.mxu0 0
        %2258 = vmatpush1.bf16.msra.mxu0 %v2248
        %2259 = vmatprep.subr.bf16.mxu0 0
        %2260 = vmatpush1.bf16.msra.mxu0 %v2247
        %2261 = vmatprep.subr.bf16.mxu0 0
        %2262 = vmatpush1.bf16.msra.mxu0 %v2246
        %2263 = vmatprep.subr.bf16.mxu0 0
        %2264 = vmatpush1.bf16.msra.mxu0 %v2245
        %2265 = vmatprep.subr.bf16.mxu0 0
        %2266 = vmatpush1.bf16.msra.mxu0 %v2244
        %2267 = vmatprep.subr.bf16.mxu0 0
        %2268 = vmatpush1.bf16.msra.mxu0 %v2243
        %2269 = vmatprep.subr.bf16.mxu0 0
        %2270 = vmatpush1.bf16.msra.mxu0 %v2242
        %2271 = vmatprep.subr.bf16.mxu0 0
        %2272 = vmatpush1.bf16.msra.mxu0 %v2241
        %2273 = vmatprep.subr.bf16.mxu0 0
        %2274 = vmatpush2.bf16.msra.mxu0 0
        %2275 = vmatprep.subr.bf16.mxu0 0
        %2276 = vmatpush2.bf16.msra.mxu0 0
        %2277 = vmatprep.subr.bf16.mxu0 0
        %2278 = vmatpush2.bf16.msra.mxu0 0
        %2279 = vmatprep.subr.bf16.mxu0 0
        %2280 = vmatpush2.bf16.msra.mxu0 0
        %2281 = vmatprep.subr.bf16.mxu0 0
        %2282 = vmatpush2.bf16.msra.mxu0 0
        %2283 = vmatprep.subr.bf16.mxu0 0
        %2284 = vmatpush2.bf16.msra.mxu0 0
        %2285 = vmatprep.subr.bf16.mxu0 0
        %2286 = vmatpush2.bf16.msra.mxu0 0
        %2287 = vmatprep.subr.bf16.mxu0 0
        %2288 = vmatpush2.bf16.msra.mxu0 0
        %2289 = vmatprep.mubr.bf16.mxu0 0
        %2290 = vmatmul.mubr.bf16.gmra.mxu0 %v2186
        %v2291 = vpop.f32.mrf.mxu0
        %v2292 = vadd.f32 %v2207, %v2291
        %v2293 = vpop.f32.mrf.mxu0
        %v2294 = vpop.f32.mrf.mxu0
        %v2295 = vadd.f32 %v2207, %v2294
        %v2296 = vpop.f32.mrf.mxu0
        %2297 = vdwg.mxu0
        %v2299 = vlaneseq
        %v2300 = vshrl.u32 %v2299, 7
        %v2301 = vsub.s32 0, %v2300
        %v2302 = vrot.slane %v1023, %v2301
        %v2304 = vmul.f32 %v2302, %v2292
        %v2305 = vmul.f32 %v2302, %v2295
        %v2306 = vadd.f32 %v2056, %v2304
        %v2307 = vadd.f32 %v2057, %v2305
        %s2308 = scalar_lea.vmem %s11, 8
        %v2309 = vld [vmem:[%s2308] sm:$0x1]
        %s2310 = scalar_lea.vmem %s11, 9
        %v2311 = vld [vmem:[%s2310] sm:$0x1]
        %s2312 = scalar_lea.vmem %s11, 10
        %v2313 = vld [vmem:[%s2312] sm:$0x1]
        %s2314 = scalar_lea.vmem %s11, 11
        %v2315 = vld [vmem:[%s2314] sm:$0x1]
        %s2316 = scalar_lea.vmem %s11, 12
        %v2317 = vld [vmem:[%s2316] sm:$0x1]
        %s2318 = scalar_lea.vmem %s11, 13
        %v2319 = vld [vmem:[%s2318] sm:$0x1]
        %s2320 = scalar_lea.vmem %s11, 14
        %v2321 = vld [vmem:[%s2320] sm:$0x1]
        %s2322 = scalar_lea.vmem %s11, 15
        %v2323 = vld [vmem:[%s2322] sm:$0x1]
        %v2324 = vsel %vm1026, %v2306, 0.0
        %2325 = vadd.xlane.f32.xlu0 %v2324
        %v2326 = vpop.xlane.xlu0 %2325
        %v2327 = vsel %vm1030, %v2307, 0.0
        %2328 = vadd.xlane.f32.xlu0 %v2327
        %v2329 = vpop.xlane.xlu0 %2328
        %v2330 = vmul.f32 %v2326, %v1034
        %v2331 = vmul.f32 %v2329, %v1034
        %v2332 = vsub.f32 %v2306, %v2330
        %v2333 = vsub.f32 %v2307, %v2331
        %v2334 = vmul.f32 %v2332, %v2332
        %v2335 = vmul.f32 %v2333, %v2333
        %v2336 = vsel %vm1026, %v2334, 0.0
        %2337 = vadd.xlane.f32.xlu0 %v2336
        %v2338 = vpop.xlane.xlu0 %2337
        %v2339 = vsel %vm1030, %v2335, 0.0
        %2340 = vadd.xlane.f32.xlu0 %v2339
        %v2341 = vpop.xlane.xlu0 %2340
        %v2342 = vmul.f32 %v2338, %v1034
        %v2343 = vmul.f32 %v2341, %v1034
        %v2344 = vadd.f32 %v2342, 1e-05
        %v2345 = vadd.f32 %v2343, 1e-05
        %v2346 = vrsqrt.pop %v2344
        %v2347 = vrsqrt.pop %v2345
        %v2348 = vmul.f32 %v2332, %v2346
        %v2349 = vmul.f32 %v2333, %v2347
        %v2351 = vlaneseq
        %v2352 = vshrl.u32 %v2351, 7
        %v2353 = vsub.s32 0, %v2352
        %v2354 = vrot.slane %v2309, %v2353
        %v2356 = vmul.f32 %v2348, %v2354
        %v2357 = vmul.f32 %v2349, %v2354
        %v2359 = vlaneseq
        %v2360 = vshrl.u32 %v2359, 7
        %v2361 = vsub.s32 0, %v2360
        %v2362 = vrot.slane %v2311, %v2361
        %v2364 = vadd.f32 %v2356, %v2362
        %v2365 = vadd.f32 %v2357, %v2362
        %v2366 = vpack.c.bf16 %v2365, %v2364
        %s2367 = scalar_lea.vmem %s13, 16
        %v2368 = vld [vmem:[%s2367] sm:$0xf]
        %v2369 = vld [vmem:[%s2367 + $0x4] sm:$0xf]
        %v2370 = vld [vmem:[%s2367 + $0x8] sm:$0xf]
        %v2371 = vld [vmem:[%s2367 + $0xc] sm:$0xf]
        %s2372 = scalar_lea.vmem %s15, 1
        %v2373 = vld [vmem:[%s2372] sm:$0x1]
        %v2375 = vlaneseq
        %v2376 = vshrl.u32 %v2375, 7
        %v2377 = vsub.s32 0, %v2376
        %v2378 = vrot.slane %v2373, %v2377
        %v2384 = vunpack.c.l.b16 %v2368
        %v2385 = vunpack.c.l.b16 %v2369
        %v2386 = vunpack.c.l.b16 %v2370
        %v2387 = vunpack.c.l.b16 %v2371
        %v2388 = vpack.c.b16 %v2385, %v2384
        %v2389 = vpack.c.b16 %v2387, %v2386
        %v2393 = vsel %vm1026, %v2366, 0
        %2395 = vmatprep.subr.bf16.mxu0 0
        %2396 = vmatpush1.bf16.msra.mxu0 0
        %2397 = vmatprep.subr.bf16.mxu0 0
        %2398 = vmatpush1.bf16.msra.mxu0 0
        %2399 = vmatprep.subr.bf16.mxu0 0
        %2400 = vmatpush1.bf16.msra.mxu0 0
        %2401 = vmatprep.subr.bf16.mxu0 0
        %2402 = vmatpush1.bf16.msra.mxu0 0
        %2403 = vmatprep.subr.bf16.mxu0 0
        %2404 = vmatpush1.bf16.msra.mxu0 0
        %2405 = vmatprep.subr.bf16.mxu0 0
        %2406 = vmatpush1.bf16.msra.mxu0 0
        %2407 = vmatprep.subr.bf16.mxu0 0
        %2408 = vmatpush1.bf16.msra.mxu0 %v2389
        %2409 = vmatprep.subr.bf16.mxu0 0
        %2410 = vmatpush1.bf16.msra.mxu0 %v2388
        %2411 = vmatprep.subr.bf16.mxu0 0
        %2412 = vmatpush2.bf16.msra.mxu0 0
        %2413 = vmatprep.subr.bf16.mxu0 0
        %2414 = vmatpush2.bf16.msra.mxu0 0
        %2415 = vmatprep.subr.bf16.mxu0 0
        %2416 = vmatpush2.bf16.msra.mxu0 0
        %2417 = vmatprep.subr.bf16.mxu0 0
        %2418 = vmatpush2.bf16.msra.mxu0 0
        %2419 = vmatprep.subr.bf16.mxu0 0
        %2420 = vmatpush2.bf16.msra.mxu0 0
        %2421 = vmatprep.subr.bf16.mxu0 0
        %2422 = vmatpush2.bf16.msra.mxu0 0
        %2423 = vmatprep.subr.bf16.mxu0 0
        %2424 = vmatpush2.bf16.msra.mxu0 0
        %2425 = vmatprep.subr.bf16.mxu0 0
        %2426 = vmatpush2.bf16.msra.mxu0 0
        %2427 = vmatprep.mubr.bf16.mxu0 0
        %2428 = vmatmul.mubr.bf16.gmra.mxu0 %v2393
        %v2429 = vpop.f32.mrf.mxu0
        %v2430 = vadd.f32 %v2378, %v2429
        %v2431 = vpop.f32.mrf.mxu0
        %v2432 = vpop.f32.mrf.mxu0
        %v2433 = vadd.f32 %v2378, %v2432
        %v2434 = vpop.f32.mrf.mxu0
        %2435 = vdwg.mxu0
        %v2436 = vmul.f32 %v2430, 0.35355338
        %v2437 = vmul.f32 %v2433, 0.35355338
        %2440 = vrot.lane.b32.xlu0 %v2430, 96
        %v2441 = vpop.permute.xlu0 %2440
        %2442 = vrot.lane.b32.xlu0 %v2433, 96
        %v2443 = vpop.permute.xlu0 %2442
        %v2445 = vsel %vm1147, %v2436, 0
        %v2448 = vsel %vm1147, %v2437, 0
        %v2450 = vsel %vm1147, %v2441, 0
        %v2452 = vsel %vm1147, %v2443, 0
        %2454 = vmatprep.subr.mxu0 0.0
        %2455 = vmatpush1.xpose.msra.mxu0 0.0
        %2456 = vmatprep.subr.mxu0 0.0
        %2457 = vmatpush1.xpose.msra.mxu0 0.0
        %2458 = vmatprep.subr.mxu0 0.0
        %2459 = vmatpush1.xpose.msra.mxu0 0.0
        %2460 = vmatprep.subr.mxu0 0.0
        %2461 = vmatpush1.xpose.msra.mxu0 0.0
        %2462 = vmatprep.subr.mxu0 0.0
        %2463 = vmatpush1.xpose.msra.mxu0 0.0
        %2464 = vmatprep.subr.mxu0 0.0
        %2465 = vmatpush1.xpose.msra.mxu0 0.0
        %2466 = vmatprep.subr.mxu0 0.0
        %2467 = vmatpush1.xpose.msra.mxu0 0.0
        %2468 = vmatprep.subr.mxu0 0.0
        %2469 = vmatpush1.xpose.msra.mxu0 0.0
        %2470 = vmatprep.subr.mxu0 0.0
        %2471 = vmatpush1.xpose.msra.mxu0 0.0
        %2472 = vmatprep.subr.mxu0 0.0
        %2473 = vmatpush1.xpose.msra.mxu0 0.0
        %2474 = vmatprep.subr.mxu0 0.0
        %2475 = vmatpush1.xpose.msra.mxu0 0.0
        %2476 = vmatprep.subr.mxu0 0.0
        %2477 = vmatpush1.xpose.msra.mxu0 0.0
        %2478 = vmatprep.subr.mxu0 0.0
        %2479 = vmatpush1.xpose.msra.mxu0 0.0
        %2480 = vmatprep.subr.mxu0 0.0
        %2481 = vmatpush1.xpose.msra.mxu0 0.0
        %2482 = vmatprep.subr.mxu0 0.0
        %2483 = vmatpush1.xpose.msra.mxu0 %v2452
        %2484 = vmatprep.subr.mxu0 0.0
        %2485 = vmatpush1.xpose.msra.mxu0 %v2450
        %2486 = vmatprep.subr.mxu0 0.0
        %2487 = vmatpush2.xpose.msra.mxu0 0.0
        %2488 = vmatprep.subr.mxu0 0.0
        %2489 = vmatpush2.xpose.msra.mxu0 0.0
        %2490 = vmatprep.subr.mxu0 0.0
        %2491 = vmatpush2.xpose.msra.mxu0 0.0
        %2492 = vmatprep.subr.mxu0 0.0
        %2493 = vmatpush2.xpose.msra.mxu0 0.0
        %2494 = vmatprep.subr.mxu0 0.0
        %2495 = vmatpush2.xpose.msra.mxu0 0.0
        %2496 = vmatprep.subr.mxu0 0.0
        %2497 = vmatpush2.xpose.msra.mxu0 0.0
        %2498 = vmatprep.subr.mxu0 0.0
        %2499 = vmatpush2.xpose.msra.mxu0 0.0
        %2500 = vmatprep.subr.mxu0 0.0
        %2501 = vmatpush2.xpose.msra.mxu0 0.0
        %2502 = vmatprep.subr.mxu0 0.0
        %2503 = vmatpush2.xpose.msra.mxu0 0.0
        %2504 = vmatprep.subr.mxu0 0.0
        %2505 = vmatpush2.xpose.msra.mxu0 0.0
        %2506 = vmatprep.subr.mxu0 0.0
        %2507 = vmatpush2.xpose.msra.mxu0 0.0
        %2508 = vmatprep.subr.mxu0 0.0
        %2509 = vmatpush2.xpose.msra.mxu0 0.0
        %2510 = vmatprep.subr.mxu0 0.0
        %2511 = vmatpush2.xpose.msra.mxu0 0.0
        %2512 = vmatprep.subr.mxu0 0.0
        %2513 = vmatpush2.xpose.msra.mxu0 0.0
        %2514 = vmatprep.subr.mxu0 0.0
        %2515 = vmatpush2.xpose.msra.mxu0 0.0
        %2516 = vmatprep.subr.mxu0 0.0
        %2517 = vmatpush2.xpose.msra.mxu0 0.0
        %2518 = vmatprep.mubr.f32.mxu0 0.0
        %2519 = vmatmul.mubr.f32.gmra.mxu0 %v2445
        %v2520 = vpop.f32.mrf.mxu0
        %v2521 = vadd.f32 0.0, %v2520
        %v2522 = vpop.f32.mrf.mxu0
        %2523 = vmatprep.mubr.f32.mxu0 0.0
        %2524 = vmatmul.mubr.f32.gmra.mxu0 %v2448
        %v2525 = vpop.f32.mrf.mxu0
        %v2526 = vadd.f32 0.0, %v2525
        %v2527 = vpop.f32.mrf.mxu0
        %2528 = vdwg.mxu0
        %v2529 = vsel %vm1233, %v2521, -inf
        %2530 = vmax.xlane.f32.xlu0 %v2529
        %v2531 = vpop.xlane.xlu0 %2530
        %v2532 = vsel %vm1237, %v2526, -inf
        %2533 = vmax.xlane.f32.xlu0 %v2532
        %v2534 = vpop.xlane.xlu0 %2533
        %v2535 = vsub.f32 %v2521, %v2531
        %v2536 = vsub.f32 %v2526, %v2534
        %v2537 = vmul.f32 %v2535, 1.442695
        %v2538 = vpow.pop %v2537
        %v2539 = vmul.f32 %v2536, 1.442695
        %v2540 = vpow.pop %v2539
        %v2541 = vsel %vm1233, %v2538, 0.0
        %2542 = vadd.xlane.f32.xlu0 %v2541
        %v2543 = vpop.xlane.xlu0 %2542
        %v2544 = vsel %vm1237, %v2540, 0.0
        %2545 = vadd.xlane.f32.xlu0 %v2544
        %v2546 = vpop.xlane.xlu0 %2545
        %v2547 = vrcp.pop %v2543
        %v2548 = vrcp.pop %v2546
        %v2549 = vmul.f32 %v2538, %v2547
        %v2550 = vmul.f32 %v2540, %v2548
        %2551 = vrot.lane.b32.xlu0 %v2430, 64
        %v2552 = vpop.permute.xlu0 %2551
        %2553 = vrot.lane.b32.xlu0 %v2433, 64
        %v2554 = vpop.permute.xlu0 %2553
        %v2557 = vsel %vm1233, %v2549, 0
        %v2560 = vsel %vm1233, %v2550, 0
        %v2562 = vsel %vm1268, %v2554, 0
        %2564 = vmatprep.subr.mxu0 0.0
        %2565 = vmatpush1.msra.mxu0 0.0
        %2566 = vmatprep.subr.mxu0 0.0
        %2567 = vmatpush1.msra.mxu0 0.0
        %2568 = vmatprep.subr.mxu0 0.0
        %2569 = vmatpush1.msra.mxu0 0.0
        %2570 = vmatprep.subr.mxu0 0.0
        %2571 = vmatpush1.msra.mxu0 0.0
        %2572 = vmatprep.subr.mxu0 0.0
        %2573 = vmatpush1.msra.mxu0 0.0
        %2574 = vmatprep.subr.mxu0 0.0
        %2575 = vmatpush1.msra.mxu0 0.0
        %2576 = vmatprep.subr.mxu0 0.0
        %2577 = vmatpush1.msra.mxu0 0.0
        %2578 = vmatprep.subr.mxu0 0.0
        %2579 = vmatpush1.msra.mxu0 0.0
        %2580 = vmatprep.subr.mxu0 0.0
        %2581 = vmatpush1.msra.mxu0 0.0
        %2582 = vmatprep.subr.mxu0 0.0
        %2583 = vmatpush1.msra.mxu0 0.0
        %2584 = vmatprep.subr.mxu0 0.0
        %2585 = vmatpush1.msra.mxu0 0.0
        %2586 = vmatprep.subr.mxu0 0.0
        %2587 = vmatpush1.msra.mxu0 0.0
        %2588 = vmatprep.subr.mxu0 0.0
        %2589 = vmatpush1.msra.mxu0 0.0
        %2590 = vmatprep.subr.mxu0 0.0
        %2591 = vmatpush1.msra.mxu0 0.0
        %2592 = vmatprep.subr.mxu0 0.0
        %2593 = vmatpush1.msra.mxu0 %v2562
        %2594 = vmatprep.subr.mxu0 0.0
        %2595 = vmatpush1.msra.mxu0 %v2552
        %2596 = vmatprep.subr.mxu0 0.0
        %2597 = vmatpush2.msra.mxu0 0.0
        %2598 = vmatprep.subr.mxu0 0.0
        %2599 = vmatpush2.msra.mxu0 0.0
        %2600 = vmatprep.subr.mxu0 0.0
        %2601 = vmatpush2.msra.mxu0 0.0
        %2602 = vmatprep.subr.mxu0 0.0
        %2603 = vmatpush2.msra.mxu0 0.0
        %2604 = vmatprep.subr.mxu0 0.0
        %2605 = vmatpush2.msra.mxu0 0.0
        %2606 = vmatprep.subr.mxu0 0.0
        %2607 = vmatpush2.msra.mxu0 0.0
        %2608 = vmatprep.subr.mxu0 0.0
        %2609 = vmatpush2.msra.mxu0 0.0
        %2610 = vmatprep.subr.mxu0 0.0
        %2611 = vmatpush2.msra.mxu0 0.0
        %2612 = vmatprep.subr.mxu0 0.0
        %2613 = vmatpush2.msra.mxu0 0.0
        %2614 = vmatprep.subr.mxu0 0.0
        %2615 = vmatpush2.msra.mxu0 0.0
        %2616 = vmatprep.subr.mxu0 0.0
        %2617 = vmatpush2.msra.mxu0 0.0
        %2618 = vmatprep.subr.mxu0 0.0
        %2619 = vmatpush2.msra.mxu0 0.0
        %2620 = vmatprep.subr.mxu0 0.0
        %2621 = vmatpush2.msra.mxu0 0.0
        %2622 = vmatprep.subr.mxu0 0.0
        %2623 = vmatpush2.msra.mxu0 0.0
        %2624 = vmatprep.subr.mxu0 0.0
        %2625 = vmatpush2.msra.mxu0 0.0
        %2626 = vmatprep.subr.mxu0 0.0
        %2627 = vmatpush2.msra.mxu0 0.0
        %2628 = vmatprep.mubr.f32.mxu0 0.0
        %2629 = vmatmul.mubr.f32.gmra.mxu0 %v2557
        %v2630 = vpop.f32.mrf.mxu0
        %v2631 = vadd.f32 0.0, %v2630
        %v2632 = vpop.f32.mrf.mxu0
        %2633 = vmatprep.mubr.f32.mxu0 0.0
        %2634 = vmatmul.mubr.f32.gmra.mxu0 %v2560
        %v2635 = vpop.f32.mrf.mxu0
        %v2636 = vadd.f32 0.0, %v2635
        %v2637 = vpop.f32.mrf.mxu0
        %2638 = vdwg.mxu0
        %2639 = vrot.lane.b32.xlu0 %v2436, 120
        %v2640 = vpop.permute.xlu0 %2639
        %2641 = vrot.lane.b32.xlu0 %v2437, 120
        %v2642 = vpop.permute.xlu0 %2641
        %2643 = vrot.lane.b32.xlu0 %v2430, 88
        %v2644 = vpop.permute.xlu0 %2643
        %2645 = vrot.lane.b32.xlu0 %v2433, 88
        %v2646 = vpop.permute.xlu0 %2645
        %v2647 = vsel %vm1147, %v2640, 0
        %v2649 = vsel %vm1147, %v2642, 0
        %v2651 = vsel %vm1147, %v2644, 0
        %v2653 = vsel %vm1147, %v2646, 0
        %2655 = vmatprep.subr.mxu0 0.0
        %2656 = vmatpush1.xpose.msra.mxu0 0.0
        %2657 = vmatprep.subr.mxu0 0.0
        %2658 = vmatpush1.xpose.msra.mxu0 0.0
        %2659 = vmatprep.subr.mxu0 0.0
        %2660 = vmatpush1.xpose.msra.mxu0 0.0
        %2661 = vmatprep.subr.mxu0 0.0
        %2662 = vmatpush1.xpose.msra.mxu0 0.0
        %2663 = vmatprep.subr.mxu0 0.0
        %2664 = vmatpush1.xpose.msra.mxu0 0.0
        %2665 = vmatprep.subr.mxu0 0.0
        %2666 = vmatpush1.xpose.msra.mxu0 0.0
        %2667 = vmatprep.subr.mxu0 0.0
        %2668 = vmatpush1.xpose.msra.mxu0 0.0
        %2669 = vmatprep.subr.mxu0 0.0
        %2670 = vmatpush1.xpose.msra.mxu0 0.0
        %2671 = vmatprep.subr.mxu0 0.0
        %2672 = vmatpush1.xpose.msra.mxu0 0.0
        %2673 = vmatprep.subr.mxu0 0.0
        %2674 = vmatpush1.xpose.msra.mxu0 0.0
        %2675 = vmatprep.subr.mxu0 0.0
        %2676 = vmatpush1.xpose.msra.mxu0 0.0
        %2677 = vmatprep.subr.mxu0 0.0
        %2678 = vmatpush1.xpose.msra.mxu0 0.0
        %2679 = vmatprep.subr.mxu0 0.0
        %2680 = vmatpush1.xpose.msra.mxu0 0.0
        %2681 = vmatprep.subr.mxu0 0.0
        %2682 = vmatpush1.xpose.msra.mxu0 0.0
        %2683 = vmatprep.subr.mxu0 0.0
        %2684 = vmatpush1.xpose.msra.mxu0 %v2653
        %2685 = vmatprep.subr.mxu0 0.0
        %2686 = vmatpush1.xpose.msra.mxu0 %v2651
        %2687 = vmatprep.subr.mxu0 0.0
        %2688 = vmatpush2.xpose.msra.mxu0 0.0
        %2689 = vmatprep.subr.mxu0 0.0
        %2690 = vmatpush2.xpose.msra.mxu0 0.0
        %2691 = vmatprep.subr.mxu0 0.0
        %2692 = vmatpush2.xpose.msra.mxu0 0.0
        %2693 = vmatprep.subr.mxu0 0.0
        %2694 = vmatpush2.xpose.msra.mxu0 0.0
        %2695 = vmatprep.subr.mxu0 0.0
        %2696 = vmatpush2.xpose.msra.mxu0 0.0
        %2697 = vmatprep.subr.mxu0 0.0
        %2698 = vmatpush2.xpose.msra.mxu0 0.0
        %2699 = vmatprep.subr.mxu0 0.0
        %2700 = vmatpush2.xpose.msra.mxu0 0.0
        %2701 = vmatprep.subr.mxu0 0.0
        %2702 = vmatpush2.xpose.msra.mxu0 0.0
        %2703 = vmatprep.subr.mxu0 0.0
        %2704 = vmatpush2.xpose.msra.mxu0 0.0
        %2705 = vmatprep.subr.mxu0 0.0
        %2706 = vmatpush2.xpose.msra.mxu0 0.0
        %2707 = vmatprep.subr.mxu0 0.0
        %2708 = vmatpush2.xpose.msra.mxu0 0.0
        %2709 = vmatprep.subr.mxu0 0.0
        %2710 = vmatpush2.xpose.msra.mxu0 0.0
        %2711 = vmatprep.subr.mxu0 0.0
        %2712 = vmatpush2.xpose.msra.mxu0 0.0
        %2713 = vmatprep.subr.mxu0 0.0
        %2714 = vmatpush2.xpose.msra.mxu0 0.0
        %2715 = vmatprep.subr.mxu0 0.0
        %2716 = vmatpush2.xpose.msra.mxu0 0.0
        %2717 = vmatprep.subr.mxu0 0.0
        %2718 = vmatpush2.xpose.msra.mxu0 0.0
        %2719 = vmatprep.mubr.f32.mxu0 0.0
        %2720 = vmatmul.mubr.f32.gmra.mxu0 %v2647
        %v2721 = vpop.f32.mrf.mxu0
        %v2722 = vadd.f32 0.0, %v2721
        %v2723 = vpop.f32.mrf.mxu0
        %2724 = vmatprep.mubr.f32.mxu0 0.0
        %2725 = vmatmul.mubr.f32.gmra.mxu0 %v2649
        %v2726 = vpop.f32.mrf.mxu0
        %v2727 = vadd.f32 0.0, %v2726
        %v2728 = vpop.f32.mrf.mxu0
        %2729 = vdwg.mxu0
        %v2730 = vsel %vm1233, %v2722, -inf
        %2731 = vmax.xlane.f32.xlu0 %v2730
        %v2732 = vpop.xlane.xlu0 %2731
        %v2733 = vsel %vm1237, %v2727, -inf
        %2734 = vmax.xlane.f32.xlu0 %v2733
        %v2735 = vpop.xlane.xlu0 %2734
        %v2736 = vsub.f32 %v2722, %v2732
        %v2737 = vsub.f32 %v2727, %v2735
        %v2738 = vmul.f32 %v2736, 1.442695
        %v2739 = vpow.pop %v2738
        %v2740 = vmul.f32 %v2737, 1.442695
        %v2741 = vpow.pop %v2740
        %v2742 = vsel %vm1233, %v2739, 0.0
        %2743 = vadd.xlane.f32.xlu0 %v2742
        %v2744 = vpop.xlane.xlu0 %2743
        %v2745 = vsel %vm1237, %v2741, 0.0
        %2746 = vadd.xlane.f32.xlu0 %v2745
        %v2747 = vpop.xlane.xlu0 %2746
        %v2748 = vrcp.pop %v2744
        %v2749 = vrcp.pop %v2747
        %v2750 = vmul.f32 %v2739, %v2748
        %v2751 = vmul.f32 %v2741, %v2749
        %2752 = vrot.lane.b32.xlu0 %v2430, 56
        %v2753 = vpop.permute.xlu0 %2752
        %2754 = vrot.lane.b32.xlu0 %v2433, 56
        %v2755 = vpop.permute.xlu0 %2754
        %v2758 = vsel %vm1233, %v2750, 0
        %v2761 = vsel %vm1233, %v2751, 0
        %v2763 = vsel %vm1268, %v2755, 0
        %2765 = vmatprep.subr.mxu0 0.0
        %2766 = vmatpush1.msra.mxu0 0.0
        %2767 = vmatprep.subr.mxu0 0.0
        %2768 = vmatpush1.msra.mxu0 0.0
        %2769 = vmatprep.subr.mxu0 0.0
        %2770 = vmatpush1.msra.mxu0 0.0
        %2771 = vmatprep.subr.mxu0 0.0
        %2772 = vmatpush1.msra.mxu0 0.0
        %2773 = vmatprep.subr.mxu0 0.0
        %2774 = vmatpush1.msra.mxu0 0.0
        %2775 = vmatprep.subr.mxu0 0.0
        %2776 = vmatpush1.msra.mxu0 0.0
        %2777 = vmatprep.subr.mxu0 0.0
        %2778 = vmatpush1.msra.mxu0 0.0
        %2779 = vmatprep.subr.mxu0 0.0
        %2780 = vmatpush1.msra.mxu0 0.0
        %2781 = vmatprep.subr.mxu0 0.0
        %2782 = vmatpush1.msra.mxu0 0.0
        %2783 = vmatprep.subr.mxu0 0.0
        %2784 = vmatpush1.msra.mxu0 0.0
        %2785 = vmatprep.subr.mxu0 0.0
        %2786 = vmatpush1.msra.mxu0 0.0
        %2787 = vmatprep.subr.mxu0 0.0
        %2788 = vmatpush1.msra.mxu0 0.0
        %2789 = vmatprep.subr.mxu0 0.0
        %2790 = vmatpush1.msra.mxu0 0.0
        %2791 = vmatprep.subr.mxu0 0.0
        %2792 = vmatpush1.msra.mxu0 0.0
        %2793 = vmatprep.subr.mxu0 0.0
        %2794 = vmatpush1.msra.mxu0 %v2763
        %2795 = vmatprep.subr.mxu0 0.0
        %2796 = vmatpush1.msra.mxu0 %v2753
        %2797 = vmatprep.subr.mxu0 0.0
        %2798 = vmatpush2.msra.mxu0 0.0
        %2799 = vmatprep.subr.mxu0 0.0
        %2800 = vmatpush2.msra.mxu0 0.0
        %2801 = vmatprep.subr.mxu0 0.0
        %2802 = vmatpush2.msra.mxu0 0.0
        %2803 = vmatprep.subr.mxu0 0.0
        %2804 = vmatpush2.msra.mxu0 0.0
        %2805 = vmatprep.subr.mxu0 0.0
        %2806 = vmatpush2.msra.mxu0 0.0
        %2807 = vmatprep.subr.mxu0 0.0
        %2808 = vmatpush2.msra.mxu0 0.0
        %2809 = vmatprep.subr.mxu0 0.0
        %2810 = vmatpush2.msra.mxu0 0.0
        %2811 = vmatprep.subr.mxu0 0.0
        %2812 = vmatpush2.msra.mxu0 0.0
        %2813 = vmatprep.subr.mxu0 0.0
        %2814 = vmatpush2.msra.mxu0 0.0
        %2815 = vmatprep.subr.mxu0 0.0
        %2816 = vmatpush2.msra.mxu0 0.0
        %2817 = vmatprep.subr.mxu0 0.0
        %2818 = vmatpush2.msra.mxu0 0.0
        %2819 = vmatprep.subr.mxu0 0.0
        %2820 = vmatpush2.msra.mxu0 0.0
        %2821 = vmatprep.subr.mxu0 0.0
        %2822 = vmatpush2.msra.mxu0 0.0
        %2823 = vmatprep.subr.mxu0 0.0
        %2824 = vmatpush2.msra.mxu0 0.0
        %2825 = vmatprep.subr.mxu0 0.0
        %2826 = vmatpush2.msra.mxu0 0.0
        %2827 = vmatprep.subr.mxu0 0.0
        %2828 = vmatpush2.msra.mxu0 0.0
        %2829 = vmatprep.mubr.f32.mxu0 0.0
        %2830 = vmatmul.mubr.f32.gmra.mxu0 %v2758
        %v2831 = vpop.f32.mrf.mxu0
        %v2832 = vadd.f32 0.0, %v2831
        %v2833 = vpop.f32.mrf.mxu0
        %2834 = vmatprep.mubr.f32.mxu0 0.0
        %2835 = vmatmul.mubr.f32.gmra.mxu0 %v2761
        %v2836 = vpop.f32.mrf.mxu0
        %v2837 = vadd.f32 0.0, %v2836
        %v2838 = vpop.f32.mrf.mxu0
        %2839 = vdwg.mxu0
        %2840 = vrot.lane.b32.xlu0 %v2436, 112
        %v2841 = vpop.permute.xlu0 %2840
        %2842 = vrot.lane.b32.xlu0 %v2437, 112
        %v2843 = vpop.permute.xlu0 %2842
        %2844 = vrot.lane.b32.xlu0 %v2430, 80
        %v2845 = vpop.permute.xlu0 %2844
        %2846 = vrot.lane.b32.xlu0 %v2433, 80
        %v2847 = vpop.permute.xlu0 %2846
        %v2848 = vsel %vm1147, %v2841, 0
        %v2850 = vsel %vm1147, %v2843, 0
        %v2852 = vsel %vm1147, %v2845, 0
        %v2854 = vsel %vm1147, %v2847, 0
        %2856 = vmatprep.subr.mxu0 0.0
        %2857 = vmatpush1.xpose.msra.mxu0 0.0
        %2858 = vmatprep.subr.mxu0 0.0
        %2859 = vmatpush1.xpose.msra.mxu0 0.0
        %2860 = vmatprep.subr.mxu0 0.0
        %2861 = vmatpush1.xpose.msra.mxu0 0.0
        %2862 = vmatprep.subr.mxu0 0.0
        %2863 = vmatpush1.xpose.msra.mxu0 0.0
        %2864 = vmatprep.subr.mxu0 0.0
        %2865 = vmatpush1.xpose.msra.mxu0 0.0
        %2866 = vmatprep.subr.mxu0 0.0
        %2867 = vmatpush1.xpose.msra.mxu0 0.0
        %2868 = vmatprep.subr.mxu0 0.0
        %2869 = vmatpush1.xpose.msra.mxu0 0.0
        %2870 = vmatprep.subr.mxu0 0.0
        %2871 = vmatpush1.xpose.msra.mxu0 0.0
        %2872 = vmatprep.subr.mxu0 0.0
        %2873 = vmatpush1.xpose.msra.mxu0 0.0
        %2874 = vmatprep.subr.mxu0 0.0
        %2875 = vmatpush1.xpose.msra.mxu0 0.0
        %2876 = vmatprep.subr.mxu0 0.0
        %2877 = vmatpush1.xpose.msra.mxu0 0.0
        %2878 = vmatprep.subr.mxu0 0.0
        %2879 = vmatpush1.xpose.msra.mxu0 0.0
        %2880 = vmatprep.subr.mxu0 0.0
        %2881 = vmatpush1.xpose.msra.mxu0 0.0
        %2882 = vmatprep.subr.mxu0 0.0
        %2883 = vmatpush1.xpose.msra.mxu0 0.0
        %2884 = vmatprep.subr.mxu0 0.0
        %2885 = vmatpush1.xpose.msra.mxu0 %v2854
        %2886 = vmatprep.subr.mxu0 0.0
        %2887 = vmatpush1.xpose.msra.mxu0 %v2852
        %2888 = vmatprep.subr.mxu0 0.0
        %2889 = vmatpush2.xpose.msra.mxu0 0.0
        %2890 = vmatprep.subr.mxu0 0.0
        %2891 = vmatpush2.xpose.msra.mxu0 0.0
        %2892 = vmatprep.subr.mxu0 0.0
        %2893 = vmatpush2.xpose.msra.mxu0 0.0
        %2894 = vmatprep.subr.mxu0 0.0
        %2895 = vmatpush2.xpose.msra.mxu0 0.0
        %2896 = vmatprep.subr.mxu0 0.0
        %2897 = vmatpush2.xpose.msra.mxu0 0.0
        %2898 = vmatprep.subr.mxu0 0.0
        %2899 = vmatpush2.xpose.msra.mxu0 0.0
        %2900 = vmatprep.subr.mxu0 0.0
        %2901 = vmatpush2.xpose.msra.mxu0 0.0
        %2902 = vmatprep.subr.mxu0 0.0
        %2903 = vmatpush2.xpose.msra.mxu0 0.0
        %2904 = vmatprep.subr.mxu0 0.0
        %2905 = vmatpush2.xpose.msra.mxu0 0.0
        %2906 = vmatprep.subr.mxu0 0.0
        %2907 = vmatpush2.xpose.msra.mxu0 0.0
        %2908 = vmatprep.subr.mxu0 0.0
        %2909 = vmatpush2.xpose.msra.mxu0 0.0
        %2910 = vmatprep.subr.mxu0 0.0
        %2911 = vmatpush2.xpose.msra.mxu0 0.0
        %2912 = vmatprep.subr.mxu0 0.0
        %2913 = vmatpush2.xpose.msra.mxu0 0.0
        %2914 = vmatprep.subr.mxu0 0.0
        %2915 = vmatpush2.xpose.msra.mxu0 0.0
        %2916 = vmatprep.subr.mxu0 0.0
        %2917 = vmatpush2.xpose.msra.mxu0 0.0
        %2918 = vmatprep.subr.mxu0 0.0
        %2919 = vmatpush2.xpose.msra.mxu0 0.0
        %2920 = vmatprep.mubr.f32.mxu0 0.0
        %2921 = vmatmul.mubr.f32.gmra.mxu0 %v2848
        %v2922 = vpop.f32.mrf.mxu0
        %v2923 = vadd.f32 0.0, %v2922
        %v2924 = vpop.f32.mrf.mxu0
        %2925 = vmatprep.mubr.f32.mxu0 0.0
        %2926 = vmatmul.mubr.f32.gmra.mxu0 %v2850
        %v2927 = vpop.f32.mrf.mxu0
        %v2928 = vadd.f32 0.0, %v2927
        %v2929 = vpop.f32.mrf.mxu0
        %2930 = vdwg.mxu0
        %v2931 = vsel %vm1233, %v2923, -inf
        %2932 = vmax.xlane.f32.xlu0 %v2931
        %v2933 = vpop.xlane.xlu0 %2932
        %v2934 = vsel %vm1237, %v2928, -inf
        %2935 = vmax.xlane.f32.xlu0 %v2934
        %v2936 = vpop.xlane.xlu0 %2935
        %v2937 = vsub.f32 %v2923, %v2933
        %v2938 = vsub.f32 %v2928, %v2936
        %v2939 = vmul.f32 %v2937, 1.442695
        %v2940 = vpow.pop %v2939
        %v2941 = vmul.f32 %v2938, 1.442695
        %v2942 = vpow.pop %v2941
        %v2943 = vsel %vm1233, %v2940, 0.0
        %2944 = vadd.xlane.f32.xlu0 %v2943
        %v2945 = vpop.xlane.xlu0 %2944
        %v2946 = vsel %vm1237, %v2942, 0.0
        %2947 = vadd.xlane.f32.xlu0 %v2946
        %v2948 = vpop.xlane.xlu0 %2947
        %v2949 = vrcp.pop %v2945
        %v2950 = vrcp.pop %v2948
        %v2951 = vmul.f32 %v2940, %v2949
        %v2952 = vmul.f32 %v2942, %v2950
        %2953 = vrot.lane.b32.xlu0 %v2430, 48
        %v2954 = vpop.permute.xlu0 %2953
        %2955 = vrot.lane.b32.xlu0 %v2433, 48
        %v2956 = vpop.permute.xlu0 %2955
        %v2959 = vsel %vm1233, %v2951, 0
        %v2962 = vsel %vm1233, %v2952, 0
        %v2964 = vsel %vm1268, %v2956, 0
        %2966 = vmatprep.subr.mxu0 0.0
        %2967 = vmatpush1.msra.mxu0 0.0
        %2968 = vmatprep.subr.mxu0 0.0
        %2969 = vmatpush1.msra.mxu0 0.0
        %2970 = vmatprep.subr.mxu0 0.0
        %2971 = vmatpush1.msra.mxu0 0.0
        %2972 = vmatprep.subr.mxu0 0.0
        %2973 = vmatpush1.msra.mxu0 0.0
        %2974 = vmatprep.subr.mxu0 0.0
        %2975 = vmatpush1.msra.mxu0 0.0
        %2976 = vmatprep.subr.mxu0 0.0
        %2977 = vmatpush1.msra.mxu0 0.0
        %2978 = vmatprep.subr.mxu0 0.0
        %2979 = vmatpush1.msra.mxu0 0.0
        %2980 = vmatprep.subr.mxu0 0.0
        %2981 = vmatpush1.msra.mxu0 0.0
        %2982 = vmatprep.subr.mxu0 0.0
        %2983 = vmatpush1.msra.mxu0 0.0
        %2984 = vmatprep.subr.mxu0 0.0
        %2985 = vmatpush1.msra.mxu0 0.0
        %2986 = vmatprep.subr.mxu0 0.0
        %2987 = vmatpush1.msra.mxu0 0.0
        %2988 = vmatprep.subr.mxu0 0.0
        %2989 = vmatpush1.msra.mxu0 0.0
        %2990 = vmatprep.subr.mxu0 0.0
        %2991 = vmatpush1.msra.mxu0 0.0
        %2992 = vmatprep.subr.mxu0 0.0
        %2993 = vmatpush1.msra.mxu0 0.0
        %2994 = vmatprep.subr.mxu0 0.0
        %2995 = vmatpush1.msra.mxu0 %v2964
        %2996 = vmatprep.subr.mxu0 0.0
        %2997 = vmatpush1.msra.mxu0 %v2954
        %2998 = vmatprep.subr.mxu0 0.0
        %2999 = vmatpush2.msra.mxu0 0.0
        %3000 = vmatprep.subr.mxu0 0.0
        %3001 = vmatpush2.msra.mxu0 0.0
        %3002 = vmatprep.subr.mxu0 0.0
        %3003 = vmatpush2.msra.mxu0 0.0
        %3004 = vmatprep.subr.mxu0 0.0
        %3005 = vmatpush2.msra.mxu0 0.0
        %3006 = vmatprep.subr.mxu0 0.0
        %3007 = vmatpush2.msra.mxu0 0.0
        %3008 = vmatprep.subr.mxu0 0.0
        %3009 = vmatpush2.msra.mxu0 0.0
        %3010 = vmatprep.subr.mxu0 0.0
        %3011 = vmatpush2.msra.mxu0 0.0
        %3012 = vmatprep.subr.mxu0 0.0
        %3013 = vmatpush2.msra.mxu0 0.0
        %3014 = vmatprep.subr.mxu0 0.0
        %3015 = vmatpush2.msra.mxu0 0.0
        %3016 = vmatprep.subr.mxu0 0.0
        %3017 = vmatpush2.msra.mxu0 0.0
        %3018 = vmatprep.subr.mxu0 0.0
        %3019 = vmatpush2.msra.mxu0 0.0
        %3020 = vmatprep.subr.mxu0 0.0
        %3021 = vmatpush2.msra.mxu0 0.0
        %3022 = vmatprep.subr.mxu0 0.0
        %3023 = vmatpush2.msra.mxu0 0.0
        %3024 = vmatprep.subr.mxu0 0.0
        %3025 = vmatpush2.msra.mxu0 0.0
        %3026 = vmatprep.subr.mxu0 0.0
        %3027 = vmatpush2.msra.mxu0 0.0
        %3028 = vmatprep.subr.mxu0 0.0
        %3029 = vmatpush2.msra.mxu0 0.0
        %3030 = vmatprep.mubr.f32.mxu0 0.0
        %3031 = vmatmul.mubr.f32.gmra.mxu0 %v2959
        %v3032 = vpop.f32.mrf.mxu0
        %v3033 = vadd.f32 0.0, %v3032
        %v3034 = vpop.f32.mrf.mxu0
        %3035 = vmatprep.mubr.f32.mxu0 0.0
        %3036 = vmatmul.mubr.f32.gmra.mxu0 %v2962
        %v3037 = vpop.f32.mrf.mxu0
        %v3038 = vadd.f32 0.0, %v3037
        %v3039 = vpop.f32.mrf.mxu0
        %3040 = vdwg.mxu0
        %3041 = vrot.lane.b32.xlu0 %v2436, 104
        %v3042 = vpop.permute.xlu0 %3041
        %3043 = vrot.lane.b32.xlu0 %v2437, 104
        %v3044 = vpop.permute.xlu0 %3043
        %3045 = vrot.lane.b32.xlu0 %v2430, 72
        %v3046 = vpop.permute.xlu0 %3045
        %3047 = vrot.lane.b32.xlu0 %v2433, 72
        %v3048 = vpop.permute.xlu0 %3047
        %v3049 = vsel %vm1147, %v3042, 0
        %v3051 = vsel %vm1147, %v3044, 0
        %v3053 = vsel %vm1147, %v3046, 0
        %v3055 = vsel %vm1147, %v3048, 0
        %3057 = vmatprep.subr.mxu0 0.0
        %3058 = vmatpush1.xpose.msra.mxu0 0.0
        %3059 = vmatprep.subr.mxu0 0.0
        %3060 = vmatpush1.xpose.msra.mxu0 0.0
        %3061 = vmatprep.subr.mxu0 0.0
        %3062 = vmatpush1.xpose.msra.mxu0 0.0
        %3063 = vmatprep.subr.mxu0 0.0
        %3064 = vmatpush1.xpose.msra.mxu0 0.0
        %3065 = vmatprep.subr.mxu0 0.0
        %3066 = vmatpush1.xpose.msra.mxu0 0.0
        %3067 = vmatprep.subr.mxu0 0.0
        %3068 = vmatpush1.xpose.msra.mxu0 0.0
        %3069 = vmatprep.subr.mxu0 0.0
        %3070 = vmatpush1.xpose.msra.mxu0 0.0
        %3071 = vmatprep.subr.mxu0 0.0
        %3072 = vmatpush1.xpose.msra.mxu0 0.0
        %3073 = vmatprep.subr.mxu0 0.0
        %3074 = vmatpush1.xpose.msra.mxu0 0.0
        %3075 = vmatprep.subr.mxu0 0.0
        %3076 = vmatpush1.xpose.msra.mxu0 0.0
        %3077 = vmatprep.subr.mxu0 0.0
        %3078 = vmatpush1.xpose.msra.mxu0 0.0
        %3079 = vmatprep.subr.mxu0 0.0
        %3080 = vmatpush1.xpose.msra.mxu0 0.0
        %3081 = vmatprep.subr.mxu0 0.0
        %3082 = vmatpush1.xpose.msra.mxu0 0.0
        %3083 = vmatprep.subr.mxu0 0.0
        %3084 = vmatpush1.xpose.msra.mxu0 0.0
        %3085 = vmatprep.subr.mxu0 0.0
        %3086 = vmatpush1.xpose.msra.mxu0 %v3055
        %3087 = vmatprep.subr.mxu0 0.0
        %3088 = vmatpush1.xpose.msra.mxu0 %v3053
        %3089 = vmatprep.subr.mxu0 0.0
        %3090 = vmatpush2.xpose.msra.mxu0 0.0
        %3091 = vmatprep.subr.mxu0 0.0
        %3092 = vmatpush2.xpose.msra.mxu0 0.0
        %3093 = vmatprep.subr.mxu0 0.0
        %3094 = vmatpush2.xpose.msra.mxu0 0.0
        %3095 = vmatprep.subr.mxu0 0.0
        %3096 = vmatpush2.xpose.msra.mxu0 0.0
        %3097 = vmatprep.subr.mxu0 0.0
        %3098 = vmatpush2.xpose.msra.mxu0 0.0
        %3099 = vmatprep.subr.mxu0 0.0
        %3100 = vmatpush2.xpose.msra.mxu0 0.0
        %3101 = vmatprep.subr.mxu0 0.0
        %3102 = vmatpush2.xpose.msra.mxu0 0.0
        %3103 = vmatprep.subr.mxu0 0.0
        %3104 = vmatpush2.xpose.msra.mxu0 0.0
        %3105 = vmatprep.subr.mxu0 0.0
        %3106 = vmatpush2.xpose.msra.mxu0 0.0
        %3107 = vmatprep.subr.mxu0 0.0
        %3108 = vmatpush2.xpose.msra.mxu0 0.0
        %3109 = vmatprep.subr.mxu0 0.0
        %3110 = vmatpush2.xpose.msra.mxu0 0.0
        %3111 = vmatprep.subr.mxu0 0.0
        %3112 = vmatpush2.xpose.msra.mxu0 0.0
        %3113 = vmatprep.subr.mxu0 0.0
        %3114 = vmatpush2.xpose.msra.mxu0 0.0
        %3115 = vmatprep.subr.mxu0 0.0
        %3116 = vmatpush2.xpose.msra.mxu0 0.0
        %3117 = vmatprep.subr.mxu0 0.0
        %3118 = vmatpush2.xpose.msra.mxu0 0.0
        %3119 = vmatprep.subr.mxu0 0.0
        %3120 = vmatpush2.xpose.msra.mxu0 0.0
        %3121 = vmatprep.mubr.f32.mxu0 0.0
        %3122 = vmatmul.mubr.f32.gmra.mxu0 %v3049
        %v3123 = vpop.f32.mrf.mxu0
        %v3124 = vadd.f32 0.0, %v3123
        %v3125 = vpop.f32.mrf.mxu0
        %3126 = vmatprep.mubr.f32.mxu0 0.0
        %3127 = vmatmul.mubr.f32.gmra.mxu0 %v3051
        %v3128 = vpop.f32.mrf.mxu0
        %v3129 = vadd.f32 0.0, %v3128
        %v3130 = vpop.f32.mrf.mxu0
        %3131 = vdwg.mxu0
        %v3132 = vsel %vm1233, %v3124, -inf
        %3133 = vmax.xlane.f32.xlu0 %v3132
        %v3134 = vpop.xlane.xlu0 %3133
        %v3135 = vsel %vm1237, %v3129, -inf
        %3136 = vmax.xlane.f32.xlu0 %v3135
        %v3137 = vpop.xlane.xlu0 %3136
        %v3138 = vsub.f32 %v3124, %v3134
        %v3139 = vsub.f32 %v3129, %v3137
        %v3140 = vmul.f32 %v3138, 1.442695
        %v3141 = vpow.pop %v3140
        %v3142 = vmul.f32 %v3139, 1.442695
        %v3143 = vpow.pop %v3142
        %v3144 = vsel %vm1233, %v3141, 0.0
        %3145 = vadd.xlane.f32.xlu0 %v3144
        %v3146 = vpop.xlane.xlu0 %3145
        %v3147 = vsel %vm1237, %v3143, 0.0
        %3148 = vadd.xlane.f32.xlu0 %v3147
        %v3149 = vpop.xlane.xlu0 %3148
        %v3150 = vrcp.pop %v3146
        %v3151 = vrcp.pop %v3149
        %v3152 = vmul.f32 %v3141, %v3150
        %v3153 = vmul.f32 %v3143, %v3151
        %3154 = vrot.lane.b32.xlu0 %v2430, 40
        %v3155 = vpop.permute.xlu0 %3154
        %3156 = vrot.lane.b32.xlu0 %v2433, 40
        %v3157 = vpop.permute.xlu0 %3156
        %v3160 = vsel %vm1233, %v3152, 0
        %v3163 = vsel %vm1233, %v3153, 0
        %v3165 = vsel %vm1268, %v3157, 0
        %3167 = vmatprep.subr.mxu0 0.0
        %3168 = vmatpush1.msra.mxu0 0.0
        %3169 = vmatprep.subr.mxu0 0.0
        %3170 = vmatpush1.msra.mxu0 0.0
        %3171 = vmatprep.subr.mxu0 0.0
        %3172 = vmatpush1.msra.mxu0 0.0
        %3173 = vmatprep.subr.mxu0 0.0
        %3174 = vmatpush1.msra.mxu0 0.0
        %3175 = vmatprep.subr.mxu0 0.0
        %3176 = vmatpush1.msra.mxu0 0.0
        %3177 = vmatprep.subr.mxu0 0.0
        %3178 = vmatpush1.msra.mxu0 0.0
        %3179 = vmatprep.subr.mxu0 0.0
        %3180 = vmatpush1.msra.mxu0 0.0
        %3181 = vmatprep.subr.mxu0 0.0
        %3182 = vmatpush1.msra.mxu0 0.0
        %3183 = vmatprep.subr.mxu0 0.0
        %3184 = vmatpush1.msra.mxu0 0.0
        %3185 = vmatprep.subr.mxu0 0.0
        %3186 = vmatpush1.msra.mxu0 0.0
        %3187 = vmatprep.subr.mxu0 0.0
        %3188 = vmatpush1.msra.mxu0 0.0
        %3189 = vmatprep.subr.mxu0 0.0
        %3190 = vmatpush1.msra.mxu0 0.0
        %3191 = vmatprep.subr.mxu0 0.0
        %3192 = vmatpush1.msra.mxu0 0.0
        %3193 = vmatprep.subr.mxu0 0.0
        %3194 = vmatpush1.msra.mxu0 0.0
        %3195 = vmatprep.subr.mxu0 0.0
        %3196 = vmatpush1.msra.mxu0 %v3165
        %3197 = vmatprep.subr.mxu0 0.0
        %3198 = vmatpush1.msra.mxu0 %v3155
        %3199 = vmatprep.subr.mxu0 0.0
        %3200 = vmatpush2.msra.mxu0 0.0
        %3201 = vmatprep.subr.mxu0 0.0
        %3202 = vmatpush2.msra.mxu0 0.0
        %3203 = vmatprep.subr.mxu0 0.0
        %3204 = vmatpush2.msra.mxu0 0.0
        %3205 = vmatprep.subr.mxu0 0.0
        %3206 = vmatpush2.msra.mxu0 0.0
        %3207 = vmatprep.subr.mxu0 0.0
        %3208 = vmatpush2.msra.mxu0 0.0
        %3209 = vmatprep.subr.mxu0 0.0
        %3210 = vmatpush2.msra.mxu0 0.0
        %3211 = vmatprep.subr.mxu0 0.0
        %3212 = vmatpush2.msra.mxu0 0.0
        %3213 = vmatprep.subr.mxu0 0.0
        %3214 = vmatpush2.msra.mxu0 0.0
        %3215 = vmatprep.subr.mxu0 0.0
        %3216 = vmatpush2.msra.mxu0 0.0
        %3217 = vmatprep.subr.mxu0 0.0
        %3218 = vmatpush2.msra.mxu0 0.0
        %3219 = vmatprep.subr.mxu0 0.0
        %3220 = vmatpush2.msra.mxu0 0.0
        %3221 = vmatprep.subr.mxu0 0.0
        %3222 = vmatpush2.msra.mxu0 0.0
        %3223 = vmatprep.subr.mxu0 0.0
        %3224 = vmatpush2.msra.mxu0 0.0
        %3225 = vmatprep.subr.mxu0 0.0
        %3226 = vmatpush2.msra.mxu0 0.0
        %3227 = vmatprep.subr.mxu0 0.0
        %3228 = vmatpush2.msra.mxu0 0.0
        %3229 = vmatprep.subr.mxu0 0.0
        %3230 = vmatpush2.msra.mxu0 0.0
        %3231 = vmatprep.mubr.f32.mxu0 0.0
        %3232 = vmatmul.mubr.f32.gmra.mxu0 %v3160
        %v3233 = vpop.f32.mrf.mxu0
        %v3234 = vadd.f32 0.0, %v3233
        %v3235 = vpop.f32.mrf.mxu0
        %3236 = vmatprep.mubr.f32.mxu0 0.0
        %3237 = vmatmul.mubr.f32.gmra.mxu0 %v3163
        %v3238 = vpop.f32.mrf.mxu0
        %v3239 = vadd.f32 0.0, %v3238
        %v3240 = vpop.f32.mrf.mxu0
        %3241 = vdwg.mxu0
        %3244 = vrot.lane.b32.xlu0 %v2832, 8
        %v3245 = vpop.permute.xlu0 %3244
        %3246 = vrot.lane.b32.xlu0 %v2837, 8
        %v3247 = vpop.permute.xlu0 %3246
        %3252 = vrot.lane.b32.xlu0 %v3033, 16
        %v3253 = vpop.permute.xlu0 %3252
        %3254 = vrot.lane.b32.xlu0 %v3038, 16
        %v3255 = vpop.permute.xlu0 %3254
        %3260 = vrot.lane.b32.xlu0 %v3234, 24
        %v3261 = vpop.permute.xlu0 %3260
        %3262 = vrot.lane.b32.xlu0 %v3239, 24
        %v3263 = vpop.permute.xlu0 %3262
        %v3266 = vsel %vm1147, %v2631, %v3245
        %v3267 = vsel %vm1147, %v2636, %v3247
        %v3268 = vsel %vm1975, %v3266, %v3253
        %v3269 = vsel %vm1975, %v3267, %v3255
        %v3270 = vsel %vm1978, %v3268, %v3261
        %v3271 = vsel %vm1978, %v3269, %v3263
        %v3272 = vpack.c.bf16 %v3271, %v3270
        %s3273 = scalar_lea.vmem %s17, 16
        %v3274 = vld [vmem:[%s3273] sm:$0xf]
        %v3275 = vld [vmem:[%s3273 + $0x4] sm:$0xf]
        %v3276 = vld [vmem:[%s3273 + $0x8] sm:$0xf]
        %v3277 = vld [vmem:[%s3273 + $0xc] sm:$0xf]
        %v3279 = vlaneseq
        %v3280 = vshrl.u32 %v3279, 7
        %v3281 = vsub.s32 0, %v3280
        %v3282 = vrot.slane %v2315, %v3281
        %v3288 = vunpack.c.l.b16 %v3274
        %v3289 = vunpack.c.l.b16 %v3275
        %v3290 = vunpack.c.l.b16 %v3276
        %v3291 = vunpack.c.l.b16 %v3277
        %v3292 = vpack.c.b16 %v3289, %v3288
        %v3293 = vpack.c.b16 %v3291, %v3290
        %v3297 = vsel %vm1026, %v3272, 0
        %3299 = vmatprep.subr.bf16.mxu0 0
        %3300 = vmatpush1.bf16.msra.mxu0 0
        %3301 = vmatprep.subr.bf16.mxu0 0
        %3302 = vmatpush1.bf16.msra.mxu0 0
        %3303 = vmatprep.subr.bf16.mxu0 0
        %3304 = vmatpush1.bf16.msra.mxu0 0
        %3305 = vmatprep.subr.bf16.mxu0 0
        %3306 = vmatpush1.bf16.msra.mxu0 0
        %3307 = vmatprep.subr.bf16.mxu0 0
        %3308 = vmatpush1.bf16.msra.mxu0 0
        %3309 = vmatprep.subr.bf16.mxu0 0
        %3310 = vmatpush1.bf16.msra.mxu0 0
        %3311 = vmatprep.subr.bf16.mxu0 0
        %3312 = vmatpush1.bf16.msra.mxu0 %v3293
        %3313 = vmatprep.subr.bf16.mxu0 0
        %3314 = vmatpush1.bf16.msra.mxu0 %v3292
        %3315 = vmatprep.subr.bf16.mxu0 0
        %3316 = vmatpush2.bf16.msra.mxu0 0
        %3317 = vmatprep.subr.bf16.mxu0 0
        %3318 = vmatpush2.bf16.msra.mxu0 0
        %3319 = vmatprep.subr.bf16.mxu0 0
        %3320 = vmatpush2.bf16.msra.mxu0 0
        %3321 = vmatprep.subr.bf16.mxu0 0
        %3322 = vmatpush2.bf16.msra.mxu0 0
        %3323 = vmatprep.subr.bf16.mxu0 0
        %3324 = vmatpush2.bf16.msra.mxu0 0
        %3325 = vmatprep.subr.bf16.mxu0 0
        %3326 = vmatpush2.bf16.msra.mxu0 0
        %3327 = vmatprep.subr.bf16.mxu0 0
        %3328 = vmatpush2.bf16.msra.mxu0 0
        %3329 = vmatprep.subr.bf16.mxu0 0
        %3330 = vmatpush2.bf16.msra.mxu0 0
        %3331 = vmatprep.mubr.bf16.mxu0 0
        %3332 = vmatmul.mubr.bf16.gmra.mxu0 %v3297
        %v3333 = vpop.f32.mrf.mxu0
        %v3334 = vadd.f32 %v3282, %v3333
        %v3335 = vpop.f32.mrf.mxu0
        %v3336 = vpop.f32.mrf.mxu0
        %v3337 = vadd.f32 %v3282, %v3336
        %v3338 = vpop.f32.mrf.mxu0
        %3339 = vdwg.mxu0
        %v3341 = vlaneseq
        %v3342 = vshrl.u32 %v3341, 7
        %v3343 = vsub.s32 0, %v3342
        %v3344 = vrot.slane %v2313, %v3343
        %v3346 = vmul.f32 %v3344, %v3334
        %v3347 = vmul.f32 %v3344, %v3337
        %v3348 = vadd.f32 %v2306, %v3346
        %v3349 = vadd.f32 %v2307, %v3347
        %v3350 = vsel %vm1026, %v3348, 0.0
        %3351 = vadd.xlane.f32.xlu0 %v3350
        %v3352 = vpop.xlane.xlu0 %3351
        %v3353 = vsel %vm1030, %v3349, 0.0
        %3354 = vadd.xlane.f32.xlu0 %v3353
        %v3355 = vpop.xlane.xlu0 %3354
        %v3356 = vmul.f32 %v3352, %v1034
        %v3357 = vmul.f32 %v3355, %v1034
        %v3358 = vsub.f32 %v3348, %v3356
        %v3359 = vsub.f32 %v3349, %v3357
        %v3360 = vmul.f32 %v3358, %v3358
        %v3361 = vmul.f32 %v3359, %v3359
        %v3362 = vsel %vm1026, %v3360, 0.0
        %3363 = vadd.xlane.f32.xlu0 %v3362
        %v3364 = vpop.xlane.xlu0 %3363
        %v3365 = vsel %vm1030, %v3361, 0.0
        %3366 = vadd.xlane.f32.xlu0 %v3365
        %v3367 = vpop.xlane.xlu0 %3366
        %v3368 = vmul.f32 %v3364, %v1034
        %v3369 = vmul.f32 %v3367, %v1034
        %v3370 = vadd.f32 %v3368, 1e-05
        %v3371 = vadd.f32 %v3369, 1e-05
        %v3372 = vrsqrt.pop %v3370
        %v3373 = vrsqrt.pop %v3371
        %v3374 = vmul.f32 %v3358, %v3372
        %v3375 = vmul.f32 %v3359, %v3373
        %v3377 = vlaneseq
        %v3378 = vshrl.u32 %v3377, 7
        %v3379 = vsub.s32 0, %v3378
        %v3380 = vrot.slane %v2317, %v3379
        %v3382 = vmul.f32 %v3374, %v3380
        %v3383 = vmul.f32 %v3375, %v3380
        %v3385 = vlaneseq
        %v3386 = vshrl.u32 %v3385, 7
        %v3387 = vsub.s32 0, %v3386
        %v3388 = vrot.slane %v2319, %v3387
        %v3390 = vadd.f32 %v3382, %v3388
        %v3391 = vadd.f32 %v3383, %v3388
        %v3392 = vpack.c.bf16 %v3391, %v3390
        %s3393 = scalar_lea.vmem %s19, 16
        %v3394 = vld [vmem:[%s3393] sm:$0xf]
        %v3395 = vld [vmem:[%s3393 + $0x4] sm:$0xf]
        %v3396 = vld [vmem:[%s3393 + $0x8] sm:$0xf]
        %v3397 = vld [vmem:[%s3393 + $0xc] sm:$0xf]
        %s3398 = scalar_lea.vmem %s21, 1
        %v3399 = vld [vmem:[%s3398] sm:$0x1]
        %v3401 = vlaneseq
        %v3402 = vshrl.u32 %v3401, 7
        %v3403 = vsub.s32 0, %v3402
        %v3404 = vrot.slane %v3399, %v3403
        %v3410 = vunpack.c.l.b16 %v3394
        %v3411 = vunpack.c.l.b16 %v3395
        %v3412 = vunpack.c.l.b16 %v3396
        %v3413 = vunpack.c.l.b16 %v3397
        %v3414 = vpack.c.b16 %v3411, %v3410
        %v3415 = vpack.c.b16 %v3413, %v3412
        %v3419 = vsel %vm1026, %v3392, 0
        %3421 = vmatprep.subr.bf16.mxu0 0
        %3422 = vmatpush1.bf16.msra.mxu0 0
        %3423 = vmatprep.subr.bf16.mxu0 0
        %3424 = vmatpush1.bf16.msra.mxu0 0
        %3425 = vmatprep.subr.bf16.mxu0 0
        %3426 = vmatpush1.bf16.msra.mxu0 0
        %3427 = vmatprep.subr.bf16.mxu0 0
        %3428 = vmatpush1.bf16.msra.mxu0 0
        %3429 = vmatprep.subr.bf16.mxu0 0
        %3430 = vmatpush1.bf16.msra.mxu0 0
        %3431 = vmatprep.subr.bf16.mxu0 0
        %3432 = vmatpush1.bf16.msra.mxu0 0
        %3433 = vmatprep.subr.bf16.mxu0 0
        %3434 = vmatpush1.bf16.msra.mxu0 %v3415
        %3435 = vmatprep.subr.bf16.mxu0 0
        %3436 = vmatpush1.bf16.msra.mxu0 %v3414
        %3437 = vmatprep.subr.bf16.mxu0 0
        %3438 = vmatpush2.bf16.msra.mxu0 0
        %3439 = vmatprep.subr.bf16.mxu0 0
        %3440 = vmatpush2.bf16.msra.mxu0 0
        %3441 = vmatprep.subr.bf16.mxu0 0
        %3442 = vmatpush2.bf16.msra.mxu0 0
        %3443 = vmatprep.subr.bf16.mxu0 0
        %3444 = vmatpush2.bf16.msra.mxu0 0
        %3445 = vmatprep.subr.bf16.mxu0 0
        %3446 = vmatpush2.bf16.msra.mxu0 0
        %3447 = vmatprep.subr.bf16.mxu0 0
        %3448 = vmatpush2.bf16.msra.mxu0 0
        %3449 = vmatprep.subr.bf16.mxu0 0
        %3450 = vmatpush2.bf16.msra.mxu0 0
        %3451 = vmatprep.subr.bf16.mxu0 0
        %3452 = vmatpush2.bf16.msra.mxu0 0
        %3453 = vmatprep.mubr.bf16.mxu0 0
        %3454 = vmatmul.mubr.bf16.gmra.mxu0 %v3419
        %v3455 = vpop.f32.mrf.mxu0
        %v3456 = vadd.f32 %v3404, %v3455
        %v3457 = vpop.f32.mrf.mxu0
        %v3458 = vpop.f32.mrf.mxu0
        %v3459 = vadd.f32 %v3404, %v3458
        %v3460 = vpop.f32.mrf.mxu0
        %3461 = vdwg.mxu0
        %v3462 = vmul.f32 %v3456, 0.5
        %v3463 = vmul.f32 %v3459, 0.5
        %v3464 = vmul.f32 %v3456, 0.044715
        %v3465 = vmul.f32 %v3459, 0.044715
        %v3466 = vmul.f32 %v3464, %v3456
        %v3467 = vmul.f32 %v3465, %v3459
        %v3468 = vmul.f32 %v3466, %v3456
        %v3469 = vmul.f32 %v3467, %v3459
        %v3470 = vadd.f32 %v3456, %v3468
        %v3471 = vadd.f32 %v3459, %v3469
        %v3472 = vmul.f32 %v3470, 0.7978846
        %v3473 = vmul.f32 %v3471, 0.7978846
        %v3474 = vtanh.pop %v3472
        %v3475 = vtanh.pop %v3473
        %v3476 = vadd.f32 %v3474, 1.0
        %v3477 = vadd.f32 %v3475, 1.0
        %v3478 = vmul.f32 %v3462, %v3476
        %v3479 = vmul.f32 %v3463, %v3477
        %v3480 = vpack.c.bf16 %v3479, %v3478
        %s3481 = scalar_lea.vmem %s23, 64
        %v3482 = vld [vmem:[%s3481] sm:$0xf]
        %v3483 = vld [vmem:[%s3481 + $0x4] sm:$0xf]
        %v3484 = vld [vmem:[%s3481 + $0x8] sm:$0xf]
        %v3485 = vld [vmem:[%s3481 + $0xc] sm:$0xf]
        %v3486 = vld [vmem:[%s3481 + $0x10] sm:$0xf]
        %v3487 = vld [vmem:[%s3481 + $0x14] sm:$0xf]
        %v3488 = vld [vmem:[%s3481 + $0x18] sm:$0xf]
        %v3489 = vld [vmem:[%s3481 + $0x1c] sm:$0xf]
        %v3490 = vld [vmem:[%s3481 + $0x20] sm:$0xf]
        %v3491 = vld [vmem:[%s3481 + $0x24] sm:$0xf]
        %v3492 = vld [vmem:[%s3481 + $0x28] sm:$0xf]
        %v3493 = vld [vmem:[%s3481 + $0x2c] sm:$0xf]
        %v3494 = vld [vmem:[%s3481 + $0x30] sm:$0xf]
        %v3495 = vld [vmem:[%s3481 + $0x34] sm:$0xf]
        %v3496 = vld [vmem:[%s3481 + $0x38] sm:$0xf]
        %v3497 = vld [vmem:[%s3481 + $0x3c] sm:$0xf]
        %v3499 = vlaneseq
        %v3500 = vshrl.u32 %v3499, 7
        %v3501 = vsub.s32 0, %v3500
        %v3502 = vrot.slane %v2323, %v3501
        %v3520 = vunpack.c.l.b16 %v3482
        %v3521 = vunpack.c.l.b16 %v3483
        %v3522 = vunpack.c.l.b16 %v3484
        %v3523 = vunpack.c.l.b16 %v3485
        %v3524 = vunpack.c.l.b16 %v3486
        %v3525 = vunpack.c.l.b16 %v3487
        %v3526 = vunpack.c.l.b16 %v3488
        %v3527 = vunpack.c.l.b16 %v3489
        %v3528 = vunpack.c.l.b16 %v3490
        %v3529 = vunpack.c.l.b16 %v3491
        %v3530 = vunpack.c.l.b16 %v3492
        %v3531 = vunpack.c.l.b16 %v3493
        %v3532 = vunpack.c.l.b16 %v3494
        %v3533 = vunpack.c.l.b16 %v3495
        %v3534 = vunpack.c.l.b16 %v3496
        %v3535 = vunpack.c.l.b16 %v3497
        %v3536 = vpack.c.b16 %v3521, %v3520
        %v3537 = vpack.c.b16 %v3523, %v3522
        %v3538 = vpack.c.b16 %v3525, %v3524
        %v3539 = vpack.c.b16 %v3527, %v3526
        %v3540 = vpack.c.b16 %v3529, %v3528
        %v3541 = vpack.c.b16 %v3531, %v3530
        %v3542 = vpack.c.b16 %v3533, %v3532
        %v3543 = vpack.c.b16 %v3535, %v3534
        %3552 = vmatprep.subr.bf16.mxu0 0
        %3553 = vmatpush1.bf16.msra.mxu0 %v3543
        %3554 = vmatprep.subr.bf16.mxu0 0
        %3555 = vmatpush1.bf16.msra.mxu0 %v3542
        %3556 = vmatprep.subr.bf16.mxu0 0
        %3557 = vmatpush1.bf16.msra.mxu0 %v3541
        %3558 = vmatprep.subr.bf16.mxu0 0
        %3559 = vmatpush1.bf16.msra.mxu0 %v3540
        %3560 = vmatprep.subr.bf16.mxu0 0
        %3561 = vmatpush1.bf16.msra.mxu0 %v3539
        %3562 = vmatprep.subr.bf16.mxu0 0
        %3563 = vmatpush1.bf16.msra.mxu0 %v3538
        %3564 = vmatprep.subr.bf16.mxu0 0
        %3565 = vmatpush1.bf16.msra.mxu0 %v3537
        %3566 = vmatprep.subr.bf16.mxu0 0
        %3567 = vmatpush1.bf16.msra.mxu0 %v3536
        %3568 = vmatprep.subr.bf16.mxu0 0
        %3569 = vmatpush2.bf16.msra.mxu0 0
        %3570 = vmatprep.subr.bf16.mxu0 0
        %3571 = vmatpush2.bf16.msra.mxu0 0
        %3572 = vmatprep.subr.bf16.mxu0 0
        %3573 = vmatpush2.bf16.msra.mxu0 0
        %3574 = vmatprep.subr.bf16.mxu0 0
        %3575 = vmatpush2.bf16.msra.mxu0 0
        %3576 = vmatprep.subr.bf16.mxu0 0
        %3577 = vmatpush2.bf16.msra.mxu0 0
        %3578 = vmatprep.subr.bf16.mxu0 0
        %3579 = vmatpush2.bf16.msra.mxu0 0
        %3580 = vmatprep.subr.bf16.mxu0 0
        %3581 = vmatpush2.bf16.msra.mxu0 0
        %3582 = vmatprep.subr.bf16.mxu0 0
        %3583 = vmatpush2.bf16.msra.mxu0 0
        %3584 = vmatprep.mubr.bf16.mxu0 0
        %3585 = vmatmul.mubr.bf16.gmra.mxu0 %v3480
        %v3586 = vpop.f32.mrf.mxu0
        %v3587 = vadd.f32 %v3502, %v3586
        %v3588 = vpop.f32.mrf.mxu0
        %v3589 = vpop.f32.mrf.mxu0
        %v3590 = vadd.f32 %v3502, %v3589
        %v3591 = vpop.f32.mrf.mxu0
        %3592 = vdwg.mxu0
        %v3594 = vlaneseq
        %v3595 = vshrl.u32 %v3594, 7
        %v3596 = vsub.s32 0, %v3595
        %v3597 = vrot.slane %v2321, %v3596
        %v3599 = vmul.f32 %v3597, %v3587
        %v3600 = vmul.f32 %v3597, %v3590
        %v3601 = vadd.f32 %v3348, %v3599
        %v3602 = vadd.f32 %v3349, %v3600
        %v3603 = vld [vmem:[%s25] sm:$0x1]
        %v3604 = vld [vmem:[%s27] sm:$0x1]
        %v3605 = vsel %vm1026, %v3601, 0.0
        %3606 = vadd.xlane.f32.xlu0 %v3605
        %v3607 = vpop.xlane.xlu0 %3606
        %v3608 = vsel %vm1030, %v3602, 0.0
        %3609 = vadd.xlane.f32.xlu0 %v3608
        %v3610 = vpop.xlane.xlu0 %3609
        %v3611 = vmul.f32 %v3607, %v1034
        %v3612 = vmul.f32 %v3610, %v1034
        %v3613 = vsub.f32 %v3601, %v3611
        %v3614 = vsub.f32 %v3602, %v3612
        %v3615 = vmul.f32 %v3613, %v3613
        %v3616 = vmul.f32 %v3614, %v3614
        %v3617 = vsel %vm1026, %v3615, 0.0
        %3618 = vadd.xlane.f32.xlu0 %v3617
        %v3619 = vpop.xlane.xlu0 %3618
        %v3620 = vsel %vm1030, %v3616, 0.0
        %3621 = vadd.xlane.f32.xlu0 %v3620
        %v3622 = vpop.xlane.xlu0 %3621
        %v3623 = vmul.f32 %v3619, %v1034
        %v3624 = vmul.f32 %v3622, %v1034
        %v3625 = vadd.f32 %v3623, 1e-05
        %v3626 = vadd.f32 %v3624, 1e-05
        %v3627 = vrsqrt.pop %v3625
        %v3628 = vrsqrt.pop %v3626
        %v3629 = vmul.f32 %v3613, %v3627
        %v3630 = vmul.f32 %v3614, %v3628
        %v3632 = vlaneseq
        %v3633 = vshrl.u32 %v3632, 7
        %v3634 = vsub.s32 0, %v3633
        %v3635 = vrot.slane %v3603, %v3634
        %v3637 = vmul.f32 %v3629, %v3635
        %v3638 = vmul.f32 %v3630, %v3635
        %v3640 = vlaneseq
        %v3641 = vshrl.u32 %v3640, 7
        %v3642 = vsub.s32 0, %v3641
        %v3643 = vrot.slane %v3604, %v3642
        %v3645 = vadd.f32 %v3637, %v3643
        %v3646 = vadd.f32 %v3638, %v3643
        %v3647 = vpack.c.bf16 %v3646, %v3645
        %v3648 = vld [vmem:[%s29] sm:$0xf]
        %v3649 = vld [vmem:[%s29 + $0x4] sm:$0xf]
        %v3650 = vld [vmem:[%s29 + $0x8] sm:$0xf]
        %v3651 = vld [vmem:[%s29 + $0xc] sm:$0xf]
        %v3652 = vld [vmem:[%s31] sm:$0x1]
        %v3654 = vlaneseq
        %v3655 = vshrl.u32 %v3654, 7
        %v3656 = vsub.s32 0, %v3655
        %v3657 = vrot.slane %v3652, %v3656
        %v3663 = vunpack.c.l.b16 %v3648
        %v3664 = vunpack.c.l.b16 %v3649
        %v3665 = vunpack.c.l.b16 %v3650
        %v3666 = vunpack.c.l.b16 %v3651
        %v3667 = vpack.c.b16 %v3664, %v3663
        %v3668 = vpack.c.b16 %v3666, %v3665
        %v3672 = vsel %vm1026, %v3647, 0
        %3674 = vmatprep.subr.bf16.mxu0 0
        %3675 = vmatpush1.bf16.msra.mxu0 0
        %3676 = vmatprep.subr.bf16.mxu0 0
        %3677 = vmatpush1.bf16.msra.mxu0 0
        %3678 = vmatprep.subr.bf16.mxu0 0
        %3679 = vmatpush1.bf16.msra.mxu0 0
        %3680 = vmatprep.subr.bf16.mxu0 0
        %3681 = vmatpush1.bf16.msra.mxu0 0
        %3682 = vmatprep.subr.bf16.mxu0 0
        %3683 = vmatpush1.bf16.msra.mxu0 0
        %3684 = vmatprep.subr.bf16.mxu0 0
        %3685 = vmatpush1.bf16.msra.mxu0 0
        %3686 = vmatprep.subr.bf16.mxu0 0
        %3687 = vmatpush1.bf16.msra.mxu0 %v3668
        %3688 = vmatprep.subr.bf16.mxu0 0
        %3689 = vmatpush1.bf16.msra.mxu0 %v3667
        %3690 = vmatprep.subr.bf16.mxu0 0
        %3691 = vmatpush2.bf16.msra.mxu0 0
        %3692 = vmatprep.subr.bf16.mxu0 0
        %3693 = vmatpush2.bf16.msra.mxu0 0
        %3694 = vmatprep.subr.bf16.mxu0 0
        %3695 = vmatpush2.bf16.msra.mxu0 0
        %3696 = vmatprep.subr.bf16.mxu0 0
        %3697 = vmatpush2.bf16.msra.mxu0 0
        %3698 = vmatprep.subr.bf16.mxu0 0
        %3699 = vmatpush2.bf16.msra.mxu0 0
        %3700 = vmatprep.subr.bf16.mxu0 0
        %3701 = vmatpush2.bf16.msra.mxu0 0
        %3702 = vmatprep.subr.bf16.mxu0 0
        %3703 = vmatpush2.bf16.msra.mxu0 0
        %3704 = vmatprep.subr.bf16.mxu0 0
        %3705 = vmatpush2.bf16.msra.mxu0 0
        %3706 = vmatprep.mubr.bf16.mxu0 0
        %3707 = vmatmul.mubr.bf16.gmra.mxu0 %v3672
        %v3708 = vpop.f32.mrf.mxu0
        %v3709 = vadd.f32 %v3657, %v3708
        %v3710 = vpop.f32.mrf.mxu0
        %v3711 = vpop.f32.mrf.mxu0
        %v3712 = vadd.f32 %v3657, %v3711
        %v3713 = vpop.f32.mrf.mxu0
        %3714 = vdwg.mxu0
        %v3715 = vld [vmem:[%s33] sm:$0x1]
        %v3717 = vlaneseq
        %v3718 = vshrl.u32 %v3717, 7
        %v3719 = vsub.s32 0, %v3718
        %v3720 = vrot.slane %v3715, %v3719
        %vm3724 = vcmask 1046528
        %v3725 = vrot.slane %v3709, 1
        %v3726 = vrot.slane %v3712, 1
        %v3727 = vsel %vm3724, %v3725, %v3726
        %v3730 = vsel %vm1004, %v3726, %v3720
        %v3731 = vlaneseq
        %v3732 = vand.u32 %v3731, 127
        %v3733 = vld [vmem:[%s920] sm:$0xff]
        %v3734 = vld [vmem:[%s920 + $0x8] sm:$0xff]
        %3735 = vset.pattern.permute.xlu0 0
        %3736 = vperm.xlu0 %3735, %v3733
        %v3737 = vpop.permute.xlu0 %3736
        %3738 = vset.pattern.permute.xlu0 0
        %3739 = vperm.xlu0 %3738, %v3734
        %v3740 = vpop.permute.xlu0 %3739
        %vm3741 = vcmp.eq.s32.totalorder %v3732, %v3737
        %vm3742 = vcmp.eq.s32.totalorder %v3732, %v3740
        %v3743 = vsel %vm3741, 1, 0
        %v3744 = vsel %vm3742, 1, 0
        %v3745 = vcvt.s32.f32 %v3743
        %v3746 = vcvt.s32.f32 %v3744
        %v3748 = vsel %vm1975, %v3745, 0
        %v3751 = vsel %vm1975, %v3746, 0
        %3753 = vmatprep.subr.mxu0 0.0
        %3754 = vmatpush1.msra.mxu0 0.0
        %3755 = vmatprep.subr.mxu0 0.0
        %3756 = vmatpush1.msra.mxu0 0.0
        %3757 = vmatprep.subr.mxu0 0.0
        %3758 = vmatpush1.msra.mxu0 0.0
        %3759 = vmatprep.subr.mxu0 0.0
        %3760 = vmatpush1.msra.mxu0 0.0
        %3761 = vmatprep.subr.mxu0 0.0
        %3762 = vmatpush1.msra.mxu0 0.0
        %3763 = vmatprep.subr.mxu0 0.0
        %3764 = vmatpush1.msra.mxu0 0.0
        %3765 = vmatprep.subr.mxu0 0.0
        %3766 = vmatpush1.msra.mxu0 0.0
        %3767 = vmatprep.subr.mxu0 0.0
        %3768 = vmatpush1.msra.mxu0 0.0
        %3769 = vmatprep.subr.mxu0 0.0
        %3770 = vmatpush1.msra.mxu0 0.0
        %3771 = vmatprep.subr.mxu0 0.0
        %3772 = vmatpush1.msra.mxu0 0.0
        %3773 = vmatprep.subr.mxu0 0.0
        %3774 = vmatpush1.msra.mxu0 0.0
        %3775 = vmatprep.subr.mxu0 0.0
        %3776 = vmatpush1.msra.mxu0 0.0
        %3777 = vmatprep.subr.mxu0 0.0
        %3778 = vmatpush1.msra.mxu0 0.0
        %3779 = vmatprep.subr.mxu0 0.0
        %3780 = vmatpush1.msra.mxu0 0.0
        %3781 = vmatprep.subr.mxu0 0.0
        %3782 = vmatpush1.msra.mxu0 %v3730
        %3783 = vmatprep.subr.mxu0 0.0
        %3784 = vmatpush1.msra.mxu0 %v3727
        %3785 = vmatprep.subr.mxu0 0.0
        %3786 = vmatpush2.msra.mxu0 0.0
        %3787 = vmatprep.subr.mxu0 0.0
        %3788 = vmatpush2.msra.mxu0 0.0
        %3789 = vmatprep.subr.mxu0 0.0
        %3790 = vmatpush2.msra.mxu0 0.0
        %3791 = vmatprep.subr.mxu0 0.0
        %3792 = vmatpush2.msra.mxu0 0.0
        %3793 = vmatprep.subr.mxu0 0.0
        %3794 = vmatpush2.msra.mxu0 0.0
        %3795 = vmatprep.subr.mxu0 0.0
        %3796 = vmatpush2.msra.mxu0 0.0
        %3797 = vmatprep.subr.mxu0 0.0
        %3798 = vmatpush2.msra.mxu0 0.0
        %3799 = vmatprep.subr.mxu0 0.0
        %3800 = vmatpush2.msra.mxu0 0.0
        %3801 = vmatprep.subr.mxu0 0.0
        %3802 = vmatpush2.msra.mxu0 0.0
        %3803 = vmatprep.subr.mxu0 0.0
        %3804 = vmatpush2.msra.mxu0 0.0
        %3805 = vmatprep.subr.mxu0 0.0
        %3806 = vmatpush2.msra.mxu0 0.0
        %3807 = vmatprep.subr.mxu0 0.0
        %3808 = vmatpush2.msra.mxu0 0.0
        %3809 = vmatprep.subr.mxu0 0.0
        %3810 = vmatpush2.msra.mxu0 0.0
        %3811 = vmatprep.subr.mxu0 0.0
        %3812 = vmatpush2.msra.mxu0 0.0
        %3813 = vmatprep.subr.mxu0 0.0
        %3814 = vmatpush2.msra.mxu0 0.0
        %3815 = vmatprep.subr.mxu0 0.0
        %3816 = vmatpush2.msra.mxu0 0.0
        %3817 = vmatprep.mubr.f32.mxu0 0.0
        %3818 = vmatmul.mubr.f32.gmra.mxu0 %v3748
        %v3819 = vpop.f32.mrf.mxu0
        %v3820 = vadd.f32 0.0, %v3819
        %v3821 = vpop.f32.mrf.mxu0
        %3822 = vmatprep.mubr.f32.mxu0 0.0
        %3823 = vmatmul.mubr.f32.gmra.mxu0 %v3751
        %v3824 = vpop.f32.mrf.mxu0
        %v3825 = vadd.f32 0.0, %v3824
        %v3826 = vpop.f32.mrf.mxu0
        %3827 = vdwg.mxu0
        %v3828 = vld [vmem:[%s35] sm:$0xff]
        %v3829 = vld [vmem:[%s35 + $0x8] sm:$0xff]
        %v3830 = vadd.f32 %v3828, %v3820
        %v3831 = vadd.f32 %v3829, %v3825
        %v3834 = vrot.slane %v3830, 7
        %v3835 = vrot.slane %v3831, 7
        %v3836 = vsel %vm1004, %v3834, %v3835
        %v3840 = vsel %vm1004, %v3709, %v3834
        %v3841 = vld [vmem:[%s37] sm:$0x1]
        %s3842 = scalar_lea.vmem %s37, 1
        %v3843 = vld [vmem:[%s3842] sm:$0x1]
        %s3844 = scalar_lea.vmem %s37, 2
        %v3845 = vld [vmem:[%s3844] sm:$0x1]
        %s3846 = scalar_lea.vmem %s37, 3
        %v3847 = vld [vmem:[%s3846] sm:$0x1]
        %s3848 = scalar_lea.vmem %s37, 4
        %v3849 = vld [vmem:[%s3848] sm:$0x1]
        %s3850 = scalar_lea.vmem %s37, 5
        %v3851 = vld [vmem:[%s3850] sm:$0x1]
        %s3852 = scalar_lea.vmem %s37, 6
        %v3853 = vld [vmem:[%s3852] sm:$0x1]
        %s3854 = scalar_lea.vmem %s37, 7
        %v3855 = vld [vmem:[%s3854] sm:$0x1]
        %v3856 = vsel %vm1975, %v3840, 0.0
        %3857 = vadd.xlane.f32.xlu0 %v3856
        %v3858 = vpop.xlane.xlu0 %3857
        %v3859 = vsel %vm1975, %v3836, 0.0
        %3860 = vadd.xlane.f32.xlu0 %v3859
        %v3861 = vpop.xlane.xlu0 %3860
        %vm3862 = vcmask 122880
        %v3863 = vsel %vm3862, %v3835, 0.0
        %3864 = vadd.xlane.f32.xlu0 %v3863
        %v3865 = vpop.xlane.xlu0 %3864
        %v3866 = vrcp.pop 16.0
        %v3867 = vmul.f32 %v3858, %v3866
        %v3868 = vmul.f32 %v3861, %v3866
        %v3869 = vmul.f32 %v3865, %v3866
        %v3870 = vsub.f32 %v3840, %v3867
        %v3871 = vsub.f32 %v3836, %v3868
        %v3872 = vsub.f32 %v3835, %v3869
        %v3873 = vmul.f32 %v3870, %v3870
        %v3874 = vmul.f32 %v3871, %v3871
        %v3875 = vmul.f32 %v3872, %v3872
        %v3876 = vsel %vm1975, %v3873, 0.0
        %3877 = vadd.xlane.f32.xlu0 %v3876
        %v3878 = vpop.xlane.xlu0 %3877
        %v3879 = vsel %vm1975, %v3874, 0.0
        %3880 = vadd.xlane.f32.xlu0 %v3879
        %v3881 = vpop.xlane.xlu0 %3880
        %v3882 = vsel %vm3862, %v3875, 0.0
        %3883 = vadd.xlane.f32.xlu0 %v3882
        %v3884 = vpop.xlane.xlu0 %3883
        %v3885 = vmul.f32 %v3878, %v3866
        %v3886 = vmul.f32 %v3881, %v3866
        %v3887 = vmul.f32 %v3884, %v3866
        %v3888 = vadd.f32 %v3885, 1e-05
        %v3889 = vadd.f32 %v3886, 1e-05
        %v3890 = vadd.f32 %v3887, 1e-05
        %v3891 = vrsqrt.pop %v3888
        %v3892 = vrsqrt.pop %v3889
        %v3893 = vrsqrt.pop %v3890
        %v3894 = vmul.f32 %v3870, %v3891
        %v3895 = vmul.f32 %v3871, %v3892
        %v3896 = vmul.f32 %v3872, %v3893
        %v3898 = vlaneseq
        %v3899 = vshrl.u32 %v3898, 7
        %v3900 = vsub.s32 0, %v3899
        %v3901 = vrot.slane %v3841, %v3900
        %v3903 = vmul.f32 %v3894, %v3901
        %v3904 = vmul.f32 %v3895, %v3901
        %v3905 = vmul.f32 %v3896, %v3901
        %v3907 = vlaneseq
        %v3908 = vshrl.u32 %v3907, 7
        %v3909 = vsub.s32 0, %v3908
        %v3910 = vrot.slane %v3843, %v3909
        %v3912 = vadd.f32 %v3903, %v3910
        %v3913 = vadd.f32 %v3904, %v3910
        %v3914 = vadd.f32 %v3905, %v3910
        %v3915 = vpack.c.bf16 %v3913, %v3912
        %v3916 = vpack.c.bf16 %v3914, %v3914
        %v3917 = vld [vmem:[%s39] sm:$0xf]
        %v3918 = vld [vmem:[%s39 + $0x4] sm:$0xf]
        %v3919 = vld [vmem:[%s41] sm:$0x1]
        %v3921 = vlaneseq
        %v3922 = vshrl.u32 %v3921, 7
        %v3923 = vsub.s32 0, %v3922
        %v3924 = vrot.slane %v3919, %v3923
        %v3928 = vunpack.c.l.b16 %v3917
        %v3929 = vunpack.c.l.b16 %v3918
        %v3930 = vpack.c.b16 %v3929, %v3928
        %v3933 = vsel %vm1975, %v3915, 0
        %v3936 = vsel %vm1975, %v3916, 0
        %3938 = vmatprep.subr.bf16.mxu0 0
        %3939 = vmatpush1.bf16.msra.mxu0 0
        %3940 = vmatprep.subr.bf16.mxu0 0
        %3941 = vmatpush1.bf16.msra.mxu0 0
        %3942 = vmatprep.subr.bf16.mxu0 0
        %3943 = vmatpush1.bf16.msra.mxu0 0
        %3944 = vmatprep.subr.bf16.mxu0 0
        %3945 = vmatpush1.bf16.msra.mxu0 0
        %3946 = vmatprep.subr.bf16.mxu0 0
        %3947 = vmatpush1.bf16.msra.mxu0 0
        %3948 = vmatprep.subr.bf16.mxu0 0
        %3949 = vmatpush1.bf16.msra.mxu0 0
        %3950 = vmatprep.subr.bf16.mxu0 0
        %3951 = vmatpush1.bf16.msra.mxu0 0
        %3952 = vmatprep.subr.bf16.mxu0 0
        %3953 = vmatpush1.bf16.msra.mxu0 %v3930
        %3954 = vmatprep.subr.bf16.mxu0 0
        %3955 = vmatpush2.bf16.msra.mxu0 0
        %3956 = vmatprep.subr.bf16.mxu0 0
        %3957 = vmatpush2.bf16.msra.mxu0 0
        %3958 = vmatprep.subr.bf16.mxu0 0
        %3959 = vmatpush2.bf16.msra.mxu0 0
        %3960 = vmatprep.subr.bf16.mxu0 0
        %3961 = vmatpush2.bf16.msra.mxu0 0
        %3962 = vmatprep.subr.bf16.mxu0 0
        %3963 = vmatpush2.bf16.msra.mxu0 0
        %3964 = vmatprep.subr.bf16.mxu0 0
        %3965 = vmatpush2.bf16.msra.mxu0 0
        %3966 = vmatprep.subr.bf16.mxu0 0
        %3967 = vmatpush2.bf16.msra.mxu0 0
        %3968 = vmatprep.subr.bf16.mxu0 0
        %3969 = vmatpush2.bf16.msra.mxu0 0
        %3970 = vmatprep.mubr.bf16.mxu0 0
        %3971 = vmatmul.mubr.bf16.gmra.mxu0 %v3933
        %v3972 = vpop.f32.mrf.mxu0
        %v3973 = vadd.f32 %v3924, %v3972
        %v3974 = vpop.f32.mrf.mxu0
        %v3975 = vpop.f32.mrf.mxu0
        %v3976 = vadd.f32 %v3924, %v3975
        %v3977 = vpop.f32.mrf.mxu0
        %3978 = vmatprep.mubr.bf16.mxu0 0
        %3979 = vmatmul.mubr.bf16.gmra.mxu0 %v3936
        %v3980 = vpop.f32.mrf.mxu0
        %v3981 = vadd.f32 %v3924, %v3980
        %v3982 = vpop.f32.mrf.mxu0
        %v3983 = vpop.f32.mrf.mxu0
        %v3984 = vpop.f32.mrf.mxu0
        %3985 = vdwg.mxu0
        %v3986 = vmul.f32 %v3973, 0.5
        %v3987 = vmul.f32 %v3976, 0.5
        %v3988 = vmul.f32 %v3981, 0.5
        %3992 = vrot.lane.b32.xlu0 %v3973, 112
        %v3993 = vpop.permute.xlu0 %3992
        %3994 = vrot.lane.b32.xlu0 %v3976, 112
        %v3995 = vpop.permute.xlu0 %3994
        %3996 = vrot.lane.b32.xlu0 %v3981, 112
        %v3997 = vpop.permute.xlu0 %3996
        %vm3998 = vcmask 31744
        %v4000 = vsel %vm3998, %v3986, 0
        %v4003 = vsel %vm3998, %v3987, 0
        %v4006 = vsel %vm3998, %v3988, 0
        %v4008 = vsel %vm3998, %v3993, 0
        %v4010 = vsel %vm3998, %v3995, 0
        %v4012 = vsel %vm3998, %v3997, 0
        %4014 = vmatprep.subr.mxu0 0.0
        %4015 = vmatpush1.xpose.msra.mxu0 0.0
        %4016 = vmatprep.subr.mxu0 0.0
        %4017 = vmatpush1.xpose.msra.mxu0 0.0
        %4018 = vmatprep.subr.mxu0 0.0
        %4019 = vmatpush1.xpose.msra.mxu0 0.0
        %4020 = vmatprep.subr.mxu0 0.0
        %4021 = vmatpush1.xpose.msra.mxu0 0.0
        %4022 = vmatprep.subr.mxu0 0.0
        %4023 = vmatpush1.xpose.msra.mxu0 0.0
        %4024 = vmatprep.subr.mxu0 0.0
        %4025 = vmatpush1.xpose.msra.mxu0 0.0
        %4026 = vmatprep.subr.mxu0 0.0
        %4027 = vmatpush1.xpose.msra.mxu0 0.0
        %4028 = vmatprep.subr.mxu0 0.0
        %4029 = vmatpush1.xpose.msra.mxu0 0.0
        %4030 = vmatprep.subr.mxu0 0.0
        %4031 = vmatpush1.xpose.msra.mxu0 0.0
        %4032 = vmatprep.subr.mxu0 0.0
        %4033 = vmatpush1.xpose.msra.mxu0 0.0
        %4034 = vmatprep.subr.mxu0 0.0
        %4035 = vmatpush1.xpose.msra.mxu0 0.0
        %4036 = vmatprep.subr.mxu0 0.0
        %4037 = vmatpush1.xpose.msra.mxu0 0.0
        %4038 = vmatprep.subr.mxu0 0.0
        %4039 = vmatpush1.xpose.msra.mxu0 0.0
        %4040 = vmatprep.subr.mxu0 0.0
        %4041 = vmatpush1.xpose.msra.mxu0 %v4012
        %4042 = vmatprep.subr.mxu0 0.0
        %4043 = vmatpush1.xpose.msra.mxu0 %v4010
        %4044 = vmatprep.subr.mxu0 0.0
        %4045 = vmatpush1.xpose.msra.mxu0 %v4008
        %4046 = vmatprep.subr.mxu0 0.0
        %4047 = vmatpush2.xpose.msra.mxu0 0.0
        %4048 = vmatprep.subr.mxu0 0.0
        %4049 = vmatpush2.xpose.msra.mxu0 0.0
        %4050 = vmatprep.subr.mxu0 0.0
        %4051 = vmatpush2.xpose.msra.mxu0 0.0
        %4052 = vmatprep.subr.mxu0 0.0
        %4053 = vmatpush2.xpose.msra.mxu0 0.0
        %4054 = vmatprep.subr.mxu0 0.0
        %4055 = vmatpush2.xpose.msra.mxu0 0.0
        %4056 = vmatprep.subr.mxu0 0.0
        %4057 = vmatpush2.xpose.msra.mxu0 0.0
        %4058 = vmatprep.subr.mxu0 0.0
        %4059 = vmatpush2.xpose.msra.mxu0 0.0
        %4060 = vmatprep.subr.mxu0 0.0
        %4061 = vmatpush2.xpose.msra.mxu0 0.0
        %4062 = vmatprep.subr.mxu0 0.0
        %4063 = vmatpush2.xpose.msra.mxu0 0.0
        %4064 = vmatprep.subr.mxu0 0.0
        %4065 = vmatpush2.xpose.msra.mxu0 0.0
        %4066 = vmatprep.subr.mxu0 0.0
        %4067 = vmatpush2.xpose.msra.mxu0 0.0
        %4068 = vmatprep.subr.mxu0 0.0
        %4069 = vmatpush2.xpose.msra.mxu0 0.0
        %4070 = vmatprep.subr.mxu0 0.0
        %4071 = vmatpush2.xpose.msra.mxu0 0.0
        %4072 = vmatprep.subr.mxu0 0.0
        %4073 = vmatpush2.xpose.msra.mxu0 0.0
        %4074 = vmatprep.subr.mxu0 0.0
        %4075 = vmatpush2.xpose.msra.mxu0 0.0
        %4076 = vmatprep.subr.mxu0 0.0
        %4077 = vmatpush2.xpose.msra.mxu0 0.0
        %4078 = vmatprep.mubr.f32.mxu0 0.0
        %4079 = vmatmul.mubr.f32.gmra.mxu0 %v4000
        %v4080 = vpop.f32.mrf.mxu0
        %v4081 = vadd.f32 0.0, %v4080
        %v4082 = vpop.f32.mrf.mxu0
        %4083 = vmatprep.mubr.f32.mxu0 0.0
        %4084 = vmatmul.mubr.f32.gmra.mxu0 %v4003
        %v4085 = vpop.f32.mrf.mxu0
        %v4086 = vadd.f32 0.0, %v4085
        %v4087 = vpop.f32.mrf.mxu0
        %4088 = vmatprep.mubr.f32.mxu0 0.0
        %4089 = vmatmul.mubr.f32.gmra.mxu0 %v4006
        %v4090 = vpop.f32.mrf.mxu0
        %v4091 = vadd.f32 0.0, %v4090
        %v4092 = vpop.f32.mrf.mxu0
        %4093 = vdwg.mxu0
        %vm4094 = vcmask 138240
        %v4095 = vsel %vm4094, %v4081, -inf
        %4096 = vmax.xlane.f32.xlu0 %v4095
        %v4097 = vpop.xlane.xlu0 %4096
        %v4098 = vsel %vm4094, %v4086, -inf
        %4099 = vmax.xlane.f32.xlu0 %v4098
        %v4100 = vpop.xlane.xlu0 %4099
        %vm4101 = vcmask 131072
        %v4102 = vsel %vm4101, %v4091, -inf
        %4103 = vmax.xlane.f32.xlu0 %v4102
        %v4104 = vpop.xlane.xlu0 %4103
        %v4105 = vsub.f32 %v4081, %v4097
        %v4106 = vsub.f32 %v4086, %v4100
        %v4107 = vsub.f32 %v4091, %v4104
        %v4108 = vmul.f32 %v4105, 1.442695
        %v4109 = vpow.pop %v4108
        %v4110 = vmul.f32 %v4106, 1.442695
        %v4111 = vpow.pop %v4110
        %v4112 = vmul.f32 %v4107, 1.442695
        %v4113 = vpow.pop %v4112
        %v4114 = vsel %vm4094, %v4109, 0.0
        %4115 = vadd.xlane.f32.xlu0 %v4114
        %v4116 = vpop.xlane.xlu0 %4115
        %v4117 = vsel %vm4094, %v4111, 0.0
        %4118 = vadd.xlane.f32.xlu0 %v4117
        %v4119 = vpop.xlane.xlu0 %4118
        %v4120 = vsel %vm4101, %v4113, 0.0
        %4121 = vadd.xlane.f32.xlu0 %v4120
        %v4122 = vpop.xlane.xlu0 %4121
        %v4123 = vrcp.pop %v4116
        %v4124 = vrcp.pop %v4119
        %v4125 = vrcp.pop %v4122
        %v4126 = vmul.f32 %v4109, %v4123
        %v4127 = vmul.f32 %v4111, %v4124
        %v4128 = vmul.f32 %v4113, %v4125
        %4129 = vrot.lane.b32.xlu0 %v3973, 96
        %v4130 = vpop.permute.xlu0 %4129
        %4131 = vrot.lane.b32.xlu0 %v3976, 96
        %v4132 = vpop.permute.xlu0 %4131
        %4133 = vrot.lane.b32.xlu0 %v3981, 96
        %v4134 = vpop.permute.xlu0 %4133
        %v4138 = vsel %vm4094, %v4126, 0
        %v4141 = vsel %vm4094, %v4127, 0
        %v4144 = vsel %vm4094, %v4128, 0
        %v4146 = vsel %vm1004, %v4134, 0
        %4148 = vmatprep.subr.mxu0 0.0
        %4149 = vmatpush1.msra.mxu0 0.0
        %4150 = vmatprep.subr.mxu0 0.0
        %4151 = vmatpush1.msra.mxu0 0.0
        %4152 = vmatprep.subr.mxu0 0.0
        %4153 = vmatpush1.msra.mxu0 0.0
        %4154 = vmatprep.subr.mxu0 0.0
        %4155 = vmatpush1.msra.mxu0 0.0
        %4156 = vmatprep.subr.mxu0 0.0
        %4157 = vmatpush1.msra.mxu0 0.0
        %4158 = vmatprep.subr.mxu0 0.0
        %4159 = vmatpush1.msra.mxu0 0.0
        %4160 = vmatprep.subr.mxu0 0.0
        %4161 = vmatpush1.msra.mxu0 0.0
        %4162 = vmatprep.subr.mxu0 0.0
        %4163 = vmatpush1.msra.mxu0 0.0
        %4164 = vmatprep.subr.mxu0 0.0
        %4165 = vmatpush1.msra.mxu0 0.0
        %4166 = vmatprep.subr.mxu0 0.0
        %4167 = vmatpush1.msra.mxu0 0.0
        %4168 = vmatprep.subr.mxu0 0.0
        %4169 = vmatpush1.msra.mxu0 0.0
        %4170 = vmatprep.subr.mxu0 0.0
        %4171 = vmatpush1.msra.mxu0 0.0
        %4172 = vmatprep.subr.mxu0 0.0
        %4173 = vmatpush1.msra.mxu0 0.0
        %4174 = vmatprep.subr.mxu0 0.0
        %4175 = vmatpush1.msra.mxu0 %v4146
        %4176 = vmatprep.subr.mxu0 0.0
        %4177 = vmatpush1.msra.mxu0 %v4132
        %4178 = vmatprep.subr.mxu0 0.0
        %4179 = vmatpush1.msra.mxu0 %v4130
        %4180 = vmatprep.subr.mxu0 0.0
        %4181 = vmatpush2.msra.mxu0 0.0
        %4182 = vmatprep.subr.mxu0 0.0
        %4183 = vmatpush2.msra.mxu0 0.0
        %4184 = vmatprep.subr.mxu0 0.0
        %4185 = vmatpush2.msra.mxu0 0.0
        %4186 = vmatprep.subr.mxu0 0.0
        %4187 = vmatpush2.msra.mxu0 0.0
        %4188 = vmatprep.subr.mxu0 0.0
        %4189 = vmatpush2.msra.mxu0 0.0
        %4190 = vmatprep.subr.mxu0 0.0
        %4191 = vmatpush2.msra.mxu0 0.0
        %4192 = vmatprep.subr.mxu0 0.0
        %4193 = vmatpush2.msra.mxu0 0.0
        %4194 = vmatprep.subr.mxu0 0.0
        %4195 = vmatpush2.msra.mxu0 0.0
        %4196 = vmatprep.subr.mxu0 0.0
        %4197 = vmatpush2.msra.mxu0 0.0
        %4198 = vmatprep.subr.mxu0 0.0
        %4199 = vmatpush2.msra.mxu0 0.0
        %4200 = vmatprep.subr.mxu0 0.0
        %4201 = vmatpush2.msra.mxu0 0.0
        %4202 = vmatprep.subr.mxu0 0.0
        %4203 = vmatpush2.msra.mxu0 0.0
        %4204 = vmatprep.subr.mxu0 0.0
        %4205 = vmatpush2.msra.mxu0 0.0
        %4206 = vmatprep.subr.mxu0 0.0
        %4207 = vmatpush2.msra.mxu0 0.0
        %4208 = vmatprep.subr.mxu0 0.0
        %4209 = vmatpush2.msra.mxu0 0.0
        %4210 = vmatprep.subr.mxu0 0.0
        %4211 = vmatpush2.msra.mxu0 0.0
        %4212 = vmatprep.mubr.f32.mxu0 0.0
        %4213 = vmatmul.mubr.f32.gmra.mxu0 %v4138
        %v4214 = vpop.f32.mrf.mxu0
        %v4215 = vadd.f32 0.0, %v4214
        %v4216 = vpop.f32.mrf.mxu0
        %4217 = vmatprep.mubr.f32.mxu0 0.0
        %4218 = vmatmul.mubr.f32.gmra.mxu0 %v4141
        %v4219 = vpop.f32.mrf.mxu0
        %v4220 = vadd.f32 0.0, %v4219
        %v4221 = vpop.f32.mrf.mxu0
        %4222 = vmatprep.mubr.f32.mxu0 0.0
        %4223 = vmatmul.mubr.f32.gmra.mxu0 %v4144
        %v4224 = vpop.f32.mrf.mxu0
        %v4225 = vadd.f32 0.0, %v4224
        %v4226 = vpop.f32.mrf.mxu0
        %4227 = vdwg.mxu0
        %4228 = vrot.lane.b32.xlu0 %v3986, 124
        %v4229 = vpop.permute.xlu0 %4228
        %4230 = vrot.lane.b32.xlu0 %v3987, 124
        %v4231 = vpop.permute.xlu0 %4230
        %4232 = vrot.lane.b32.xlu0 %v3988, 124
        %v4233 = vpop.permute.xlu0 %4232
        %4234 = vrot.lane.b32.xlu0 %v3973, 108
        %v4235 = vpop.permute.xlu0 %4234
        %4236 = vrot.lane.b32.xlu0 %v3976, 108
        %v4237 = vpop.permute.xlu0 %4236
        %4238 = vrot.lane.b32.xlu0 %v3981, 108
        %v4239 = vpop.permute.xlu0 %4238
        %v4240 = vsel %vm3998, %v4229, 0
        %v4242 = vsel %vm3998, %v4231, 0
        %v4244 = vsel %vm3998, %v4233, 0
        %v4246 = vsel %vm3998, %v4235, 0
        %v4248 = vsel %vm3998, %v4237, 0
        %v4250 = vsel %vm3998, %v4239, 0
        %4252 = vmatprep.subr.mxu0 0.0
        %4253 = vmatpush1.xpose.msra.mxu0 0.0
        %4254 = vmatprep.subr.mxu0 0.0
        %4255 = vmatpush1.xpose.msra.mxu0 0.0
        %4256 = vmatprep.subr.mxu0 0.0
        %4257 = vmatpush1.xpose.msra.mxu0 0.0
        %4258 = vmatprep.subr.mxu0 0.0
        %4259 = vmatpush1.xpose.msra.mxu0 0.0
        %4260 = vmatprep.subr.mxu0 0.0
        %4261 = vmatpush1.xpose.msra.mxu0 0.0
        %4262 = vmatprep.subr.mxu0 0.0
        %4263 = vmatpush1.xpose.msra.mxu0 0.0
        %4264 = vmatprep.subr.mxu0 0.0
        %4265 = vmatpush1.xpose.msra.mxu0 0.0
        %4266 = vmatprep.subr.mxu0 0.0
        %4267 = vmatpush1.xpose.msra.mxu0 0.0
        %4268 = vmatprep.subr.mxu0 0.0
        %4269 = vmatpush1.xpose.msra.mxu0 0.0
        %4270 = vmatprep.subr.mxu0 0.0
        %4271 = vmatpush1.xpose.msra.mxu0 0.0
        %4272 = vmatprep.subr.mxu0 0.0
        %4273 = vmatpush1.xpose.msra.mxu0 0.0
        %4274 = vmatprep.subr.mxu0 0.0
        %4275 = vmatpush1.xpose.msra.mxu0 0.0
        %4276 = vmatprep.subr.mxu0 0.0
        %4277 = vmatpush1.xpose.msra.mxu0 0.0
        %4278 = vmatprep.subr.mxu0 0.0
        %4279 = vmatpush1.xpose.msra.mxu0 %v4250
        %4280 = vmatprep.subr.mxu0 0.0
        %4281 = vmatpush1.xpose.msra.mxu0 %v4248
        %4282 = vmatprep.subr.mxu0 0.0
        %4283 = vmatpush1.xpose.msra.mxu0 %v4246
        %4284 = vmatprep.subr.mxu0 0.0
        %4285 = vmatpush2.xpose.msra.mxu0 0.0
        %4286 = vmatprep.subr.mxu0 0.0
        %4287 = vmatpush2.xpose.msra.mxu0 0.0
        %4288 = vmatprep.subr.mxu0 0.0
        %4289 = vmatpush2.xpose.msra.mxu0 0.0
        %4290 = vmatprep.subr.mxu0 0.0
        %4291 = vmatpush2.xpose.msra.mxu0 0.0
        %4292 = vmatprep.subr.mxu0 0.0
        %4293 = vmatpush2.xpose.msra.mxu0 0.0
        %4294 = vmatprep.subr.mxu0 0.0
        %4295 = vmatpush2.xpose.msra.mxu0 0.0
        %4296 = vmatprep.subr.mxu0 0.0
        %4297 = vmatpush2.xpose.msra.mxu0 0.0
        %4298 = vmatprep.subr.mxu0 0.0
        %4299 = vmatpush2.xpose.msra.mxu0 0.0
        %4300 = vmatprep.subr.mxu0 0.0
        %4301 = vmatpush2.xpose.msra.mxu0 0.0
        %4302 = vmatprep.subr.mxu0 0.0
        %4303 = vmatpush2.xpose.msra.mxu0 0.0
        %4304 = vmatprep.subr.mxu0 0.0
        %4305 = vmatpush2.xpose.msra.mxu0 0.0
        %4306 = vmatprep.subr.mxu0 0.0
        %4307 = vmatpush2.xpose.msra.mxu0 0.0
        %4308 = vmatprep.subr.mxu0 0.0
        %4309 = vmatpush2.xpose.msra.mxu0 0.0
        %4310 = vmatprep.subr.mxu0 0.0
        %4311 = vmatpush2.xpose.msra.mxu0 0.0
        %4312 = vmatprep.subr.mxu0 0.0
        %4313 = vmatpush2.xpose.msra.mxu0 0.0
        %4314 = vmatprep.subr.mxu0 0.0
        %4315 = vmatpush2.xpose.msra.mxu0 0.0
        %4316 = vmatprep.mubr.f32.mxu0 0.0
        %4317 = vmatmul.mubr.f32.gmra.mxu0 %v4240
        %v4318 = vpop.f32.mrf.mxu0
        %v4319 = vadd.f32 0.0, %v4318
        %v4320 = vpop.f32.mrf.mxu0
        %4321 = vmatprep.mubr.f32.mxu0 0.0
        %4322 = vmatmul.mubr.f32.gmra.mxu0 %v4242
        %v4323 = vpop.f32.mrf.mxu0
        %v4324 = vadd.f32 0.0, %v4323
        %v4325 = vpop.f32.mrf.mxu0
        %4326 = vmatprep.mubr.f32.mxu0 0.0
        %4327 = vmatmul.mubr.f32.gmra.mxu0 %v4244
        %v4328 = vpop.f32.mrf.mxu0
        %v4329 = vadd.f32 0.0, %v4328
        %v4330 = vpop.f32.mrf.mxu0
        %4331 = vdwg.mxu0
        %v4332 = vsel %vm4094, %v4319, -inf
        %4333 = vmax.xlane.f32.xlu0 %v4332
        %v4334 = vpop.xlane.xlu0 %4333
        %v4335 = vsel %vm4094, %v4324, -inf
        %4336 = vmax.xlane.f32.xlu0 %v4335
        %v4337 = vpop.xlane.xlu0 %4336
        %v4338 = vsel %vm4101, %v4329, -inf
        %4339 = vmax.xlane.f32.xlu0 %v4338
        %v4340 = vpop.xlane.xlu0 %4339
        %v4341 = vsub.f32 %v4319, %v4334
        %v4342 = vsub.f32 %v4324, %v4337
        %v4343 = vsub.f32 %v4329, %v4340
        %v4344 = vmul.f32 %v4341, 1.442695
        %v4345 = vpow.pop %v4344
        %v4346 = vmul.f32 %v4342, 1.442695
        %v4347 = vpow.pop %v4346
        %v4348 = vmul.f32 %v4343, 1.442695
        %v4349 = vpow.pop %v4348
        %v4350 = vsel %vm4094, %v4345, 0.0
        %4351 = vadd.xlane.f32.xlu0 %v4350
        %v4352 = vpop.xlane.xlu0 %4351
        %v4353 = vsel %vm4094, %v4347, 0.0
        %4354 = vadd.xlane.f32.xlu0 %v4353
        %v4355 = vpop.xlane.xlu0 %4354
        %v4356 = vsel %vm4101, %v4349, 0.0
        %4357 = vadd.xlane.f32.xlu0 %v4356
        %v4358 = vpop.xlane.xlu0 %4357
        %v4359 = vrcp.pop %v4352
        %v4360 = vrcp.pop %v4355
        %v4361 = vrcp.pop %v4358
        %v4362 = vmul.f32 %v4345, %v4359
        %v4363 = vmul.f32 %v4347, %v4360
        %v4364 = vmul.f32 %v4349, %v4361
        %4365 = vrot.lane.b32.xlu0 %v3973, 92
        %v4366 = vpop.permute.xlu0 %4365
        %4367 = vrot.lane.b32.xlu0 %v3976, 92
        %v4368 = vpop.permute.xlu0 %4367
        %4369 = vrot.lane.b32.xlu0 %v3981, 92
        %v4370 = vpop.permute.xlu0 %4369
        %v4374 = vsel %vm4094, %v4362, 0
        %v4377 = vsel %vm4094, %v4363, 0
        %v4380 = vsel %vm4094, %v4364, 0
        %v4382 = vsel %vm1004, %v4370, 0
        %4384 = vmatprep.subr.mxu0 0.0
        %4385 = vmatpush1.msra.mxu0 0.0
        %4386 = vmatprep.subr.mxu0 0.0
        %4387 = vmatpush1.msra.mxu0 0.0
        %4388 = vmatprep.subr.mxu0 0.0
        %4389 = vmatpush1.msra.mxu0 0.0
        %4390 = vmatprep.subr.mxu0 0.0
        %4391 = vmatpush1.msra.mxu0 0.0
        %4392 = vmatprep.subr.mxu0 0.0
        %4393 = vmatpush1.msra.mxu0 0.0
        %4394 = vmatprep.subr.mxu0 0.0
        %4395 = vmatpush1.msra.mxu0 0.0
        %4396 = vmatprep.subr.mxu0 0.0
        %4397 = vmatpush1.msra.mxu0 0.0
        %4398 = vmatprep.subr.mxu0 0.0
        %4399 = vmatpush1.msra.mxu0 0.0
        %4400 = vmatprep.subr.mxu0 0.0
        %4401 = vmatpush1.msra.mxu0 0.0
        %4402 = vmatprep.subr.mxu0 0.0
        %4403 = vmatpush1.msra.mxu0 0.0
        %4404 = vmatprep.subr.mxu0 0.0
        %4405 = vmatpush1.msra.mxu0 0.0
        %4406 = vmatprep.subr.mxu0 0.0
        %4407 = vmatpush1.msra.mxu0 0.0
        %4408 = vmatprep.subr.mxu0 0.0
        %4409 = vmatpush1.msra.mxu0 0.0
        %4410 = vmatprep.subr.mxu0 0.0
        %4411 = vmatpush1.msra.mxu0 %v4382
        %4412 = vmatprep.subr.mxu0 0.0
        %4413 = vmatpush1.msra.mxu0 %v4368
        %4414 = vmatprep.subr.mxu0 0.0
        %4415 = vmatpush1.msra.mxu0 %v4366
        %4416 = vmatprep.subr.mxu0 0.0
        %4417 = vmatpush2.msra.mxu0 0.0
        %4418 = vmatprep.subr.mxu0 0.0
        %4419 = vmatpush2.msra.mxu0 0.0
        %4420 = vmatprep.subr.mxu0 0.0
        %4421 = vmatpush2.msra.mxu0 0.0
        %4422 = vmatprep.subr.mxu0 0.0
        %4423 = vmatpush2.msra.mxu0 0.0
        %4424 = vmatprep.subr.mxu0 0.0
        %4425 = vmatpush2.msra.mxu0 0.0
        %4426 = vmatprep.subr.mxu0 0.0
        %4427 = vmatpush2.msra.mxu0 0.0
        %4428 = vmatprep.subr.mxu0 0.0
        %4429 = vmatpush2.msra.mxu0 0.0
        %4430 = vmatprep.subr.mxu0 0.0
        %4431 = vmatpush2.msra.mxu0 0.0
        %4432 = vmatprep.subr.mxu0 0.0
        %4433 = vmatpush2.msra.mxu0 0.0
        %4434 = vmatprep.subr.mxu0 0.0
        %4435 = vmatpush2.msra.mxu0 0.0
        %4436 = vmatprep.subr.mxu0 0.0
        %4437 = vmatpush2.msra.mxu0 0.0
        %4438 = vmatprep.subr.mxu0 0.0
        %4439 = vmatpush2.msra.mxu0 0.0
        %4440 = vmatprep.subr.mxu0 0.0
        %4441 = vmatpush2.msra.mxu0 0.0
        %4442 = vmatprep.subr.mxu0 0.0
        %4443 = vmatpush2.msra.mxu0 0.0
        %4444 = vmatprep.subr.mxu0 0.0
        %4445 = vmatpush2.msra.mxu0 0.0
        %4446 = vmatprep.subr.mxu0 0.0
        %4447 = vmatpush2.msra.mxu0 0.0
        %4448 = vmatprep.mubr.f32.mxu0 0.0
        %4449 = vmatmul.mubr.f32.gmra.mxu0 %v4374
        %v4450 = vpop.f32.mrf.mxu0
        %v4451 = vadd.f32 0.0, %v4450
        %v4452 = vpop.f32.mrf.mxu0
        %4453 = vmatprep.mubr.f32.mxu0 0.0
        %4454 = vmatmul.mubr.f32.gmra.mxu0 %v4377
        %v4455 = vpop.f32.mrf.mxu0
        %v4456 = vadd.f32 0.0, %v4455
        %v4457 = vpop.f32.mrf.mxu0
        %4458 = vmatprep.mubr.f32.mxu0 0.0
        %4459 = vmatmul.mubr.f32.gmra.mxu0 %v4380
        %v4460 = vpop.f32.mrf.mxu0
        %v4461 = vadd.f32 0.0, %v4460
        %v4462 = vpop.f32.mrf.mxu0
        %4463 = vdwg.mxu0
        %4464 = vrot.lane.b32.xlu0 %v3986, 120
        %v4465 = vpop.permute.xlu0 %4464
        %4466 = vrot.lane.b32.xlu0 %v3987, 120
        %v4467 = vpop.permute.xlu0 %4466
        %4468 = vrot.lane.b32.xlu0 %v3988, 120
        %v4469 = vpop.permute.xlu0 %4468
        %4470 = vrot.lane.b32.xlu0 %v3973, 104
        %v4471 = vpop.permute.xlu0 %4470
        %4472 = vrot.lane.b32.xlu0 %v3976, 104
        %v4473 = vpop.permute.xlu0 %4472
        %4474 = vrot.lane.b32.xlu0 %v3981, 104
        %v4475 = vpop.permute.xlu0 %4474
        %v4476 = vsel %vm3998, %v4465, 0
        %v4478 = vsel %vm3998, %v4467, 0
        %v4480 = vsel %vm3998, %v4469, 0
        %v4482 = vsel %vm3998, %v4471, 0
        %v4484 = vsel %vm3998, %v4473, 0
        %v4486 = vsel %vm3998, %v4475, 0
        %4488 = vmatprep.subr.mxu0 0.0
        %4489 = vmatpush1.xpose.msra.mxu0 0.0
        %4490 = vmatprep.subr.mxu0 0.0
        %4491 = vmatpush1.xpose.msra.mxu0 0.0
        %4492 = vmatprep.subr.mxu0 0.0
        %4493 = vmatpush1.xpose.msra.mxu0 0.0
        %4494 = vmatprep.subr.mxu0 0.0
        %4495 = vmatpush1.xpose.msra.mxu0 0.0
        %4496 = vmatprep.subr.mxu0 0.0
        %4497 = vmatpush1.xpose.msra.mxu0 0.0
        %4498 = vmatprep.subr.mxu0 0.0
        %4499 = vmatpush1.xpose.msra.mxu0 0.0
        %4500 = vmatprep.subr.mxu0 0.0
        %4501 = vmatpush1.xpose.msra.mxu0 0.0
        %4502 = vmatprep.subr.mxu0 0.0
        %4503 = vmatpush1.xpose.msra.mxu0 0.0
        %4504 = vmatprep.subr.mxu0 0.0
        %4505 = vmatpush1.xpose.msra.mxu0 0.0
        %4506 = vmatprep.subr.mxu0 0.0
        %4507 = vmatpush1.xpose.msra.mxu0 0.0
        %4508 = vmatprep.subr.mxu0 0.0
        %4509 = vmatpush1.xpose.msra.mxu0 0.0
        %4510 = vmatprep.subr.mxu0 0.0
        %4511 = vmatpush1.xpose.msra.mxu0 0.0
        %4512 = vmatprep.subr.mxu0 0.0
        %4513 = vmatpush1.xpose.msra.mxu0 0.0
        %4514 = vmatprep.subr.mxu0 0.0
        %4515 = vmatpush1.xpose.msra.mxu0 %v4486
        %4516 = vmatprep.subr.mxu0 0.0
        %4517 = vmatpush1.xpose.msra.mxu0 %v4484
        %4518 = vmatprep.subr.mxu0 0.0
        %4519 = vmatpush1.xpose.msra.mxu0 %v4482
        %4520 = vmatprep.subr.mxu0 0.0
        %4521 = vmatpush2.xpose.msra.mxu0 0.0
        %4522 = vmatprep.subr.mxu0 0.0
        %4523 = vmatpush2.xpose.msra.mxu0 0.0
        %4524 = vmatprep.subr.mxu0 0.0
        %4525 = vmatpush2.xpose.msra.mxu0 0.0
        %4526 = vmatprep.subr.mxu0 0.0
        %4527 = vmatpush2.xpose.msra.mxu0 0.0
        %4528 = vmatprep.subr.mxu0 0.0
        %4529 = vmatpush2.xpose.msra.mxu0 0.0
        %4530 = vmatprep.subr.mxu0 0.0
        %4531 = vmatpush2.xpose.msra.mxu0 0.0
        %4532 = vmatprep.subr.mxu0 0.0
        %4533 = vmatpush2.xpose.msra.mxu0 0.0
        %4534 = vmatprep.subr.mxu0 0.0
        %4535 = vmatpush2.xpose.msra.mxu0 0.0
        %4536 = vmatprep.subr.mxu0 0.0
        %4537 = vmatpush2.xpose.msra.mxu0 0.0
        %4538 = vmatprep.subr.mxu0 0.0
        %4539 = vmatpush2.xpose.msra.mxu0 0.0
        %4540 = vmatprep.subr.mxu0 0.0
        %4541 = vmatpush2.xpose.msra.mxu0 0.0
        %4542 = vmatprep.subr.mxu0 0.0
        %4543 = vmatpush2.xpose.msra.mxu0 0.0
        %4544 = vmatprep.subr.mxu0 0.0
        %4545 = vmatpush2.xpose.msra.mxu0 0.0
        %4546 = vmatprep.subr.mxu0 0.0
        %4547 = vmatpush2.xpose.msra.mxu0 0.0
        %4548 = vmatprep.subr.mxu0 0.0
        %4549 = vmatpush2.xpose.msra.mxu0 0.0
        %4550 = vmatprep.subr.mxu0 0.0
        %4551 = vmatpush2.xpose.msra.mxu0 0.0
        %4552 = vmatprep.mubr.f32.mxu0 0.0
        %4553 = vmatmul.mubr.f32.gmra.mxu0 %v4476
        %v4554 = vpop.f32.mrf.mxu0
        %v4555 = vadd.f32 0.0, %v4554
        %v4556 = vpop.f32.mrf.mxu0
        %4557 = vmatprep.mubr.f32.mxu0 0.0
        %4558 = vmatmul.mubr.f32.gmra.mxu0 %v4478
        %v4559 = vpop.f32.mrf.mxu0
        %v4560 = vadd.f32 0.0, %v4559
        %v4561 = vpop.f32.mrf.mxu0
        %4562 = vmatprep.mubr.f32.mxu0 0.0
        %4563 = vmatmul.mubr.f32.gmra.mxu0 %v4480
        %v4564 = vpop.f32.mrf.mxu0
        %v4565 = vadd.f32 0.0, %v4564
        %v4566 = vpop.f32.mrf.mxu0
        %4567 = vdwg.mxu0
        %v4568 = vsel %vm4094, %v4555, -inf
        %4569 = vmax.xlane.f32.xlu0 %v4568
        %v4570 = vpop.xlane.xlu0 %4569
        %v4571 = vsel %vm4094, %v4560, -inf
        %4572 = vmax.xlane.f32.xlu0 %v4571
        %v4573 = vpop.xlane.xlu0 %4572
        %v4574 = vsel %vm4101, %v4565, -inf
        %4575 = vmax.xlane.f32.xlu0 %v4574
        %v4576 = vpop.xlane.xlu0 %4575
        %v4577 = vsub.f32 %v4555, %v4570
        %v4578 = vsub.f32 %v4560, %v4573
        %v4579 = vsub.f32 %v4565, %v4576
        %v4580 = vmul.f32 %v4577, 1.442695
        %v4581 = vpow.pop %v4580
        %v4582 = vmul.f32 %v4578, 1.442695
        %v4583 = vpow.pop %v4582
        %v4584 = vmul.f32 %v4579, 1.442695
        %v4585 = vpow.pop %v4584
        %v4586 = vsel %vm4094, %v4581, 0.0
        %4587 = vadd.xlane.f32.xlu0 %v4586
        %v4588 = vpop.xlane.xlu0 %4587
        %v4589 = vsel %vm4094, %v4583, 0.0
        %4590 = vadd.xlane.f32.xlu0 %v4589
        %v4591 = vpop.xlane.xlu0 %4590
        %v4592 = vsel %vm4101, %v4585, 0.0
        %4593 = vadd.xlane.f32.xlu0 %v4592
        %v4594 = vpop.xlane.xlu0 %4593
        %v4595 = vrcp.pop %v4588
        %v4596 = vrcp.pop %v4591
        %v4597 = vrcp.pop %v4594
        %v4598 = vmul.f32 %v4581, %v4595
        %v4599 = vmul.f32 %v4583, %v4596
        %v4600 = vmul.f32 %v4585, %v4597
        %4601 = vrot.lane.b32.xlu0 %v3973, 88
        %v4602 = vpop.permute.xlu0 %4601
        %4603 = vrot.lane.b32.xlu0 %v3976, 88
        %v4604 = vpop.permute.xlu0 %4603
        %4605 = vrot.lane.b32.xlu0 %v3981, 88
        %v4606 = vpop.permute.xlu0 %4605
        %v4610 = vsel %vm4094, %v4598, 0
        %v4613 = vsel %vm4094, %v4599, 0
        %v4616 = vsel %vm4094, %v4600, 0
        %v4618 = vsel %vm1004, %v4606, 0
        %4620 = vmatprep.subr.mxu0 0.0
        %4621 = vmatpush1.msra.mxu0 0.0
        %4622 = vmatprep.subr.mxu0 0.0
        %4623 = vmatpush1.msra.mxu0 0.0
        %4624 = vmatprep.subr.mxu0 0.0
        %4625 = vmatpush1.msra.mxu0 0.0
        %4626 = vmatprep.subr.mxu0 0.0
        %4627 = vmatpush1.msra.mxu0 0.0
        %4628 = vmatprep.subr.mxu0 0.0
        %4629 = vmatpush1.msra.mxu0 0.0
        %4630 = vmatprep.subr.mxu0 0.0
        %4631 = vmatpush1.msra.mxu0 0.0
        %4632 = vmatprep.subr.mxu0 0.0
        %4633 = vmatpush1.msra.mxu0 0.0
        %4634 = vmatprep.subr.mxu0 0.0
        %4635 = vmatpush1.msra.mxu0 0.0
        %4636 = vmatprep.subr.mxu0 0.0
        %4637 = vmatpush1.msra.mxu0 0.0
        %4638 = vmatprep.subr.mxu0 0.0
        %4639 = vmatpush1.msra.mxu0 0.0
        %4640 = vmatprep.subr.mxu0 0.0
        %4641 = vmatpush1.msra.mxu0 0.0
        %4642 = vmatprep.subr.mxu0 0.0
        %4643 = vmatpush1.msra.mxu0 0.0
        %4644 = vmatprep.subr.mxu0 0.0
        %4645 = vmatpush1.msra.mxu0 0.0
        %4646 = vmatprep.subr.mxu0 0.0
        %4647 = vmatpush1.msra.mxu0 %v4618
        %4648 = vmatprep.subr.mxu0 0.0
        %4649 = vmatpush1.msra.mxu0 %v4604
        %4650 = vmatprep.subr.mxu0 0.0
        %4651 = vmatpush1.msra.mxu0 %v4602
        %4652 = vmatprep.subr.mxu0 0.0
        %4653 = vmatpush2.msra.mxu0 0.0
        %4654 = vmatprep.subr.mxu0 0.0
        %4655 = vmatpush2.msra.mxu0 0.0
        %4656 = vmatprep.subr.mxu0 0.0
        %4657 = vmatpush2.msra.mxu0 0.0
        %4658 = vmatprep.subr.mxu0 0.0
        %4659 = vmatpush2.msra.mxu0 0.0
        %4660 = vmatprep.subr.mxu0 0.0
        %4661 = vmatpush2.msra.mxu0 0.0
        %4662 = vmatprep.subr.mxu0 0.0
        %4663 = vmatpush2.msra.mxu0 0.0
        %4664 = vmatprep.subr.mxu0 0.0
        %4665 = vmatpush2.msra.mxu0 0.0
        %4666 = vmatprep.subr.mxu0 0.0
        %4667 = vmatpush2.msra.mxu0 0.0
        %4668 = vmatprep.subr.mxu0 0.0
        %4669 = vmatpush2.msra.mxu0 0.0
        %4670 = vmatprep.subr.mxu0 0.0
        %4671 = vmatpush2.msra.mxu0 0.0
        %4672 = vmatprep.subr.mxu0 0.0
        %4673 = vmatpush2.msra.mxu0 0.0
        %4674 = vmatprep.subr.mxu0 0.0
        %4675 = vmatpush2.msra.mxu0 0.0
        %4676 = vmatprep.subr.mxu0 0.0
        %4677 = vmatpush2.msra.mxu0 0.0
        %4678 = vmatprep.subr.mxu0 0.0
        %4679 = vmatpush2.msra.mxu0 0.0
        %4680 = vmatprep.subr.mxu0 0.0
        %4681 = vmatpush2.msra.mxu0 0.0
        %4682 = vmatprep.subr.mxu0 0.0
        %4683 = vmatpush2.msra.mxu0 0.0
        %4684 = vmatprep.mubr.f32.mxu0 0.0
        %4685 = vmatmul.mubr.f32.gmra.mxu0 %v4610
        %v4686 = vpop.f32.mrf.mxu0
        %v4687 = vadd.f32 0.0, %v4686
        %v4688 = vpop.f32.mrf.mxu0
        %4689 = vmatprep.mubr.f32.mxu0 0.0
        %4690 = vmatmul.mubr.f32.gmra.mxu0 %v4613
        %v4691 = vpop.f32.mrf.mxu0
        %v4692 = vadd.f32 0.0, %v4691
        %v4693 = vpop.f32.mrf.mxu0
        %4694 = vmatprep.mubr.f32.mxu0 0.0
        %4695 = vmatmul.mubr.f32.gmra.mxu0 %v4616
        %v4696 = vpop.f32.mrf.mxu0
        %v4697 = vadd.f32 0.0, %v4696
        %v4698 = vpop.f32.mrf.mxu0
        %4699 = vdwg.mxu0
        %4700 = vrot.lane.b32.xlu0 %v3986, 116
        %v4701 = vpop.permute.xlu0 %4700
        %4702 = vrot.lane.b32.xlu0 %v3987, 116
        %v4703 = vpop.permute.xlu0 %4702
        %4704 = vrot.lane.b32.xlu0 %v3988, 116
        %v4705 = vpop.permute.xlu0 %4704
        %4706 = vrot.lane.b32.xlu0 %v3973, 100
        %v4707 = vpop.permute.xlu0 %4706
        %4708 = vrot.lane.b32.xlu0 %v3976, 100
        %v4709 = vpop.permute.xlu0 %4708
        %4710 = vrot.lane.b32.xlu0 %v3981, 100
        %v4711 = vpop.permute.xlu0 %4710
        %v4712 = vsel %vm3998, %v4701, 0
        %v4714 = vsel %vm3998, %v4703, 0
        %v4716 = vsel %vm3998, %v4705, 0
        %v4718 = vsel %vm3998, %v4707, 0
        %v4720 = vsel %vm3998, %v4709, 0
        %v4722 = vsel %vm3998, %v4711, 0
        %4724 = vmatprep.subr.mxu0 0.0
        %4725 = vmatpush1.xpose.msra.mxu0 0.0
        %4726 = vmatprep.subr.mxu0 0.0
        %4727 = vmatpush1.xpose.msra.mxu0 0.0
        %4728 = vmatprep.subr.mxu0 0.0
        %4729 = vmatpush1.xpose.msra.mxu0 0.0
        %4730 = vmatprep.subr.mxu0 0.0
        %4731 = vmatpush1.xpose.msra.mxu0 0.0
        %4732 = vmatprep.subr.mxu0 0.0
        %4733 = vmatpush1.xpose.msra.mxu0 0.0
        %4734 = vmatprep.subr.mxu0 0.0
        %4735 = vmatpush1.xpose.msra.mxu0 0.0
        %4736 = vmatprep.subr.mxu0 0.0
        %4737 = vmatpush1.xpose.msra.mxu0 0.0
        %4738 = vmatprep.subr.mxu0 0.0
        %4739 = vmatpush1.xpose.msra.mxu0 0.0
        %4740 = vmatprep.subr.mxu0 0.0
        %4741 = vmatpush1.xpose.msra.mxu0 0.0
        %4742 = vmatprep.subr.mxu0 0.0
        %4743 = vmatpush1.xpose.msra.mxu0 0.0
        %4744 = vmatprep.subr.mxu0 0.0
        %4745 = vmatpush1.xpose.msra.mxu0 0.0
        %4746 = vmatprep.subr.mxu0 0.0
        %4747 = vmatpush1.xpose.msra.mxu0 0.0
        %4748 = vmatprep.subr.mxu0 0.0
        %4749 = vmatpush1.xpose.msra.mxu0 0.0
        %4750 = vmatprep.subr.mxu0 0.0
        %4751 = vmatpush1.xpose.msra.mxu0 %v4722
        %4752 = vmatprep.subr.mxu0 0.0
        %4753 = vmatpush1.xpose.msra.mxu0 %v4720
        %4754 = vmatprep.subr.mxu0 0.0
        %4755 = vmatpush1.xpose.msra.mxu0 %v4718
        %4756 = vmatprep.subr.mxu0 0.0
        %4757 = vmatpush2.xpose.msra.mxu0 0.0
        %4758 = vmatprep.subr.mxu0 0.0
        %4759 = vmatpush2.xpose.msra.mxu0 0.0
        %4760 = vmatprep.subr.mxu0 0.0
        %4761 = vmatpush2.xpose.msra.mxu0 0.0
        %4762 = vmatprep.subr.mxu0 0.0
        %4763 = vmatpush2.xpose.msra.mxu0 0.0
        %4764 = vmatprep.subr.mxu0 0.0
        %4765 = vmatpush2.xpose.msra.mxu0 0.0
        %4766 = vmatprep.subr.mxu0 0.0
        %4767 = vmatpush2.xpose.msra.mxu0 0.0
        %4768 = vmatprep.subr.mxu0 0.0
        %4769 = vmatpush2.xpose.msra.mxu0 0.0
        %4770 = vmatprep.subr.mxu0 0.0
        %4771 = vmatpush2.xpose.msra.mxu0 0.0
        %4772 = vmatprep.subr.mxu0 0.0
        %4773 = vmatpush2.xpose.msra.mxu0 0.0
        %4774 = vmatprep.subr.mxu0 0.0
        %4775 = vmatpush2.xpose.msra.mxu0 0.0
        %4776 = vmatprep.subr.mxu0 0.0
        %4777 = vmatpush2.xpose.msra.mxu0 0.0
        %4778 = vmatprep.subr.mxu0 0.0
        %4779 = vmatpush2.xpose.msra.mxu0 0.0
        %4780 = vmatprep.subr.mxu0 0.0
        %4781 = vmatpush2.xpose.msra.mxu0 0.0
        %4782 = vmatprep.subr.mxu0 0.0
        %4783 = vmatpush2.xpose.msra.mxu0 0.0
        %4784 = vmatprep.subr.mxu0 0.0
        %4785 = vmatpush2.xpose.msra.mxu0 0.0
        %4786 = vmatprep.subr.mxu0 0.0
        %4787 = vmatpush2.xpose.msra.mxu0 0.0
        %4788 = vmatprep.mubr.f32.mxu0 0.0
        %4789 = vmatmul.mubr.f32.gmra.mxu0 %v4712
        %v4790 = vpop.f32.mrf.mxu0
        %v4791 = vadd.f32 0.0, %v4790
        %v4792 = vpop.f32.mrf.mxu0
        %4793 = vmatprep.mubr.f32.mxu0 0.0
        %4794 = vmatmul.mubr.f32.gmra.mxu0 %v4714
        %v4795 = vpop.f32.mrf.mxu0
        %v4796 = vadd.f32 0.0, %v4795
        %v4797 = vpop.f32.mrf.mxu0
        %4798 = vmatprep.mubr.f32.mxu0 0.0
        %4799 = vmatmul.mubr.f32.gmra.mxu0 %v4716
        %v4800 = vpop.f32.mrf.mxu0
        %v4801 = vadd.f32 0.0, %v4800
        %v4802 = vpop.f32.mrf.mxu0
        %4803 = vdwg.mxu0
        %v4804 = vsel %vm4094, %v4791, -inf
        %4805 = vmax.xlane.f32.xlu0 %v4804
        %v4806 = vpop.xlane.xlu0 %4805
        %v4807 = vsel %vm4094, %v4796, -inf
        %4808 = vmax.xlane.f32.xlu0 %v4807
        %v4809 = vpop.xlane.xlu0 %4808
        %v4810 = vsel %vm4101, %v4801, -inf
        %4811 = vmax.xlane.f32.xlu0 %v4810
        %v4812 = vpop.xlane.xlu0 %4811
        %v4813 = vsub.f32 %v4791, %v4806
        %v4814 = vsub.f32 %v4796, %v4809
        %v4815 = vsub.f32 %v4801, %v4812
        %v4816 = vmul.f32 %v4813, 1.442695
        %v4817 = vpow.pop %v4816
        %v4818 = vmul.f32 %v4814, 1.442695
        %v4819 = vpow.pop %v4818
        %v4820 = vmul.f32 %v4815, 1.442695
        %v4821 = vpow.pop %v4820
        %v4822 = vsel %vm4094, %v4817, 0.0
        %4823 = vadd.xlane.f32.xlu0 %v4822
        %v4824 = vpop.xlane.xlu0 %4823
        %v4825 = vsel %vm4094, %v4819, 0.0
        %4826 = vadd.xlane.f32.xlu0 %v4825
        %v4827 = vpop.xlane.xlu0 %4826
        %v4828 = vsel %vm4101, %v4821, 0.0
        %4829 = vadd.xlane.f32.xlu0 %v4828
        %v4830 = vpop.xlane.xlu0 %4829
        %v4831 = vrcp.pop %v4824
        %v4832 = vrcp.pop %v4827
        %v4833 = vrcp.pop %v4830
        %v4834 = vmul.f32 %v4817, %v4831
        %v4835 = vmul.f32 %v4819, %v4832
        %v4836 = vmul.f32 %v4821, %v4833
        %4837 = vrot.lane.b32.xlu0 %v3973, 84
        %v4838 = vpop.permute.xlu0 %4837
        %4839 = vrot.lane.b32.xlu0 %v3976, 84
        %v4840 = vpop.permute.xlu0 %4839
        %4841 = vrot.lane.b32.xlu0 %v3981, 84
        %v4842 = vpop.permute.xlu0 %4841
        %v4846 = vsel %vm4094, %v4834, 0
        %v4849 = vsel %vm4094, %v4835, 0
        %v4852 = vsel %vm4094, %v4836, 0
        %v4854 = vsel %vm1004, %v4842, 0
        %4856 = vmatprep.subr.mxu0 0.0
        %4857 = vmatpush1.msra.mxu0 0.0
        %4858 = vmatprep.subr.mxu0 0.0
        %4859 = vmatpush1.msra.mxu0 0.0
        %4860 = vmatprep.subr.mxu0 0.0
        %4861 = vmatpush1.msra.mxu0 0.0
        %4862 = vmatprep.subr.mxu0 0.0
        %4863 = vmatpush1.msra.mxu0 0.0
        %4864 = vmatprep.subr.mxu0 0.0
        %4865 = vmatpush1.msra.mxu0 0.0
        %4866 = vmatprep.subr.mxu0 0.0
        %4867 = vmatpush1.msra.mxu0 0.0
        %4868 = vmatprep.subr.mxu0 0.0
        %4869 = vmatpush1.msra.mxu0 0.0
        %4870 = vmatprep.subr.mxu0 0.0
        %4871 = vmatpush1.msra.mxu0 0.0
        %4872 = vmatprep.subr.mxu0 0.0
        %4873 = vmatpush1.msra.mxu0 0.0
        %4874 = vmatprep.subr.mxu0 0.0
        %4875 = vmatpush1.msra.mxu0 0.0
        %4876 = vmatprep.subr.mxu0 0.0
        %4877 = vmatpush1.msra.mxu0 0.0
        %4878 = vmatprep.subr.mxu0 0.0
        %4879 = vmatpush1.msra.mxu0 0.0
        %4880 = vmatprep.subr.mxu0 0.0
        %4881 = vmatpush1.msra.mxu0 0.0
        %4882 = vmatprep.subr.mxu0 0.0
        %4883 = vmatpush1.msra.mxu0 %v4854
        %4884 = vmatprep.subr.mxu0 0.0
        %4885 = vmatpush1.msra.mxu0 %v4840
        %4886 = vmatprep.subr.mxu0 0.0
        %4887 = vmatpush1.msra.mxu0 %v4838
        %4888 = vmatprep.subr.mxu0 0.0
        %4889 = vmatpush2.msra.mxu0 0.0
        %4890 = vmatprep.subr.mxu0 0.0
        %4891 = vmatpush2.msra.mxu0 0.0
        %4892 = vmatprep.subr.mxu0 0.0
        %4893 = vmatpush2.msra.mxu0 0.0
        %4894 = vmatprep.subr.mxu0 0.0
        %4895 = vmatpush2.msra.mxu0 0.0
        %4896 = vmatprep.subr.mxu0 0.0
        %4897 = vmatpush2.msra.mxu0 0.0
        %4898 = vmatprep.subr.mxu0 0.0
        %4899 = vmatpush2.msra.mxu0 0.0
        %4900 = vmatprep.subr.mxu0 0.0
        %4901 = vmatpush2.msra.mxu0 0.0
        %4902 = vmatprep.subr.mxu0 0.0
        %4903 = vmatpush2.msra.mxu0 0.0
        %4904 = vmatprep.subr.mxu0 0.0
        %4905 = vmatpush2.msra.mxu0 0.0
        %4906 = vmatprep.subr.mxu0 0.0
        %4907 = vmatpush2.msra.mxu0 0.0
        %4908 = vmatprep.subr.mxu0 0.0
        %4909 = vmatpush2.msra.mxu0 0.0
        %4910 = vmatprep.subr.mxu0 0.0
        %4911 = vmatpush2.msra.mxu0 0.0
        %4912 = vmatprep.subr.mxu0 0.0
        %4913 = vmatpush2.msra.mxu0 0.0
        %4914 = vmatprep.subr.mxu0 0.0
        %4915 = vmatpush2.msra.mxu0 0.0
        %4916 = vmatprep.subr.mxu0 0.0
        %4917 = vmatpush2.msra.mxu0 0.0
        %4918 = vmatprep.subr.mxu0 0.0
        %4919 = vmatpush2.msra.mxu0 0.0
        %4920 = vmatprep.mubr.f32.mxu0 0.0
        %4921 = vmatmul.mubr.f32.gmra.mxu0 %v4846
        %v4922 = vpop.f32.mrf.mxu0
        %v4923 = vadd.f32 0.0, %v4922
        %v4924 = vpop.f32.mrf.mxu0
        %4925 = vmatprep.mubr.f32.mxu0 0.0
        %4926 = vmatmul.mubr.f32.gmra.mxu0 %v4849
        %v4927 = vpop.f32.mrf.mxu0
        %v4928 = vadd.f32 0.0, %v4927
        %v4929 = vpop.f32.mrf.mxu0
        %4930 = vmatprep.mubr.f32.mxu0 0.0
        %4931 = vmatmul.mubr.f32.gmra.mxu0 %v4852
        %v4932 = vpop.f32.mrf.mxu0
        %v4933 = vadd.f32 0.0, %v4932
        %v4934 = vpop.f32.mrf.mxu0
        %4935 = vdwg.mxu0
        %4939 = vrot.lane.b32.xlu0 %v4451, 4
        %v4940 = vpop.permute.xlu0 %4939
        %4941 = vrot.lane.b32.xlu0 %v4456, 4
        %v4942 = vpop.permute.xlu0 %4941
        %4943 = vrot.lane.b32.xlu0 %v4461, 4
        %v4944 = vpop.permute.xlu0 %4943
        %4951 = vrot.lane.b32.xlu0 %v4687, 8
        %v4952 = vpop.permute.xlu0 %4951
        %4953 = vrot.lane.b32.xlu0 %v4692, 8
        %v4954 = vpop.permute.xlu0 %4953
        %4955 = vrot.lane.b32.xlu0 %v4697, 8
        %v4956 = vpop.permute.xlu0 %4955
        %4963 = vrot.lane.b32.xlu0 %v4923, 12
        %v4964 = vpop.permute.xlu0 %4963
        %4965 = vrot.lane.b32.xlu0 %v4928, 12
        %v4966 = vpop.permute.xlu0 %4965
        %4967 = vrot.lane.b32.xlu0 %v4933, 12
        %v4968 = vpop.permute.xlu0 %4967
        %v4972 = vsel %vm3998, %v4215, %v4940
        %v4973 = vsel %vm3998, %v4220, %v4942
        %v4974 = vsel %vm3998, %v4225, %v4944
        %v4975 = vsel %vm1147, %v4972, %v4952
        %v4976 = vsel %vm1147, %v4973, %v4954
        %v4977 = vsel %vm1147, %v4974, %v4956
        %vm4978 = vcmask 97280
        %v4979 = vsel %vm4978, %v4975, %v4964
        %v4980 = vsel %vm4978, %v4976, %v4966
        %v4981 = vsel %vm4978, %v4977, %v4968
        %v4982 = vpack.c.bf16 %v4980, %v4979
        %v4983 = vpack.c.bf16 %v4981, %v4981
        %v4984 = vld [vmem:[%s43] sm:$0xf]
        %v4985 = vld [vmem:[%s43 + $0x4] sm:$0xf]
        %v4987 = vlaneseq
        %v4988 = vshrl.u32 %v4987, 7
        %v4989 = vsub.s32 0, %v4988
        %v4990 = vrot.slane %v3847, %v4989
        %v4994 = vunpack.c.l.b16 %v4984
        %v4995 = vunpack.c.l.b16 %v4985
        %v4996 = vpack.c.b16 %v4995, %v4994
        %v4999 = vsel %vm1975, %v4982, 0
        %v5002 = vsel %vm1975, %v4983, 0
        %5004 = vmatprep.subr.bf16.mxu0 0
        %5005 = vmatpush1.bf16.msra.mxu0 0
        %5006 = vmatprep.subr.bf16.mxu0 0
        %5007 = vmatpush1.bf16.msra.mxu0 0
        %5008 = vmatprep.subr.bf16.mxu0 0
        %5009 = vmatpush1.bf16.msra.mxu0 0
        %5010 = vmatprep.subr.bf16.mxu0 0
        %5011 = vmatpush1.bf16.msra.mxu0 0
        %5012 = vmatprep.subr.bf16.mxu0 0
        %5013 = vmatpush1.bf16.msra.mxu0 0
        %5014 = vmatprep.subr.bf16.mxu0 0
        %5015 = vmatpush1.bf16.msra.mxu0 0
        %5016 = vmatprep.subr.bf16.mxu0 0
        %5017 = vmatpush1.bf16.msra.mxu0 0
        %5018 = vmatprep.subr.bf16.mxu0 0
        %5019 = vmatpush1.bf16.msra.mxu0 %v4996
        %5020 = vmatprep.subr.bf16.mxu0 0
        %5021 = vmatpush2.bf16.msra.mxu0 0
        %5022 = vmatprep.subr.bf16.mxu0 0
        %5023 = vmatpush2.bf16.msra.mxu0 0
        %5024 = vmatprep.subr.bf16.mxu0 0
        %5025 = vmatpush2.bf16.msra.mxu0 0
        %5026 = vmatprep.subr.bf16.mxu0 0
        %5027 = vmatpush2.bf16.msra.mxu0 0
        %5028 = vmatprep.subr.bf16.mxu0 0
        %5029 = vmatpush2.bf16.msra.mxu0 0
        %5030 = vmatprep.subr.bf16.mxu0 0
        %5031 = vmatpush2.bf16.msra.mxu0 0
        %5032 = vmatprep.subr.bf16.mxu0 0
        %5033 = vmatpush2.bf16.msra.mxu0 0
        %5034 = vmatprep.subr.bf16.mxu0 0
        %5035 = vmatpush2.bf16.msra.mxu0 0
        %5036 = vmatprep.mubr.bf16.mxu0 0
        %5037 = vmatmul.mubr.bf16.gmra.mxu0 %v4999
        %v5038 = vpop.f32.mrf.mxu0
        %v5039 = vadd.f32 %v4990, %v5038
        %v5040 = vpop.f32.mrf.mxu0
        %v5041 = vpop.f32.mrf.mxu0
        %v5042 = vadd.f32 %v4990, %v5041
        %v5043 = vpop.f32.mrf.mxu0
        %5044 = vmatprep.mubr.bf16.mxu0 0
        %5045 = vmatmul.mubr.bf16.gmra.mxu0 %v5002
        %v5046 = vpop.f32.mrf.mxu0
        %v5047 = vadd.f32 %v4990, %v5046
        %v5048 = vpop.f32.mrf.mxu0
        %v5049 = vpop.f32.mrf.mxu0
        %v5050 = vpop.f32.mrf.mxu0
        %5051 = vdwg.mxu0
        %v5053 = vlaneseq
        %v5054 = vshrl.u32 %v5053, 7
        %v5055 = vsub.s32 0, %v5054
        %v5056 = vrot.slane %v3845, %v5055
        %v5058 = vmul.f32 %v5056, %v5039
        %v5059 = vmul.f32 %v5056, %v5042
        %v5060 = vmul.f32 %v5056, %v5047
        %v5061 = vadd.f32 %v3840, %v5058
        %v5062 = vadd.f32 %v3836, %v5059
        %v5063 = vadd.f32 %v3835, %v5060
        %v5064 = vsel %vm1975, %v5061, 0.0
        %5065 = vadd.xlane.f32.xlu0 %v5064
        %v5066 = vpop.xlane.xlu0 %5065
        %v5067 = vsel %vm1975, %v5062, 0.0
        %5068 = vadd.xlane.f32.xlu0 %v5067
        %v5069 = vpop.xlane.xlu0 %5068
        %v5070 = vsel %vm3862, %v5063, 0.0
        %5071 = vadd.xlane.f32.xlu0 %v5070
        %v5072 = vpop.xlane.xlu0 %5071
        %v5073 = vmul.f32 %v5066, %v3866
        %v5074 = vmul.f32 %v5069, %v3866
        %v5075 = vmul.f32 %v5072, %v3866
        %v5076 = vsub.f32 %v5061, %v5073
        %v5077 = vsub.f32 %v5062, %v5074
        %v5078 = vsub.f32 %v5063, %v5075
        %v5079 = vmul.f32 %v5076, %v5076
        %v5080 = vmul.f32 %v5077, %v5077
        %v5081 = vmul.f32 %v5078, %v5078
        %v5082 = vsel %vm1975, %v5079, 0.0
        %5083 = vadd.xlane.f32.xlu0 %v5082
        %v5084 = vpop.xlane.xlu0 %5083
        %v5085 = vsel %vm1975, %v5080, 0.0
        %5086 = vadd.xlane.f32.xlu0 %v5085
        %v5087 = vpop.xlane.xlu0 %5086
        %v5088 = vsel %vm3862, %v5081, 0.0
        %5089 = vadd.xlane.f32.xlu0 %v5088
        %v5090 = vpop.xlane.xlu0 %5089
        %v5091 = vmul.f32 %v5084, %v3866
        %v5092 = vmul.f32 %v5087, %v3866
        %v5093 = vmul.f32 %v5090, %v3866
        %v5094 = vadd.f32 %v5091, 1e-05
        %v5095 = vadd.f32 %v5092, 1e-05
        %v5096 = vadd.f32 %v5093, 1e-05
        %v5097 = vrsqrt.pop %v5094
        %v5098 = vrsqrt.pop %v5095
        %v5099 = vrsqrt.pop %v5096
        %v5100 = vmul.f32 %v5076, %v5097
        %v5101 = vmul.f32 %v5077, %v5098
        %v5102 = vmul.f32 %v5078, %v5099
        %v5104 = vlaneseq
        %v5105 = vshrl.u32 %v5104, 7
        %v5106 = vsub.s32 0, %v5105
        %v5107 = vrot.slane %v3849, %v5106
        %v5109 = vmul.f32 %v5100, %v5107
        %v5110 = vmul.f32 %v5101, %v5107
        %v5111 = vmul.f32 %v5102, %v5107
        %v5113 = vlaneseq
        %v5114 = vshrl.u32 %v5113, 7
        %v5115 = vsub.s32 0, %v5114
        %v5116 = vrot.slane %v3851, %v5115
        %v5118 = vadd.f32 %v5109, %v5116
        %v5119 = vadd.f32 %v5110, %v5116
        %v5120 = vadd.f32 %v5111, %v5116
        %v5121 = vpack.c.bf16 %v5119, %v5118
        %v5122 = vpack.c.bf16 %v5120, %v5120
        %v5123 = vld [vmem:[%s45] sm:$0xf]
        %v5124 = vld [vmem:[%s45 + $0x4] sm:$0xf]
        %v5125 = vld [vmem:[%s47] sm:$0x1]
        %v5127 = vlaneseq
        %v5128 = vshrl.u32 %v5127, 7
        %v5129 = vsub.s32 0, %v5128
        %v5130 = vrot.slane %v5125, %v5129
        %v5134 = vunpack.c.l.b16 %v5123
        %v5135 = vunpack.c.l.b16 %v5124
        %v5136 = vpack.c.b16 %v5135, %v5134
        %v5139 = vsel %vm1975, %v5121, 0
        %v5142 = vsel %vm1975, %v5122, 0
        %5144 = vmatprep.subr.bf16.mxu0 0
        %5145 = vmatpush1.bf16.msra.mxu0 0
        %5146 = vmatprep.subr.bf16.mxu0 0
        %5147 = vmatpush1.bf16.msra.mxu0 0
        %5148 = vmatprep.subr.bf16.mxu0 0
        %5149 = vmatpush1.bf16.msra.mxu0 0
        %5150 = vmatprep.subr.bf16.mxu0 0
        %5151 = vmatpush1.bf16.msra.mxu0 0
        %5152 = vmatprep.subr.bf16.mxu0 0
        %5153 = vmatpush1.bf16.msra.mxu0 0
        %5154 = vmatprep.subr.bf16.mxu0 0
        %5155 = vmatpush1.bf16.msra.mxu0 0
        %5156 = vmatprep.subr.bf16.mxu0 0
        %5157 = vmatpush1.bf16.msra.mxu0 0
        %5158 = vmatprep.subr.bf16.mxu0 0
        %5159 = vmatpush1.bf16.msra.mxu0 %v5136
        %5160 = vmatprep.subr.bf16.mxu0 0
        %5161 = vmatpush2.bf16.msra.mxu0 0
        %5162 = vmatprep.subr.bf16.mxu0 0
        %5163 = vmatpush2.bf16.msra.mxu0 0
        %5164 = vmatprep.subr.bf16.mxu0 0
        %5165 = vmatpush2.bf16.msra.mxu0 0
        %5166 = vmatprep.subr.bf16.mxu0 0
        %5167 = vmatpush2.bf16.msra.mxu0 0
        %5168 = vmatprep.subr.bf16.mxu0 0
        %5169 = vmatpush2.bf16.msra.mxu0 0
        %5170 = vmatprep.subr.bf16.mxu0 0
        %5171 = vmatpush2.bf16.msra.mxu0 0
        %5172 = vmatprep.subr.bf16.mxu0 0
        %5173 = vmatpush2.bf16.msra.mxu0 0
        %5174 = vmatprep.subr.bf16.mxu0 0
        %5175 = vmatpush2.bf16.msra.mxu0 0
        %5176 = vmatprep.mubr.bf16.mxu0 0
        %5177 = vmatmul.mubr.bf16.gmra.mxu0 %v5139
        %v5178 = vpop.f32.mrf.mxu0
        %v5179 = vadd.f32 %v5130, %v5178
        %v5180 = vpop.f32.mrf.mxu0
        %v5181 = vpop.f32.mrf.mxu0
        %v5182 = vadd.f32 %v5130, %v5181
        %v5183 = vpop.f32.mrf.mxu0
        %5184 = vmatprep.mubr.bf16.mxu0 0
        %5185 = vmatmul.mubr.bf16.gmra.mxu0 %v5142
        %v5186 = vpop.f32.mrf.mxu0
        %v5187 = vadd.f32 %v5130, %v5186
        %v5188 = vpop.f32.mrf.mxu0
        %v5189 = vpop.f32.mrf.mxu0
        %v5190 = vpop.f32.mrf.mxu0
        %5191 = vdwg.mxu0
        %v5192 = vmul.f32 %v5179, 0.5
        %v5193 = vmul.f32 %v5182, 0.5
        %v5194 = vmul.f32 %v5187, 0.5
        %v5195 = vmul.f32 %v5179, 0.044715
        %v5196 = vmul.f32 %v5182, 0.044715
        %v5197 = vmul.f32 %v5187, 0.044715
        %v5198 = vmul.f32 %v5195, %v5179
        %v5199 = vmul.f32 %v5196, %v5182
        %v5200 = vmul.f32 %v5197, %v5187
        %v5201 = vmul.f32 %v5198, %v5179
        %v5202 = vmul.f32 %v5199, %v5182
        %v5203 = vmul.f32 %v5200, %v5187
        %v5204 = vadd.f32 %v5179, %v5201
        %v5205 = vadd.f32 %v5182, %v5202
        %v5206 = vadd.f32 %v5187, %v5203
        %v5207 = vmul.f32 %v5204, 0.7978846
        %v5208 = vmul.f32 %v5205, 0.7978846
        %v5209 = vmul.f32 %v5206, 0.7978846
        %v5210 = vtanh.pop %v5207
        %v5211 = vtanh.pop %v5208
        %v5212 = vtanh.pop %v5209
        %v5213 = vadd.f32 %v5210, 1.0
        %v5214 = vadd.f32 %v5211, 1.0
        %v5215 = vadd.f32 %v5212, 1.0
        %v5216 = vmul.f32 %v5192, %v5213
        %v5217 = vmul.f32 %v5193, %v5214
        %v5218 = vmul.f32 %v5194, %v5215
        %v5219 = vpack.c.bf16 %v5217, %v5216
        %v5220 = vpack.c.bf16 %v5218, %v5218
        %v5221 = vld [vmem:[%s49] sm:$0xf]
        %v5222 = vld [vmem:[%s49 + $0x4] sm:$0xf]
        %v5223 = vld [vmem:[%s49 + $0x8] sm:$0xf]
        %v5224 = vld [vmem:[%s49 + $0xc] sm:$0xf]
        %v5225 = vld [vmem:[%s49 + $0x10] sm:$0xf]
        %v5226 = vld [vmem:[%s49 + $0x14] sm:$0xf]
        %v5227 = vld [vmem:[%s49 + $0x18] sm:$0xf]
        %v5228 = vld [vmem:[%s49 + $0x1c] sm:$0xf]
        %v5230 = vlaneseq
        %v5231 = vshrl.u32 %v5230, 7
        %v5232 = vsub.s32 0, %v5231
        %v5233 = vrot.slane %v3855, %v5232
        %v5243 = vunpack.c.l.b16 %v5221
        %v5244 = vunpack.c.l.b16 %v5222
        %v5245 = vunpack.c.l.b16 %v5223
        %v5246 = vunpack.c.l.b16 %v5224
        %v5247 = vunpack.c.l.b16 %v5225
        %v5248 = vunpack.c.l.b16 %v5226
        %v5249 = vunpack.c.l.b16 %v5227
        %v5250 = vunpack.c.l.b16 %v5228
        %v5251 = vpack.c.b16 %v5244, %v5243
        %v5252 = vpack.c.b16 %v5246, %v5245
        %v5253 = vpack.c.b16 %v5248, %v5247
        %v5254 = vpack.c.b16 %v5250, %v5249
        %vm5259 = vcmask 523264
        %v5261 = vsel %vm5259, %v5219, 0
        %v5264 = vsel %vm5259, %v5220, 0
        %5266 = vmatprep.subr.bf16.mxu0 0
        %5267 = vmatpush1.bf16.msra.mxu0 0
        %5268 = vmatprep.subr.bf16.mxu0 0
        %5269 = vmatpush1.bf16.msra.mxu0 0
        %5270 = vmatprep.subr.bf16.mxu0 0
        %5271 = vmatpush1.bf16.msra.mxu0 0
        %5272 = vmatprep.subr.bf16.mxu0 0
        %5273 = vmatpush1.bf16.msra.mxu0 0
        %5274 = vmatprep.subr.bf16.mxu0 0
        %5275 = vmatpush1.bf16.msra.mxu0 %v5254
        %5276 = vmatprep.subr.bf16.mxu0 0
        %5277 = vmatpush1.bf16.msra.mxu0 %v5253
        %5278 = vmatprep.subr.bf16.mxu0 0
        %5279 = vmatpush1.bf16.msra.mxu0 %v5252
        %5280 = vmatprep.subr.bf16.mxu0 0
        %5281 = vmatpush1.bf16.msra.mxu0 %v5251
        %5282 = vmatprep.subr.bf16.mxu0 0
        %5283 = vmatpush2.bf16.msra.mxu0 0
        %5284 = vmatprep.subr.bf16.mxu0 0
        %5285 = vmatpush2.bf16.msra.mxu0 0
        %5286 = vmatprep.subr.bf16.mxu0 0
        %5287 = vmatpush2.bf16.msra.mxu0 0
        %5288 = vmatprep.subr.bf16.mxu0 0
        %5289 = vmatpush2.bf16.msra.mxu0 0
        %5290 = vmatprep.subr.bf16.mxu0 0
        %5291 = vmatpush2.bf16.msra.mxu0 0
        %5292 = vmatprep.subr.bf16.mxu0 0
        %5293 = vmatpush2.bf16.msra.mxu0 0
        %5294 = vmatprep.subr.bf16.mxu0 0
        %5295 = vmatpush2.bf16.msra.mxu0 0
        %5296 = vmatprep.subr.bf16.mxu0 0
        %5297 = vmatpush2.bf16.msra.mxu0 0
        %5298 = vmatprep.mubr.bf16.mxu0 0
        %5299 = vmatmul.mubr.bf16.gmra.mxu0 %v5261
        %v5300 = vpop.f32.mrf.mxu0
        %v5301 = vadd.f32 %v5233, %v5300
        %v5302 = vpop.f32.mrf.mxu0
        %v5303 = vpop.f32.mrf.mxu0
        %v5304 = vadd.f32 %v5233, %v5303
        %v5305 = vpop.f32.mrf.mxu0
        %5306 = vmatprep.mubr.bf16.mxu0 0
        %5307 = vmatmul.mubr.bf16.gmra.mxu0 %v5264
        %v5308 = vpop.f32.mrf.mxu0
        %v5309 = vadd.f32 %v5233, %v5308
        %v5310 = vpop.f32.mrf.mxu0
        %v5311 = vpop.f32.mrf.mxu0
        %v5312 = vpop.f32.mrf.mxu0
        %5313 = vdwg.mxu0
        %v5315 = vlaneseq
        %v5316 = vshrl.u32 %v5315, 7
        %v5317 = vsub.s32 0, %v5316
        %v5318 = vrot.slane %v3853, %v5317
        %v5320 = vmul.f32 %v5318, %v5301
        %v5321 = vmul.f32 %v5318, %v5304
        %v5322 = vmul.f32 %v5318, %v5309
        %v5323 = vadd.f32 %v5061, %v5320
        %v5324 = vadd.f32 %v5062, %v5321
        %v5325 = vadd.f32 %v5063, %v5322
        %v5326 = vld [vmem:[%s51] sm:$0x1]
        %v5327 = vld [vmem:[%s53] sm:$0x1]
        %vm5328 = vcmask 130049
        %v5329 = vsel %vm5328, %v5323, 0.0
        %5330 = vadd.xlane.f32.xlu0 %v5329
        %v5331 = vpop.xlane.xlu0 %5330
        %v5332 = vsel %vm1975, %v5324, 0.0
        %5333 = vadd.xlane.f32.xlu0 %v5332
        %v5334 = vpop.xlane.xlu0 %5333
        %v5335 = vsel %vm3862, %v5325, 0.0
        %5336 = vadd.xlane.f32.xlu0 %v5335
        %v5337 = vpop.xlane.xlu0 %5336
        %v5338 = vmul.f32 %v5331, %v3866
        %v5339 = vmul.f32 %v5334, %v3866
        %v5340 = vmul.f32 %v5337, %v3866
        %v5341 = vsub.f32 %v5323, %v5338
        %v5342 = vsub.f32 %v5324, %v5339
        %v5343 = vsub.f32 %v5325, %v5340
        %v5344 = vmul.f32 %v5341, %v5341
        %v5345 = vmul.f32 %v5342, %v5342
        %v5346 = vmul.f32 %v5343, %v5343
        %v5347 = vsel %vm5328, %v5344, 0.0
        %5348 = vadd.xlane.f32.xlu0 %v5347
        %v5349 = vpop.xlane.xlu0 %5348
        %v5350 = vsel %vm1975, %v5345, 0.0
        %5351 = vadd.xlane.f32.xlu0 %v5350
        %v5352 = vpop.xlane.xlu0 %5351
        %v5353 = vsel %vm3862, %v5346, 0.0
        %5354 = vadd.xlane.f32.xlu0 %v5353
        %v5355 = vpop.xlane.xlu0 %5354
        %v5356 = vmul.f32 %v5349, %v3866
        %v5357 = vmul.f32 %v5352, %v3866
        %v5358 = vmul.f32 %v5355, %v3866
        %v5359 = vadd.f32 %v5356, 1e-05
        %v5360 = vadd.f32 %v5357, 1e-05
        %v5361 = vadd.f32 %v5358, 1e-05
        %v5362 = vrsqrt.pop %v5359
        %v5363 = vrsqrt.pop %v5360
        %v5364 = vrsqrt.pop %v5361
        %v5365 = vmul.f32 %v5341, %v5362
        %v5366 = vmul.f32 %v5342, %v5363
        %v5367 = vmul.f32 %v5343, %v5364
        %v5369 = vlaneseq
        %v5370 = vshrl.u32 %v5369, 7
        %v5371 = vsub.s32 0, %v5370
        %v5372 = vrot.slane %v5326, %v5371
        %v5374 = vmul.f32 %v5365, %v5372
        %v5375 = vmul.f32 %v5366, %v5372
        %v5376 = vmul.f32 %v5367, %v5372
        %v5378 = vlaneseq
        %v5379 = vshrl.u32 %v5378, 7
        %v5380 = vsub.s32 0, %v5379
        %v5381 = vrot.slane %v5327, %v5380
        %v5383 = vadd.f32 %v5374, %v5381
        %v5384 = vadd.f32 %v5375, %v5381
        %v5385 = vadd.f32 %v5376, %v5381
        %v5386 = vpack.c.bf16 %v5384, %v5383
        %v5387 = vpack.c.bf16 %v5385, %v5385
        %v5388 = vld [vmem:[%s55] sm:$0xf]
        %v5389 = vld [vmem:[%s55 + $0x4] sm:$0xf]
        %v5390 = vld [vmem:[%s57] sm:$0x1]
        %v5392 = vlaneseq
        %v5393 = vshrl.u32 %v5392, 7
        %v5394 = vsub.s32 0, %v5393
        %v5395 = vrot.slane %v5390, %v5394
        %vm5397 = vsmask.f32 7424
        %v5399 = vshrl.u32 %v5386, 16
        %v5401 = vshll.u32 %v5386, 16
        %v5403 = vrot.slane %v5401, 1
        %v5404 = vor.u32 %v5399, %v5403
        %v5406 = vshll.u32 %v5387, 16
        %v5408 = vrot.slane %v5406, 1
        %v5409 = vsel %vm5397, %v5404, %v5408
        %v5412 = vunpack.c.l.b16 %v5388
        %v5413 = vunpack.c.l.b16 %v5389
        %v5414 = vpack.c.b16 %v5413, %v5412
        %v5417 = vsel %vm1975, %v5409, 0
        %5419 = vmatprep.subr.bf16.mxu0 0
        %5420 = vmatpush1.bf16.msra.mxu0 0
        %5421 = vmatprep.subr.bf16.mxu0 0
        %5422 = vmatpush1.bf16.msra.mxu0 0
        %5423 = vmatprep.subr.bf16.mxu0 0
        %5424 = vmatpush1.bf16.msra.mxu0 0
        %5425 = vmatprep.subr.bf16.mxu0 0
        %5426 = vmatpush1.bf16.msra.mxu0 0
        %5427 = vmatprep.subr.bf16.mxu0 0
        %5428 = vmatpush1.bf16.msra.mxu0 0
        %5429 = vmatprep.subr.bf16.mxu0 0
        %5430 = vmatpush1.bf16.msra.mxu0 0
        %5431 = vmatprep.subr.bf16.mxu0 0
        %5432 = vmatpush1.bf16.msra.mxu0 0
        %5433 = vmatprep.subr.bf16.mxu0 0
        %5434 = vmatpush1.bf16.msra.mxu0 %v5414
        %5435 = vmatprep.subr.bf16.mxu0 0
        %5436 = vmatpush2.bf16.msra.mxu0 0
        %5437 = vmatprep.subr.bf16.mxu0 0
        %5438 = vmatpush2.bf16.msra.mxu0 0
        %5439 = vmatprep.subr.bf16.mxu0 0
        %5440 = vmatpush2.bf16.msra.mxu0 0
        %5441 = vmatprep.subr.bf16.mxu0 0
        %5442 = vmatpush2.bf16.msra.mxu0 0
        %5443 = vmatprep.subr.bf16.mxu0 0
        %5444 = vmatpush2.bf16.msra.mxu0 0
        %5445 = vmatprep.subr.bf16.mxu0 0
        %5446 = vmatpush2.bf16.msra.mxu0 0
        %5447 = vmatprep.subr.bf16.mxu0 0
        %5448 = vmatpush2.bf16.msra.mxu0 0
        %5449 = vmatprep.subr.bf16.mxu0 0
        %5450 = vmatpush2.bf16.msra.mxu0 0
        %5451 = vmatprep.mubr.bf16.mxu0 0
        %5452 = vmatmul.mubr.bf16.gmra.mxu0 %v5417
        %v5453 = vpop.f32.mrf.mxu0
        %v5454 = vadd.f32 %v5395, %v5453
        %v5455 = vpop.f32.mrf.mxu0
        %v5456 = vpop.f32.mrf.mxu0
        %v5457 = vadd.f32 %v5395, %v5456
        %v5458 = vpop.f32.mrf.mxu0
        %5459 = vdwg.mxu0
        %5460 = vst [vmem:[%s910] sm:$0xff] %v5454
        %5461 = vst [vmem:[%s910 + $0x8] sm:$0xff] %v5457
        %s5462 = sand.u32 %s700, 1
        %s5463 = scalar_lea.sflag [#allocation3], %s5462
        %s5464 = sand.u32 %s700, 1
        %s5465 = smul.addr %s5464, 16
        %s5466 = scalar_lea.vmem [#allocation2], %s5465
        // Predicated region
        $region137: #{mae_forward.1} parent=135 // pred_check
          %p5467 = pneg %p710
        $region138: #{mae_forward.1} parent=135 // pred_check_branch
          %5469 = sbr.rel (%p5467) target = $region140
        $region139: #{mae_forward.1} parent=135 // pred_region
          %s5471 = ssub.s32 256, 256
          %5472 = vsyncadd %s5463, %s5471
          %s5473 = smul.addr %s73, 2
          %s5474 = smul.addr %s5473, 128
          %s5475 = scalar_lea.hbm %s59, %s5474
          %s5476 = sshll.u32 %s5466, 4
          %s5477 = int_to_ptr.vmem [resolvable:$true] %s5476
          %5482 = dma.vmem_to_hbm [thread:$0]  %s5477, 256, %s5475, %s5463, 128, 128, 8
        $region140: #{mae_forward.1} parent=135 // pred_fallthru
          _
      $region136: #{mae_forward.1} parent=5 // pred_fallthru
        _
      %p5483 = scmp.le.s32.totalorder 2, %s68
      // Predicated region
      $region141: #{mae_forward.1} parent=5 // pred_check
        %p5484 = pneg %p5483
      $region142: #{mae_forward.1} parent=5 // pred_check_branch
        %5486 = sbr.rel (%p5484) target = $region144
      $region143: #{mae_forward.1} parent=5 // pred_region
        %s5487 = ssub.s32 %s68, 2
        // Predicated region
        $region145: #{mae_forward.1} parent=143 // pred_check
          %p5488 = pneg %p716
        $region146: #{mae_forward.1} parent=143 // pred_check_branch
          %5490 = sbr.rel (%p5488) target = $region148
        $region147: #{mae_forward.1} parent=143 // pred_region
          %s5491 = sand.u32 %s701, 1
          %s5492 = scalar_lea.sflag [#allocation3], %s5491
          %s5493 = sand.u32 %s701, 1
          %s5494 = smul.addr %s5493, 16
          %s5495 = scalar_lea.vmem [#allocation2], %s5494
          %5496 = dma.done %s5492, 256
        $region148: #{mae_forward.1} parent=143 // pred_fallthru
          _
      $region144: #{mae_forward.1} parent=5 // pred_fallthru
        _
    $region6: #{mae_forward.1} parent=1 // loop_footer
      %s72 = sadd.s32 1, %s68
    $region7: #{mae_forward.1} parent=1 // loop_footer_branch
      %67 = sbr.rel target = $region3
    $region8: #{mae_forward.1} parent=1 // loop_exit
      _
    %5497 = vsyncpa [#allocation3], 1
    %s5498 = scalar_lea.sflag [#allocation3], 1
    %5499 = vsyncpa %s5498, 1

</llo_original>
